<compile_context>
chip_gen: v6e
topology: v6e:2x2x1
jax: 0.10.0
libtpu: 0.0.40
codegen_flags: <defaults>
</compile_context>

<pallas_src>
import functools

import jax
import jax.numpy as jnp
from jax.experimental import pallas as pl
from jax.experimental.pallas import tpu as pltpu

# ------------------------- synthetic BART config -------------------------
VOCAB = 128
D_MODEL = 32
NUM_HEADS = 4
HEAD_DIM = D_MODEL // NUM_HEADS
FFN_DIM = 64
MAX_POS = 64
PAD_ID = 0
DEC_START_ID = 2
NEG_INF = -1e9
ATTN_SCALE = 1.0 / (HEAD_DIM ** 0.5)


# ----------------------------- kernel helpers -----------------------------
def _bdot(a, b):
    """Matmul with bf16 operands, f32 accumulation."""
    return jnp.dot(a.astype(jnp.bfloat16), b.astype(jnp.bfloat16),
                   preferred_element_type=jnp.float32)


def _bdot_t(a, b):
    """a @ b^T (contract last dims) with bf16 operands, f32 accumulation."""
    return jax.lax.dot_general(
        a.astype(jnp.bfloat16), b.astype(jnp.bfloat16),
        dimension_numbers=(((1,), (1,)), ((), ())),
        preferred_element_type=jnp.float32)


def _ln(x, g, b):
    mu = jnp.mean(x, axis=-1, keepdims=True)
    var = jnp.mean((x - mu) ** 2, axis=-1, keepdims=True)
    return (x - mu) * jax.lax.rsqrt(var + 1e-5) * g + b


def _mha_block(x_q, x_kv, key_bias, qw, qb, kw, kb, vw, vb, ow, ob,
               *, causal, scale):
    """Fused multi-head attention + output projection.

    x_q: (Lq, D) f32, x_kv: (Lk, D) f32, key_bias: (1, Lk) f32 additive.
    qw/kw/vw: (H, D, Dh) refs, qb/kb/vb: (H, 1, Dh) refs,
    ow: (H, Dh, D) ref, ob: (1, D) ref.
    The O projection is accumulated per head (no lane-dim concat needed).
    """
    Lq = x_q.shape[0]
    Lk = x_kv.shape[0]
    H = qw.shape[0]
    if causal:
        row = jax.lax.broadcasted_iota(jnp.int32, (Lq, Lk), 0)
        col = jax.lax.broadcasted_iota(jnp.int32, (Lq, Lk), 1)
        causal_bias = jnp.where(row >= col, 0.0, NEG_INF).astype(jnp.float32)
    else:
        causal_bias = jnp.float32(0.0)

    out = jnp.zeros((Lq, ow.shape[-1]), jnp.float32)
    for h in range(H):  # H=4, statically unrolled
        qh = _bdot(x_q, qw[h]) + qb[h]          # (Lq, Dh)
        kh = _bdot(x_kv, kw[h]) + kb[h]         # (Lk, Dh)
        vh = _bdot(x_kv, vw[h]) + vb[h]         # (Lk, Dh)
        s = _bdot_t(qh, kh) * scale + key_bias + causal_bias   # (Lq, Lk)
        m = jnp.max(s, axis=-1, keepdims=True)
        p = jnp.exp(s - m)
        p = p * pl.reciprocal(jnp.sum(p, axis=-1, keepdims=True), approx=True)
        out = out + _bdot(_bdot(p, vh), ow[h])  # fold O-proj into epilogue
    return out + ob[...]


# ----------------------------- fused layer kernels -----------------------------
def _encoder_layer_kernel(
    x_ref, kbias_ref,
    embg_ref, embb_ref,
    qw_ref, qb_ref, kw_ref, kb_ref, vw_ref, vb_ref, ow_ref, ob_ref,
    sag_ref, sab_ref,
    w1_ref, b1_ref, w2_ref, b2_ref,
    fing_ref, finb_ref,
    o_ref,
):
    x = _ln(x_ref[0], embg_ref[...], embb_ref[...])          # (S, D)
    attn = _mha_block(x, x, kbias_ref[0],
                      qw_ref, qb_ref, kw_ref, kb_ref, vw_ref, vb_ref,
                      ow_ref, ob_ref, causal=False, scale=ATTN_SCALE)
    x = _ln(x + attn, sag_ref[...], sab_ref[...])
    h = _bdot(x, w1_ref[...]) + b1_ref[...]
    # TODO(synk): PyTorch BART uses exact (erf) GELU; tanh approximation here.
    h = jax.nn.gelu(h, approximate=True)
    h = _bdot(h, w2_ref[...]) + b2_ref[...]
    o_ref[0] = _ln(x + h, fing_ref[...], finb_ref[...])


def _decoder_fused_kernel(
    x_ref, skbias_ref, ench_ref, ckbias_ref, ids_ref,
    embg_ref, embb_ref,
    sqw_ref, sqb_ref, skw_ref, skb_ref, svw_ref, svb_ref, sow_ref, sob_ref,
    sag_ref, sab_ref,
    cqw_ref, cqb_ref, ckw_ref, ckb_ref, cvw_ref, cvb_ref, cow_ref, cob_ref,
    cag_ref, cab_ref,
    w1_ref, b1_ref, w2_ref, b2_ref,
    fing_ref, finb_ref,
    lmw_ref, flb_ref,
    score_ref, probs_ref,
    *, length_penalty, pad_id,
):
    """Decoder layer + lm_head + log_softmax + gather + length-penalty score.

    Gridded over (batch b, candidate c).  The candidate-0 raw logits ("probs")
    output block stays resident across the c axis and is written only at c==0.
    """
    c = pl.program_id(1)

    # ---- decoder transformer layer ----
    x = _ln(x_ref[0], embg_ref[...], embb_ref[...])          # (L, D)
    # masked causal self-attention (causal mask built in-kernel)
    attn = _mha_block(x, x, skbias_ref[0],
                      sqw_ref, sqb_ref, skw_ref, skb_ref, svw_ref, svb_ref,
                      sow_ref, sob_ref, causal=True, scale=ATTN_SCALE)
    x = _ln(x + attn, sag_ref[...], sab_ref[...])
    # cross attention over (shared, not repeated) encoder states
    enc = ench_ref[0]                                        # (S, D)
    attn = _mha_block(x, enc, ckbias_ref[0],
                      cqw_ref, cqb_ref, ckw_ref, ckb_ref, cvw_ref, cvb_ref,
                      cow_ref, cob_ref, causal=False, scale=ATTN_SCALE)
    x = _ln(x + attn, cag_ref[...], cab_ref[...])
    h = _bdot(x, w1_ref[...]) + b1_ref[...]
    h = jax.nn.gelu(h, approximate=True)
    h = _bdot(h, w2_ref[...]) + b2_ref[...]
    dec_h = _ln(x + h, fing_ref[...], finb_ref[...])         # (L, D)

    # ---- lm_head logits (full sequence; never leaves VMEM except probs) ----
    logits = _bdot(dec_h, lmw_ref[...]) + flb_ref[...]       # (L, V) f32

    # raw logits of candidate 0 only (the PyTorch "probs" output)
    @pl.when(c == 0)
    def _():
        probs_ref[0] = logits

    # ---- score: log_softmax + gather(candidate ids) + masked len-penalty ----
    L = logits.shape[0]
    lg = logits[:L - 1]                                      # drop last position
    m = jnp.max(lg, axis=-1, keepdims=True)
    lse = m + jnp.log(jnp.sum(jnp.exp(lg - m), axis=-1, keepdims=True))
    ids = ids_ref[0]                                         # (L-1, 1) int32
    iota_v = jax.lax.broadcasted_iota(jnp.int32, lg.shape, 1)
    tok_logit = jnp.sum(jnp.where(iota_v == ids, lg, 0.0),
                        axis=-1, keepdims=True)              # gather raw logit
    tok_lp = tok_logit - lse                                 # (L-1, 1) log-prob
    mask = (ids != pad_id).astype(jnp.float32)
    num = jnp.sum(tok_lp * mask, axis=0, keepdims=True)      # (1, 1)
    den = jnp.sum(mask, axis=0, keepdims=True)               # (1, 1)
    # clamp: avoids NaN for an all-pad continuation (den == 0)
    den = jnp.maximum(den, 1.0)
    den_pow = jnp.exp(length_penalty * jnp.log(den))         # den ** length_penalty
    score_ref[0] = num / den_pow


# ----------------------------- pallas_call wrappers -----------------------------
def _rep_spec(arr):
    """Full-array block replicated across the grid (weights)."""
    shape = tuple(arr.shape)
    return pl.BlockSpec(shape, lambda *_: (0,) * len(shape))


def encoder_layer(x_emb, key_bias, wts):
    B, S, D = x_emb.shape
    in_specs = [
        pl.BlockSpec((1, S, D), lambda i: (i, 0, 0)),
        pl.BlockSpec((1, 1, S), lambda i: (i, 0, 0)),
    ] + [_rep_spec(w) for w in wts]
    return pl.pallas_call(
        _encoder_layer_kernel,
        out_shape=jax.ShapeDtypeStruct((B, S, D), jnp.float32),
        grid=(B,),
        in_specs=in_specs,
        out_specs=pl.BlockSpec((1, S, D), lambda i: (i, 0, 0)),
        compiler_params=pltpu.CompilerParams(dimension_semantics=("parallel",)),
    )(x_emb, key_bias, *wts)


def decoder_score(x_emb, self_key_bias, enc_h, cross_key_bias, shifted_ids,
                  cand_num, wts, lm_w, flb, length_penalty, pad_id):
    """One fused pallas_call: decoder layer + lm_head + score + candidate-0 probs."""
    N, L, D = x_emb.shape
    B, S, _ = enc_h.shape
    C = cand_num
    V = lm_w.shape[1]
    Lm1 = shifted_ids.shape[1]

    kern = functools.partial(_decoder_fused_kernel,
                             length_penalty=float(length_penalty), pad_id=pad_id)
    in_specs = [
        pl.BlockSpec((1, L, D), lambda b, c: (b * C + c, 0, 0)),
        pl.BlockSpec((1, 1, L), lambda b, c: (b * C + c, 0, 0)),
        # de-dup: candidate (b, c) reads encoder batch b (no repeat_interleave)
        pl.BlockSpec((1, S, D), lambda b, c: (b, 0, 0)),
        pl.BlockSpec((1, 1, S), lambda b, c: (b, 0, 0)),
        pl.BlockSpec((1, Lm1, 1), lambda b, c: (b * C + c, 0, 0)),
    ] + [_rep_spec(w) for w in wts] + [_rep_spec(lm_w), _rep_spec(flb)]

    out_shape = (jax.ShapeDtypeStruct((N, 1, 1), jnp.float32),   # scores
                 jax.ShapeDtypeStruct((B, L, V), jnp.float32))   # candidate-0 logits
    out_specs = (
        pl.BlockSpec((1, 1, 1), lambda b, c: (b * C + c, 0, 0)),
        # block resident across c ("arbitrary" axis); written only when c == 0
        pl.BlockSpec((1, L, V), lambda b, c: (b, 0, 0)),
    )

    scores, probs = pl.pallas_call(
        kern,
        out_shape=out_shape,
        grid=(B, C),
        in_specs=in_specs,
        out_specs=out_specs,
        compiler_params=pltpu.CompilerParams(
            dimension_semantics=("parallel", "arbitrary")),
    )(x_emb, self_key_bias, enc_h, cross_key_bias, shifted_ids, *wts, lm_w, flb)
    return scores.reshape(B, C), probs


# --------------------- weight packing (per-head layout, bf16) ---------------------
def _prep_attn(p, prefix):
    H, Dh, D = NUM_HEADS, HEAD_DIM, D_MODEL

    def heads_in(w):    # (D, D) -> (H, D, Dh): W[:, h*Dh:(h+1)*Dh]
        return w.reshape(D, H, Dh).transpose(1, 0, 2).astype(jnp.bfloat16)

    def heads_bias(b):  # (D,) -> (H, 1, Dh)
        return b.reshape(H, 1, Dh).astype(jnp.float32)

    def heads_out(w):   # (D, D) -> (H, Dh, D): W[h*Dh:(h+1)*Dh, :]
        return w.reshape(H, Dh, D).astype(jnp.bfloat16)

    return [
        heads_in(p[f"{prefix}_q_w"]), heads_bias(p[f"{prefix}_q_b"]),
        heads_in(p[f"{prefix}_k_w"]), heads_bias(p[f"{prefix}_k_b"]),
        heads_in(p[f"{prefix}_v_w"]), heads_bias(p[f"{prefix}_v_b"]),
        heads_out(p[f"{prefix}_o_w"]), p[f"{prefix}_o_b"].reshape(1, D),
    ]


def _prep_encoder_weights(p):
    D, F = D_MODEL, FFN_DIM
    return (
        [p["enc_emb_ln_g"].reshape(1, D), p["enc_emb_ln_b"].reshape(1, D)]
        + _prep_attn(p, "enc_self")
        + [p["enc_sa_ln_g"].reshape(1, D), p["enc_sa_ln_b"].reshape(1, D),
           p["enc_fc1_w"].astype(jnp.bfloat16), p["enc_fc1_b"].reshape(1, F),
           p["enc_fc2_w"].astype(jnp.bfloat16), p["enc_fc2_b"].reshape(1, D),
           p["enc_fin_ln_g"].reshape(1, D), p["enc_fin_ln_b"].reshape(1, D)]
    )


def _prep_decoder_weights(p):
    D, F = D_MODEL, FFN_DIM
    return (
        [p["dec_emb_ln_g"].reshape(1, D), p["dec_emb_ln_b"].reshape(1, D)]
        + _prep_attn(p, "dec_self")
        + [p["dec_sa_ln_g"].reshape(1, D), p["dec_sa_ln_b"].reshape(1, D)]
        + _prep_attn(p, "dec_cross")
        + [p["dec_ca_ln_g"].reshape(1, D), p["dec_ca_ln_b"].reshape(1, D),
           p["dec_fc1_w"].astype(jnp.bfloat16), p["dec_fc1_b"].reshape(1, F),
           p["dec_fc2_w"].astype(jnp.bfloat16), p["dec_fc2_b"].reshape(1, D),
           p["dec_fin_ln_g"].reshape(1, D), p["dec_fin_ln_b"].reshape(1, D)]
    )


# ----------------------------------- forward -----------------------------------
@functools.partial(jax.jit, static_argnames=("length_penalty", "require_evaluation"))
def brio_forward(params, input_ids, candidate_ids, length_penalty,
                 require_evaluation=True):
    B, S = input_ids.shape
    _, C, L = candidate_ids.shape
    N = B * C

    input_mask = input_ids != PAD_ID
    cand_mask = candidate_ids != PAD_ID
    cand_mask = cand_mask.at[:, :, 0].set(True)

    # additive key-padding biases (NOT broadcast over heads)
    enc_key_bias = jnp.where(input_mask, 0.0, NEG_INF).astype(
        jnp.float32).reshape(B, 1, S)
    dec_key_bias = jnp.where(cand_mask.reshape(N, L), 0.0, NEG_INF).astype(
        jnp.float32).reshape(N, 1, L)

    # ---------------- encoder (one fused pallas_call) ----------------
    x_enc = params["embed"][input_ids] + params["enc_pos"][:S]
    enc_h = encoder_layer(x_enc, enc_key_bias, _prep_encoder_weights(params))

    # -------- decoder + lm_head + scoring (one fused pallas_call) --------
    dec_ids = candidate_ids.reshape(-1, L)
    x_dec = params["embed"][dec_ids] + params["dec_pos"][:L]

    lm_w = params["lm_head_w"].astype(jnp.bfloat16)
    flb = params["final_logits_bias"].astype(jnp.float32)   # (1, V)

    shifted_ids = candidate_ids[:, :, 1:].astype(jnp.int32).reshape(N, L - 1, 1)
    scores, probs = decoder_score(
        x_dec, dec_key_bias, enc_h, enc_key_bias, shifted_ids, C,
        _prep_decoder_weights(params), lm_w, flb, length_penalty, PAD_ID)

    if require_evaluation:
        return {"candidate_scores": scores[:, 1:],
                "summary_score": scores[:, 0],
                "probs": probs}
    return {"candidate_scores": scores, "probs": probs}


# ------------------------------ parameter init ------------------------------
def init_params(key):
    keys = iter(jax.random.split(key, 64))

    def dense(shape, scale=0.02):
        return jax.random.normal(next(keys), shape, jnp.float32) * scale

    p = {}
    emb = dense((VOCAB, D_MODEL))
    p["embed"] = emb.at[PAD_ID].set(0.0)          # padding_idx row zeroed
    p["enc_pos"] = dense((MAX_POS, D_MODEL))
    p["dec_pos"] = dense((MAX_POS, D_MODEL))
    for name in ["enc_emb_ln", "enc_sa_ln", "enc_fin_ln",
                 "dec_emb_ln", "dec_sa_ln", "dec_ca_ln", "dec_fin_ln"]:
        p[name + "_g"] = jnp.ones((D_MODEL,), jnp.float32)
        p[name + "_b"] = jnp.zeros((D_MODEL,), jnp.float32)
    for prefix in ["enc_self", "dec_self", "dec_cross"]:
        for proj in ["q", "k", "v", "o"]:
            p[f"{prefix}_{proj}_w"] = dense((D_MODEL, D_MODEL))
            p[f"{prefix}_{proj}_b"] = jnp.zeros((D_MODEL,), jnp.float32)
    for side in ["enc", "dec"]:
        p[f"{side}_fc1_w"] = dense((D_MODEL, FFN_DIM))
        p[f"{side}_fc1_b"] = jnp.zeros((FFN_DIM,), jnp.float32)
        p[f"{side}_fc2_w"] = dense((FFN_DIM, D_MODEL))
        p[f"{side}_fc2_b"] = jnp.zeros((D_MODEL,), jnp.float32)
    p["lm_head_w"] = dense((D_MODEL, VOCAB))
    p["final_logits_bias"] = jnp.zeros((1, VOCAB), jnp.float32)
    return p


# ----------------------------------- main -----------------------------------
if __name__ == "__main__":
    key = jax.random.PRNGKey(0)
    pkey, ikey, ckey = jax.random.split(key, 3)
    params = init_params(pkey)

    B, S, C, L = 2, 16, 3, 8
    input_ids = jax.random.randint(ikey, (B, S), 3, VOCAB, dtype=jnp.int32)
    input_ids = input_ids.at[1, -4:].set(PAD_ID)                 # some padding
    candidate_ids = jax.random.randint(ckey, (B, C, L), 3, VOCAB, dtype=jnp.int32)
    candidate_ids = candidate_ids.at[:, :, 0].set(DEC_START_ID)  # decoder start token
    candidate_ids = candidate_ids.at[0, 1, -2:].set(PAD_ID)
    candidate_ids = candidate_ids.at[1, 2, -3:].set(PAD_ID)

    out = brio_forward(params, input_ids, candidate_ids,
                       length_penalty=2.0, require_evaluation=True)
    out = jax.block_until_ready(out)

    assert out["candidate_scores"].shape == (B, C - 1)
    assert out["summary_score"].shape == (B,)
    assert out["probs"].shape == (B, L, VOCAB)
    assert bool(jnp.all(jnp.isfinite(out["candidate_scores"])))
    assert bool(jnp.all(jnp.isfinite(out["summary_score"])))
    assert bool(jnp.all(jnp.isfinite(out["probs"])))
    print("KERNEL_OK")
</pallas_src>

<mosaic_0001>
module attributes {stable_mosaic.version = 11 : i64} {
  func.func @_encoder_layer_kernel(%arg0: i32, %arg1: memref<1x16x32xf32, #tpu.memory_space<vmem>>, %arg2: memref<1x1x16xf32, #tpu.memory_space<vmem>>, %arg3: memref<1x32xf32, #tpu.memory_space<vmem>>, %arg4: memref<1x32xf32, #tpu.memory_space<vmem>>, %arg5: memref<4x32x8xbf16, #tpu.memory_space<vmem>>, %arg6: memref<4x1x8xf32, #tpu.memory_space<vmem>>, %arg7: memref<4x32x8xbf16, #tpu.memory_space<vmem>>, %arg8: memref<4x1x8xf32, #tpu.memory_space<vmem>>, %arg9: memref<4x32x8xbf16, #tpu.memory_space<vmem>>, %arg10: memref<4x1x8xf32, #tpu.memory_space<vmem>>, %arg11: memref<4x8x32xbf16, #tpu.memory_space<vmem>>, %arg12: memref<1x32xf32, #tpu.memory_space<vmem>>, %arg13: memref<1x32xf32, #tpu.memory_space<vmem>>, %arg14: memref<1x32xf32, #tpu.memory_space<vmem>>, %arg15: memref<32x64xbf16, #tpu.memory_space<vmem>>, %arg16: memref<1x64xf32, #tpu.memory_space<vmem>>, %arg17: memref<64x32xbf16, #tpu.memory_space<vmem>>, %arg18: memref<1x32xf32, #tpu.memory_space<vmem>>, %arg19: memref<1x32xf32, #tpu.memory_space<vmem>>, %arg20: memref<1x32xf32, #tpu.memory_space<vmem>>, %arg21: memref<1x16x32xf32, #tpu.memory_space<vmem>>) attributes {dimension_semantics = [#tpu.dimension_semantics<parallel>], iteration_bounds = array<i64: 2>, scalar_prefetch = 0 : i64, scratch_operands = 0 : i64, tpu.core_type = #tpu.core_type<tc>, window_params = [{transform_indices = @transform_0, window_bounds = array<i64: 1, 16, 32>}, {transform_indices = @transform_1, window_bounds = array<i64: 1, 1, 16>}, {pipeline_mode = #tpu.pipeline_mode<synchronous>, transform_indices = @transform_2, window_bounds = array<i64: 1, 32>}, {pipeline_mode = #tpu.pipeline_mode<synchronous>, transform_indices = @transform_3, window_bounds = array<i64: 1, 32>}, {pipeline_mode = #tpu.pipeline_mode<synchronous>, transform_indices = @transform_4, window_bounds = array<i64: 4, 32, 8>}, {pipeline_mode = #tpu.pipeline_mode<synchronous>, transform_indices = @transform_5, window_bounds = array<i64: 4, 1, 8>}, {pipeline_mode = #tpu.pipeline_mode<synchronous>, transform_indices = @transform_6, window_bounds = array<i64: 4, 32, 8>}, {pipeline_mode = #tpu.pipeline_mode<synchronous>, transform_indices = @transform_7, window_bounds = array<i64: 4, 1, 8>}, {pipeline_mode = #tpu.pipeline_mode<synchronous>, transform_indices = @transform_8, window_bounds = array<i64: 4, 32, 8>}, {pipeline_mode = #tpu.pipeline_mode<synchronous>, transform_indices = @transform_9, window_bounds = array<i64: 4, 1, 8>}, {pipeline_mode = #tpu.pipeline_mode<synchronous>, transform_indices = @transform_10, window_bounds = array<i64: 4, 8, 32>}, {pipeline_mode = #tpu.pipeline_mode<synchronous>, transform_indices = @transform_11, window_bounds = array<i64: 1, 32>}, {pipeline_mode = #tpu.pipeline_mode<synchronous>, transform_indices = @transform_12, window_bounds = array<i64: 1, 32>}, {pipeline_mode = #tpu.pipeline_mode<synchronous>, transform_indices = @transform_13, window_bounds = array<i64: 1, 32>}, {pipeline_mode = #tpu.pipeline_mode<synchronous>, transform_indices = @transform_14, window_bounds = array<i64: 32, 64>}, {pipeline_mode = #tpu.pipeline_mode<synchronous>, transform_indices = @transform_15, window_bounds = array<i64: 1, 64>}, {pipeline_mode = #tpu.pipeline_mode<synchronous>, transform_indices = @transform_16, window_bounds = array<i64: 64, 32>}, {pipeline_mode = #tpu.pipeline_mode<synchronous>, transform_indices = @transform_17, window_bounds = array<i64: 1, 32>}, {pipeline_mode = #tpu.pipeline_mode<synchronous>, transform_indices = @transform_18, window_bounds = array<i64: 1, 32>}, {pipeline_mode = #tpu.pipeline_mode<synchronous>, transform_indices = @transform_19, window_bounds = array<i64: 1, 32>}, {transform_indices = @transform_20, window_bounds = array<i64: 1, 16, 32>}]} {
    %c0 = arith.constant 0 : index
    %c0_0 = arith.constant 0 : index
    %c0_1 = arith.constant 0 : index
    %0 = vector.load %arg1[%c0, %c0_0, %c0_1] : memref<1x16x32xf32, #tpu.memory_space<vmem>>, vector<1x16x32xf32>
    %1 = vector.shape_cast %0 : vector<1x16x32xf32> to vector<16x32xf32>
    %c0_2 = arith.constant 0 : index
    %c0_3 = arith.constant 0 : index
    %2 = vector.load %arg3[%c0_2, %c0_3] : memref<1x32xf32, #tpu.memory_space<vmem>>, vector<1x32xf32>
    %c0_4 = arith.constant 0 : index
    %c0_5 = arith.constant 0 : index
    %3 = vector.load %arg4[%c0_4, %c0_5] : memref<1x32xf32, #tpu.memory_space<vmem>>, vector<1x32xf32>
    %cst = arith.constant dense<0.000000e+00> : vector<16xf32>
    %4 = vector.multi_reduction <add>, %1, %cst [1] : vector<16x32xf32> to vector<16xf32>
    %5 = vector.shape_cast %4 : vector<16xf32> to vector<16x1xf32>
    %cst_6 = arith.constant 3.200000e+01 : f32
    %6 = vector.broadcast %cst_6 : f32 to vector<16x1xf32>
    %7 = arith.divf %5, %6 : vector<16x1xf32>
    %8 = vector.broadcast %7 : vector<16x1xf32> to vector<16x32xf32>
    %9 = arith.subf %1, %8 : vector<16x32xf32>
    %10 = arith.mulf %9, %9 : vector<16x32xf32>
    %cst_7 = arith.constant dense<0.000000e+00> : vector<16xf32>
    %11 = vector.multi_reduction <add>, %10, %cst_7 [1] : vector<16x32xf32> to vector<16xf32>
    %12 = vector.shape_cast %11 : vector<16xf32> to vector<16x1xf32>
    %cst_8 = arith.constant 3.200000e+01 : f32
    %13 = vector.broadcast %cst_8 : f32 to vector<16x1xf32>
    %14 = arith.divf %12, %13 : vector<16x1xf32>
    %15 = vector.broadcast %7 : vector<16x1xf32> to vector<16x32xf32>
    %16 = arith.subf %1, %15 : vector<16x32xf32>
    %cst_9 = arith.constant 9.99999974E-6 : f32
    %17 = vector.broadcast %cst_9 : f32 to vector<16x1xf32>
    %18 = arith.addf %14, %17 : vector<16x1xf32>
    %19 = math.rsqrt %18 : vector<16x1xf32>
    %20 = vector.broadcast %19 : vector<16x1xf32> to vector<16x32xf32>
    %21 = arith.mulf %16, %20 : vector<16x32xf32>
    %22 = vector.broadcast %2 : vector<1x32xf32> to vector<16x32xf32>
    %23 = arith.mulf %21, %22 : vector<16x32xf32>
    %24 = vector.broadcast %3 : vector<1x32xf32> to vector<16x32xf32>
    %25 = arith.addf %23, %24 : vector<16x32xf32>
    %c0_10 = arith.constant 0 : index
    %c0_11 = arith.constant 0 : index
    %c0_12 = arith.constant 0 : index
    %26 = vector.load %arg2[%c0_10, %c0_11, %c0_12] : memref<1x1x16xf32, #tpu.memory_space<vmem>>, vector<1x1x16xf32>
    %27 = vector.shape_cast %26 : vector<1x1x16xf32> to vector<1x16xf32>
    %cst_13 = arith.constant 0.000000e+00 : f32
    %28 = vector.broadcast %cst_13 : f32 to vector<16x32xf32>
    %c0_14 = arith.constant 0 : index
    %c0_15 = arith.constant 0 : index
    %c0_16 = arith.constant 0 : index
    %29 = vector.load %arg5[%c0_14, %c0_15, %c0_16] : memref<4x32x8xbf16, #tpu.memory_space<vmem>>, vector<1x32x8xbf16>
    %30 = vector.shape_cast %29 : vector<1x32x8xbf16> to vector<32x8xbf16>
    %31 = arith.truncf %25 : vector<16x32xf32> to vector<16x32xbf16>
    %cst_17 = arith.constant dense<0.000000e+00> : vector<16x8xf32>
    %32 = tpu.matmul %31, %30, %cst_17 {dimension_numbers = #tpu.dot_dimension_numbers<[1], [0], [0], [1], [0, 0, 1, 1], [], []>} : vector<16x32xbf16>, vector<32x8xbf16>, vector<16x8xf32> -> vector<16x8xf32>
    %c0_18 = arith.constant 0 : index
    %c0_19 = arith.constant 0 : index
    %c0_20 = arith.constant 0 : index
    %33 = vector.load %arg6[%c0_18, %c0_19, %c0_20] : memref<4x1x8xf32, #tpu.memory_space<vmem>>, vector<1x1x8xf32>
    %34 = vector.shape_cast %33 : vector<1x1x8xf32> to vector<1x8xf32>
    %35 = vector.broadcast %34 : vector<1x8xf32> to vector<16x8xf32>
    %36 = arith.addf %32, %35 : vector<16x8xf32>
    %c0_21 = arith.constant 0 : index
    %c0_22 = arith.constant 0 : index
    %c0_23 = arith.constant 0 : index
    %37 = vector.load %arg7[%c0_21, %c0_22, %c0_23] : memref<4x32x8xbf16, #tpu.memory_space<vmem>>, vector<1x32x8xbf16>
    %38 = vector.shape_cast %37 : vector<1x32x8xbf16> to vector<32x8xbf16>
    %39 = arith.truncf %25 : vector<16x32xf32> to vector<16x32xbf16>
    %cst_24 = arith.constant dense<0.000000e+00> : vector<16x8xf32>
    %40 = tpu.matmul %39, %38, %cst_24 {dimension_numbers = #tpu.dot_dimension_numbers<[1], [0], [0], [1], [0, 0, 1, 1], [], []>} : vector<16x32xbf16>, vector<32x8xbf16>, vector<16x8xf32> -> vector<16x8xf32>
    %c0_25 = arith.constant 0 : index
    %c0_26 = arith.constant 0 : index
    %c0_27 = arith.constant 0 : index
    %41 = vector.load %arg8[%c0_25, %c0_26, %c0_27] : memref<4x1x8xf32, #tpu.memory_space<vmem>>, vector<1x1x8xf32>
    %42 = vector.shape_cast %41 : vector<1x1x8xf32> to vector<1x8xf32>
    %43 = vector.broadcast %42 : vector<1x8xf32> to vector<16x8xf32>
    %44 = arith.addf %40, %43 : vector<16x8xf32>
    %c0_28 = arith.constant 0 : index
    %c0_29 = arith.constant 0 : index
    %c0_30 = arith.constant 0 : index
    %45 = vector.load %arg9[%c0_28, %c0_29, %c0_30] : memref<4x32x8xbf16, #tpu.memory_space<vmem>>, vector<1x32x8xbf16>
    %46 = vector.shape_cast %45 : vector<1x32x8xbf16> to vector<32x8xbf16>
    %47 = arith.truncf %25 : vector<16x32xf32> to vector<16x32xbf16>
    %cst_31 = arith.constant dense<0.000000e+00> : vector<16x8xf32>
    %48 = tpu.matmul %47, %46, %cst_31 {dimension_numbers = #tpu.dot_dimension_numbers<[1], [0], [0], [1], [0, 0, 1, 1], [], []>} : vector<16x32xbf16>, vector<32x8xbf16>, vector<16x8xf32> -> vector<16x8xf32>
    %c0_32 = arith.constant 0 : index
    %c0_33 = arith.constant 0 : index
    %c0_34 = arith.constant 0 : index
    %49 = vector.load %arg10[%c0_32, %c0_33, %c0_34] : memref<4x1x8xf32, #tpu.memory_space<vmem>>, vector<1x1x8xf32>
    %50 = vector.shape_cast %49 : vector<1x1x8xf32> to vector<1x8xf32>
    %51 = vector.broadcast %50 : vector<1x8xf32> to vector<16x8xf32>
    %52 = arith.addf %48, %51 : vector<16x8xf32>
    %53 = arith.truncf %36 : vector<16x8xf32> to vector<16x8xbf16>
    %54 = arith.truncf %44 : vector<16x8xf32> to vector<16x8xbf16>
    %cst_35 = arith.constant dense<0.000000e+00> : vector<16x16xf32>
    %55 = tpu.matmul %53, %54, %cst_35 {dimension_numbers = #tpu.dot_dimension_numbers<[1], [1], [0], [0], [0, 0, 1, 0], [], []>} : vector<16x8xbf16>, vector<16x8xbf16>, vector<16x16xf32> -> vector<16x16xf32>
    %cst_36 = arith.constant 0.353553385 : f32
    %56 = vector.broadcast %cst_36 : f32 to vector<16x16xf32>
    %57 = arith.mulf %55, %56 : vector<16x16xf32>
    %58 = vector.broadcast %27 : vector<1x16xf32> to vector<16x16xf32>
    %59 = arith.addf %57, %58 : vector<16x16xf32>
    %cst_37 = arith.constant 0.000000e+00 : f32
    %60 = vector.broadcast %cst_37 : f32 to vector<16x16xf32>
    %61 = arith.addf %59, %60 : vector<16x16xf32>
    %cst_38 = arith.constant dense<0xFF800000> : vector<16xf32>
    %62 = vector.multi_reduction <maximumf>, %61, %cst_38 [1] : vector<16x16xf32> to vector<16xf32>
    %63 = vector.shape_cast %62 : vector<16xf32> to vector<16x1xf32>
    %64 = vector.broadcast %63 : vector<16x1xf32> to vector<16x16xf32>
    %65 = arith.subf %61, %64 : vector<16x16xf32>
    %66 = math.exp %65 : vector<16x16xf32>
    %cst_39 = arith.constant dense<0.000000e+00> : vector<16xf32>
    %67 = vector.multi_reduction <add>, %66, %cst_39 [1] : vector<16x16xf32> to vector<16xf32>
    %68 = vector.shape_cast %67 : vector<16xf32> to vector<16x1xf32>
    %69 = tpu.reciprocal %68 {approx = true} : vector<16x1xf32> -> vector<16x1xf32>
    %70 = vector.broadcast %69 : vector<16x1xf32> to vector<16x16xf32>
    %71 = arith.mulf %66, %70 : vector<16x16xf32>
    %72 = arith.truncf %71 : vector<16x16xf32> to vector<16x16xbf16>
    %73 = arith.truncf %52 : vector<16x8xf32> to vector<16x8xbf16>
    %cst_40 = arith.constant dense<0.000000e+00> : vector<16x8xf32>
    %74 = tpu.matmul %72, %73, %cst_40 {dimension_numbers = #tpu.dot_dimension_numbers<[1], [0], [0], [1], [0, 0, 1, 1], [], []>} : vector<16x16xbf16>, vector<16x8xbf16>, vector<16x8xf32> -> vector<16x8xf32>
    %c0_41 = arith.constant 0 : index
    %c0_42 = arith.constant 0 : index
    %c0_43 = arith.constant 0 : index
    %75 = vector.load %arg11[%c0_41, %c0_42, %c0_43] : memref<4x8x32xbf16, #tpu.memory_space<vmem>>, vector<1x8x32xbf16>
    %76 = vector.shape_cast %75 : vector<1x8x32xbf16> to vector<8x32xbf16>
    %77 = arith.truncf %74 : vector<16x8xf32> to vector<16x8xbf16>
    %cst_44 = arith.constant dense<0.000000e+00> : vector<16x32xf32>
    %78 = tpu.matmul %77, %76, %cst_44 {dimension_numbers = #tpu.dot_dimension_numbers<[1], [0], [0], [1], [0, 0, 1, 1], [], []>} : vector<16x8xbf16>, vector<8x32xbf16>, vector<16x32xf32> -> vector<16x32xf32>
    %79 = arith.addf %28, %78 : vector<16x32xf32>
    %c1 = arith.constant 1 : index
    %c0_45 = arith.constant 0 : index
    %c0_46 = arith.constant 0 : index
    %80 = vector.load %arg5[%c1, %c0_45, %c0_46] : memref<4x32x8xbf16, #tpu.memory_space<vmem>>, vector<1x32x8xbf16>
    %81 = vector.shape_cast %80 : vector<1x32x8xbf16> to vector<32x8xbf16>
    %82 = arith.truncf %25 : vector<16x32xf32> to vector<16x32xbf16>
    %cst_47 = arith.constant dense<0.000000e+00> : vector<16x8xf32>
    %83 = tpu.matmul %82, %81, %cst_47 {dimension_numbers = #tpu.dot_dimension_numbers<[1], [0], [0], [1], [0, 0, 1, 1], [], []>} : vector<16x32xbf16>, vector<32x8xbf16>, vector<16x8xf32> -> vector<16x8xf32>
    %c1_48 = arith.constant 1 : index
    %c0_49 = arith.constant 0 : index
    %c0_50 = arith.constant 0 : index
    %84 = vector.load %arg6[%c1_48, %c0_49, %c0_50] : memref<4x1x8xf32, #tpu.memory_space<vmem>>, vector<1x1x8xf32>
    %85 = vector.shape_cast %84 : vector<1x1x8xf32> to vector<1x8xf32>
    %86 = vector.broadcast %85 : vector<1x8xf32> to vector<16x8xf32>
    %87 = arith.addf %83, %86 : vector<16x8xf32>
    %c1_51 = arith.constant 1 : index
    %c0_52 = arith.constant 0 : index
    %c0_53 = arith.constant 0 : index
    %88 = vector.load %arg7[%c1_51, %c0_52, %c0_53] : memref<4x32x8xbf16, #tpu.memory_space<vmem>>, vector<1x32x8xbf16>
    %89 = vector.shape_cast %88 : vector<1x32x8xbf16> to vector<32x8xbf16>
    %90 = arith.truncf %25 : vector<16x32xf32> to vector<16x32xbf16>
    %cst_54 = arith.constant dense<0.000000e+00> : vector<16x8xf32>
    %91 = tpu.matmul %90, %89, %cst_54 {dimension_numbers = #tpu.dot_dimension_numbers<[1], [0], [0], [1], [0, 0, 1, 1], [], []>} : vector<16x32xbf16>, vector<32x8xbf16>, vector<16x8xf32> -> vector<16x8xf32>
    %c1_55 = arith.constant 1 : index
    %c0_56 = arith.constant 0 : index
    %c0_57 = arith.constant 0 : index
    %92 = vector.load %arg8[%c1_55, %c0_56, %c0_57] : memref<4x1x8xf32, #tpu.memory_space<vmem>>, vector<1x1x8xf32>
    %93 = vector.shape_cast %92 : vector<1x1x8xf32> to vector<1x8xf32>
    %94 = vector.broadcast %93 : vector<1x8xf32> to vector<16x8xf32>
    %95 = arith.addf %91, %94 : vector<16x8xf32>
    %c1_58 = arith.constant 1 : index
    %c0_59 = arith.constant 0 : index
    %c0_60 = arith.constant 0 : index
    %96 = vector.load %arg9[%c1_58, %c0_59, %c0_60] : memref<4x32x8xbf16, #tpu.memory_space<vmem>>, vector<1x32x8xbf16>
    %97 = vector.shape_cast %96 : vector<1x32x8xbf16> to vector<32x8xbf16>
    %98 = arith.truncf %25 : vector<16x32xf32> to vector<16x32xbf16>
    %cst_61 = arith.constant dense<0.000000e+00> : vector<16x8xf32>
    %99 = tpu.matmul %98, %97, %cst_61 {dimension_numbers = #tpu.dot_dimension_numbers<[1], [0], [0], [1], [0, 0, 1, 1], [], []>} : vector<16x32xbf16>, vector<32x8xbf16>, vector<16x8xf32> -> vector<16x8xf32>
    %c1_62 = arith.constant 1 : index
    %c0_63 = arith.constant 0 : index
    %c0_64 = arith.constant 0 : index
    %100 = vector.load %arg10[%c1_62, %c0_63, %c0_64] : memref<4x1x8xf32, #tpu.memory_space<vmem>>, vector<1x1x8xf32>
    %101 = vector.shape_cast %100 : vector<1x1x8xf32> to vector<1x8xf32>
    %102 = vector.broadcast %101 : vector<1x8xf32> to vector<16x8xf32>
    %103 = arith.addf %99, %102 : vector<16x8xf32>
    %104 = arith.truncf %87 : vector<16x8xf32> to vector<16x8xbf16>
    %105 = arith.truncf %95 : vector<16x8xf32> to vector<16x8xbf16>
    %cst_65 = arith.constant dense<0.000000e+00> : vector<16x16xf32>
    %106 = tpu.matmul %104, %105, %cst_65 {dimension_numbers = #tpu.dot_dimension_numbers<[1], [1], [0], [0], [0, 0, 1, 0], [], []>} : vector<16x8xbf16>, vector<16x8xbf16>, vector<16x16xf32> -> vector<16x16xf32>
    %cst_66 = arith.constant 0.353553385 : f32
    %107 = vector.broadcast %cst_66 : f32 to vector<16x16xf32>
    %108 = arith.mulf %106, %107 : vector<16x16xf32>
    %109 = vector.broadcast %27 : vector<1x16xf32> to vector<16x16xf32>
    %110 = arith.addf %108, %109 : vector<16x16xf32>
    %cst_67 = arith.constant 0.000000e+00 : f32
    %111 = vector.broadcast %cst_67 : f32 to vector<16x16xf32>
    %112 = arith.addf %110, %111 : vector<16x16xf32>
    %cst_68 = arith.constant dense<0xFF800000> : vector<16xf32>
    %113 = vector.multi_reduction <maximumf>, %112, %cst_68 [1] : vector<16x16xf32> to vector<16xf32>
    %114 = vector.shape_cast %113 : vector<16xf32> to vector<16x1xf32>
    %115 = vector.broadcast %114 : vector<16x1xf32> to vector<16x16xf32>
    %116 = arith.subf %112, %115 : vector<16x16xf32>
    %117 = math.exp %116 : vector<16x16xf32>
    %cst_69 = arith.constant dense<0.000000e+00> : vector<16xf32>
    %118 = vector.multi_reduction <add>, %117, %cst_69 [1] : vector<16x16xf32> to vector<16xf32>
    %119 = vector.shape_cast %118 : vector<16xf32> to vector<16x1xf32>
    %120 = tpu.reciprocal %119 {approx = true} : vector<16x1xf32> -> vector<16x1xf32>
    %121 = vector.broadcast %120 : vector<16x1xf32> to vector<16x16xf32>
    %122 = arith.mulf %117, %121 : vector<16x16xf32>
    %123 = arith.truncf %122 : vector<16x16xf32> to vector<16x16xbf16>
    %124 = arith.truncf %103 : vector<16x8xf32> to vector<16x8xbf16>
    %cst_70 = arith.constant dense<0.000000e+00> : vector<16x8xf32>
    %125 = tpu.matmul %123, %124, %cst_70 {dimension_numbers = #tpu.dot_dimension_numbers<[1], [0], [0], [1], [0, 0, 1, 1], [], []>} : vector<16x16xbf16>, vector<16x8xbf16>, vector<16x8xf32> -> vector<16x8xf32>
    %c1_71 = arith.constant 1 : index
    %c0_72 = arith.constant 0 : index
    %c0_73 = arith.constant 0 : index
    %126 = vector.load %arg11[%c1_71, %c0_72, %c0_73] : memref<4x8x32xbf16, #tpu.memory_space<vmem>>, vector<1x8x32xbf16>
    %127 = vector.shape_cast %126 : vector<1x8x32xbf16> to vector<8x32xbf16>
    %128 = arith.truncf %125 : vector<16x8xf32> to vector<16x8xbf16>
    %cst_74 = arith.constant dense<0.000000e+00> : vector<16x32xf32>
    %129 = tpu.matmul %128, %127, %cst_74 {dimension_numbers = #tpu.dot_dimension_numbers<[1], [0], [0], [1], [0, 0, 1, 1], [], []>} : vector<16x8xbf16>, vector<8x32xbf16>, vector<16x32xf32> -> vector<16x32xf32>
    %130 = arith.addf %79, %129 : vector<16x32xf32>
    %c2 = arith.constant 2 : index
    %c0_75 = arith.constant 0 : index
    %c0_76 = arith.constant 0 : index
    %131 = vector.load %arg5[%c2, %c0_75, %c0_76] : memref<4x32x8xbf16, #tpu.memory_space<vmem>>, vector<1x32x8xbf16>
    %132 = vector.shape_cast %131 : vector<1x32x8xbf16> to vector<32x8xbf16>
    %133 = arith.truncf %25 : vector<16x32xf32> to vector<16x32xbf16>
    %cst_77 = arith.constant dense<0.000000e+00> : vector<16x8xf32>
    %134 = tpu.matmul %133, %132, %cst_77 {dimension_numbers = #tpu.dot_dimension_numbers<[1], [0], [0], [1], [0, 0, 1, 1], [], []>} : vector<16x32xbf16>, vector<32x8xbf16>, vector<16x8xf32> -> vector<16x8xf32>
    %c2_78 = arith.constant 2 : index
    %c0_79 = arith.constant 0 : index
    %c0_80 = arith.constant 0 : index
    %135 = vector.load %arg6[%c2_78, %c0_79, %c0_80] : memref<4x1x8xf32, #tpu.memory_space<vmem>>, vector<1x1x8xf32>
    %136 = vector.shape_cast %135 : vector<1x1x8xf32> to vector<1x8xf32>
    %137 = vector.broadcast %136 : vector<1x8xf32> to vector<16x8xf32>
    %138 = arith.addf %134, %137 : vector<16x8xf32>
    %c2_81 = arith.constant 2 : index
    %c0_82 = arith.constant 0 : index
    %c0_83 = arith.constant 0 : index
    %139 = vector.load %arg7[%c2_81, %c0_82, %c0_83] : memref<4x32x8xbf16, #tpu.memory_space<vmem>>, vector<1x32x8xbf16>
    %140 = vector.shape_cast %139 : vector<1x32x8xbf16> to vector<32x8xbf16>
    %141 = arith.truncf %25 : vector<16x32xf32> to vector<16x32xbf16>
    %cst_84 = arith.constant dense<0.000000e+00> : vector<16x8xf32>
    %142 = tpu.matmul %141, %140, %cst_84 {dimension_numbers = #tpu.dot_dimension_numbers<[1], [0], [0], [1], [0, 0, 1, 1], [], []>} : vector<16x32xbf16>, vector<32x8xbf16>, vector<16x8xf32> -> vector<16x8xf32>
    %c2_85 = arith.constant 2 : index
    %c0_86 = arith.constant 0 : index
    %c0_87 = arith.constant 0 : index
    %143 = vector.load %arg8[%c2_85, %c0_86, %c0_87] : memref<4x1x8xf32, #tpu.memory_space<vmem>>, vector<1x1x8xf32>
    %144 = vector.shape_cast %143 : vector<1x1x8xf32> to vector<1x8xf32>
    %145 = vector.broadcast %144 : vector<1x8xf32> to vector<16x8xf32>
    %146 = arith.addf %142, %145 : vector<16x8xf32>
    %c2_88 = arith.constant 2 : index
    %c0_89 = arith.constant 0 : index
    %c0_90 = arith.constant 0 : index
    %147 = vector.load %arg9[%c2_88, %c0_89, %c0_90] : memref<4x32x8xbf16, #tpu.memory_space<vmem>>, vector<1x32x8xbf16>
    %148 = vector.shape_cast %147 : vector<1x32x8xbf16> to vector<32x8xbf16>
    %149 = arith.truncf %25 : vector<16x32xf32> to vector<16x32xbf16>
    %cst_91 = arith.constant dense<0.000000e+00> : vector<16x8xf32>
    %150 = tpu.matmul %149, %148, %cst_91 {dimension_numbers = #tpu.dot_dimension_numbers<[1], [0], [0], [1], [0, 0, 1, 1], [], []>} : vector<16x32xbf16>, vector<32x8xbf16>, vector<16x8xf32> -> vector<16x8xf32>
    %c2_92 = arith.constant 2 : index
    %c0_93 = arith.constant 0 : index
    %c0_94 = arith.constant 0 : index
    %151 = vector.load %arg10[%c2_92, %c0_93, %c0_94] : memref<4x1x8xf32, #tpu.memory_space<vmem>>, vector<1x1x8xf32>
    %152 = vector.shape_cast %151 : vector<1x1x8xf32> to vector<1x8xf32>
    %153 = vector.broadcast %152 : vector<1x8xf32> to vector<16x8xf32>
    %154 = arith.addf %150, %153 : vector<16x8xf32>
    %155 = arith.truncf %138 : vector<16x8xf32> to vector<16x8xbf16>
    %156 = arith.truncf %146 : vector<16x8xf32> to vector<16x8xbf16>
    %cst_95 = arith.constant dense<0.000000e+00> : vector<16x16xf32>
    %157 = tpu.matmul %155, %156, %cst_95 {dimension_numbers = #tpu.dot_dimension_numbers<[1], [1], [0], [0], [0, 0, 1, 0], [], []>} : vector<16x8xbf16>, vector<16x8xbf16>, vector<16x16xf32> -> vector<16x16xf32>
    %cst_96 = arith.constant 0.353553385 : f32
    %158 = vector.broadcast %cst_96 : f32 to vector<16x16xf32>
    %159 = arith.mulf %157, %158 : vector<16x16xf32>
    %160 = vector.broadcast %27 : vector<1x16xf32> to vector<16x16xf32>
    %161 = arith.addf %159, %160 : vector<16x16xf32>
    %cst_97 = arith.constant 0.000000e+00 : f32
    %162 = vector.broadcast %cst_97 : f32 to vector<16x16xf32>
    %163 = arith.addf %161, %162 : vector<16x16xf32>
    %cst_98 = arith.constant dense<0xFF800000> : vector<16xf32>
    %164 = vector.multi_reduction <maximumf>, %163, %cst_98 [1] : vector<16x16xf32> to vector<16xf32>
    %165 = vector.shape_cast %164 : vector<16xf32> to vector<16x1xf32>
    %166 = vector.broadcast %165 : vector<16x1xf32> to vector<16x16xf32>
    %167 = arith.subf %163, %166 : vector<16x16xf32>
    %168 = math.exp %167 : vector<16x16xf32>
    %cst_99 = arith.constant dense<0.000000e+00> : vector<16xf32>
    %169 = vector.multi_reduction <add>, %168, %cst_99 [1] : vector<16x16xf32> to vector<16xf32>
    %170 = vector.shape_cast %169 : vector<16xf32> to vector<16x1xf32>
    %171 = tpu.reciprocal %170 {approx = true} : vector<16x1xf32> -> vector<16x1xf32>
    %172 = vector.broadcast %171 : vector<16x1xf32> to vector<16x16xf32>
    %173 = arith.mulf %168, %172 : vector<16x16xf32>
    %174 = arith.truncf %173 : vector<16x16xf32> to vector<16x16xbf16>
    %175 = arith.truncf %154 : vector<16x8xf32> to vector<16x8xbf16>
    %cst_100 = arith.constant dense<0.000000e+00> : vector<16x8xf32>
    %176 = tpu.matmul %174, %175, %cst_100 {dimension_numbers = #tpu.dot_dimension_numbers<[1], [0], [0], [1], [0, 0, 1, 1], [], []>} : vector<16x16xbf16>, vector<16x8xbf16>, vector<16x8xf32> -> vector<16x8xf32>
    %c2_101 = arith.constant 2 : index
    %c0_102 = arith.constant 0 : index
    %c0_103 = arith.constant 0 : index
    %177 = vector.load %arg11[%c2_101, %c0_102, %c0_103] : memref<4x8x32xbf16, #tpu.memory_space<vmem>>, vector<1x8x32xbf16>
    %178 = vector.shape_cast %177 : vector<1x8x32xbf16> to vector<8x32xbf16>
    %179 = arith.truncf %176 : vector<16x8xf32> to vector<16x8xbf16>
    %cst_104 = arith.constant dense<0.000000e+00> : vector<16x32xf32>
    %180 = tpu.matmul %179, %178, %cst_104 {dimension_numbers = #tpu.dot_dimension_numbers<[1], [0], [0], [1], [0, 0, 1, 1], [], []>} : vector<16x8xbf16>, vector<8x32xbf16>, vector<16x32xf32> -> vector<16x32xf32>
    %181 = arith.addf %130, %180 : vector<16x32xf32>
    %c3 = arith.constant 3 : index
    %c0_105 = arith.constant 0 : index
    %c0_106 = arith.constant 0 : index
    %182 = vector.load %arg5[%c3, %c0_105, %c0_106] : memref<4x32x8xbf16, #tpu.memory_space<vmem>>, vector<1x32x8xbf16>
    %183 = vector.shape_cast %182 : vector<1x32x8xbf16> to vector<32x8xbf16>
    %184 = arith.truncf %25 : vector<16x32xf32> to vector<16x32xbf16>
    %cst_107 = arith.constant dense<0.000000e+00> : vector<16x8xf32>
    %185 = tpu.matmul %184, %183, %cst_107 {dimension_numbers = #tpu.dot_dimension_numbers<[1], [0], [0], [1], [0, 0, 1, 1], [], []>} : vector<16x32xbf16>, vector<32x8xbf16>, vector<16x8xf32> -> vector<16x8xf32>
    %c3_108 = arith.constant 3 : index
    %c0_109 = arith.constant 0 : index
    %c0_110 = arith.constant 0 : index
    %186 = vector.load %arg6[%c3_108, %c0_109, %c0_110] : memref<4x1x8xf32, #tpu.memory_space<vmem>>, vector<1x1x8xf32>
    %187 = vector.shape_cast %186 : vector<1x1x8xf32> to vector<1x8xf32>
    %188 = vector.broadcast %187 : vector<1x8xf32> to vector<16x8xf32>
    %189 = arith.addf %185, %188 : vector<16x8xf32>
    %c3_111 = arith.constant 3 : index
    %c0_112 = arith.constant 0 : index
    %c0_113 = arith.constant 0 : index
    %190 = vector.load %arg7[%c3_111, %c0_112, %c0_113] : memref<4x32x8xbf16, #tpu.memory_space<vmem>>, vector<1x32x8xbf16>
    %191 = vector.shape_cast %190 : vector<1x32x8xbf16> to vector<32x8xbf16>
    %192 = arith.truncf %25 : vector<16x32xf32> to vector<16x32xbf16>
    %cst_114 = arith.constant dense<0.000000e+00> : vector<16x8xf32>
    %193 = tpu.matmul %192, %191, %cst_114 {dimension_numbers = #tpu.dot_dimension_numbers<[1], [0], [0], [1], [0, 0, 1, 1], [], []>} : vector<16x32xbf16>, vector<32x8xbf16>, vector<16x8xf32> -> vector<16x8xf32>
    %c3_115 = arith.constant 3 : index
    %c0_116 = arith.constant 0 : index
    %c0_117 = arith.constant 0 : index
    %194 = vector.load %arg8[%c3_115, %c0_116, %c0_117] : memref<4x1x8xf32, #tpu.memory_space<vmem>>, vector<1x1x8xf32>
    %195 = vector.shape_cast %194 : vector<1x1x8xf32> to vector<1x8xf32>
    %196 = vector.broadcast %195 : vector<1x8xf32> to vector<16x8xf32>
    %197 = arith.addf %193, %196 : vector<16x8xf32>
    %c3_118 = arith.constant 3 : index
    %c0_119 = arith.constant 0 : index
    %c0_120 = arith.constant 0 : index
    %198 = vector.load %arg9[%c3_118, %c0_119, %c0_120] : memref<4x32x8xbf16, #tpu.memory_space<vmem>>, vector<1x32x8xbf16>
    %199 = vector.shape_cast %198 : vector<1x32x8xbf16> to vector<32x8xbf16>
    %200 = arith.truncf %25 : vector<16x32xf32> to vector<16x32xbf16>
    %cst_121 = arith.constant dense<0.000000e+00> : vector<16x8xf32>
    %201 = tpu.matmul %200, %199, %cst_121 {dimension_numbers = #tpu.dot_dimension_numbers<[1], [0], [0], [1], [0, 0, 1, 1], [], []>} : vector<16x32xbf16>, vector<32x8xbf16>, vector<16x8xf32> -> vector<16x8xf32>
    %c3_122 = arith.constant 3 : index
    %c0_123 = arith.constant 0 : index
    %c0_124 = arith.constant 0 : index
    %202 = vector.load %arg10[%c3_122, %c0_123, %c0_124] : memref<4x1x8xf32, #tpu.memory_space<vmem>>, vector<1x1x8xf32>
    %203 = vector.shape_cast %202 : vector<1x1x8xf32> to vector<1x8xf32>
    %204 = vector.broadcast %203 : vector<1x8xf32> to vector<16x8xf32>
    %205 = arith.addf %201, %204 : vector<16x8xf32>
    %206 = arith.truncf %189 : vector<16x8xf32> to vector<16x8xbf16>
    %207 = arith.truncf %197 : vector<16x8xf32> to vector<16x8xbf16>
    %cst_125 = arith.constant dense<0.000000e+00> : vector<16x16xf32>
    %208 = tpu.matmul %206, %207, %cst_125 {dimension_numbers = #tpu.dot_dimension_numbers<[1], [1], [0], [0], [0, 0, 1, 0], [], []>} : vector<16x8xbf16>, vector<16x8xbf16>, vector<16x16xf32> -> vector<16x16xf32>
    %cst_126 = arith.constant 0.353553385 : f32
    %209 = vector.broadcast %cst_126 : f32 to vector<16x16xf32>
    %210 = arith.mulf %208, %209 : vector<16x16xf32>
    %211 = vector.broadcast %27 : vector<1x16xf32> to vector<16x16xf32>
    %212 = arith.addf %210, %211 : vector<16x16xf32>
    %cst_127 = arith.constant 0.000000e+00 : f32
    %213 = vector.broadcast %cst_127 : f32 to vector<16x16xf32>
    %214 = arith.addf %212, %213 : vector<16x16xf32>
    %cst_128 = arith.constant dense<0xFF800000> : vector<16xf32>
    %215 = vector.multi_reduction <maximumf>, %214, %cst_128 [1] : vector<16x16xf32> to vector<16xf32>
    %216 = vector.shape_cast %215 : vector<16xf32> to vector<16x1xf32>
    %217 = vector.broadcast %216 : vector<16x1xf32> to vector<16x16xf32>
    %218 = arith.subf %214, %217 : vector<16x16xf32>
    %219 = math.exp %218 : vector<16x16xf32>
    %cst_129 = arith.constant dense<0.000000e+00> : vector<16xf32>
    %220 = vector.multi_reduction <add>, %219, %cst_129 [1] : vector<16x16xf32> to vector<16xf32>
    %221 = vector.shape_cast %220 : vector<16xf32> to vector<16x1xf32>
    %222 = tpu.reciprocal %221 {approx = true} : vector<16x1xf32> -> vector<16x1xf32>
    %223 = vector.broadcast %222 : vector<16x1xf32> to vector<16x16xf32>
    %224 = arith.mulf %219, %223 : vector<16x16xf32>
    %225 = arith.truncf %224 : vector<16x16xf32> to vector<16x16xbf16>
    %226 = arith.truncf %205 : vector<16x8xf32> to vector<16x8xbf16>
    %cst_130 = arith.constant dense<0.000000e+00> : vector<16x8xf32>
    %227 = tpu.matmul %225, %226, %cst_130 {dimension_numbers = #tpu.dot_dimension_numbers<[1], [0], [0], [1], [0, 0, 1, 1], [], []>} : vector<16x16xbf16>, vector<16x8xbf16>, vector<16x8xf32> -> vector<16x8xf32>
    %c3_131 = arith.constant 3 : index
    %c0_132 = arith.constant 0 : index
    %c0_133 = arith.constant 0 : index
    %228 = vector.load %arg11[%c3_131, %c0_132, %c0_133] : memref<4x8x32xbf16, #tpu.memory_space<vmem>>, vector<1x8x32xbf16>
    %229 = vector.shape_cast %228 : vector<1x8x32xbf16> to vector<8x32xbf16>
    %230 = arith.truncf %227 : vector<16x8xf32> to vector<16x8xbf16>
    %cst_134 = arith.constant dense<0.000000e+00> : vector<16x32xf32>
    %231 = tpu.matmul %230, %229, %cst_134 {dimension_numbers = #tpu.dot_dimension_numbers<[1], [0], [0], [1], [0, 0, 1, 1], [], []>} : vector<16x8xbf16>, vector<8x32xbf16>, vector<16x32xf32> -> vector<16x32xf32>
    %232 = arith.addf %181, %231 : vector<16x32xf32>
    %c0_135 = arith.constant 0 : index
    %c0_136 = arith.constant 0 : index
    %233 = vector.load %arg12[%c0_135, %c0_136] : memref<1x32xf32, #tpu.memory_space<vmem>>, vector<1x32xf32>
    %234 = vector.broadcast %233 : vector<1x32xf32> to vector<16x32xf32>
    %235 = arith.addf %232, %234 : vector<16x32xf32>
    %236 = arith.addf %25, %235 : vector<16x32xf32>
    %c0_137 = arith.constant 0 : index
    %c0_138 = arith.constant 0 : index
    %237 = vector.load %arg13[%c0_137, %c0_138] : memref<1x32xf32, #tpu.memory_space<vmem>>, vector<1x32xf32>
    %c0_139 = arith.constant 0 : index
    %c0_140 = arith.constant 0 : index
    %238 = vector.load %arg14[%c0_139, %c0_140] : memref<1x32xf32, #tpu.memory_space<vmem>>, vector<1x32xf32>
    %cst_141 = arith.constant dense<0.000000e+00> : vector<16xf32>
    %239 = vector.multi_reduction <add>, %236, %cst_141 [1] : vector<16x32xf32> to vector<16xf32>
    %240 = vector.shape_cast %239 : vector<16xf32> to vector<16x1xf32>
    %cst_142 = arith.constant 3.200000e+01 : f32
    %241 = vector.broadcast %cst_142 : f32 to vector<16x1xf32>
    %242 = arith.divf %240, %241 : vector<16x1xf32>
    %243 = vector.broadcast %242 : vector<16x1xf32> to vector<16x32xf32>
    %244 = arith.subf %236, %243 : vector<16x32xf32>
    %245 = arith.mulf %244, %244 : vector<16x32xf32>
    %cst_143 = arith.constant dense<0.000000e+00> : vector<16xf32>
    %246 = vector.multi_reduction <add>, %245, %cst_143 [1] : vector<16x32xf32> to vector<16xf32>
    %247 = vector.shape_cast %246 : vector<16xf32> to vector<16x1xf32>
    %cst_144 = arith.constant 3.200000e+01 : f32
    %248 = vector.broadcast %cst_144 : f32 to vector<16x1xf32>
    %249 = arith.divf %247, %248 : vector<16x1xf32>
    %250 = vector.broadcast %242 : vector<16x1xf32> to vector<16x32xf32>
    %251 = arith.subf %236, %250 : vector<16x32xf32>
    %cst_145 = arith.constant 9.99999974E-6 : f32
    %252 = vector.broadcast %cst_145 : f32 to vector<16x1xf32>
    %253 = arith.addf %249, %252 : vector<16x1xf32>
    %254 = math.rsqrt %253 : vector<16x1xf32>
    %255 = vector.broadcast %254 : vector<16x1xf32> to vector<16x32xf32>
    %256 = arith.mulf %251, %255 : vector<16x32xf32>
    %257 = vector.broadcast %237 : vector<1x32xf32> to vector<16x32xf32>
    %258 = arith.mulf %256, %257 : vector<16x32xf32>
    %259 = vector.broadcast %238 : vector<1x32xf32> to vector<16x32xf32>
    %260 = arith.addf %258, %259 : vector<16x32xf32>
    %c0_146 = arith.constant 0 : index
    %c0_147 = arith.constant 0 : index
    %261 = vector.load %arg15[%c0_146, %c0_147] : memref<32x64xbf16, #tpu.memory_space<vmem>>, vector<32x64xbf16>
    %262 = arith.truncf %260 : vector<16x32xf32> to vector<16x32xbf16>
    %cst_148 = arith.constant dense<0.000000e+00> : vector<16x64xf32>
    %263 = tpu.matmul %262, %261, %cst_148 {dimension_numbers = #tpu.dot_dimension_numbers<[1], [0], [0], [1], [0, 0, 1, 1], [], []>} : vector<16x32xbf16>, vector<32x64xbf16>, vector<16x64xf32> -> vector<16x64xf32>
    %c0_149 = arith.constant 0 : index
    %c0_150 = arith.constant 0 : index
    %264 = vector.load %arg16[%c0_149, %c0_150] : memref<1x64xf32, #tpu.memory_space<vmem>>, vector<1x64xf32>
    %265 = vector.broadcast %264 : vector<1x64xf32> to vector<16x64xf32>
    %266 = arith.addf %263, %265 : vector<16x64xf32>
    %267 = arith.mulf %266, %266 : vector<16x64xf32>
    %268 = arith.mulf %266, %267 : vector<16x64xf32>
    %cst_151 = arith.constant 4.471500e-02 : f32
    %269 = vector.broadcast %cst_151 : f32 to vector<16x64xf32>
    %270 = arith.mulf %269, %268 : vector<16x64xf32>
    %271 = arith.addf %266, %270 : vector<16x64xf32>
    %cst_152 = arith.constant 0.797884583 : f32
    %272 = vector.broadcast %cst_152 : f32 to vector<16x64xf32>
    %273 = arith.mulf %272, %271 : vector<16x64xf32>
    %274 = math.tanh %273 : vector<16x64xf32>
    %cst_153 = arith.constant 1.000000e+00 : f32
    %275 = vector.broadcast %cst_153 : f32 to vector<16x64xf32>
    %276 = arith.addf %275, %274 : vector<16x64xf32>
    %cst_154 = arith.constant 5.000000e-01 : f32
    %277 = vector.broadcast %cst_154 : f32 to vector<16x64xf32>
    %278 = arith.mulf %277, %276 : vector<16x64xf32>
    %279 = arith.mulf %266, %278 : vector<16x64xf32>
    %c0_155 = arith.constant 0 : index
    %c0_156 = arith.constant 0 : index
    %280 = vector.load %arg17[%c0_155, %c0_156] : memref<64x32xbf16, #tpu.memory_space<vmem>>, vector<64x32xbf16>
    %281 = arith.truncf %279 : vector<16x64xf32> to vector<16x64xbf16>
    %cst_157 = arith.constant dense<0.000000e+00> : vector<16x32xf32>
    %282 = tpu.matmul %281, %280, %cst_157 {dimension_numbers = #tpu.dot_dimension_numbers<[1], [0], [0], [1], [0, 0, 1, 1], [], []>} : vector<16x64xbf16>, vector<64x32xbf16>, vector<16x32xf32> -> vector<16x32xf32>
    %c0_158 = arith.constant 0 : index
    %c0_159 = arith.constant 0 : index
    %283 = vector.load %arg18[%c0_158, %c0_159] : memref<1x32xf32, #tpu.memory_space<vmem>>, vector<1x32xf32>
    %284 = vector.broadcast %283 : vector<1x32xf32> to vector<16x32xf32>
    %285 = arith.addf %282, %284 : vector<16x32xf32>
    %286 = arith.addf %260, %285 : vector<16x32xf32>
    %c0_160 = arith.constant 0 : index
    %c0_161 = arith.constant 0 : index
    %287 = vector.load %arg19[%c0_160, %c0_161] : memref<1x32xf32, #tpu.memory_space<vmem>>, vector<1x32xf32>
    %c0_162 = arith.constant 0 : index
    %c0_163 = arith.constant 0 : index
    %288 = vector.load %arg20[%c0_162, %c0_163] : memref<1x32xf32, #tpu.memory_space<vmem>>, vector<1x32xf32>
    %cst_164 = arith.constant dense<0.000000e+00> : vector<16xf32>
    %289 = vector.multi_reduction <add>, %286, %cst_164 [1] : vector<16x32xf32> to vector<16xf32>
    %290 = vector.shape_cast %289 : vector<16xf32> to vector<16x1xf32>
    %cst_165 = arith.constant 3.200000e+01 : f32
    %291 = vector.broadcast %cst_165 : f32 to vector<16x1xf32>
    %292 = arith.divf %290, %291 : vector<16x1xf32>
    %293 = vector.broadcast %292 : vector<16x1xf32> to vector<16x32xf32>
    %294 = arith.subf %286, %293 : vector<16x32xf32>
    %295 = arith.mulf %294, %294 : vector<16x32xf32>
    %cst_166 = arith.constant dense<0.000000e+00> : vector<16xf32>
    %296 = vector.multi_reduction <add>, %295, %cst_166 [1] : vector<16x32xf32> to vector<16xf32>
    %297 = vector.shape_cast %296 : vector<16xf32> to vector<16x1xf32>
    %cst_167 = arith.constant 3.200000e+01 : f32
    %298 = vector.broadcast %cst_167 : f32 to vector<16x1xf32>
    %299 = arith.divf %297, %298 : vector<16x1xf32>
    %300 = vector.broadcast %292 : vector<16x1xf32> to vector<16x32xf32>
    %301 = arith.subf %286, %300 : vector<16x32xf32>
    %cst_168 = arith.constant 9.99999974E-6 : f32
    %302 = vector.broadcast %cst_168 : f32 to vector<16x1xf32>
    %303 = arith.addf %299, %302 : vector<16x1xf32>
    %304 = math.rsqrt %303 : vector<16x1xf32>
    %305 = vector.broadcast %304 : vector<16x1xf32> to vector<16x32xf32>
    %306 = arith.mulf %301, %305 : vector<16x32xf32>
    %307 = vector.broadcast %287 : vector<1x32xf32> to vector<16x32xf32>
    %308 = arith.mulf %306, %307 : vector<16x32xf32>
    %309 = vector.broadcast %288 : vector<1x32xf32> to vector<16x32xf32>
    %310 = arith.addf %308, %309 : vector<16x32xf32>
    %c0_169 = arith.constant 0 : index
    %c0_170 = arith.constant 0 : index
    %c0_171 = arith.constant 0 : index
    %311 = vector.load %arg21[%c0_169, %c0_170, %c0_171] : memref<1x16x32xf32, #tpu.memory_space<vmem>>, vector<1x16x32xf32>
    %312 = vector.shape_cast %311 : vector<1x16x32xf32> to vector<16x32xf32>
    %313 = vector.shape_cast %310 : vector<16x32xf32> to vector<1x16x32xf32>
    tpu.vector_store %arg21[%c0_169, %c0_170, %c0_171], %313 {strides = array<i32>} : memref<1x16x32xf32, #tpu.memory_space<vmem>>, vector<1x16x32xf32>,
    return
  }
  func.func @transform_0(%arg0: i32) -> (i32, i32, i32) {
    %c0_i32 = arith.constant 0 : i32
    %c0_i32_0 = arith.constant 0 : i32
    %c0_i32_1 = arith.constant 0 : i32
    return %arg0, %c0_i32, %c0_i32_0 : i32, i32, i32
  }
  func.func @transform_1(%arg0: i32) -> (i32, i32, i32) {
    %c0_i32 = arith.constant 0 : i32
    %c0_i32_0 = arith.constant 0 : i32
    %c0_i32_1 = arith.constant 0 : i32
    return %arg0, %c0_i32, %c0_i32_0 : i32, i32, i32
  }
  func.func @transform_2(%arg0: i32) -> (i32, i32) {
    %c0_i32 = arith.constant 0 : i32
    %c0_i32_0 = arith.constant 0 : i32
    %c0_i32_1 = arith.constant 0 : i32
    return %c0_i32, %c0_i32_0 : i32, i32
  }
  func.func @transform_3(%arg0: i32) -> (i32, i32) {
    %c0_i32 = arith.constant 0 : i32
    %c0_i32_0 = arith.constant 0 : i32
    %c0_i32_1 = arith.constant 0 : i32
    return %c0_i32, %c0_i32_0 : i32, i32
  }
  func.func @transform_4(%arg0: i32) -> (i32, i32, i32) {
    %c0_i32 = arith.constant 0 : i32
    %c0_i32_0 = arith.constant 0 : i32
    %c0_i32_1 = arith.constant 0 : i32
    %c0_i32_2 = arith.constant 0 : i32
    return %c0_i32, %c0_i32_0, %c0_i32_1 : i32, i32, i32
  }
  func.func @transform_5(%arg0: i32) -> (i32, i32, i32) {
    %c0_i32 = arith.constant 0 : i32
    %c0_i32_0 = arith.constant 0 : i32
    %c0_i32_1 = arith.constant 0 : i32
    %c0_i32_2 = arith.constant 0 : i32
    return %c0_i32, %c0_i32_0, %c0_i32_1 : i32, i32, i32
  }
  func.func @transform_6(%arg0: i32) -> (i32, i32, i32) {
    %c0_i32 = arith.constant 0 : i32
    %c0_i32_0 = arith.constant 0 : i32
    %c0_i32_1 = arith.constant 0 : i32
    %c0_i32_2 = arith.constant 0 : i32
    return %c0_i32, %c0_i32_0, %c0_i32_1 : i32, i32, i32
  }
  func.func @transform_7(%arg0: i32) -> (i32, i32, i32) {
    %c0_i32 = arith.constant 0 : i32
    %c0_i32_0 = arith.constant 0 : i32
    %c0_i32_1 = arith.constant 0 : i32
    %c0_i32_2 = arith.constant 0 : i32
    return %c0_i32, %c0_i32_0, %c0_i32_1 : i32, i32, i32
  }
  func.func @transform_8(%arg0: i32) -> (i32, i32, i32) {
    %c0_i32 = arith.constant 0 : i32
    %c0_i32_0 = arith.constant 0 : i32
    %c0_i32_1 = arith.constant 0 : i32
    %c0_i32_2 = arith.constant 0 : i32
    return %c0_i32, %c0_i32_0, %c0_i32_1 : i32, i32, i32
  }
  func.func @transform_9(%arg0: i32) -> (i32, i32, i32) {
    %c0_i32 = arith.constant 0 : i32
    %c0_i32_0 = arith.constant 0 : i32
    %c0_i32_1 = arith.constant 0 : i32
    %c0_i32_2 = arith.constant 0 : i32
    return %c0_i32, %c0_i32_0, %c0_i32_1 : i32, i32, i32
  }
  func.func @transform_10(%arg0: i32) -> (i32, i32, i32) {
    %c0_i32 = arith.constant 0 : i32
    %c0_i32_0 = arith.constant 0 : i32
    %c0_i32_1 = arith.constant 0 : i32
    %c0_i32_2 = arith.constant 0 : i32
    return %c0_i32, %c0_i32_0, %c0_i32_1 : i32, i32, i32
  }
  func.func @transform_11(%arg0: i32) -> (i32, i32) {
    %c0_i32 = arith.constant 0 : i32
    %c0_i32_0 = arith.constant 0 : i32
    %c0_i32_1 = arith.constant 0 : i32
    return %c0_i32, %c0_i32_0 : i32, i32
  }
  func.func @transform_12(%arg0: i32) -> (i32, i32) {
    %c0_i32 = arith.constant 0 : i32
    %c0_i32_0 = arith.constant 0 : i32
    %c0_i32_1 = arith.constant 0 : i32
    return %c0_i32, %c0_i32_0 : i32, i32
  }
  func.func @transform_13(%arg0: i32) -> (i32, i32) {
    %c0_i32 = arith.constant 0 : i32
    %c0_i32_0 = arith.constant 0 : i32
    %c0_i32_1 = arith.constant 0 : i32
    return %c0_i32, %c0_i32_0 : i32, i32
  }
  func.func @transform_14(%arg0: i32) -> (i32, i32) {
    %c0_i32 = arith.constant 0 : i32
    %c0_i32_0 = arith.constant 0 : i32
    %c0_i32_1 = arith.constant 0 : i32
    return %c0_i32, %c0_i32_0 : i32, i32
  }
  func.func @transform_15(%arg0: i32) -> (i32, i32) {
    %c0_i32 = arith.constant 0 : i32
    %c0_i32_0 = arith.constant 0 : i32
    %c0_i32_1 = arith.constant 0 : i32
    return %c0_i32, %c0_i32_0 : i32, i32
  }
  func.func @transform_16(%arg0: i32) -> (i32, i32) {
    %c0_i32 = arith.constant 0 : i32
    %c0_i32_0 = arith.constant 0 : i32
    %c0_i32_1 = arith.constant 0 : i32
    return %c0_i32, %c0_i32_0 : i32, i32
  }
  func.func @transform_17(%arg0: i32) -> (i32, i32) {
    %c0_i32 = arith.constant 0 : i32
    %c0_i32_0 = arith.constant 0 : i32
    %c0_i32_1 = arith.constant 0 : i32
    return %c0_i32, %c0_i32_0 : i32, i32
  }
  func.func @transform_18(%arg0: i32) -> (i32, i32) {
    %c0_i32 = arith.constant 0 : i32
    %c0_i32_0 = arith.constant 0 : i32
    %c0_i32_1 = arith.constant 0 : i32
    return %c0_i32, %c0_i32_0 : i32, i32
  }
  func.func @transform_19(%arg0: i32) -> (i32, i32) {
    %c0_i32 = arith.constant 0 : i32
    %c0_i32_0 = arith.constant 0 : i32
    %c0_i32_1 = arith.constant 0 : i32
    return %c0_i32, %c0_i32_0 : i32, i32
  }
  func.func @transform_20(%arg0: i32) -> (i32, i32, i32) {
    %c0_i32 = arith.constant 0 : i32
    %c0_i32_0 = arith.constant 0 : i32
    %c0_i32_1 = arith.constant 0 : i32
    return %arg0, %c0_i32, %c0_i32_0 : i32, i32, i32
  }
}

module attributes {stable_mosaic.version = 11 : i64} {
  func.func @_decoder_fused_kernel(%arg0: i32, %arg1: i32, %arg2: memref<1x8x32xf32, #tpu.memory_space<vmem>>, %arg3: memref<1x1x8xf32, #tpu.memory_space<vmem>>, %arg4: memref<1x16x32xf32, #tpu.memory_space<vmem>>, %arg5: memref<1x1x16xf32, #tpu.memory_space<vmem>>, %arg6: memref<1x7x1xi32, #tpu.memory_space<vmem>>, %arg7: memref<1x32xf32, #tpu.memory_space<vmem>>, %arg8: memref<1x32xf32, #tpu.memory_space<vmem>>, %arg9: memref<4x32x8xbf16, #tpu.memory_space<vmem>>, %arg10: memref<4x1x8xf32, #tpu.memory_space<vmem>>, %arg11: memref<4x32x8xbf16, #tpu.memory_space<vmem>>, %arg12: memref<4x1x8xf32, #tpu.memory_space<vmem>>, %arg13: memref<4x32x8xbf16, #tpu.memory_space<vmem>>, %arg14: memref<4x1x8xf32, #tpu.memory_space<vmem>>, %arg15: memref<4x8x32xbf16, #tpu.memory_space<vmem>>, %arg16: memref<1x32xf32, #tpu.memory_space<vmem>>, %arg17: memref<1x32xf32, #tpu.memory_space<vmem>>, %arg18: memref<1x32xf32, #tpu.memory_space<vmem>>, %arg19: memref<4x32x8xbf16, #tpu.memory_space<vmem>>, %arg20: memref<4x1x8xf32, #tpu.memory_space<vmem>>, %arg21: memref<4x32x8xbf16, #tpu.memory_space<vmem>>, %arg22: memref<4x1x8xf32, #tpu.memory_space<vmem>>, %arg23: memref<4x32x8xbf16, #tpu.memory_space<vmem>>, %arg24: memref<4x1x8xf32, #tpu.memory_space<vmem>>, %arg25: memref<4x8x32xbf16, #tpu.memory_space<vmem>>, %arg26: memref<1x32xf32, #tpu.memory_space<vmem>>, %arg27: memref<1x32xf32, #tpu.memory_space<vmem>>, %arg28: memref<1x32xf32, #tpu.memory_space<vmem>>, %arg29: memref<32x64xbf16, #tpu.memory_space<vmem>>, %arg30: memref<1x64xf32, #tpu.memory_space<vmem>>, %arg31: memref<64x32xbf16, #tpu.memory_space<vmem>>, %arg32: memref<1x32xf32, #tpu.memory_space<vmem>>, %arg33: memref<1x32xf32, #tpu.memory_space<vmem>>, %arg34: memref<1x32xf32, #tpu.memory_space<vmem>>, %arg35: memref<32x128xbf16, #tpu.memory_space<vmem>>, %arg36: memref<1x128xf32, #tpu.memory_space<vmem>>, %arg37: memref<1x1x1xf32, #tpu.memory_space<vmem>>, %arg38: memref<1x8x128xf32, #tpu.memory_space<vmem>>) attributes {dimension_semantics = [#tpu.dimension_semantics<parallel>, #tpu.dimension_semantics<arbitrary>], iteration_bounds = array<i64: 2, 3>, scalar_prefetch = 0 : i64, scratch_operands = 0 : i64, tpu.core_type = #tpu.core_type<tc>, window_params = [{transform_indices = @transform_0, window_bounds = array<i64: 1, 8, 32>}, {transform_indices = @transform_1, window_bounds = array<i64: 1, 1, 8>}, {transform_indices = @transform_2, window_bounds = array<i64: 1, 16, 32>}, {transform_indices = @transform_3, window_bounds = array<i64: 1, 1, 16>}, {transform_indices = @transform_4, window_bounds = array<i64: 1, 7, 1>}, {pipeline_mode = #tpu.pipeline_mode<synchronous>, transform_indices = @transform_5, window_bounds = array<i64: 1, 32>}, {pipeline_mode = #tpu.pipeline_mode<synchronous>, transform_indices = @transform_6, window_bounds = array<i64: 1, 32>}, {pipeline_mode = #tpu.pipeline_mode<synchronous>, transform_indices = @transform_7, window_bounds = array<i64: 4, 32, 8>}, {pipeline_mode = #tpu.pipeline_mode<synchronous>, transform_indices = @transform_8, window_bounds = array<i64: 4, 1, 8>}, {pipeline_mode = #tpu.pipeline_mode<synchronous>, transform_indices = @transform_9, window_bounds = array<i64: 4, 32, 8>}, {pipeline_mode = #tpu.pipeline_mode<synchronous>, transform_indices = @transform_10, window_bounds = array<i64: 4, 1, 8>}, {pipeline_mode = #tpu.pipeline_mode<synchronous>, transform_indices = @transform_11, window_bounds = array<i64: 4, 32, 8>}, {pipeline_mode = #tpu.pipeline_mode<synchronous>, transform_indices = @transform_12, window_bounds = array<i64: 4, 1, 8>}, {pipeline_mode = #tpu.pipeline_mode<synchronous>, transform_indices = @transform_13, window_bounds = array<i64: 4, 8, 32>}, {pipeline_mode = #tpu.pipeline_mode<synchronous>, transform_indices = @transform_14, window_bounds = array<i64: 1, 32>}, {pipeline_mode = #tpu.pipeline_mode<synchronous>, transform_indices = @transform_15, window_bounds = array<i64: 1, 32>}, {pipeline_mode = #tpu.pipeline_mode<synchronous>, transform_indices = @transform_16, window_bounds = array<i64: 1, 32>}, {pipeline_mode = #tpu.pipeline_mode<synchronous>, transform_indices = @transform_17, window_bounds = array<i64: 4, 32, 8>}, {pipeline_mode = #tpu.pipeline_mode<synchronous>, transform_indices = @transform_18, window_bounds = array<i64: 4, 1, 8>}, {pipeline_mode = #tpu.pipeline_mode<synchronous>, transform_indices = @transform_19, window_bounds = array<i64: 4, 32, 8>}, {pipeline_mode = #tpu.pipeline_mode<synchronous>, transform_indices = @transform_20, window_bounds = array<i64: 4, 1, 8>}, {pipeline_mode = #tpu.pipeline_mode<synchronous>, transform_indices = @transform_21, window_bounds = array<i64: 4, 32, 8>}, {pipeline_mode = #tpu.pipeline_mode<synchronous>, transform_indices = @transform_22, window_bounds = array<i64: 4, 1, 8>}, {pipeline_mode = #tpu.pipeline_mode<synchronous>, transform_indices = @transform_23, window_bounds = array<i64: 4, 8, 32>}, {pipeline_mode = #tpu.pipeline_mode<synchronous>, transform_indices = @transform_24, window_bounds = array<i64: 1, 32>}, {pipeline_mode = #tpu.pipeline_mode<synchronous>, transform_indices = @transform_25, window_bounds = array<i64: 1, 32>}, {pipeline_mode = #tpu.pipeline_mode<synchronous>, transform_indices = @transform_26, window_bounds = array<i64: 1, 32>}, {pipeline_mode = #tpu.pipeline_mode<synchronous>, transform_indices = @transform_27, window_bounds = array<i64: 32, 64>}, {pipeline_mode = #tpu.pipeline_mode<synchronous>, transform_indices = @transform_28, window_bounds = array<i64: 1, 64>}, {pipeline_mode = #tpu.pipeline_mode<synchronous>, transform_indices = @transform_29, window_bounds = array<i64: 64, 32>}, {pipeline_mode = #tpu.pipeline_mode<synchronous>, transform_indices = @transform_30, window_bounds = array<i64: 1, 32>}, {pipeline_mode = #tpu.pipeline_mode<synchronous>, transform_indices = @transform_31, window_bounds = array<i64: 1, 32>}, {pipeline_mode = #tpu.pipeline_mode<synchronous>, transform_indices = @transform_32, window_bounds = array<i64: 1, 32>}, {pipeline_mode = #tpu.pipeline_mode<synchronous>, transform_indices = @transform_33, window_bounds = array<i64: 32, 128>}, {pipeline_mode = #tpu.pipeline_mode<synchronous>, transform_indices = @transform_34, window_bounds = array<i64: 1, 128>}, {transform_indices = @transform_35, window_bounds = array<i64: 1, 1, 1>}, {transform_indices = @transform_36, window_bounds = array<i64: 1, 8, 128>}]} {
    %c0 = arith.constant 0 : index
    %c0_0 = arith.constant 0 : index
    %c0_1 = arith.constant 0 : index
    %0 = vector.load %arg2[%c0, %c0_0, %c0_1] : memref<1x8x32xf32, #tpu.memory_space<vmem>>, vector<1x8x32xf32>
    %1 = vector.shape_cast %0 : vector<1x8x32xf32> to vector<8x32xf32>
    %c0_2 = arith.constant 0 : index
    %c0_3 = arith.constant 0 : index
    %2 = vector.load %arg7[%c0_2, %c0_3] : memref<1x32xf32, #tpu.memory_space<vmem>>, vector<1x32xf32>
    %c0_4 = arith.constant 0 : index
    %c0_5 = arith.constant 0 : index
    %3 = vector.load %arg8[%c0_4, %c0_5] : memref<1x32xf32, #tpu.memory_space<vmem>>, vector<1x32xf32>
    %cst = arith.constant dense<0.000000e+00> : vector<8xf32>
    %4 = vector.multi_reduction <add>, %1, %cst [1] : vector<8x32xf32> to vector<8xf32>
    %5 = vector.shape_cast %4 : vector<8xf32> to vector<8x1xf32>
    %cst_6 = arith.constant 3.200000e+01 : f32
    %6 = vector.broadcast %cst_6 : f32 to vector<8x1xf32>
    %7 = arith.divf %5, %6 : vector<8x1xf32>
    %8 = vector.broadcast %7 : vector<8x1xf32> to vector<8x32xf32>
    %9 = arith.subf %1, %8 : vector<8x32xf32>
    %10 = arith.mulf %9, %9 : vector<8x32xf32>
    %cst_7 = arith.constant dense<0.000000e+00> : vector<8xf32>
    %11 = vector.multi_reduction <add>, %10, %cst_7 [1] : vector<8x32xf32> to vector<8xf32>
    %12 = vector.shape_cast %11 : vector<8xf32> to vector<8x1xf32>
    %cst_8 = arith.constant 3.200000e+01 : f32
    %13 = vector.broadcast %cst_8 : f32 to vector<8x1xf32>
    %14 = arith.divf %12, %13 : vector<8x1xf32>
    %15 = vector.broadcast %7 : vector<8x1xf32> to vector<8x32xf32>
    %16 = arith.subf %1, %15 : vector<8x32xf32>
    %cst_9 = arith.constant 9.99999974E-6 : f32
    %17 = vector.broadcast %cst_9 : f32 to vector<8x1xf32>
    %18 = arith.addf %14, %17 : vector<8x1xf32>
    %19 = math.rsqrt %18 : vector<8x1xf32>
    %20 = vector.broadcast %19 : vector<8x1xf32> to vector<8x32xf32>
    %21 = arith.mulf %16, %20 : vector<8x32xf32>
    %22 = vector.broadcast %2 : vector<1x32xf32> to vector<8x32xf32>
    %23 = arith.mulf %21, %22 : vector<8x32xf32>
    %24 = vector.broadcast %3 : vector<1x32xf32> to vector<8x32xf32>
    %25 = arith.addf %23, %24 : vector<8x32xf32>
    %c0_10 = arith.constant 0 : index
    %c0_11 = arith.constant 0 : index
    %c0_12 = arith.constant 0 : index
    %26 = vector.load %arg3[%c0_10, %c0_11, %c0_12] : memref<1x1x8xf32, #tpu.memory_space<vmem>>, vector<1x1x8xf32>
    %27 = vector.shape_cast %26 : vector<1x1x8xf32> to vector<1x8xf32>
    %28 = tpu.iota {dimensions = array<i32: 0>} : vector<8x8xi32>
    %29 = tpu.iota {dimensions = array<i32: 1>} : vector<8x8xi32>
    %30 = arith.cmpi sge, %28, %29 : vector<8x8xi32>
    %cst_13 = arith.constant 0.000000e+00 : f32
    %cst_14 = arith.constant -1.000000e+09 : f32
    %31 = vector.broadcast %cst_13 : f32 to vector<8x8xf32>
    %32 = vector.broadcast %cst_14 : f32 to vector<8x8xf32>
    %33 = arith.select %30, %31, %32 : vector<8x8xi1>, vector<8x8xf32>
    %cst_15 = arith.constant 0.000000e+00 : f32
    %34 = vector.broadcast %cst_15 : f32 to vector<8x32xf32>
    %c0_16 = arith.constant 0 : index
    %c0_17 = arith.constant 0 : index
    %c0_18 = arith.constant 0 : index
    %35 = vector.load %arg9[%c0_16, %c0_17, %c0_18] : memref<4x32x8xbf16, #tpu.memory_space<vmem>>, vector<1x32x8xbf16>
    %36 = vector.shape_cast %35 : vector<1x32x8xbf16> to vector<32x8xbf16>
    %37 = arith.truncf %25 : vector<8x32xf32> to vector<8x32xbf16>
    %cst_19 = arith.constant dense<0.000000e+00> : vector<8x8xf32>
    %38 = tpu.matmul %37, %36, %cst_19 {dimension_numbers = #tpu.dot_dimension_numbers<[1], [0], [0], [1], [0, 0, 1, 1], [], []>} : vector<8x32xbf16>, vector<32x8xbf16>, vector<8x8xf32> -> vector<8x8xf32>
    %c0_20 = arith.constant 0 : index
    %c0_21 = arith.constant 0 : index
    %c0_22 = arith.constant 0 : index
    %39 = vector.load %arg10[%c0_20, %c0_21, %c0_22] : memref<4x1x8xf32, #tpu.memory_space<vmem>>, vector<1x1x8xf32>
    %40 = vector.shape_cast %39 : vector<1x1x8xf32> to vector<1x8xf32>
    %41 = vector.broadcast %40 : vector<1x8xf32> to vector<8x8xf32>
    %42 = arith.addf %38, %41 : vector<8x8xf32>
    %c0_23 = arith.constant 0 : index
    %c0_24 = arith.constant 0 : index
    %c0_25 = arith.constant 0 : index
    %43 = vector.load %arg11[%c0_23, %c0_24, %c0_25] : memref<4x32x8xbf16, #tpu.memory_space<vmem>>, vector<1x32x8xbf16>
    %44 = vector.shape_cast %43 : vector<1x32x8xbf16> to vector<32x8xbf16>
    %45 = arith.truncf %25 : vector<8x32xf32> to vector<8x32xbf16>
    %cst_26 = arith.constant dense<0.000000e+00> : vector<8x8xf32>
    %46 = tpu.matmul %45, %44, %cst_26 {dimension_numbers = #tpu.dot_dimension_numbers<[1], [0], [0], [1], [0, 0, 1, 1], [], []>} : vector<8x32xbf16>, vector<32x8xbf16>, vector<8x8xf32> -> vector<8x8xf32>
    %c0_27 = arith.constant 0 : index
    %c0_28 = arith.constant 0 : index
    %c0_29 = arith.constant 0 : index
    %47 = vector.load %arg12[%c0_27, %c0_28, %c0_29] : memref<4x1x8xf32, #tpu.memory_space<vmem>>, vector<1x1x8xf32>
    %48 = vector.shape_cast %47 : vector<1x1x8xf32> to vector<1x8xf32>
    %49 = vector.broadcast %48 : vector<1x8xf32> to vector<8x8xf32>
    %50 = arith.addf %46, %49 : vector<8x8xf32>
    %c0_30 = arith.constant 0 : index
    %c0_31 = arith.constant 0 : index
    %c0_32 = arith.constant 0 : index
    %51 = vector.load %arg13[%c0_30, %c0_31, %c0_32] : memref<4x32x8xbf16, #tpu.memory_space<vmem>>, vector<1x32x8xbf16>
    %52 = vector.shape_cast %51 : vector<1x32x8xbf16> to vector<32x8xbf16>
    %53 = arith.truncf %25 : vector<8x32xf32> to vector<8x32xbf16>
    %cst_33 = arith.constant dense<0.000000e+00> : vector<8x8xf32>
    %54 = tpu.matmul %53, %52, %cst_33 {dimension_numbers = #tpu.dot_dimension_numbers<[1], [0], [0], [1], [0, 0, 1, 1], [], []>} : vector<8x32xbf16>, vector<32x8xbf16>, vector<8x8xf32> -> vector<8x8xf32>
    %c0_34 = arith.constant 0 : index
    %c0_35 = arith.constant 0 : index
    %c0_36 = arith.constant 0 : index
    %55 = vector.load %arg14[%c0_34, %c0_35, %c0_36] : memref<4x1x8xf32, #tpu.memory_space<vmem>>, vector<1x1x8xf32>
    %56 = vector.shape_cast %55 : vector<1x1x8xf32> to vector<1x8xf32>
    %57 = vector.broadcast %56 : vector<1x8xf32> to vector<8x8xf32>
    %58 = arith.addf %54, %57 : vector<8x8xf32>
    %59 = arith.truncf %42 : vector<8x8xf32> to vector<8x8xbf16>
    %60 = arith.truncf %50 : vector<8x8xf32> to vector<8x8xbf16>
    %cst_37 = arith.constant dense<0.000000e+00> : vector<8x8xf32>
    %61 = tpu.matmul %59, %60, %cst_37 {dimension_numbers = #tpu.dot_dimension_numbers<[1], [1], [0], [0], [0, 0, 1, 0], [], []>} : vector<8x8xbf16>, vector<8x8xbf16>, vector<8x8xf32> -> vector<8x8xf32>
    %cst_38 = arith.constant 0.353553385 : f32
    %62 = vector.broadcast %cst_38 : f32 to vector<8x8xf32>
    %63 = arith.mulf %61, %62 : vector<8x8xf32>
    %64 = vector.broadcast %27 : vector<1x8xf32> to vector<8x8xf32>
    %65 = arith.addf %63, %64 : vector<8x8xf32>
    %66 = arith.addf %65, %33 : vector<8x8xf32>
    %cst_39 = arith.constant dense<0xFF800000> : vector<8xf32>
    %67 = vector.multi_reduction <maximumf>, %66, %cst_39 [1] : vector<8x8xf32> to vector<8xf32>
    %68 = vector.shape_cast %67 : vector<8xf32> to vector<8x1xf32>
    %69 = vector.broadcast %68 : vector<8x1xf32> to vector<8x8xf32>
    %70 = arith.subf %66, %69 : vector<8x8xf32>
    %71 = math.exp %70 : vector<8x8xf32>
    %cst_40 = arith.constant dense<0.000000e+00> : vector<8xf32>
    %72 = vector.multi_reduction <add>, %71, %cst_40 [1] : vector<8x8xf32> to vector<8xf32>
    %73 = vector.shape_cast %72 : vector<8xf32> to vector<8x1xf32>
    %74 = tpu.reciprocal %73 {approx = true} : vector<8x1xf32> -> vector<8x1xf32>
    %75 = vector.broadcast %74 : vector<8x1xf32> to vector<8x8xf32>
    %76 = arith.mulf %71, %75 : vector<8x8xf32>
    %77 = arith.truncf %76 : vector<8x8xf32> to vector<8x8xbf16>
    %78 = arith.truncf %58 : vector<8x8xf32> to vector<8x8xbf16>
    %cst_41 = arith.constant dense<0.000000e+00> : vector<8x8xf32>
    %79 = tpu.matmul %77, %78, %cst_41 {dimension_numbers = #tpu.dot_dimension_numbers<[1], [0], [0], [1], [0, 0, 1, 1], [], []>} : vector<8x8xbf16>, vector<8x8xbf16>, vector<8x8xf32> -> vector<8x8xf32>
    %c0_42 = arith.constant 0 : index
    %c0_43 = arith.constant 0 : index
    %c0_44 = arith.constant 0 : index
    %80 = vector.load %arg15[%c0_42, %c0_43, %c0_44] : memref<4x8x32xbf16, #tpu.memory_space<vmem>>, vector<1x8x32xbf16>
    %81 = vector.shape_cast %80 : vector<1x8x32xbf16> to vector<8x32xbf16>
    %82 = arith.truncf %79 : vector<8x8xf32> to vector<8x8xbf16>
    %cst_45 = arith.constant dense<0.000000e+00> : vector<8x32xf32>
    %83 = tpu.matmul %82, %81, %cst_45 {dimension_numbers = #tpu.dot_dimension_numbers<[1], [0], [0], [1], [0, 0, 1, 1], [], []>} : vector<8x8xbf16>, vector<8x32xbf16>, vector<8x32xf32> -> vector<8x32xf32>
    %84 = arith.addf %34, %83 : vector<8x32xf32>
    %c1 = arith.constant 1 : index
    %c0_46 = arith.constant 0 : index
    %c0_47 = arith.constant 0 : index
    %85 = vector.load %arg9[%c1, %c0_46, %c0_47] : memref<4x32x8xbf16, #tpu.memory_space<vmem>>, vector<1x32x8xbf16>
    %86 = vector.shape_cast %85 : vector<1x32x8xbf16> to vector<32x8xbf16>
    %87 = arith.truncf %25 : vector<8x32xf32> to vector<8x32xbf16>
    %cst_48 = arith.constant dense<0.000000e+00> : vector<8x8xf32>
    %88 = tpu.matmul %87, %86, %cst_48 {dimension_numbers = #tpu.dot_dimension_numbers<[1], [0], [0], [1], [0, 0, 1, 1], [], []>} : vector<8x32xbf16>, vector<32x8xbf16>, vector<8x8xf32> -> vector<8x8xf32>
    %c1_49 = arith.constant 1 : index
    %c0_50 = arith.constant 0 : index
    %c0_51 = arith.constant 0 : index
    %89 = vector.load %arg10[%c1_49, %c0_50, %c0_51] : memref<4x1x8xf32, #tpu.memory_space<vmem>>, vector<1x1x8xf32>
    %90 = vector.shape_cast %89 : vector<1x1x8xf32> to vector<1x8xf32>
    %91 = vector.broadcast %90 : vector<1x8xf32> to vector<8x8xf32>
    %92 = arith.addf %88, %91 : vector<8x8xf32>
    %c1_52 = arith.constant 1 : index
    %c0_53 = arith.constant 0 : index
    %c0_54 = arith.constant 0 : index
    %93 = vector.load %arg11[%c1_52, %c0_53, %c0_54] : memref<4x32x8xbf16, #tpu.memory_space<vmem>>, vector<1x32x8xbf16>
    %94 = vector.shape_cast %93 : vector<1x32x8xbf16> to vector<32x8xbf16>
    %95 = arith.truncf %25 : vector<8x32xf32> to vector<8x32xbf16>
    %cst_55 = arith.constant dense<0.000000e+00> : vector<8x8xf32>
    %96 = tpu.matmul %95, %94, %cst_55 {dimension_numbers = #tpu.dot_dimension_numbers<[1], [0], [0], [1], [0, 0, 1, 1], [], []>} : vector<8x32xbf16>, vector<32x8xbf16>, vector<8x8xf32> -> vector<8x8xf32>
    %c1_56 = arith.constant 1 : index
    %c0_57 = arith.constant 0 : index
    %c0_58 = arith.constant 0 : index
    %97 = vector.load %arg12[%c1_56, %c0_57, %c0_58] : memref<4x1x8xf32, #tpu.memory_space<vmem>>, vector<1x1x8xf32>
    %98 = vector.shape_cast %97 : vector<1x1x8xf32> to vector<1x8xf32>
    %99 = vector.broadcast %98 : vector<1x8xf32> to vector<8x8xf32>
    %100 = arith.addf %96, %99 : vector<8x8xf32>
    %c1_59 = arith.constant 1 : index
    %c0_60 = arith.constant 0 : index
    %c0_61 = arith.constant 0 : index
    %101 = vector.load %arg13[%c1_59, %c0_60, %c0_61] : memref<4x32x8xbf16, #tpu.memory_space<vmem>>, vector<1x32x8xbf16>
    %102 = vector.shape_cast %101 : vector<1x32x8xbf16> to vector<32x8xbf16>
    %103 = arith.truncf %25 : vector<8x32xf32> to vector<8x32xbf16>
    %cst_62 = arith.constant dense<0.000000e+00> : vector<8x8xf32>
    %104 = tpu.matmul %103, %102, %cst_62 {dimension_numbers = #tpu.dot_dimension_numbers<[1], [0], [0], [1], [0, 0, 1, 1], [], []>} : vector<8x32xbf16>, vector<32x8xbf16>, vector<8x8xf32> -> vector<8x8xf32>
    %c1_63 = arith.constant 1 : index
    %c0_64 = arith.constant 0 : index
    %c0_65 = arith.constant 0 : index
    %105 = vector.load %arg14[%c1_63, %c0_64, %c0_65] : memref<4x1x8xf32, #tpu.memory_space<vmem>>, vector<1x1x8xf32>
    %106 = vector.shape_cast %105 : vector<1x1x8xf32> to vector<1x8xf32>
    %107 = vector.broadcast %106 : vector<1x8xf32> to vector<8x8xf32>
    %108 = arith.addf %104, %107 : vector<8x8xf32>
    %109 = arith.truncf %92 : vector<8x8xf32> to vector<8x8xbf16>
    %110 = arith.truncf %100 : vector<8x8xf32> to vector<8x8xbf16>
    %cst_66 = arith.constant dense<0.000000e+00> : vector<8x8xf32>
    %111 = tpu.matmul %109, %110, %cst_66 {dimension_numbers = #tpu.dot_dimension_numbers<[1], [1], [0], [0], [0, 0, 1, 0], [], []>} : vector<8x8xbf16>, vector<8x8xbf16>, vector<8x8xf32> -> vector<8x8xf32>
    %cst_67 = arith.constant 0.353553385 : f32
    %112 = vector.broadcast %cst_67 : f32 to vector<8x8xf32>
    %113 = arith.mulf %111, %112 : vector<8x8xf32>
    %114 = vector.broadcast %27 : vector<1x8xf32> to vector<8x8xf32>
    %115 = arith.addf %113, %114 : vector<8x8xf32>
    %116 = arith.addf %115, %33 : vector<8x8xf32>
    %cst_68 = arith.constant dense<0xFF800000> : vector<8xf32>
    %117 = vector.multi_reduction <maximumf>, %116, %cst_68 [1] : vector<8x8xf32> to vector<8xf32>
    %118 = vector.shape_cast %117 : vector<8xf32> to vector<8x1xf32>
    %119 = vector.broadcast %118 : vector<8x1xf32> to vector<8x8xf32>
    %120 = arith.subf %116, %119 : vector<8x8xf32>
    %121 = math.exp %120 : vector<8x8xf32>
    %cst_69 = arith.constant dense<0.000000e+00> : vector<8xf32>
    %122 = vector.multi_reduction <add>, %121, %cst_69 [1] : vector<8x8xf32> to vector<8xf32>
    %123 = vector.shape_cast %122 : vector<8xf32> to vector<8x1xf32>
    %124 = tpu.reciprocal %123 {approx = true} : vector<8x1xf32> -> vector<8x1xf32>
    %125 = vector.broadcast %124 : vector<8x1xf32> to vector<8x8xf32>
    %126 = arith.mulf %121, %125 : vector<8x8xf32>
    %127 = arith.truncf %126 : vector<8x8xf32> to vector<8x8xbf16>
    %128 = arith.truncf %108 : vector<8x8xf32> to vector<8x8xbf16>
    %cst_70 = arith.constant dense<0.000000e+00> : vector<8x8xf32>
    %129 = tpu.matmul %127, %128, %cst_70 {dimension_numbers = #tpu.dot_dimension_numbers<[1], [0], [0], [1], [0, 0, 1, 1], [], []>} : vector<8x8xbf16>, vector<8x8xbf16>, vector<8x8xf32> -> vector<8x8xf32>
    %c1_71 = arith.constant 1 : index
    %c0_72 = arith.constant 0 : index
    %c0_73 = arith.constant 0 : index
    %130 = vector.load %arg15[%c1_71, %c0_72, %c0_73] : memref<4x8x32xbf16, #tpu.memory_space<vmem>>, vector<1x8x32xbf16>
    %131 = vector.shape_cast %130 : vector<1x8x32xbf16> to vector<8x32xbf16>
    %132 = arith.truncf %129 : vector<8x8xf32> to vector<8x8xbf16>
    %cst_74 = arith.constant dense<0.000000e+00> : vector<8x32xf32>
    %133 = tpu.matmul %132, %131, %cst_74 {dimension_numbers = #tpu.dot_dimension_numbers<[1], [0], [0], [1], [0, 0, 1, 1], [], []>} : vector<8x8xbf16>, vector<8x32xbf16>, vector<8x32xf32> -> vector<8x32xf32>
    %134 = arith.addf %84, %133 : vector<8x32xf32>
    %c2 = arith.constant 2 : index
    %c0_75 = arith.constant 0 : index
    %c0_76 = arith.constant 0 : index
    %135 = vector.load %arg9[%c2, %c0_75, %c0_76] : memref<4x32x8xbf16, #tpu.memory_space<vmem>>, vector<1x32x8xbf16>
    %136 = vector.shape_cast %135 : vector<1x32x8xbf16> to vector<32x8xbf16>
    %137 = arith.truncf %25 : vector<8x32xf32> to vector<8x32xbf16>
    %cst_77 = arith.constant dense<0.000000e+00> : vector<8x8xf32>
    %138 = tpu.matmul %137, %136, %cst_77 {dimension_numbers = #tpu.dot_dimension_numbers<[1], [0], [0], [1], [0, 0, 1, 1], [], []>} : vector<8x32xbf16>, vector<32x8xbf16>, vector<8x8xf32> -> vector<8x8xf32>
    %c2_78 = arith.constant 2 : index
    %c0_79 = arith.constant 0 : index
    %c0_80 = arith.constant 0 : index
    %139 = vector.load %arg10[%c2_78, %c0_79, %c0_80] : memref<4x1x8xf32, #tpu.memory_space<vmem>>, vector<1x1x8xf32>
    %140 = vector.shape_cast %139 : vector<1x1x8xf32> to vector<1x8xf32>
    %141 = vector.broadcast %140 : vector<1x8xf32> to vector<8x8xf32>
    %142 = arith.addf %138, %141 : vector<8x8xf32>
    %c2_81 = arith.constant 2 : index
    %c0_82 = arith.constant 0 : index
    %c0_83 = arith.constant 0 : index
    %143 = vector.load %arg11[%c2_81, %c0_82, %c0_83] : memref<4x32x8xbf16, #tpu.memory_space<vmem>>, vector<1x32x8xbf16>
    %144 = vector.shape_cast %143 : vector<1x32x8xbf16> to vector<32x8xbf16>
    %145 = arith.truncf %25 : vector<8x32xf32> to vector<8x32xbf16>
    %cst_84 = arith.constant dense<0.000000e+00> : vector<8x8xf32>
    %146 = tpu.matmul %145, %144, %cst_84 {dimension_numbers = #tpu.dot_dimension_numbers<[1], [0], [0], [1], [0, 0, 1, 1], [], []>} : vector<8x32xbf16>, vector<32x8xbf16>, vector<8x8xf32> -> vector<8x8xf32>
    %c2_85 = arith.constant 2 : index
    %c0_86 = arith.constant 0 : index
    %c0_87 = arith.constant 0 : index
    %147 = vector.load %arg12[%c2_85, %c0_86, %c0_87] : memref<4x1x8xf32, #tpu.memory_space<vmem>>, vector<1x1x8xf32>
    %148 = vector.shape_cast %147 : vector<1x1x8xf32> to vector<1x8xf32>
    %149 = vector.broadcast %148 : vector<1x8xf32> to vector<8x8xf32>
    %150 = arith.addf %146, %149 : vector<8x8xf32>
    %c2_88 = arith.constant 2 : index
    %c0_89 = arith.constant 0 : index
    %c0_90 = arith.constant 0 : index
    %151 = vector.load %arg13[%c2_88, %c0_89, %c0_90] : memref<4x32x8xbf16, #tpu.memory_space<vmem>>, vector<1x32x8xbf16>
    %152 = vector.shape_cast %151 : vector<1x32x8xbf16> to vector<32x8xbf16>
    %153 = arith.truncf %25 : vector<8x32xf32> to vector<8x32xbf16>
    %cst_91 = arith.constant dense<0.000000e+00> : vector<8x8xf32>
    %154 = tpu.matmul %153, %152, %cst_91 {dimension_numbers = #tpu.dot_dimension_numbers<[1], [0], [0], [1], [0, 0, 1, 1], [], []>} : vector<8x32xbf16>, vector<32x8xbf16>, vector<8x8xf32> -> vector<8x8xf32>
    %c2_92 = arith.constant 2 : index
    %c0_93 = arith.constant 0 : index
    %c0_94 = arith.constant 0 : index
    %155 = vector.load %arg14[%c2_92, %c0_93, %c0_94] : memref<4x1x8xf32, #tpu.memory_space<vmem>>, vector<1x1x8xf32>
    %156 = vector.shape_cast %155 : vector<1x1x8xf32> to vector<1x8xf32>
    %157 = vector.broadcast %156 : vector<1x8xf32> to vector<8x8xf32>
    %158 = arith.addf %154, %157 : vector<8x8xf32>
    %159 = arith.truncf %142 : vector<8x8xf32> to vector<8x8xbf16>
    %160 = arith.truncf %150 : vector<8x8xf32> to vector<8x8xbf16>
    %cst_95 = arith.constant dense<0.000000e+00> : vector<8x8xf32>
    %161 = tpu.matmul %159, %160, %cst_95 {dimension_numbers = #tpu.dot_dimension_numbers<[1], [1], [0], [0], [0, 0, 1, 0], [], []>} : vector<8x8xbf16>, vector<8x8xbf16>, vector<8x8xf32> -> vector<8x8xf32>
    %cst_96 = arith.constant 0.353553385 : f32
    %162 = vector.broadcast %cst_96 : f32 to vector<8x8xf32>
    %163 = arith.mulf %161, %162 : vector<8x8xf32>
    %164 = vector.broadcast %27 : vector<1x8xf32> to vector<8x8xf32>
    %165 = arith.addf %163, %164 : vector<8x8xf32>
    %166 = arith.addf %165, %33 : vector<8x8xf32>
    %cst_97 = arith.constant dense<0xFF800000> : vector<8xf32>
    %167 = vector.multi_reduction <maximumf>, %166, %cst_97 [1] : vector<8x8xf32> to vector<8xf32>
    %168 = vector.shape_cast %167 : vector<8xf32> to vector<8x1xf32>
    %169 = vector.broadcast %168 : vector<8x1xf32> to vector<8x8xf32>
    %170 = arith.subf %166, %169 : vector<8x8xf32>
    %171 = math.exp %170 : vector<8x8xf32>
    %cst_98 = arith.constant dense<0.000000e+00> : vector<8xf32>
    %172 = vector.multi_reduction <add>, %171, %cst_98 [1] : vector<8x8xf32> to vector<8xf32>
    %173 = vector.shape_cast %172 : vector<8xf32> to vector<8x1xf32>
    %174 = tpu.reciprocal %173 {approx = true} : vector<8x1xf32> -> vector<8x1xf32>
    %175 = vector.broadcast %174 : vector<8x1xf32> to vector<8x8xf32>
    %176 = arith.mulf %171, %175 : vector<8x8xf32>
    %177 = arith.truncf %176 : vector<8x8xf32> to vector<8x8xbf16>
    %178 = arith.truncf %158 : vector<8x8xf32> to vector<8x8xbf16>
    %cst_99 = arith.constant dense<0.000000e+00> : vector<8x8xf32>
    %179 = tpu.matmul %177, %178, %cst_99 {dimension_numbers = #tpu.dot_dimension_numbers<[1], [0], [0], [1], [0, 0, 1, 1], [], []>} : vector<8x8xbf16>, vector<8x8xbf16>, vector<8x8xf32> -> vector<8x8xf32>
    %c2_100 = arith.constant 2 : index
    %c0_101 = arith.constant 0 : index
    %c0_102 = arith.constant 0 : index
    %180 = vector.load %arg15[%c2_100, %c0_101, %c0_102] : memref<4x8x32xbf16, #tpu.memory_space<vmem>>, vector<1x8x32xbf16>
    %181 = vector.shape_cast %180 : vector<1x8x32xbf16> to vector<8x32xbf16>
    %182 = arith.truncf %179 : vector<8x8xf32> to vector<8x8xbf16>
    %cst_103 = arith.constant dense<0.000000e+00> : vector<8x32xf32>
    %183 = tpu.matmul %182, %181, %cst_103 {dimension_numbers = #tpu.dot_dimension_numbers<[1], [0], [0], [1], [0, 0, 1, 1], [], []>} : vector<8x8xbf16>, vector<8x32xbf16>, vector<8x32xf32> -> vector<8x32xf32>
    %184 = arith.addf %134, %183 : vector<8x32xf32>
    %c3 = arith.constant 3 : index
    %c0_104 = arith.constant 0 : index
    %c0_105 = arith.constant 0 : index
    %185 = vector.load %arg9[%c3, %c0_104, %c0_105] : memref<4x32x8xbf16, #tpu.memory_space<vmem>>, vector<1x32x8xbf16>
    %186 = vector.shape_cast %185 : vector<1x32x8xbf16> to vector<32x8xbf16>
    %187 = arith.truncf %25 : vector<8x32xf32> to vector<8x32xbf16>
    %cst_106 = arith.constant dense<0.000000e+00> : vector<8x8xf32>
    %188 = tpu.matmul %187, %186, %cst_106 {dimension_numbers = #tpu.dot_dimension_numbers<[1], [0], [0], [1], [0, 0, 1, 1], [], []>} : vector<8x32xbf16>, vector<32x8xbf16>, vector<8x8xf32> -> vector<8x8xf32>
    %c3_107 = arith.constant 3 : index
    %c0_108 = arith.constant 0 : index
    %c0_109 = arith.constant 0 : index
    %189 = vector.load %arg10[%c3_107, %c0_108, %c0_109] : memref<4x1x8xf32, #tpu.memory_space<vmem>>, vector<1x1x8xf32>
    %190 = vector.shape_cast %189 : vector<1x1x8xf32> to vector<1x8xf32>
    %191 = vector.broadcast %190 : vector<1x8xf32> to vector<8x8xf32>
    %192 = arith.addf %188, %191 : vector<8x8xf32>
    %c3_110 = arith.constant 3 : index
    %c0_111 = arith.constant 0 : index
    %c0_112 = arith.constant 0 : index
    %193 = vector.load %arg11[%c3_110, %c0_111, %c0_112] : memref<4x32x8xbf16, #tpu.memory_space<vmem>>, vector<1x32x8xbf16>
    %194 = vector.shape_cast %193 : vector<1x32x8xbf16> to vector<32x8xbf16>
    %195 = arith.truncf %25 : vector<8x32xf32> to vector<8x32xbf16>
    %cst_113 = arith.constant dense<0.000000e+00> : vector<8x8xf32>
    %196 = tpu.matmul %195, %194, %cst_113 {dimension_numbers = #tpu.dot_dimension_numbers<[1], [0], [0], [1], [0, 0, 1, 1], [], []>} : vector<8x32xbf16>, vector<32x8xbf16>, vector<8x8xf32> -> vector<8x8xf32>
    %c3_114 = arith.constant 3 : index
    %c0_115 = arith.constant 0 : index
    %c0_116 = arith.constant 0 : index
    %197 = vector.load %arg12[%c3_114, %c0_115, %c0_116] : memref<4x1x8xf32, #tpu.memory_space<vmem>>, vector<1x1x8xf32>
    %198 = vector.shape_cast %197 : vector<1x1x8xf32> to vector<1x8xf32>
    %199 = vector.broadcast %198 : vector<1x8xf32> to vector<8x8xf32>
    %200 = arith.addf %196, %199 : vector<8x8xf32>
    %c3_117 = arith.constant 3 : index
    %c0_118 = arith.constant 0 : index
    %c0_119 = arith.constant 0 : index
    %201 = vector.load %arg13[%c3_117, %c0_118, %c0_119] : memref<4x32x8xbf16, #tpu.memory_space<vmem>>, vector<1x32x8xbf16>
    %202 = vector.shape_cast %201 : vector<1x32x8xbf16> to vector<32x8xbf16>
    %203 = arith.truncf %25 : vector<8x32xf32> to vector<8x32xbf16>
    %cst_120 = arith.constant dense<0.000000e+00> : vector<8x8xf32>
    %204 = tpu.matmul %203, %202, %cst_120 {dimension_numbers = #tpu.dot_dimension_numbers<[1], [0], [0], [1], [0, 0, 1, 1], [], []>} : vector<8x32xbf16>, vector<32x8xbf16>, vector<8x8xf32> -> vector<8x8xf32>
    %c3_121 = arith.constant 3 : index
    %c0_122 = arith.constant 0 : index
    %c0_123 = arith.constant 0 : index
    %205 = vector.load %arg14[%c3_121, %c0_122, %c0_123] : memref<4x1x8xf32, #tpu.memory_space<vmem>>, vector<1x1x8xf32>
    %206 = vector.shape_cast %205 : vector<1x1x8xf32> to vector<1x8xf32>
    %207 = vector.broadcast %206 : vector<1x8xf32> to vector<8x8xf32>
    %208 = arith.addf %204, %207 : vector<8x8xf32>
    %209 = arith.truncf %192 : vector<8x8xf32> to vector<8x8xbf16>
    %210 = arith.truncf %200 : vector<8x8xf32> to vector<8x8xbf16>
    %cst_124 = arith.constant dense<0.000000e+00> : vector<8x8xf32>
    %211 = tpu.matmul %209, %210, %cst_124 {dimension_numbers = #tpu.dot_dimension_numbers<[1], [1], [0], [0], [0, 0, 1, 0], [], []>} : vector<8x8xbf16>, vector<8x8xbf16>, vector<8x8xf32> -> vector<8x8xf32>
    %cst_125 = arith.constant 0.353553385 : f32
    %212 = vector.broadcast %cst_125 : f32 to vector<8x8xf32>
    %213 = arith.mulf %211, %212 : vector<8x8xf32>
    %214 = vector.broadcast %27 : vector<1x8xf32> to vector<8x8xf32>
    %215 = arith.addf %213, %214 : vector<8x8xf32>
    %216 = arith.addf %215, %33 : vector<8x8xf32>
    %cst_126 = arith.constant dense<0xFF800000> : vector<8xf32>
    %217 = vector.multi_reduction <maximumf>, %216, %cst_126 [1] : vector<8x8xf32> to vector<8xf32>
    %218 = vector.shape_cast %217 : vector<8xf32> to vector<8x1xf32>
    %219 = vector.broadcast %218 : vector<8x1xf32> to vector<8x8xf32>
    %220 = arith.subf %216, %219 : vector<8x8xf32>
    %221 = math.exp %220 : vector<8x8xf32>
    %cst_127 = arith.constant dense<0.000000e+00> : vector<8xf32>
    %222 = vector.multi_reduction <add>, %221, %cst_127 [1] : vector<8x8xf32> to vector<8xf32>
    %223 = vector.shape_cast %222 : vector<8xf32> to vector<8x1xf32>
    %224 = tpu.reciprocal %223 {approx = true} : vector<8x1xf32> -> vector<8x1xf32>
    %225 = vector.broadcast %224 : vector<8x1xf32> to vector<8x8xf32>
    %226 = arith.mulf %221, %225 : vector<8x8xf32>
    %227 = arith.truncf %226 : vector<8x8xf32> to vector<8x8xbf16>
    %228 = arith.truncf %208 : vector<8x8xf32> to vector<8x8xbf16>
    %cst_128 = arith.constant dense<0.000000e+00> : vector<8x8xf32>
    %229 = tpu.matmul %227, %228, %cst_128 {dimension_numbers = #tpu.dot_dimension_numbers<[1], [0], [0], [1], [0, 0, 1, 1], [], []>} : vector<8x8xbf16>, vector<8x8xbf16>, vector<8x8xf32> -> vector<8x8xf32>
    %c3_129 = arith.constant 3 : index
    %c0_130 = arith.constant 0 : index
    %c0_131 = arith.constant 0 : index
    %230 = vector.load %arg15[%c3_129, %c0_130, %c0_131] : memref<4x8x32xbf16, #tpu.memory_space<vmem>>, vector<1x8x32xbf16>
    %231 = vector.shape_cast %230 : vector<1x8x32xbf16> to vector<8x32xbf16>
    %232 = arith.truncf %229 : vector<8x8xf32> to vector<8x8xbf16>
    %cst_132 = arith.constant dense<0.000000e+00> : vector<8x32xf32>
    %233 = tpu.matmul %232, %231, %cst_132 {dimension_numbers = #tpu.dot_dimension_numbers<[1], [0], [0], [1], [0, 0, 1, 1], [], []>} : vector<8x8xbf16>, vector<8x32xbf16>, vector<8x32xf32> -> vector<8x32xf32>
    %234 = arith.addf %184, %233 : vector<8x32xf32>
    %c0_133 = arith.constant 0 : index
    %c0_134 = arith.constant 0 : index
    %235 = vector.load %arg16[%c0_133, %c0_134] : memref<1x32xf32, #tpu.memory_space<vmem>>, vector<1x32xf32>
    %236 = vector.broadcast %235 : vector<1x32xf32> to vector<8x32xf32>
    %237 = arith.addf %234, %236 : vector<8x32xf32>
    %238 = arith.addf %25, %237 : vector<8x32xf32>
    %c0_135 = arith.constant 0 : index
    %c0_136 = arith.constant 0 : index
    %239 = vector.load %arg17[%c0_135, %c0_136] : memref<1x32xf32, #tpu.memory_space<vmem>>, vector<1x32xf32>
    %c0_137 = arith.constant 0 : index
    %c0_138 = arith.constant 0 : index
    %240 = vector.load %arg18[%c0_137, %c0_138] : memref<1x32xf32, #tpu.memory_space<vmem>>, vector<1x32xf32>
    %cst_139 = arith.constant dense<0.000000e+00> : vector<8xf32>
    %241 = vector.multi_reduction <add>, %238, %cst_139 [1] : vector<8x32xf32> to vector<8xf32>
    %242 = vector.shape_cast %241 : vector<8xf32> to vector<8x1xf32>
    %cst_140 = arith.constant 3.200000e+01 : f32
    %243 = vector.broadcast %cst_140 : f32 to vector<8x1xf32>
    %244 = arith.divf %242, %243 : vector<8x1xf32>
    %245 = vector.broadcast %244 : vector<8x1xf32> to vector<8x32xf32>
    %246 = arith.subf %238, %245 : vector<8x32xf32>
    %247 = arith.mulf %246, %246 : vector<8x32xf32>
    %cst_141 = arith.constant dense<0.000000e+00> : vector<8xf32>
    %248 = vector.multi_reduction <add>, %247, %cst_141 [1] : vector<8x32xf32> to vector<8xf32>
    %249 = vector.shape_cast %248 : vector<8xf32> to vector<8x1xf32>
    %cst_142 = arith.constant 3.200000e+01 : f32
    %250 = vector.broadcast %cst_142 : f32 to vector<8x1xf32>
    %251 = arith.divf %249, %250 : vector<8x1xf32>
    %252 = vector.broadcast %244 : vector<8x1xf32> to vector<8x32xf32>
    %253 = arith.subf %238, %252 : vector<8x32xf32>
    %cst_143 = arith.constant 9.99999974E-6 : f32
    %254 = vector.broadcast %cst_143 : f32 to vector<8x1xf32>
    %255 = arith.addf %251, %254 : vector<8x1xf32>
    %256 = math.rsqrt %255 : vector<8x1xf32>
    %257 = vector.broadcast %256 : vector<8x1xf32> to vector<8x32xf32>
    %258 = arith.mulf %253, %257 : vector<8x32xf32>
    %259 = vector.broadcast %239 : vector<1x32xf32> to vector<8x32xf32>
    %260 = arith.mulf %258, %259 : vector<8x32xf32>
    %261 = vector.broadcast %240 : vector<1x32xf32> to vector<8x32xf32>
    %262 = arith.addf %260, %261 : vector<8x32xf32>
    %c0_144 = arith.constant 0 : index
    %c0_145 = arith.constant 0 : index
    %c0_146 = arith.constant 0 : index
    %263 = vector.load %arg4[%c0_144, %c0_145, %c0_146] : memref<1x16x32xf32, #tpu.memory_space<vmem>>, vector<1x16x32xf32>
    %264 = vector.shape_cast %263 : vector<1x16x32xf32> to vector<16x32xf32>
    %c0_147 = arith.constant 0 : index
    %c0_148 = arith.constant 0 : index
    %c0_149 = arith.constant 0 : index
    %265 = vector.load %arg5[%c0_147, %c0_148, %c0_149] : memref<1x1x16xf32, #tpu.memory_space<vmem>>, vector<1x1x16xf32>
    %266 = vector.shape_cast %265 : vector<1x1x16xf32> to vector<1x16xf32>
    %cst_150 = arith.constant 0.000000e+00 : f32
    %267 = vector.broadcast %cst_150 : f32 to vector<8x32xf32>
    %c0_151 = arith.constant 0 : index
    %c0_152 = arith.constant 0 : index
    %c0_153 = arith.constant 0 : index
    %268 = vector.load %arg19[%c0_151, %c0_152, %c0_153] : memref<4x32x8xbf16, #tpu.memory_space<vmem>>, vector<1x32x8xbf16>
    %269 = vector.shape_cast %268 : vector<1x32x8xbf16> to vector<32x8xbf16>
    %270 = arith.truncf %262 : vector<8x32xf32> to vector<8x32xbf16>
    %cst_154 = arith.constant dense<0.000000e+00> : vector<8x8xf32>
    %271 = tpu.matmul %270, %269, %cst_154 {dimension_numbers = #tpu.dot_dimension_numbers<[1], [0], [0], [1], [0, 0, 1, 1], [], []>} : vector<8x32xbf16>, vector<32x8xbf16>, vector<8x8xf32> -> vector<8x8xf32>
    %c0_155 = arith.constant 0 : index
    %c0_156 = arith.constant 0 : index
    %c0_157 = arith.constant 0 : index
    %272 = vector.load %arg20[%c0_155, %c0_156, %c0_157] : memref<4x1x8xf32, #tpu.memory_space<vmem>>, vector<1x1x8xf32>
    %273 = vector.shape_cast %272 : vector<1x1x8xf32> to vector<1x8xf32>
    %274 = vector.broadcast %273 : vector<1x8xf32> to vector<8x8xf32>
    %275 = arith.addf %271, %274 : vector<8x8xf32>
    %c0_158 = arith.constant 0 : index
    %c0_159 = arith.constant 0 : index
    %c0_160 = arith.constant 0 : index
    %276 = vector.load %arg21[%c0_158, %c0_159, %c0_160] : memref<4x32x8xbf16, #tpu.memory_space<vmem>>, vector<1x32x8xbf16>
    %277 = vector.shape_cast %276 : vector<1x32x8xbf16> to vector<32x8xbf16>
    %278 = arith.truncf %264 : vector<16x32xf32> to vector<16x32xbf16>
    %cst_161 = arith.constant dense<0.000000e+00> : vector<16x8xf32>
    %279 = tpu.matmul %278, %277, %cst_161 {dimension_numbers = #tpu.dot_dimension_numbers<[1], [0], [0], [1], [0, 0, 1, 1], [], []>} : vector<16x32xbf16>, vector<32x8xbf16>, vector<16x8xf32> -> vector<16x8xf32>
    %c0_162 = arith.constant 0 : index
    %c0_163 = arith.constant 0 : index
    %c0_164 = arith.constant 0 : index
    %280 = vector.load %arg22[%c0_162, %c0_163, %c0_164] : memref<4x1x8xf32, #tpu.memory_space<vmem>>, vector<1x1x8xf32>
    %281 = vector.shape_cast %280 : vector<1x1x8xf32> to vector<1x8xf32>
    %282 = vector.broadcast %281 : vector<1x8xf32> to vector<16x8xf32>
    %283 = arith.addf %279, %282 : vector<16x8xf32>
    %c0_165 = arith.constant 0 : index
    %c0_166 = arith.constant 0 : index
    %c0_167 = arith.constant 0 : index
    %284 = vector.load %arg23[%c0_165, %c0_166, %c0_167] : memref<4x32x8xbf16, #tpu.memory_space<vmem>>, vector<1x32x8xbf16>
    %285 = vector.shape_cast %284 : vector<1x32x8xbf16> to vector<32x8xbf16>
    %286 = arith.truncf %264 : vector<16x32xf32> to vector<16x32xbf16>
    %cst_168 = arith.constant dense<0.000000e+00> : vector<16x8xf32>
    %287 = tpu.matmul %286, %285, %cst_168 {dimension_numbers = #tpu.dot_dimension_numbers<[1], [0], [0], [1], [0, 0, 1, 1], [], []>} : vector<16x32xbf16>, vector<32x8xbf16>, vector<16x8xf32> -> vector<16x8xf32>
    %c0_169 = arith.constant 0 : index
    %c0_170 = arith.constant 0 : index
    %c0_171 = arith.constant 0 : index
    %288 = vector.load %arg24[%c0_169, %c0_170, %c0_171] : memref<4x1x8xf32, #tpu.memory_space<vmem>>, vector<1x1x8xf32>
    %289 = vector.shape_cast %288 : vector<1x1x8xf32> to vector<1x8xf32>
    %290 = vector.broadcast %289 : vector<1x8xf32> to vector<16x8xf32>
    %291 = arith.addf %287, %290 : vector<16x8xf32>
    %292 = arith.truncf %275 : vector<8x8xf32> to vector<8x8xbf16>
    %293 = arith.truncf %283 : vector<16x8xf32> to vector<16x8xbf16>
    %cst_172 = arith.constant dense<0.000000e+00> : vector<8x16xf32>
    %294 = tpu.matmul %292, %293, %cst_172 {dimension_numbers = #tpu.dot_dimension_numbers<[1], [1], [0], [0], [0, 0, 1, 0], [], []>} : vector<8x8xbf16>, vector<16x8xbf16>, vector<8x16xf32> -> vector<8x16xf32>
    %cst_173 = arith.constant 0.353553385 : f32
    %295 = vector.broadcast %cst_173 : f32 to vector<8x16xf32>
    %296 = arith.mulf %294, %295 : vector<8x16xf32>
    %297 = vector.broadcast %266 : vector<1x16xf32> to vector<8x16xf32>
    %298 = arith.addf %296, %297 : vector<8x16xf32>
    %cst_174 = arith.constant 0.000000e+00 : f32
    %299 = vector.broadcast %cst_174 : f32 to vector<8x16xf32>
    %300 = arith.addf %298, %299 : vector<8x16xf32>
    %cst_175 = arith.constant dense<0xFF800000> : vector<8xf32>
    %301 = vector.multi_reduction <maximumf>, %300, %cst_175 [1] : vector<8x16xf32> to vector<8xf32>
    %302 = vector.shape_cast %301 : vector<8xf32> to vector<8x1xf32>
    %303 = vector.broadcast %302 : vector<8x1xf32> to vector<8x16xf32>
    %304 = arith.subf %300, %303 : vector<8x16xf32>
    %305 = math.exp %304 : vector<8x16xf32>
    %cst_176 = arith.constant dense<0.000000e+00> : vector<8xf32>
    %306 = vector.multi_reduction <add>, %305, %cst_176 [1] : vector<8x16xf32> to vector<8xf32>
    %307 = vector.shape_cast %306 : vector<8xf32> to vector<8x1xf32>
    %308 = tpu.reciprocal %307 {approx = true} : vector<8x1xf32> -> vector<8x1xf32>
    %309 = vector.broadcast %308 : vector<8x1xf32> to vector<8x16xf32>
    %310 = arith.mulf %305, %309 : vector<8x16xf32>
    %311 = arith.truncf %310 : vector<8x16xf32> to vector<8x16xbf16>
    %312 = arith.truncf %291 : vector<16x8xf32> to vector<16x8xbf16>
    %cst_177 = arith.constant dense<0.000000e+00> : vector<8x8xf32>
    %313 = tpu.matmul %311, %312, %cst_177 {dimension_numbers = #tpu.dot_dimension_numbers<[1], [0], [0], [1], [0, 0, 1, 1], [], []>} : vector<8x16xbf16>, vector<16x8xbf16>, vector<8x8xf32> -> vector<8x8xf32>
    %c0_178 = arith.constant 0 : index
    %c0_179 = arith.constant 0 : index
    %c0_180 = arith.constant 0 : index
    %314 = vector.load %arg25[%c0_178, %c0_179, %c0_180] : memref<4x8x32xbf16, #tpu.memory_space<vmem>>, vector<1x8x32xbf16>
    %315 = vector.shape_cast %314 : vector<1x8x32xbf16> to vector<8x32xbf16>
    %316 = arith.truncf %313 : vector<8x8xf32> to vector<8x8xbf16>
    %cst_181 = arith.constant dense<0.000000e+00> : vector<8x32xf32>
    %317 = tpu.matmul %316, %315, %cst_181 {dimension_numbers = #tpu.dot_dimension_numbers<[1], [0], [0], [1], [0, 0, 1, 1], [], []>} : vector<8x8xbf16>, vector<8x32xbf16>, vector<8x32xf32> -> vector<8x32xf32>
    %318 = arith.addf %267, %317 : vector<8x32xf32>
    %c1_182 = arith.constant 1 : index
    %c0_183 = arith.constant 0 : index
    %c0_184 = arith.constant 0 : index
    %319 = vector.load %arg19[%c1_182, %c0_183, %c0_184] : memref<4x32x8xbf16, #tpu.memory_space<vmem>>, vector<1x32x8xbf16>
    %320 = vector.shape_cast %319 : vector<1x32x8xbf16> to vector<32x8xbf16>
    %321 = arith.truncf %262 : vector<8x32xf32> to vector<8x32xbf16>
    %cst_185 = arith.constant dense<0.000000e+00> : vector<8x8xf32>
    %322 = tpu.matmul %321, %320, %cst_185 {dimension_numbers = #tpu.dot_dimension_numbers<[1], [0], [0], [1], [0, 0, 1, 1], [], []>} : vector<8x32xbf16>, vector<32x8xbf16>, vector<8x8xf32> -> vector<8x8xf32>
    %c1_186 = arith.constant 1 : index
    %c0_187 = arith.constant 0 : index
    %c0_188 = arith.constant 0 : index
    %323 = vector.load %arg20[%c1_186, %c0_187, %c0_188] : memref<4x1x8xf32, #tpu.memory_space<vmem>>, vector<1x1x8xf32>
    %324 = vector.shape_cast %323 : vector<1x1x8xf32> to vector<1x8xf32>
    %325 = vector.broadcast %324 : vector<1x8xf32> to vector<8x8xf32>
    %326 = arith.addf %322, %325 : vector<8x8xf32>
    %c1_189 = arith.constant 1 : index
    %c0_190 = arith.constant 0 : index
    %c0_191 = arith.constant 0 : index
    %327 = vector.load %arg21[%c1_189, %c0_190, %c0_191] : memref<4x32x8xbf16, #tpu.memory_space<vmem>>, vector<1x32x8xbf16>
    %328 = vector.shape_cast %327 : vector<1x32x8xbf16> to vector<32x8xbf16>
    %329 = arith.truncf %264 : vector<16x32xf32> to vector<16x32xbf16>
    %cst_192 = arith.constant dense<0.000000e+00> : vector<16x8xf32>
    %330 = tpu.matmul %329, %328, %cst_192 {dimension_numbers = #tpu.dot_dimension_numbers<[1], [0], [0], [1], [0, 0, 1, 1], [], []>} : vector<16x32xbf16>, vector<32x8xbf16>, vector<16x8xf32> -> vector<16x8xf32>
    %c1_193 = arith.constant 1 : index
    %c0_194 = arith.constant 0 : index
    %c0_195 = arith.constant 0 : index
    %331 = vector.load %arg22[%c1_193, %c0_194, %c0_195] : memref<4x1x8xf32, #tpu.memory_space<vmem>>, vector<1x1x8xf32>
    %332 = vector.shape_cast %331 : vector<1x1x8xf32> to vector<1x8xf32>
    %333 = vector.broadcast %332 : vector<1x8xf32> to vector<16x8xf32>
    %334 = arith.addf %330, %333 : vector<16x8xf32>
    %c1_196 = arith.constant 1 : index
    %c0_197 = arith.constant 0 : index
    %c0_198 = arith.constant 0 : index
    %335 = vector.load %arg23[%c1_196, %c0_197, %c0_198] : memref<4x32x8xbf16, #tpu.memory_space<vmem>>, vector<1x32x8xbf16>
    %336 = vector.shape_cast %335 : vector<1x32x8xbf16> to vector<32x8xbf16>
    %337 = arith.truncf %264 : vector<16x32xf32> to vector<16x32xbf16>
    %cst_199 = arith.constant dense<0.000000e+00> : vector<16x8xf32>
    %338 = tpu.matmul %337, %336, %cst_199 {dimension_numbers = #tpu.dot_dimension_numbers<[1], [0], [0], [1], [0, 0, 1, 1], [], []>} : vector<16x32xbf16>, vector<32x8xbf16>, vector<16x8xf32> -> vector<16x8xf32>
    %c1_200 = arith.constant 1 : index
    %c0_201 = arith.constant 0 : index
    %c0_202 = arith.constant 0 : index
    %339 = vector.load %arg24[%c1_200, %c0_201, %c0_202] : memref<4x1x8xf32, #tpu.memory_space<vmem>>, vector<1x1x8xf32>
    %340 = vector.shape_cast %339 : vector<1x1x8xf32> to vector<1x8xf32>
    %341 = vector.broadcast %340 : vector<1x8xf32> to vector<16x8xf32>
    %342 = arith.addf %338, %341 : vector<16x8xf32>
    %343 = arith.truncf %326 : vector<8x8xf32> to vector<8x8xbf16>
    %344 = arith.truncf %334 : vector<16x8xf32> to vector<16x8xbf16>
    %cst_203 = arith.constant dense<0.000000e+00> : vector<8x16xf32>
    %345 = tpu.matmul %343, %344, %cst_203 {dimension_numbers = #tpu.dot_dimension_numbers<[1], [1], [0], [0], [0, 0, 1, 0], [], []>} : vector<8x8xbf16>, vector<16x8xbf16>, vector<8x16xf32> -> vector<8x16xf32>
    %cst_204 = arith.constant 0.353553385 : f32
    %346 = vector.broadcast %cst_204 : f32 to vector<8x16xf32>
    %347 = arith.mulf %345, %346 : vector<8x16xf32>
    %348 = vector.broadcast %266 : vector<1x16xf32> to vector<8x16xf32>
    %349 = arith.addf %347, %348 : vector<8x16xf32>
    %cst_205 = arith.constant 0.000000e+00 : f32
    %350 = vector.broadcast %cst_205 : f32 to vector<8x16xf32>
    %351 = arith.addf %349, %350 : vector<8x16xf32>
    %cst_206 = arith.constant dense<0xFF800000> : vector<8xf32>
    %352 = vector.multi_reduction <maximumf>, %351, %cst_206 [1] : vector<8x16xf32> to vector<8xf32>
    %353 = vector.shape_cast %352 : vector<8xf32> to vector<8x1xf32>
    %354 = vector.broadcast %353 : vector<8x1xf32> to vector<8x16xf32>
    %355 = arith.subf %351, %354 : vector<8x16xf32>
    %356 = math.exp %355 : vector<8x16xf32>
    %cst_207 = arith.constant dense<0.000000e+00> : vector<8xf32>
    %357 = vector.multi_reduction <add>, %356, %cst_207 [1] : vector<8x16xf32> to vector<8xf32>
    %358 = vector.shape_cast %357 : vector<8xf32> to vector<8x1xf32>
    %359 = tpu.reciprocal %358 {approx = true} : vector<8x1xf32> -> vector<8x1xf32>
    %360 = vector.broadcast %359 : vector<8x1xf32> to vector<8x16xf32>
    %361 = arith.mulf %356, %360 : vector<8x16xf32>
    %362 = arith.truncf %361 : vector<8x16xf32> to vector<8x16xbf16>
    %363 = arith.truncf %342 : vector<16x8xf32> to vector<16x8xbf16>
    %cst_208 = arith.constant dense<0.000000e+00> : vector<8x8xf32>
    %364 = tpu.matmul %362, %363, %cst_208 {dimension_numbers = #tpu.dot_dimension_numbers<[1], [0], [0], [1], [0, 0, 1, 1], [], []>} : vector<8x16xbf16>, vector<16x8xbf16>, vector<8x8xf32> -> vector<8x8xf32>
    %c1_209 = arith.constant 1 : index
    %c0_210 = arith.constant 0 : index
    %c0_211 = arith.constant 0 : index
    %365 = vector.load %arg25[%c1_209, %c0_210, %c0_211] : memref<4x8x32xbf16, #tpu.memory_space<vmem>>, vector<1x8x32xbf16>
    %366 = vector.shape_cast %365 : vector<1x8x32xbf16> to vector<8x32xbf16>
    %367 = arith.truncf %364 : vector<8x8xf32> to vector<8x8xbf16>
    %cst_212 = arith.constant dense<0.000000e+00> : vector<8x32xf32>
    %368 = tpu.matmul %367, %366, %cst_212 {dimension_numbers = #tpu.dot_dimension_numbers<[1], [0], [0], [1], [0, 0, 1, 1], [], []>} : vector<8x8xbf16>, vector<8x32xbf16>, vector<8x32xf32> -> vector<8x32xf32>
    %369 = arith.addf %318, %368 : vector<8x32xf32>
    %c2_213 = arith.constant 2 : index
    %c0_214 = arith.constant 0 : index
    %c0_215 = arith.constant 0 : index
    %370 = vector.load %arg19[%c2_213, %c0_214, %c0_215] : memref<4x32x8xbf16, #tpu.memory_space<vmem>>, vector<1x32x8xbf16>
    %371 = vector.shape_cast %370 : vector<1x32x8xbf16> to vector<32x8xbf16>
    %372 = arith.truncf %262 : vector<8x32xf32> to vector<8x32xbf16>
    %cst_216 = arith.constant dense<0.000000e+00> : vector<8x8xf32>
    %373 = tpu.matmul %372, %371, %cst_216 {dimension_numbers = #tpu.dot_dimension_numbers<[1], [0], [0], [1], [0, 0, 1, 1], [], []>} : vector<8x32xbf16>, vector<32x8xbf16>, vector<8x8xf32> -> vector<8x8xf32>
    %c2_217 = arith.constant 2 : index
    %c0_218 = arith.constant 0 : index
    %c0_219 = arith.constant 0 : index
    %374 = vector.load %arg20[%c2_217, %c0_218, %c0_219] : memref<4x1x8xf32, #tpu.memory_space<vmem>>, vector<1x1x8xf32>
    %375 = vector.shape_cast %374 : vector<1x1x8xf32> to vector<1x8xf32>
    %376 = vector.broadcast %375 : vector<1x8xf32> to vector<8x8xf32>
    %377 = arith.addf %373, %376 : vector<8x8xf32>
    %c2_220 = arith.constant 2 : index
    %c0_221 = arith.constant 0 : index
    %c0_222 = arith.constant 0 : index
    %378 = vector.load %arg21[%c2_220, %c0_221, %c0_222] : memref<4x32x8xbf16, #tpu.memory_space<vmem>>, vector<1x32x8xbf16>
    %379 = vector.shape_cast %378 : vector<1x32x8xbf16> to vector<32x8xbf16>
    %380 = arith.truncf %264 : vector<16x32xf32> to vector<16x32xbf16>
    %cst_223 = arith.constant dense<0.000000e+00> : vector<16x8xf32>
    %381 = tpu.matmul %380, %379, %cst_223 {dimension_numbers = #tpu.dot_dimension_numbers<[1], [0], [0], [1], [0, 0, 1, 1], [], []>} : vector<16x32xbf16>, vector<32x8xbf16>, vector<16x8xf32> -> vector<16x8xf32>
    %c2_224 = arith.constant 2 : index
    %c0_225 = arith.constant 0 : index
    %c0_226 = arith.constant 0 : index
    %382 = vector.load %arg22[%c2_224, %c0_225, %c0_226] : memref<4x1x8xf32, #tpu.memory_space<vmem>>, vector<1x1x8xf32>
    %383 = vector.shape_cast %382 : vector<1x1x8xf32> to vector<1x8xf32>
    %384 = vector.broadcast %383 : vector<1x8xf32> to vector<16x8xf32>
    %385 = arith.addf %381, %384 : vector<16x8xf32>
    %c2_227 = arith.constant 2 : index
    %c0_228 = arith.constant 0 : index
    %c0_229 = arith.constant 0 : index
    %386 = vector.load %arg23[%c2_227, %c0_228, %c0_229] : memref<4x32x8xbf16, #tpu.memory_space<vmem>>, vector<1x32x8xbf16>
    %387 = vector.shape_cast %386 : vector<1x32x8xbf16> to vector<32x8xbf16>
    %388 = arith.truncf %264 : vector<16x32xf32> to vector<16x32xbf16>
    %cst_230 = arith.constant dense<0.000000e+00> : vector<16x8xf32>
    %389 = tpu.matmul %388, %387, %cst_230 {dimension_numbers = #tpu.dot_dimension_numbers<[1], [0], [0], [1], [0, 0, 1, 1], [], []>} : vector<16x32xbf16>, vector<32x8xbf16>, vector<16x8xf32> -> vector<16x8xf32>
    %c2_231 = arith.constant 2 : index
    %c0_232 = arith.constant 0 : index
    %c0_233 = arith.constant 0 : index
    %390 = vector.load %arg24[%c2_231, %c0_232, %c0_233] : memref<4x1x8xf32, #tpu.memory_space<vmem>>, vector<1x1x8xf32>
    %391 = vector.shape_cast %390 : vector<1x1x8xf32> to vector<1x8xf32>
    %392 = vector.broadcast %391 : vector<1x8xf32> to vector<16x8xf32>
    %393 = arith.addf %389, %392 : vector<16x8xf32>
    %394 = arith.truncf %377 : vector<8x8xf32> to vector<8x8xbf16>
    %395 = arith.truncf %385 : vector<16x8xf32> to vector<16x8xbf16>
    %cst_234 = arith.constant dense<0.000000e+00> : vector<8x16xf32>
    %396 = tpu.matmul %394, %395, %cst_234 {dimension_numbers = #tpu.dot_dimension_numbers<[1], [1], [0], [0], [0, 0, 1, 0], [], []>} : vector<8x8xbf16>, vector<16x8xbf16>, vector<8x16xf32> -> vector<8x16xf32>
    %cst_235 = arith.constant 0.353553385 : f32
    %397 = vector.broadcast %cst_235 : f32 to vector<8x16xf32>
    %398 = arith.mulf %396, %397 : vector<8x16xf32>
    %399 = vector.broadcast %266 : vector<1x16xf32> to vector<8x16xf32>
    %400 = arith.addf %398, %399 : vector<8x16xf32>
    %cst_236 = arith.constant 0.000000e+00 : f32
    %401 = vector.broadcast %cst_236 : f32 to vector<8x16xf32>
    %402 = arith.addf %400, %401 : vector<8x16xf32>
    %cst_237 = arith.constant dense<0xFF800000> : vector<8xf32>
    %403 = vector.multi_reduction <maximumf>, %402, %cst_237 [1] : vector<8x16xf32> to vector<8xf32>
    %404 = vector.shape_cast %403 : vector<8xf32> to vector<8x1xf32>
    %405 = vector.broadcast %404 : vector<8x1xf32> to vector<8x16xf32>
    %406 = arith.subf %402, %405 : vector<8x16xf32>
    %407 = math.exp %406 : vector<8x16xf32>
    %cst_238 = arith.constant dense<0.000000e+00> : vector<8xf32>
    %408 = vector.multi_reduction <add>, %407, %cst_238 [1] : vector<8x16xf32> to vector<8xf32>
    %409 = vector.shape_cast %408 : vector<8xf32> to vector<8x1xf32>
    %410 = tpu.reciprocal %409 {approx = true} : vector<8x1xf32> -> vector<8x1xf32>
    %411 = vector.broadcast %410 : vector<8x1xf32> to vector<8x16xf32>
    %412 = arith.mulf %407, %411 : vector<8x16xf32>
    %413 = arith.truncf %412 : vector<8x16xf32> to vector<8x16xbf16>
    %414 = arith.truncf %393 : vector<16x8xf32> to vector<16x8xbf16>
    %cst_239 = arith.constant dense<0.000000e+00> : vector<8x8xf32>
    %415 = tpu.matmul %413, %414, %cst_239 {dimension_numbers = #tpu.dot_dimension_numbers<[1], [0], [0], [1], [0, 0, 1, 1], [], []>} : vector<8x16xbf16>, vector<16x8xbf16>, vector<8x8xf32> -> vector<8x8xf32>
    %c2_240 = arith.constant 2 : index
    %c0_241 = arith.constant 0 : index
    %c0_242 = arith.constant 0 : index
    %416 = vector.load %arg25[%c2_240, %c0_241, %c0_242] : memref<4x8x32xbf16, #tpu.memory_space<vmem>>, vector<1x8x32xbf16>
    %417 = vector.shape_cast %416 : vector<1x8x32xbf16> to vector<8x32xbf16>
    %418 = arith.truncf %415 : vector<8x8xf32> to vector<8x8xbf16>
    %cst_243 = arith.constant dense<0.000000e+00> : vector<8x32xf32>
    %419 = tpu.matmul %418, %417, %cst_243 {dimension_numbers = #tpu.dot_dimension_numbers<[1], [0], [0], [1], [0, 0, 1, 1], [], []>} : vector<8x8xbf16>, vector<8x32xbf16>, vector<8x32xf32> -> vector<8x32xf32>
    %420 = arith.addf %369, %419 : vector<8x32xf32>
    %c3_244 = arith.constant 3 : index
    %c0_245 = arith.constant 0 : index
    %c0_246 = arith.constant 0 : index
    %421 = vector.load %arg19[%c3_244, %c0_245, %c0_246] : memref<4x32x8xbf16, #tpu.memory_space<vmem>>, vector<1x32x8xbf16>
    %422 = vector.shape_cast %421 : vector<1x32x8xbf16> to vector<32x8xbf16>
    %423 = arith.truncf %262 : vector<8x32xf32> to vector<8x32xbf16>
    %cst_247 = arith.constant dense<0.000000e+00> : vector<8x8xf32>
    %424 = tpu.matmul %423, %422, %cst_247 {dimension_numbers = #tpu.dot_dimension_numbers<[1], [0], [0], [1], [0, 0, 1, 1], [], []>} : vector<8x32xbf16>, vector<32x8xbf16>, vector<8x8xf32> -> vector<8x8xf32>
    %c3_248 = arith.constant 3 : index
    %c0_249 = arith.constant 0 : index
    %c0_250 = arith.constant 0 : index
    %425 = vector.load %arg20[%c3_248, %c0_249, %c0_250] : memref<4x1x8xf32, #tpu.memory_space<vmem>>, vector<1x1x8xf32>
    %426 = vector.shape_cast %425 : vector<1x1x8xf32> to vector<1x8xf32>
    %427 = vector.broadcast %426 : vector<1x8xf32> to vector<8x8xf32>
    %428 = arith.addf %424, %427 : vector<8x8xf32>
    %c3_251 = arith.constant 3 : index
    %c0_252 = arith.constant 0 : index
    %c0_253 = arith.constant 0 : index
    %429 = vector.load %arg21[%c3_251, %c0_252, %c0_253] : memref<4x32x8xbf16, #tpu.memory_space<vmem>>, vector<1x32x8xbf16>
    %430 = vector.shape_cast %429 : vector<1x32x8xbf16> to vector<32x8xbf16>
    %431 = arith.truncf %264 : vector<16x32xf32> to vector<16x32xbf16>
    %cst_254 = arith.constant dense<0.000000e+00> : vector<16x8xf32>
    %432 = tpu.matmul %431, %430, %cst_254 {dimension_numbers = #tpu.dot_dimension_numbers<[1], [0], [0], [1], [0, 0, 1, 1], [], []>} : vector<16x32xbf16>, vector<32x8xbf16>, vector<16x8xf32> -> vector<16x8xf32>
    %c3_255 = arith.constant 3 : index
    %c0_256 = arith.constant 0 : index
    %c0_257 = arith.constant 0 : index
    %433 = vector.load %arg22[%c3_255, %c0_256, %c0_257] : memref<4x1x8xf32, #tpu.memory_space<vmem>>, vector<1x1x8xf32>
    %434 = vector.shape_cast %433 : vector<1x1x8xf32> to vector<1x8xf32>
    %435 = vector.broadcast %434 : vector<1x8xf32> to vector<16x8xf32>
    %436 = arith.addf %432, %435 : vector<16x8xf32>
    %c3_258 = arith.constant 3 : index
    %c0_259 = arith.constant 0 : index
    %c0_260 = arith.constant 0 : index
    %437 = vector.load %arg23[%c3_258, %c0_259, %c0_260] : memref<4x32x8xbf16, #tpu.memory_space<vmem>>, vector<1x32x8xbf16>
    %438 = vector.shape_cast %437 : vector<1x32x8xbf16> to vector<32x8xbf16>
    %439 = arith.truncf %264 : vector<16x32xf32> to vector<16x32xbf16>
    %cst_261 = arith.constant dense<0.000000e+00> : vector<16x8xf32>
    %440 = tpu.matmul %439, %438, %cst_261 {dimension_numbers = #tpu.dot_dimension_numbers<[1], [0], [0], [1], [0, 0, 1, 1], [], []>} : vector<16x32xbf16>, vector<32x8xbf16>, vector<16x8xf32> -> vector<16x8xf32>
    %c3_262 = arith.constant 3 : index
    %c0_263 = arith.constant 0 : index
    %c0_264 = arith.constant 0 : index
    %441 = vector.load %arg24[%c3_262, %c0_263, %c0_264] : memref<4x1x8xf32, #tpu.memory_space<vmem>>, vector<1x1x8xf32>
    %442 = vector.shape_cast %441 : vector<1x1x8xf32> to vector<1x8xf32>
    %443 = vector.broadcast %442 : vector<1x8xf32> to vector<16x8xf32>
    %444 = arith.addf %440, %443 : vector<16x8xf32>
    %445 = arith.truncf %428 : vector<8x8xf32> to vector<8x8xbf16>
    %446 = arith.truncf %436 : vector<16x8xf32> to vector<16x8xbf16>
    %cst_265 = arith.constant dense<0.000000e+00> : vector<8x16xf32>
    %447 = tpu.matmul %445, %446, %cst_265 {dimension_numbers = #tpu.dot_dimension_numbers<[1], [1], [0], [0], [0, 0, 1, 0], [], []>} : vector<8x8xbf16>, vector<16x8xbf16>, vector<8x16xf32> -> vector<8x16xf32>
    %cst_266 = arith.constant 0.353553385 : f32
    %448 = vector.broadcast %cst_266 : f32 to vector<8x16xf32>
    %449 = arith.mulf %447, %448 : vector<8x16xf32>
    %450 = vector.broadcast %266 : vector<1x16xf32> to vector<8x16xf32>
    %451 = arith.addf %449, %450 : vector<8x16xf32>
    %cst_267 = arith.constant 0.000000e+00 : f32
    %452 = vector.broadcast %cst_267 : f32 to vector<8x16xf32>
    %453 = arith.addf %451, %452 : vector<8x16xf32>
    %cst_268 = arith.constant dense<0xFF800000> : vector<8xf32>
    %454 = vector.multi_reduction <maximumf>, %453, %cst_268 [1] : vector<8x16xf32> to vector<8xf32>
    %455 = vector.shape_cast %454 : vector<8xf32> to vector<8x1xf32>
    %456 = vector.broadcast %455 : vector<8x1xf32> to vector<8x16xf32>
    %457 = arith.subf %453, %456 : vector<8x16xf32>
    %458 = math.exp %457 : vector<8x16xf32>
    %cst_269 = arith.constant dense<0.000000e+00> : vector<8xf32>
    %459 = vector.multi_reduction <add>, %458, %cst_269 [1] : vector<8x16xf32> to vector<8xf32>
    %460 = vector.shape_cast %459 : vector<8xf32> to vector<8x1xf32>
    %461 = tpu.reciprocal %460 {approx = true} : vector<8x1xf32> -> vector<8x1xf32>
    %462 = vector.broadcast %461 : vector<8x1xf32> to vector<8x16xf32>
    %463 = arith.mulf %458, %462 : vector<8x16xf32>
    %464 = arith.truncf %463 : vector<8x16xf32> to vector<8x16xbf16>
    %465 = arith.truncf %444 : vector<16x8xf32> to vector<16x8xbf16>
    %cst_270 = arith.constant dense<0.000000e+00> : vector<8x8xf32>
    %466 = tpu.matmul %464, %465, %cst_270 {dimension_numbers = #tpu.dot_dimension_numbers<[1], [0], [0], [1], [0, 0, 1, 1], [], []>} : vector<8x16xbf16>, vector<16x8xbf16>, vector<8x8xf32> -> vector<8x8xf32>
    %c3_271 = arith.constant 3 : index
    %c0_272 = arith.constant 0 : index
    %c0_273 = arith.constant 0 : index
    %467 = vector.load %arg25[%c3_271, %c0_272, %c0_273] : memref<4x8x32xbf16, #tpu.memory_space<vmem>>, vector<1x8x32xbf16>
    %468 = vector.shape_cast %467 : vector<1x8x32xbf16> to vector<8x32xbf16>
    %469 = arith.truncf %466 : vector<8x8xf32> to vector<8x8xbf16>
    %cst_274 = arith.constant dense<0.000000e+00> : vector<8x32xf32>
    %470 = tpu.matmul %469, %468, %cst_274 {dimension_numbers = #tpu.dot_dimension_numbers<[1], [0], [0], [1], [0, 0, 1, 1], [], []>} : vector<8x8xbf16>, vector<8x32xbf16>, vector<8x32xf32> -> vector<8x32xf32>
    %471 = arith.addf %420, %470 : vector<8x32xf32>
    %c0_275 = arith.constant 0 : index
    %c0_276 = arith.constant 0 : index
    %472 = vector.load %arg26[%c0_275, %c0_276] : memref<1x32xf32, #tpu.memory_space<vmem>>, vector<1x32xf32>
    %473 = vector.broadcast %472 : vector<1x32xf32> to vector<8x32xf32>
    %474 = arith.addf %471, %473 : vector<8x32xf32>
    %475 = arith.addf %262, %474 : vector<8x32xf32>
    %c0_277 = arith.constant 0 : index
    %c0_278 = arith.constant 0 : index
    %476 = vector.load %arg27[%c0_277, %c0_278] : memref<1x32xf32, #tpu.memory_space<vmem>>, vector<1x32xf32>
    %c0_279 = arith.constant 0 : index
    %c0_280 = arith.constant 0 : index
    %477 = vector.load %arg28[%c0_279, %c0_280] : memref<1x32xf32, #tpu.memory_space<vmem>>, vector<1x32xf32>
    %cst_281 = arith.constant dense<0.000000e+00> : vector<8xf32>
    %478 = vector.multi_reduction <add>, %475, %cst_281 [1] : vector<8x32xf32> to vector<8xf32>
    %479 = vector.shape_cast %478 : vector<8xf32> to vector<8x1xf32>
    %cst_282 = arith.constant 3.200000e+01 : f32
    %480 = vector.broadcast %cst_282 : f32 to vector<8x1xf32>
    %481 = arith.divf %479, %480 : vector<8x1xf32>
    %482 = vector.broadcast %481 : vector<8x1xf32> to vector<8x32xf32>
    %483 = arith.subf %475, %482 : vector<8x32xf32>
    %484 = arith.mulf %483, %483 : vector<8x32xf32>
    %cst_283 = arith.constant dense<0.000000e+00> : vector<8xf32>
    %485 = vector.multi_reduction <add>, %484, %cst_283 [1] : vector<8x32xf32> to vector<8xf32>
    %486 = vector.shape_cast %485 : vector<8xf32> to vector<8x1xf32>
    %cst_284 = arith.constant 3.200000e+01 : f32
    %487 = vector.broadcast %cst_284 : f32 to vector<8x1xf32>
    %488 = arith.divf %486, %487 : vector<8x1xf32>
    %489 = vector.broadcast %481 : vector<8x1xf32> to vector<8x32xf32>
    %490 = arith.subf %475, %489 : vector<8x32xf32>
    %cst_285 = arith.constant 9.99999974E-6 : f32
    %491 = vector.broadcast %cst_285 : f32 to vector<8x1xf32>
    %492 = arith.addf %488, %491 : vector<8x1xf32>
    %493 = math.rsqrt %492 : vector<8x1xf32>
    %494 = vector.broadcast %493 : vector<8x1xf32> to vector<8x32xf32>
    %495 = arith.mulf %490, %494 : vector<8x32xf32>
    %496 = vector.broadcast %476 : vector<1x32xf32> to vector<8x32xf32>
    %497 = arith.mulf %495, %496 : vector<8x32xf32>
    %498 = vector.broadcast %477 : vector<1x32xf32> to vector<8x32xf32>
    %499 = arith.addf %497, %498 : vector<8x32xf32>
    %c0_286 = arith.constant 0 : index
    %c0_287 = arith.constant 0 : index
    %500 = vector.load %arg29[%c0_286, %c0_287] : memref<32x64xbf16, #tpu.memory_space<vmem>>, vector<32x64xbf16>
    %501 = arith.truncf %499 : vector<8x32xf32> to vector<8x32xbf16>
    %cst_288 = arith.constant dense<0.000000e+00> : vector<8x64xf32>
    %502 = tpu.matmul %501, %500, %cst_288 {dimension_numbers = #tpu.dot_dimension_numbers<[1], [0], [0], [1], [0, 0, 1, 1], [], []>} : vector<8x32xbf16>, vector<32x64xbf16>, vector<8x64xf32> -> vector<8x64xf32>
    %c0_289 = arith.constant 0 : index
    %c0_290 = arith.constant 0 : index
    %503 = vector.load %arg30[%c0_289, %c0_290] : memref<1x64xf32, #tpu.memory_space<vmem>>, vector<1x64xf32>
    %504 = vector.broadcast %503 : vector<1x64xf32> to vector<8x64xf32>
    %505 = arith.addf %502, %504 : vector<8x64xf32>
    %506 = arith.mulf %505, %505 : vector<8x64xf32>
    %507 = arith.mulf %505, %506 : vector<8x64xf32>
    %cst_291 = arith.constant 4.471500e-02 : f32
    %508 = vector.broadcast %cst_291 : f32 to vector<8x64xf32>
    %509 = arith.mulf %508, %507 : vector<8x64xf32>
    %510 = arith.addf %505, %509 : vector<8x64xf32>
    %cst_292 = arith.constant 0.797884583 : f32
    %511 = vector.broadcast %cst_292 : f32 to vector<8x64xf32>
    %512 = arith.mulf %511, %510 : vector<8x64xf32>
    %513 = math.tanh %512 : vector<8x64xf32>
    %cst_293 = arith.constant 1.000000e+00 : f32
    %514 = vector.broadcast %cst_293 : f32 to vector<8x64xf32>
    %515 = arith.addf %514, %513 : vector<8x64xf32>
    %cst_294 = arith.constant 5.000000e-01 : f32
    %516 = vector.broadcast %cst_294 : f32 to vector<8x64xf32>
    %517 = arith.mulf %516, %515 : vector<8x64xf32>
    %518 = arith.mulf %505, %517 : vector<8x64xf32>
    %c0_295 = arith.constant 0 : index
    %c0_296 = arith.constant 0 : index
    %519 = vector.load %arg31[%c0_295, %c0_296] : memref<64x32xbf16, #tpu.memory_space<vmem>>, vector<64x32xbf16>
    %520 = arith.truncf %518 : vector<8x64xf32> to vector<8x64xbf16>
    %cst_297 = arith.constant dense<0.000000e+00> : vector<8x32xf32>
    %521 = tpu.matmul %520, %519, %cst_297 {dimension_numbers = #tpu.dot_dimension_numbers<[1], [0], [0], [1], [0, 0, 1, 1], [], []>} : vector<8x64xbf16>, vector<64x32xbf16>, vector<8x32xf32> -> vector<8x32xf32>
    %c0_298 = arith.constant 0 : index
    %c0_299 = arith.constant 0 : index
    %522 = vector.load %arg32[%c0_298, %c0_299] : memref<1x32xf32, #tpu.memory_space<vmem>>, vector<1x32xf32>
    %523 = vector.broadcast %522 : vector<1x32xf32> to vector<8x32xf32>
    %524 = arith.addf %521, %523 : vector<8x32xf32>
    %525 = arith.addf %499, %524 : vector<8x32xf32>
    %c0_300 = arith.constant 0 : index
    %c0_301 = arith.constant 0 : index
    %526 = vector.load %arg33[%c0_300, %c0_301] : memref<1x32xf32, #tpu.memory_space<vmem>>, vector<1x32xf32>
    %c0_302 = arith.constant 0 : index
    %c0_303 = arith.constant 0 : index
    %527 = vector.load %arg34[%c0_302, %c0_303] : memref<1x32xf32, #tpu.memory_space<vmem>>, vector<1x32xf32>
    %cst_304 = arith.constant dense<0.000000e+00> : vector<8xf32>
    %528 = vector.multi_reduction <add>, %525, %cst_304 [1] : vector<8x32xf32> to vector<8xf32>
    %529 = vector.shape_cast %528 : vector<8xf32> to vector<8x1xf32>
    %cst_305 = arith.constant 3.200000e+01 : f32
    %530 = vector.broadcast %cst_305 : f32 to vector<8x1xf32>
    %531 = arith.divf %529, %530 : vector<8x1xf32>
    %532 = vector.broadcast %531 : vector<8x1xf32> to vector<8x32xf32>
    %533 = arith.subf %525, %532 : vector<8x32xf32>
    %534 = arith.mulf %533, %533 : vector<8x32xf32>
    %cst_306 = arith.constant dense<0.000000e+00> : vector<8xf32>
    %535 = vector.multi_reduction <add>, %534, %cst_306 [1] : vector<8x32xf32> to vector<8xf32>
    %536 = vector.shape_cast %535 : vector<8xf32> to vector<8x1xf32>
    %cst_307 = arith.constant 3.200000e+01 : f32
    %537 = vector.broadcast %cst_307 : f32 to vector<8x1xf32>
    %538 = arith.divf %536, %537 : vector<8x1xf32>
    %539 = vector.broadcast %531 : vector<8x1xf32> to vector<8x32xf32>
    %540 = arith.subf %525, %539 : vector<8x32xf32>
    %cst_308 = arith.constant 9.99999974E-6 : f32
    %541 = vector.broadcast %cst_308 : f32 to vector<8x1xf32>
    %542 = arith.addf %538, %541 : vector<8x1xf32>
    %543 = math.rsqrt %542 : vector<8x1xf32>
    %544 = vector.broadcast %543 : vector<8x1xf32> to vector<8x32xf32>
    %545 = arith.mulf %540, %544 : vector<8x32xf32>
    %546 = vector.broadcast %526 : vector<1x32xf32> to vector<8x32xf32>
    %547 = arith.mulf %545, %546 : vector<8x32xf32>
    %548 = vector.broadcast %527 : vector<1x32xf32> to vector<8x32xf32>
    %549 = arith.addf %547, %548 : vector<8x32xf32>
    %c0_309 = arith.constant 0 : index
    %c0_310 = arith.constant 0 : index
    %550 = vector.load %arg35[%c0_309, %c0_310] : memref<32x128xbf16, #tpu.memory_space<vmem>>, vector<32x128xbf16>
    %551 = arith.truncf %549 : vector<8x32xf32> to vector<8x32xbf16>
    %cst_311 = arith.constant dense<0.000000e+00> : vector<8x128xf32>
    %552 = tpu.matmul %551, %550, %cst_311 {dimension_numbers = #tpu.dot_dimension_numbers<[1], [0], [0], [1], [0, 0, 1, 1], [], []>} : vector<8x32xbf16>, vector<32x128xbf16>, vector<8x128xf32> -> vector<8x128xf32>
    %c0_312 = arith.constant 0 : index
    %c0_313 = arith.constant 0 : index
    %553 = vector.load %arg36[%c0_312, %c0_313] : memref<1x128xf32, #tpu.memory_space<vmem>>, vector<1x128xf32>
    %554 = vector.broadcast %553 : vector<1x128xf32> to vector<8x128xf32>
    %555 = arith.addf %552, %554 : vector<8x128xf32>
    %c0_i32 = arith.constant 0 : i32
    %556 = arith.cmpi eq, %arg1, %c0_i32 : i32
    %557 = arith.extui %556 : i1 to i32
    %c0_i32_314 = arith.constant 0 : i32
    %558 = arith.cmpi ne, %557, %c0_i32_314 : i32
    scf.if %558 {
      %c0_330 = arith.constant 0 : index
      %c0_331 = arith.constant 0 : index
      %c0_332 = arith.constant 0 : index
      %598 = vector.load %arg38[%c0_330, %c0_331, %c0_332] : memref<1x8x128xf32, #tpu.memory_space<vmem>>, vector<1x8x128xf32>
      %599 = vector.shape_cast %598 : vector<1x8x128xf32> to vector<8x128xf32>
      %600 = vector.shape_cast %555 : vector<8x128xf32> to vector<1x8x128xf32>
      tpu.vector_store %arg38[%c0_330, %c0_331, %c0_332], %600 {strides = array<i32>} : memref<1x8x128xf32, #tpu.memory_space<vmem>>, vector<1x8x128xf32>,
    } else {
    }
    %559 = vector.extract_strided_slice %555 {offsets = [0, 0], sizes = [7, 128], strides = [1, 1]} : vector<8x128xf32> to vector<7x128xf32>
    %cst_315 = arith.constant dense<0xFF800000> : vector<7xf32>
    %560 = vector.multi_reduction <maximumf>, %559, %cst_315 [1] : vector<7x128xf32> to vector<7xf32>
    %561 = vector.shape_cast %560 : vector<7xf32> to vector<7x1xf32>
    %562 = vector.broadcast %561 : vector<7x1xf32> to vector<7x128xf32>
    %563 = arith.subf %559, %562 : vector<7x128xf32>
    %564 = math.exp %563 : vector<7x128xf32>
    %cst_316 = arith.constant dense<0.000000e+00> : vector<7xf32>
    %565 = vector.multi_reduction <add>, %564, %cst_316 [1] : vector<7x128xf32> to vector<7xf32>
    %566 = vector.shape_cast %565 : vector<7xf32> to vector<7x1xf32>
    %567 = math.log %566 : vector<7x1xf32>
    %568 = arith.addf %561, %567 : vector<7x1xf32>
    %c0_317 = arith.constant 0 : index
    %c0_318 = arith.constant 0 : index
    %c0_319 = arith.constant 0 : index
    %569 = vector.load %arg6[%c0_317, %c0_318, %c0_319] : memref<1x7x1xi32, #tpu.memory_space<vmem>>, vector<1x7x1xi32>
    %570 = vector.shape_cast %569 : vector<1x7x1xi32> to vector<7x1xi32>
    %571 = tpu.iota {dimensions = array<i32: 1>} : vector<7x128xi32>
    %572 = vector.broadcast %570 : vector<7x1xi32> to vector<7x128xi32>
    %573 = arith.cmpi eq, %571, %572 : vector<7x128xi32>
    %cst_320 = arith.constant 0.000000e+00 : f32
    %574 = vector.broadcast %cst_320 : f32 to vector<7x128xf32>
    %575 = arith.select %573, %559, %574 : vector<7x128xi1>, vector<7x128xf32>
    %cst_321 = arith.constant dense<0.000000e+00> : vector<7xf32>
    %576 = vector.multi_reduction <add>, %575, %cst_321 [1] : vector<7x128xf32> to vector<7xf32>
    %577 = vector.shape_cast %576 : vector<7xf32> to vector<7x1xf32>
    %578 = arith.subf %577, %568 : vector<7x1xf32>
    %c0_i32_322 = arith.constant 0 : i32
    %579 = vector.broadcast %c0_i32_322 : i32 to vector<7x1xi32>
    %580 = arith.cmpi ne, %570, %579 : vector<7x1xi32>
    %581 = arith.extui %580 : vector<7x1xi1> to vector<7x1xi32>
    %582 = arith.sitofp %581 : vector<7x1xi32> to vector<7x1xf32>
    %583 = arith.mulf %578, %582 : vector<7x1xf32>
    %cst_323 = arith.constant dense<0.000000e+00> : vector<1xf32>
    %584 = vector.multi_reduction <add>, %583, %cst_323 [0] : vector<7x1xf32> to vector<1xf32>
    %585 = vector.shape_cast %584 : vector<1xf32> to vector<1x1xf32>
    %cst_324 = arith.constant dense<0.000000e+00> : vector<1xf32>
    %586 = vector.multi_reduction <add>, %582, %cst_324 [0] : vector<7x1xf32> to vector<1xf32>
    %587 = vector.shape_cast %586 : vector<1xf32> to vector<1x1xf32>
    %cst_325 = arith.constant 1.000000e+00 : f32
    %588 = vector.broadcast %cst_325 : f32 to vector<1x1xf32>
    %589 = arith.maximumf %587, %588 : vector<1x1xf32>
    %590 = math.log %589 : vector<1x1xf32>
    %cst_326 = arith.constant 2.000000e+00 : f32
    %591 = vector.broadcast %cst_326 : f32 to vector<1x1xf32>
    %592 = arith.mulf %591, %590 : vector<1x1xf32>
    %593 = math.exp %592 : vector<1x1xf32>
    %594 = arith.divf %585, %593 : vector<1x1xf32>
    %c0_327 = arith.constant 0 : index
    %c0_328 = arith.constant 0 : index
    %c0_329 = arith.constant 0 : index
    %595 = vector.load %arg37[%c0_327, %c0_328, %c0_329] : memref<1x1x1xf32, #tpu.memory_space<vmem>>, vector<1x1x1xf32>
    %596 = vector.shape_cast %595 : vector<1x1x1xf32> to vector<1x1xf32>
    %597 = vector.shape_cast %594 : vector<1x1xf32> to vector<1x1x1xf32>
    tpu.vector_store %arg37[%c0_327, %c0_328, %c0_329], %597 {strides = array<i32>} : memref<1x1x1xf32, #tpu.memory_space<vmem>>, vector<1x1x1xf32>,
    return
  }
  func.func @transform_0(%arg0: i32, %arg1: i32) -> (i32, i32, i32) {
    %c3_i32 = arith.constant 3 : i32
    %0 = arith.muli %arg0, %c3_i32 : i32
    %1 = arith.addi %0, %arg1 : i32
    %c0_i32 = arith.constant 0 : i32
    %c0_i32_0 = arith.constant 0 : i32
    %c0_i32_1 = arith.constant 0 : i32
    return %1, %c0_i32, %c0_i32_0 : i32, i32, i32
  }
  func.func @transform_1(%arg0: i32, %arg1: i32) -> (i32, i32, i32) {
    %c3_i32 = arith.constant 3 : i32
    %0 = arith.muli %arg0, %c3_i32 : i32
    %1 = arith.addi %0, %arg1 : i32
    %c0_i32 = arith.constant 0 : i32
    %c0_i32_0 = arith.constant 0 : i32
    %c0_i32_1 = arith.constant 0 : i32
    return %1, %c0_i32, %c0_i32_0 : i32, i32, i32
  }
  func.func @transform_2(%arg0: i32, %arg1: i32) -> (i32, i32, i32) {
    %c0_i32 = arith.constant 0 : i32
    %c0_i32_0 = arith.constant 0 : i32
    %c0_i32_1 = arith.constant 0 : i32
    return %arg0, %c0_i32, %c0_i32_0 : i32, i32, i32
  }
  func.func @transform_3(%arg0: i32, %arg1: i32) -> (i32, i32, i32) {
    %c0_i32 = arith.constant 0 : i32
    %c0_i32_0 = arith.constant 0 : i32
    %c0_i32_1 = arith.constant 0 : i32
    return %arg0, %c0_i32, %c0_i32_0 : i32, i32, i32
  }
  func.func @transform_4(%arg0: i32, %arg1: i32) -> (i32, i32, i32) {
    %c3_i32 = arith.constant 3 : i32
    %0 = arith.muli %arg0, %c3_i32 : i32
    %1 = arith.addi %0, %arg1 : i32
    %c0_i32 = arith.constant 0 : i32
    %c0_i32_0 = arith.constant 0 : i32
    %c0_i32_1 = arith.constant 0 : i32
    return %1, %c0_i32, %c0_i32_0 : i32, i32, i32
  }
  func.func @transform_5(%arg0: i32, %arg1: i32) -> (i32, i32) {
    %c0_i32 = arith.constant 0 : i32
    %c0_i32_0 = arith.constant 0 : i32
    %c0_i32_1 = arith.constant 0 : i32
    return %c0_i32, %c0_i32_0 : i32, i32
  }
  func.func @transform_6(%arg0: i32, %arg1: i32) -> (i32, i32) {
    %c0_i32 = arith.constant 0 : i32
    %c0_i32_0 = arith.constant 0 : i32
    %c0_i32_1 = arith.constant 0 : i32
    return %c0_i32, %c0_i32_0 : i32, i32
  }
  func.func @transform_7(%arg0: i32, %arg1: i32) -> (i32, i32, i32) {
    %c0_i32 = arith.constant 0 : i32
    %c0_i32_0 = arith.constant 0 : i32
    %c0_i32_1 = arith.constant 0 : i32
    %c0_i32_2 = arith.constant 0 : i32
    return %c0_i32, %c0_i32_0, %c0_i32_1 : i32, i32, i32
  }
  func.func @transform_8(%arg0: i32, %arg1: i32) -> (i32, i32, i32) {
    %c0_i32 = arith.constant 0 : i32
    %c0_i32_0 = arith.constant 0 : i32
    %c0_i32_1 = arith.constant 0 : i32
    %c0_i32_2 = arith.constant 0 : i32
    return %c0_i32, %c0_i32_0, %c0_i32_1 : i32, i32, i32
  }
  func.func @transform_9(%arg0: i32, %arg1: i32) -> (i32, i32, i32) {
    %c0_i32 = arith.constant 0 : i32
    %c0_i32_0 = arith.constant 0 : i32
    %c0_i32_1 = arith.constant 0 : i32
    %c0_i32_2 = arith.constant 0 : i32
    return %c0_i32, %c0_i32_0, %c0_i32_1 : i32, i32, i32
  }
  func.func @transform_10(%arg0: i32, %arg1: i32) -> (i32, i32, i32) {
    %c0_i32 = arith.constant 0 : i32
    %c0_i32_0 = arith.constant 0 : i32
    %c0_i32_1 = arith.constant 0 : i32
    %c0_i32_2 = arith.constant 0 : i32
    return %c0_i32, %c0_i32_0, %c0_i32_1 : i32, i32, i32
  }
  func.func @transform_11(%arg0: i32, %arg1: i32) -> (i32, i32, i32) {
    %c0_i32 = arith.constant 0 : i32
    %c0_i32_0 = arith.constant 0 : i32
    %c0_i32_1 = arith.constant 0 : i32
    %c0_i32_2 = arith.constant 0 : i32
    return %c0_i32, %c0_i32_0, %c0_i32_1 : i32, i32, i32
  }
  func.func @transform_12(%arg0: i32, %arg1: i32) -> (i32, i32, i32) {
    %c0_i32 = arith.constant 0 : i32
    %c0_i32_0 = arith.constant 0 : i32
    %c0_i32_1 = arith.constant 0 : i32
    %c0_i32_2 = arith.constant 0 : i32
    return %c0_i32, %c0_i32_0, %c0_i32_1 : i32, i32, i32
  }
  func.func @transform_13(%arg0: i32, %arg1: i32) -> (i32, i32, i32) {
    %c0_i32 = arith.constant 0 : i32
    %c0_i32_0 = arith.constant 0 : i32
    %c0_i32_1 = arith.constant 0 : i32
    %c0_i32_2 = arith.constant 0 : i32
    return %c0_i32, %c0_i32_0, %c0_i32_1 : i32, i32, i32
  }
  func.func @transform_14(%arg0: i32, %arg1: i32) -> (i32, i32) {
    %c0_i32 = arith.constant 0 : i32
    %c0_i32_0 = arith.constant 0 : i32
    %c0_i32_1 = arith.constant 0 : i32
    return %c0_i32, %c0_i32_0 : i32, i32
  }
  func.func @transform_15(%arg0: i32, %arg1: i32) -> (i32, i32) {
    %c0_i32 = arith.constant 0 : i32
    %c0_i32_0 = arith.constant 0 : i32
    %c0_i32_1 = arith.constant 0 : i32
    return %c0_i32, %c0_i32_0 : i32, i32
  }
  func.func @transform_16(%arg0: i32, %arg1: i32) -> (i32, i32) {
    %c0_i32 = arith.constant 0 : i32
    %c0_i32_0 = arith.constant 0 : i32
    %c0_i32_1 = arith.constant 0 : i32
    return %c0_i32, %c0_i32_0 : i32, i32
  }
  func.func @transform_17(%arg0: i32, %arg1: i32) -> (i32, i32, i32) {
    %c0_i32 = arith.constant 0 : i32
    %c0_i32_0 = arith.constant 0 : i32
    %c0_i32_1 = arith.constant 0 : i32
    %c0_i32_2 = arith.constant 0 : i32
    return %c0_i32, %c0_i32_0, %c0_i32_1 : i32, i32, i32
  }
  func.func @transform_18(%arg0: i32, %arg1: i32) -> (i32, i32, i32) {
    %c0_i32 = arith.constant 0 : i32
    %c0_i32_0 = arith.constant 0 : i32
    %c0_i32_1 = arith.constant 0 : i32
    %c0_i32_2 = arith.constant 0 : i32
    return %c0_i32, %c0_i32_0, %c0_i32_1 : i32, i32, i32
  }
  func.func @transform_19(%arg0: i32, %arg1: i32) -> (i32, i32, i32) {
    %c0_i32 = arith.constant 0 : i32
    %c0_i32_0 = arith.constant 0 : i32
    %c0_i32_1 = arith.constant 0 : i32
    %c0_i32_2 = arith.constant 0 : i32
    return %c0_i32, %c0_i32_0, %c0_i32_1 : i32, i32, i32
  }
  func.func @transform_20(%arg0: i32, %arg1: i32) -> (i32, i32, i32) {
    %c0_i32 = arith.constant 0 : i32
    %c0_i32_0 = arith.constant 0 : i32
    %c0_i32_1 = arith.constant 0 : i32
    %c0_i32_2 = arith.constant 0 : i32
    return %c0_i32, %c0_i32_0, %c0_i32_1 : i32, i32, i32
  }
  func.func @transform_21(%arg0: i32, %arg1: i32) -> (i32, i32, i32) {
    %c0_i32 = arith.constant 0 : i32
    %c0_i32_0 = arith.constant 0 : i32
    %c0_i32_1 = arith.constant 0 : i32
    %c0_i32_2 = arith.constant 0 : i32
    return %c0_i32, %c0_i32_0, %c0_i32_1 : i32, i32, i32
  }
  func.func @transform_22(%arg0: i32, %arg1: i32) -> (i32, i32, i32) {
    %c0_i32 = arith.constant 0 : i32
    %c0_i32_0 = arith.constant 0 : i32
    %c0_i32_1 = arith.constant 0 : i32
    %c0_i32_2 = arith.constant 0 : i32
    return %c0_i32, %c0_i32_0, %c0_i32_1 : i32, i32, i32
  }
  func.func @transform_23(%arg0: i32, %arg1: i32) -> (i32, i32, i32) {
    %c0_i32 = arith.constant 0 : i32
    %c0_i32_0 = arith.constant 0 : i32
    %c0_i32_1 = arith.constant 0 : i32
    %c0_i32_2 = arith.constant 0 : i32
    return %c0_i32, %c0_i32_0, %c0_i32_1 : i32, i32, i32
  }
  func.func @transform_24(%arg0: i32, %arg1: i32) -> (i32, i32) {
    %c0_i32 = arith.constant 0 : i32
    %c0_i32_0 = arith.constant 0 : i32
    %c0_i32_1 = arith.constant 0 : i32
    return %c0_i32, %c0_i32_0 : i32, i32
  }
  func.func @transform_25(%arg0: i32, %arg1: i32) -> (i32, i32) {
    %c0_i32 = arith.constant 0 : i32
    %c0_i32_0 = arith.constant 0 : i32
    %c0_i32_1 = arith.constant 0 : i32
    return %c0_i32, %c0_i32_0 : i32, i32
  }
  func.func @transform_26(%arg0: i32, %arg1: i32) -> (i32, i32) {
    %c0_i32 = arith.constant 0 : i32
    %c0_i32_0 = arith.constant 0 : i32
    %c0_i32_1 = arith.constant 0 : i32
    return %c0_i32, %c0_i32_0 : i32, i32
  }
  func.func @transform_27(%arg0: i32, %arg1: i32) -> (i32, i32) {
    %c0_i32 = arith.constant 0 : i32
    %c0_i32_0 = arith.constant 0 : i32
    %c0_i32_1 = arith.constant 0 : i32
    return %c0_i32, %c0_i32_0 : i32, i32
  }
  func.func @transform_28(%arg0: i32, %arg1: i32) -> (i32, i32) {
    %c0_i32 = arith.constant 0 : i32
    %c0_i32_0 = arith.constant 0 : i32
    %c0_i32_1 = arith.constant 0 : i32
    return %c0_i32, %c0_i32_0 : i32, i32
  }
  func.func @transform_29(%arg0: i32, %arg1: i32) -> (i32, i32) {
    %c0_i32 = arith.constant 0 : i32
    %c0_i32_0 = arith.constant 0 : i32
    %c0_i32_1 = arith.constant 0 : i32
    return %c0_i32, %c0_i32_0 : i32, i32
  }
  func.func @transform_30(%arg0: i32, %arg1: i32) -> (i32, i32) {
    %c0_i32 = arith.constant 0 : i32
    %c0_i32_0 = arith.constant 0 : i32
    %c0_i32_1 = arith.constant 0 : i32
    return %c0_i32, %c0_i32_0 : i32, i32
  }
  func.func @transform_31(%arg0: i32, %arg1: i32) -> (i32, i32) {
    %c0_i32 = arith.constant 0 : i32
    %c0_i32_0 = arith.constant 0 : i32
    %c0_i32_1 = arith.constant 0 : i32
    return %c0_i32, %c0_i32_0 : i32, i32
  }
  func.func @transform_32(%arg0: i32, %arg1: i32) -> (i32, i32) {
    %c0_i32 = arith.constant 0 : i32
    %c0_i32_0 = arith.constant 0 : i32
    %c0_i32_1 = arith.constant 0 : i32
    return %c0_i32, %c0_i32_0 : i32, i32
  }
  func.func @transform_33(%arg0: i32, %arg1: i32) -> (i32, i32) {
    %c0_i32 = arith.constant 0 : i32
    %c0_i32_0 = arith.constant 0 : i32
    %c0_i32_1 = arith.constant 0 : i32
    return %c0_i32, %c0_i32_0 : i32, i32
  }
  func.func @transform_34(%arg0: i32, %arg1: i32) -> (i32, i32) {
    %c0_i32 = arith.constant 0 : i32
    %c0_i32_0 = arith.constant 0 : i32
    %c0_i32_1 = arith.constant 0 : i32
    return %c0_i32, %c0_i32_0 : i32, i32
  }
  func.func @transform_35(%arg0: i32, %arg1: i32) -> (i32, i32, i32) {
    %c3_i32 = arith.constant 3 : i32
    %0 = arith.muli %arg0, %c3_i32 : i32
    %1 = arith.addi %0, %arg1 : i32
    %c0_i32 = arith.constant 0 : i32
    %c0_i32_0 = arith.constant 0 : i32
    %c0_i32_1 = arith.constant 0 : i32
    return %1, %c0_i32, %c0_i32_0 : i32, i32, i32
  }
  func.func @transform_36(%arg0: i32, %arg1: i32) -> (i32, i32, i32) {
    %c0_i32 = arith.constant 0 : i32
    %c0_i32_0 = arith.constant 0 : i32
    %c0_i32_1 = arith.constant 0 : i32
    return %arg0, %c0_i32, %c0_i32_0 : i32, i32, i32
  }
}

</mosaic_0001>

<llo_original>
// kernel: brio_forward.2
$region0: #{brio_forward.2}
  #allocation0 [shape = 'u32[]', space=smem, size = 0x4, offset = 0x4, fixed_abs, tag = 'smem constant byte address 0x4 - core index']
  #allocation1 [shape = 'u32[144,128]{1,0:T(1,128)}', space=vmem, size = 0x12000, scoped, tag = 'internal scratch']
  %s0 = inlined_call_operand.vmem [shape: f32[2,16,32], index: 0, kind: input, shape index: {}]
  %s1 = inlined_call_operand.vmem [shape: f32[2,1,16], index: 1, kind: input, shape index: {}]
  %s2 = inlined_call_operand.vmem [shape: f32[1,32], index: 2, kind: input, shape index: {}]
  %s3 = inlined_call_operand.vmem [shape: f32[1,32], index: 3, kind: input, shape index: {}]
  %s4 = inlined_call_operand.vmem [shape: bf16[4,32,8], index: 4, kind: input, shape index: {}]
  %s5 = inlined_call_operand.vmem [shape: f32[4,1,8], index: 5, kind: input, shape index: {}]
  %s6 = inlined_call_operand.vmem [shape: bf16[4,32,8], index: 6, kind: input, shape index: {}]
  %s7 = inlined_call_operand.vmem [shape: f32[4,1,8], index: 7, kind: input, shape index: {}]
  %s8 = inlined_call_operand.vmem [shape: bf16[4,32,8], index: 8, kind: input, shape index: {}]
  %s9 = inlined_call_operand.vmem [shape: f32[4,1,8], index: 9, kind: input, shape index: {}]
  %s10 = inlined_call_operand.vmem [shape: bf16[4,8,32], index: 10, kind: input, shape index: {}]
  %s11 = inlined_call_operand.vmem [shape: f32[1,32], index: 11, kind: input, shape index: {}]
  %s12 = inlined_call_operand.vmem [shape: f32[1,32], index: 12, kind: input, shape index: {}]
  %s13 = inlined_call_operand.vmem [shape: f32[1,32], index: 13, kind: input, shape index: {}]
  %s14 = inlined_call_operand.vmem [shape: bf16[32,64], index: 14, kind: input, shape index: {}]
  %s15 = inlined_call_operand.vmem [shape: f32[1,64], index: 15, kind: input, shape index: {}]
  %s16 = inlined_call_operand.vmem [shape: bf16[64,32], index: 16, kind: input, shape index: {}]
  %s17 = inlined_call_operand.vmem [shape: f32[1,32], index: 17, kind: input, shape index: {}]
  %s18 = inlined_call_operand.vmem [shape: f32[1,32], index: 18, kind: input, shape index: {}]
  %s19 = inlined_call_operand.vmem [shape: f32[1,32], index: 19, kind: input, shape index: {}]
  %s20 = inlined_call_operand.vmem [shape: f32[2,16,32], index: 20, kind: output, shape index: {}]
  %s21 = sld [smem:[#allocation0]]
  $region113: #{brio_forward.2} parent=0
    _
  %s23 = ssub.s32 1, %s21
  %s24 = scalar_select 0, %s23, %s21
  loop: start=0, step=1, limit=4
  $region2: #{brio_forward.2} parent=0 // loop_pre_header
    _
  $region3: #{brio_forward.2} parent=0 // loop_header
    %s26 = sphi 0, %s30
    %p27 = scmp.ge.s32.totalorder %s26, 4
    %s36 = sphi 0, %s38
    %s39 = sphi 0, %s36
    %s40 = sphi 0, %s39
    %s56 = sphi 0, %s40
    %s62 = sphi 0, %s64
    %s65 = sphi 0, %s62
    %s66 = sphi 0, %s65
    %s82 = sphi 0, %s66
    %s86 = sphi 0, %s86
    %s88 = sphi 0, %s86
    %s89 = sphi 0, %s88
    %s103 = sphi 0, %s89
    %s107 = sphi 0, %s107
    %s109 = sphi 0, %s107
    %s110 = sphi 0, %s109
    %s124 = sphi 0, %s110
    %s128 = sphi 0, %s128
    %s130 = sphi 0, %s128
    %s131 = sphi 0, %s130
    %s145 = sphi 0, %s131
    %s149 = sphi 0, %s149
    %s151 = sphi 0, %s149
    %s152 = sphi 0, %s151
    %s166 = sphi 0, %s152
    %s170 = sphi 0, %s170
    %s172 = sphi 0, %s170
    %s173 = sphi 0, %s172
    %s187 = sphi 0, %s173
    %s191 = sphi 0, %s191
    %s193 = sphi 0, %s191
    %s194 = sphi 0, %s193
    %s208 = sphi 0, %s194
    %s212 = sphi 0, %s212
    %s214 = sphi 0, %s212
    %s215 = sphi 0, %s214
    %s229 = sphi 0, %s215
    %s233 = sphi 0, %s233
    %s235 = sphi 0, %s233
    %s236 = sphi 0, %s235
    %s250 = sphi 0, %s236
    %s254 = sphi 0, %s254
    %s256 = sphi 0, %s254
    %s257 = sphi 0, %s256
    %s271 = sphi 0, %s257
    %s275 = sphi 0, %s275
    %s277 = sphi 0, %s275
    %s278 = sphi 0, %s277
    %s292 = sphi 0, %s278
    %s296 = sphi 0, %s296
    %s298 = sphi 0, %s296
    %s299 = sphi 0, %s298
    %s313 = sphi 0, %s299
    %s317 = sphi 0, %s317
    %s319 = sphi 0, %s317
    %s320 = sphi 0, %s319
    %s334 = sphi 0, %s320
    %s338 = sphi 0, %s338
    %s340 = sphi 0, %s338
    %s341 = sphi 0, %s340
    %s355 = sphi 0, %s341
    %s359 = sphi 0, %s359
    %s361 = sphi 0, %s359
    %s362 = sphi 0, %s361
    %s376 = sphi 0, %s362
    %s380 = sphi 0, %s380
    %s382 = sphi 0, %s380
    %s383 = sphi 0, %s382
    %s397 = sphi 0, %s383
    %s401 = sphi 0, %s401
    %s403 = sphi 0, %s401
    %s404 = sphi 0, %s403
    %s418 = sphi 0, %s404
    %s422 = sphi 0, %s422
    %s424 = sphi 0, %s422
    %s425 = sphi 0, %s424
    %s439 = sphi 0, %s425
    %s443 = sphi 0, %s443
    %s445 = sphi 0, %s443
    %s446 = sphi 0, %s445
    %s460 = sphi 0, %s446
    %s466 = sphi 0, %s468
    %s469 = sphi 0, %s466
    %s470 = sphi 0, %s469
    %s486 = sphi 0, %s470
  $region4: #{brio_forward.2} parent=0 // loop_header_branch
    %29 = sbr.rel (%p27) target = $region8
  $region5: #{brio_forward.2} parent=0 // loop_body
    %s31 = ssub.s32 %s26, 1
    %s32 = ssub.s32 %s26, 2
    %s33 = sadd.s32 %s26, 1
    %s34 = ssub.s32 %s26, %s33
    %p35 = scmp.eq.s32.totalorder %s34, 0
    %s37 = sadd.s32 %s36, 1
    %s38 = scalar_select %p35, %s36, %s37
    %p41 = pneg %p35
    %p42 = scmp.eq.s32.totalorder %s26, 1
    %p43 = por %p41, %p42
    %p44 = scmp.ne.s32.totalorder %s36, %s39
    %p45 = scmp.eq.s32.totalorder %s26, 0
    %p46 = por %p44, %p45
    %p47 = scmp.ne.s32.totalorder %s36, %s39
    %p48 = scmp.eq.s32.totalorder %s31, 1
    %p49 = por %p47, %p48
    %p50 = scmp.ne.s32.totalorder %s39, %s40
    %p51 = scmp.eq.s32.totalorder %s31, 0
    %p52 = por %p50, %p51
    %p53 = scmp.ne.s32.totalorder %s39, %s40
    %p54 = scmp.eq.s32.totalorder %s32, 1
    %p55 = por %p53, %p54
    %p57 = scmp.ne.s32.totalorder %s40, %s56
    %p58 = scmp.eq.s32.totalorder %s32, 0
    %p59 = por %p57, %p58
    %s60 = ssub.s32 %s26, %s33
    %p61 = scmp.eq.s32.totalorder %s60, 0
    %s63 = sadd.s32 %s62, 1
    %s64 = scalar_select %p61, %s62, %s63
    %p67 = pneg %p61
    %p68 = scmp.eq.s32.totalorder %s26, 1
    %p69 = por %p67, %p68
    %p70 = scmp.ne.s32.totalorder %s62, %s65
    %p71 = scmp.eq.s32.totalorder %s26, 0
    %p72 = por %p70, %p71
    %p73 = scmp.ne.s32.totalorder %s62, %s65
    %p74 = scmp.eq.s32.totalorder %s31, 1
    %p75 = por %p73, %p74
    %p76 = scmp.ne.s32.totalorder %s65, %s66
    %p77 = scmp.eq.s32.totalorder %s31, 0
    %p78 = por %p76, %p77
    %p79 = scmp.ne.s32.totalorder %s65, %s66
    %p80 = scmp.eq.s32.totalorder %s32, 1
    %p81 = por %p79, %p80
    %p83 = scmp.ne.s32.totalorder %s66, %s82
    %p84 = scmp.eq.s32.totalorder %s32, 0
    %p85 = por %p83, %p84
    %s87 = sadd.s32 %s86, 1
    %p90 = scmp.eq.s32.totalorder %s26, 1
    %p91 = scmp.ne.s32.totalorder %s86, %s88
    %p92 = scmp.eq.s32.totalorder %s26, 0
    %p93 = por %p91, %p92
    %p94 = scmp.ne.s32.totalorder %s86, %s88
    %p95 = scmp.eq.s32.totalorder %s31, 1
    %p96 = por %p94, %p95
    %p97 = scmp.ne.s32.totalorder %s88, %s89
    %p98 = scmp.eq.s32.totalorder %s31, 0
    %p99 = por %p97, %p98
    %p100 = scmp.ne.s32.totalorder %s88, %s89
    %p101 = scmp.eq.s32.totalorder %s32, 1
    %p102 = por %p100, %p101
    %p104 = scmp.ne.s32.totalorder %s89, %s103
    %p105 = scmp.eq.s32.totalorder %s32, 0
    %p106 = por %p104, %p105
    %s108 = sadd.s32 %s107, 1
    %p111 = scmp.eq.s32.totalorder %s26, 1
    %p112 = scmp.ne.s32.totalorder %s107, %s109
    %p113 = scmp.eq.s32.totalorder %s26, 0
    %p114 = por %p112, %p113
    %p115 = scmp.ne.s32.totalorder %s107, %s109
    %p116 = scmp.eq.s32.totalorder %s31, 1
    %p117 = por %p115, %p116
    %p118 = scmp.ne.s32.totalorder %s109, %s110
    %p119 = scmp.eq.s32.totalorder %s31, 0
    %p120 = por %p118, %p119
    %p121 = scmp.ne.s32.totalorder %s109, %s110
    %p122 = scmp.eq.s32.totalorder %s32, 1
    %p123 = por %p121, %p122
    %p125 = scmp.ne.s32.totalorder %s110, %s124
    %p126 = scmp.eq.s32.totalorder %s32, 0
    %p127 = por %p125, %p126
    %s129 = sadd.s32 %s128, 1
    %p132 = scmp.eq.s32.totalorder %s26, 1
    %p133 = scmp.ne.s32.totalorder %s128, %s130
    %p134 = scmp.eq.s32.totalorder %s26, 0
    %p135 = por %p133, %p134
    %p136 = scmp.ne.s32.totalorder %s128, %s130
    %p137 = scmp.eq.s32.totalorder %s31, 1
    %p138 = por %p136, %p137
    %p139 = scmp.ne.s32.totalorder %s130, %s131
    %p140 = scmp.eq.s32.totalorder %s31, 0
    %p141 = por %p139, %p140
    %p142 = scmp.ne.s32.totalorder %s130, %s131
    %p143 = scmp.eq.s32.totalorder %s32, 1
    %p144 = por %p142, %p143
    %p146 = scmp.ne.s32.totalorder %s131, %s145
    %p147 = scmp.eq.s32.totalorder %s32, 0
    %p148 = por %p146, %p147
    %s150 = sadd.s32 %s149, 1
    %p153 = scmp.eq.s32.totalorder %s26, 1
    %p154 = scmp.ne.s32.totalorder %s149, %s151
    %p155 = scmp.eq.s32.totalorder %s26, 0
    %p156 = por %p154, %p155
    %p157 = scmp.ne.s32.totalorder %s149, %s151
    %p158 = scmp.eq.s32.totalorder %s31, 1
    %p159 = por %p157, %p158
    %p160 = scmp.ne.s32.totalorder %s151, %s152
    %p161 = scmp.eq.s32.totalorder %s31, 0
    %p162 = por %p160, %p161
    %p163 = scmp.ne.s32.totalorder %s151, %s152
    %p164 = scmp.eq.s32.totalorder %s32, 1
    %p165 = por %p163, %p164
    %p167 = scmp.ne.s32.totalorder %s152, %s166
    %p168 = scmp.eq.s32.totalorder %s32, 0
    %p169 = por %p167, %p168
    %s171 = sadd.s32 %s170, 1
    %p174 = scmp.eq.s32.totalorder %s26, 1
    %p175 = scmp.ne.s32.totalorder %s170, %s172
    %p176 = scmp.eq.s32.totalorder %s26, 0
    %p177 = por %p175, %p176
    %p178 = scmp.ne.s32.totalorder %s170, %s172
    %p179 = scmp.eq.s32.totalorder %s31, 1
    %p180 = por %p178, %p179
    %p181 = scmp.ne.s32.totalorder %s172, %s173
    %p182 = scmp.eq.s32.totalorder %s31, 0
    %p183 = por %p181, %p182
    %p184 = scmp.ne.s32.totalorder %s172, %s173
    %p185 = scmp.eq.s32.totalorder %s32, 1
    %p186 = por %p184, %p185
    %p188 = scmp.ne.s32.totalorder %s173, %s187
    %p189 = scmp.eq.s32.totalorder %s32, 0
    %p190 = por %p188, %p189
    %s192 = sadd.s32 %s191, 1
    %p195 = scmp.eq.s32.totalorder %s26, 1
    %p196 = scmp.ne.s32.totalorder %s191, %s193
    %p197 = scmp.eq.s32.totalorder %s26, 0
    %p198 = por %p196, %p197
    %p199 = scmp.ne.s32.totalorder %s191, %s193
    %p200 = scmp.eq.s32.totalorder %s31, 1
    %p201 = por %p199, %p200
    %p202 = scmp.ne.s32.totalorder %s193, %s194
    %p203 = scmp.eq.s32.totalorder %s31, 0
    %p204 = por %p202, %p203
    %p205 = scmp.ne.s32.totalorder %s193, %s194
    %p206 = scmp.eq.s32.totalorder %s32, 1
    %p207 = por %p205, %p206
    %p209 = scmp.ne.s32.totalorder %s194, %s208
    %p210 = scmp.eq.s32.totalorder %s32, 0
    %p211 = por %p209, %p210
    %s213 = sadd.s32 %s212, 1
    %p216 = scmp.eq.s32.totalorder %s26, 1
    %p217 = scmp.ne.s32.totalorder %s212, %s214
    %p218 = scmp.eq.s32.totalorder %s26, 0
    %p219 = por %p217, %p218
    %p220 = scmp.ne.s32.totalorder %s212, %s214
    %p221 = scmp.eq.s32.totalorder %s31, 1
    %p222 = por %p220, %p221
    %p223 = scmp.ne.s32.totalorder %s214, %s215
    %p224 = scmp.eq.s32.totalorder %s31, 0
    %p225 = por %p223, %p224
    %p226 = scmp.ne.s32.totalorder %s214, %s215
    %p227 = scmp.eq.s32.totalorder %s32, 1
    %p228 = por %p226, %p227
    %p230 = scmp.ne.s32.totalorder %s215, %s229
    %p231 = scmp.eq.s32.totalorder %s32, 0
    %p232 = por %p230, %p231
    %s234 = sadd.s32 %s233, 1
    %p237 = scmp.eq.s32.totalorder %s26, 1
    %p238 = scmp.ne.s32.totalorder %s233, %s235
    %p239 = scmp.eq.s32.totalorder %s26, 0
    %p240 = por %p238, %p239
    %p241 = scmp.ne.s32.totalorder %s233, %s235
    %p242 = scmp.eq.s32.totalorder %s31, 1
    %p243 = por %p241, %p242
    %p244 = scmp.ne.s32.totalorder %s235, %s236
    %p245 = scmp.eq.s32.totalorder %s31, 0
    %p246 = por %p244, %p245
    %p247 = scmp.ne.s32.totalorder %s235, %s236
    %p248 = scmp.eq.s32.totalorder %s32, 1
    %p249 = por %p247, %p248
    %p251 = scmp.ne.s32.totalorder %s236, %s250
    %p252 = scmp.eq.s32.totalorder %s32, 0
    %p253 = por %p251, %p252
    %s255 = sadd.s32 %s254, 1
    %p258 = scmp.eq.s32.totalorder %s26, 1
    %p259 = scmp.ne.s32.totalorder %s254, %s256
    %p260 = scmp.eq.s32.totalorder %s26, 0
    %p261 = por %p259, %p260
    %p262 = scmp.ne.s32.totalorder %s254, %s256
    %p263 = scmp.eq.s32.totalorder %s31, 1
    %p264 = por %p262, %p263
    %p265 = scmp.ne.s32.totalorder %s256, %s257
    %p266 = scmp.eq.s32.totalorder %s31, 0
    %p267 = por %p265, %p266
    %p268 = scmp.ne.s32.totalorder %s256, %s257
    %p269 = scmp.eq.s32.totalorder %s32, 1
    %p270 = por %p268, %p269
    %p272 = scmp.ne.s32.totalorder %s257, %s271
    %p273 = scmp.eq.s32.totalorder %s32, 0
    %p274 = por %p272, %p273
    %s276 = sadd.s32 %s275, 1
    %p279 = scmp.eq.s32.totalorder %s26, 1
    %p280 = scmp.ne.s32.totalorder %s275, %s277
    %p281 = scmp.eq.s32.totalorder %s26, 0
    %p282 = por %p280, %p281
    %p283 = scmp.ne.s32.totalorder %s275, %s277
    %p284 = scmp.eq.s32.totalorder %s31, 1
    %p285 = por %p283, %p284
    %p286 = scmp.ne.s32.totalorder %s277, %s278
    %p287 = scmp.eq.s32.totalorder %s31, 0
    %p288 = por %p286, %p287
    %p289 = scmp.ne.s32.totalorder %s277, %s278
    %p290 = scmp.eq.s32.totalorder %s32, 1
    %p291 = por %p289, %p290
    %p293 = scmp.ne.s32.totalorder %s278, %s292
    %p294 = scmp.eq.s32.totalorder %s32, 0
    %p295 = por %p293, %p294
    %s297 = sadd.s32 %s296, 1
    %p300 = scmp.eq.s32.totalorder %s26, 1
    %p301 = scmp.ne.s32.totalorder %s296, %s298
    %p302 = scmp.eq.s32.totalorder %s26, 0
    %p303 = por %p301, %p302
    %p304 = scmp.ne.s32.totalorder %s296, %s298
    %p305 = scmp.eq.s32.totalorder %s31, 1
    %p306 = por %p304, %p305
    %p307 = scmp.ne.s32.totalorder %s298, %s299
    %p308 = scmp.eq.s32.totalorder %s31, 0
    %p309 = por %p307, %p308
    %p310 = scmp.ne.s32.totalorder %s298, %s299
    %p311 = scmp.eq.s32.totalorder %s32, 1
    %p312 = por %p310, %p311
    %p314 = scmp.ne.s32.totalorder %s299, %s313
    %p315 = scmp.eq.s32.totalorder %s32, 0
    %p316 = por %p314, %p315
    %s318 = sadd.s32 %s317, 1
    %p321 = scmp.eq.s32.totalorder %s26, 1
    %p322 = scmp.ne.s32.totalorder %s317, %s319
    %p323 = scmp.eq.s32.totalorder %s26, 0
    %p324 = por %p322, %p323
    %p325 = scmp.ne.s32.totalorder %s317, %s319
    %p326 = scmp.eq.s32.totalorder %s31, 1
    %p327 = por %p325, %p326
    %p328 = scmp.ne.s32.totalorder %s319, %s320
    %p329 = scmp.eq.s32.totalorder %s31, 0
    %p330 = por %p328, %p329
    %p331 = scmp.ne.s32.totalorder %s319, %s320
    %p332 = scmp.eq.s32.totalorder %s32, 1
    %p333 = por %p331, %p332
    %p335 = scmp.ne.s32.totalorder %s320, %s334
    %p336 = scmp.eq.s32.totalorder %s32, 0
    %p337 = por %p335, %p336
    %s339 = sadd.s32 %s338, 1
    %p342 = scmp.eq.s32.totalorder %s26, 1
    %p343 = scmp.ne.s32.totalorder %s338, %s340
    %p344 = scmp.eq.s32.totalorder %s26, 0
    %p345 = por %p343, %p344
    %p346 = scmp.ne.s32.totalorder %s338, %s340
    %p347 = scmp.eq.s32.totalorder %s31, 1
    %p348 = por %p346, %p347
    %p349 = scmp.ne.s32.totalorder %s340, %s341
    %p350 = scmp.eq.s32.totalorder %s31, 0
    %p351 = por %p349, %p350
    %p352 = scmp.ne.s32.totalorder %s340, %s341
    %p353 = scmp.eq.s32.totalorder %s32, 1
    %p354 = por %p352, %p353
    %p356 = scmp.ne.s32.totalorder %s341, %s355
    %p357 = scmp.eq.s32.totalorder %s32, 0
    %p358 = por %p356, %p357
    %s360 = sadd.s32 %s359, 1
    %p363 = scmp.eq.s32.totalorder %s26, 1
    %p364 = scmp.ne.s32.totalorder %s359, %s361
    %p365 = scmp.eq.s32.totalorder %s26, 0
    %p366 = por %p364, %p365
    %p367 = scmp.ne.s32.totalorder %s359, %s361
    %p368 = scmp.eq.s32.totalorder %s31, 1
    %p369 = por %p367, %p368
    %p370 = scmp.ne.s32.totalorder %s361, %s362
    %p371 = scmp.eq.s32.totalorder %s31, 0
    %p372 = por %p370, %p371
    %p373 = scmp.ne.s32.totalorder %s361, %s362
    %p374 = scmp.eq.s32.totalorder %s32, 1
    %p375 = por %p373, %p374
    %p377 = scmp.ne.s32.totalorder %s362, %s376
    %p378 = scmp.eq.s32.totalorder %s32, 0
    %p379 = por %p377, %p378
    %s381 = sadd.s32 %s380, 1
    %p384 = scmp.eq.s32.totalorder %s26, 1
    %p385 = scmp.ne.s32.totalorder %s380, %s382
    %p386 = scmp.eq.s32.totalorder %s26, 0
    %p387 = por %p385, %p386
    %p388 = scmp.ne.s32.totalorder %s380, %s382
    %p389 = scmp.eq.s32.totalorder %s31, 1
    %p390 = por %p388, %p389
    %p391 = scmp.ne.s32.totalorder %s382, %s383
    %p392 = scmp.eq.s32.totalorder %s31, 0
    %p393 = por %p391, %p392
    %p394 = scmp.ne.s32.totalorder %s382, %s383
    %p395 = scmp.eq.s32.totalorder %s32, 1
    %p396 = por %p394, %p395
    %p398 = scmp.ne.s32.totalorder %s383, %s397
    %p399 = scmp.eq.s32.totalorder %s32, 0
    %p400 = por %p398, %p399
    %s402 = sadd.s32 %s401, 1
    %p405 = scmp.eq.s32.totalorder %s26, 1
    %p406 = scmp.ne.s32.totalorder %s401, %s403
    %p407 = scmp.eq.s32.totalorder %s26, 0
    %p408 = por %p406, %p407
    %p409 = scmp.ne.s32.totalorder %s401, %s403
    %p410 = scmp.eq.s32.totalorder %s31, 1
    %p411 = por %p409, %p410
    %p412 = scmp.ne.s32.totalorder %s403, %s404
    %p413 = scmp.eq.s32.totalorder %s31, 0
    %p414 = por %p412, %p413
    %p415 = scmp.ne.s32.totalorder %s403, %s404
    %p416 = scmp.eq.s32.totalorder %s32, 1
    %p417 = por %p415, %p416
    %p419 = scmp.ne.s32.totalorder %s404, %s418
    %p420 = scmp.eq.s32.totalorder %s32, 0
    %p421 = por %p419, %p420
    %s423 = sadd.s32 %s422, 1
    %p426 = scmp.eq.s32.totalorder %s26, 1
    %p427 = scmp.ne.s32.totalorder %s422, %s424
    %p428 = scmp.eq.s32.totalorder %s26, 0
    %p429 = por %p427, %p428
    %p430 = scmp.ne.s32.totalorder %s422, %s424
    %p431 = scmp.eq.s32.totalorder %s31, 1
    %p432 = por %p430, %p431
    %p433 = scmp.ne.s32.totalorder %s424, %s425
    %p434 = scmp.eq.s32.totalorder %s31, 0
    %p435 = por %p433, %p434
    %p436 = scmp.ne.s32.totalorder %s424, %s425
    %p437 = scmp.eq.s32.totalorder %s32, 1
    %p438 = por %p436, %p437
    %p440 = scmp.ne.s32.totalorder %s425, %s439
    %p441 = scmp.eq.s32.totalorder %s32, 0
    %p442 = por %p440, %p441
    %s444 = sadd.s32 %s443, 1
    %p447 = scmp.eq.s32.totalorder %s26, 1
    %p448 = scmp.ne.s32.totalorder %s443, %s445
    %p449 = scmp.eq.s32.totalorder %s26, 0
    %p450 = por %p448, %p449
    %p451 = scmp.ne.s32.totalorder %s443, %s445
    %p452 = scmp.eq.s32.totalorder %s31, 1
    %p453 = por %p451, %p452
    %p454 = scmp.ne.s32.totalorder %s445, %s446
    %p455 = scmp.eq.s32.totalorder %s31, 0
    %p456 = por %p454, %p455
    %p457 = scmp.ne.s32.totalorder %s445, %s446
    %p458 = scmp.eq.s32.totalorder %s32, 1
    %p459 = por %p457, %p458
    %p461 = scmp.ne.s32.totalorder %s446, %s460
    %p462 = scmp.eq.s32.totalorder %s32, 0
    %p463 = por %p461, %p462
    %s464 = ssub.s32 %s26, %s33
    %p465 = scmp.eq.s32.totalorder %s464, 0
    %s467 = sadd.s32 %s466, 1
    %s468 = scalar_select %p465, %s466, %s467
    %p471 = pneg %p465
    %p472 = scmp.eq.s32.totalorder %s26, 1
    %p473 = por %p471, %p472
    %p474 = scmp.ne.s32.totalorder %s466, %s469
    %p475 = scmp.eq.s32.totalorder %s26, 0
    %p476 = por %p474, %p475
    %p477 = scmp.ne.s32.totalorder %s466, %s469
    %p478 = scmp.eq.s32.totalorder %s31, 1
    %p479 = por %p477, %p478
    %p480 = scmp.ne.s32.totalorder %s469, %s470
    %p481 = scmp.eq.s32.totalorder %s31, 0
    %p482 = por %p480, %p481
    %p483 = scmp.ne.s32.totalorder %s469, %s470
    %p484 = scmp.eq.s32.totalorder %s32, 1
    %p485 = por %p483, %p484
    %p487 = scmp.ne.s32.totalorder %s470, %s486
    %p488 = scmp.eq.s32.totalorder %s32, 0
    %p489 = por %p487, %p488
    %p490 = scmp.le.s32.totalorder 1, %s26
    %p491 = scmp.lt.s32.totalorder %s26, 3
    %p492 = pnand %p490, %p491
    %p493 = pneg %p492
    // Predicated region
    $region9: #{brio_forward.2} parent=5 // pred_check
      _
    $region10: #{brio_forward.2} parent=5 // pred_check_branch
      %495 = sbr.rel (%p492) target = $region12
    $region11: #{brio_forward.2} parent=5 // pred_region
      %s496 = ssub.s32 %s26, 1
      // Predicated region
      $region13: #{brio_forward.2} parent=11 // pred_check
        %p497 = pneg %p99
      $region14: #{brio_forward.2} parent=11 // pred_check_branch
        %499 = sbr.rel (%p497) target = $region16
      $region15: #{brio_forward.2} parent=11 // pred_region
        _
      $region16: #{brio_forward.2} parent=11 // pred_fallthru
        _
      // Predicated region
      $region17: #{brio_forward.2} parent=11 // pred_check
        %p500 = pneg %p120
      $region18: #{brio_forward.2} parent=11 // pred_check_branch
        %502 = sbr.rel (%p500) target = $region20
      $region19: #{brio_forward.2} parent=11 // pred_region
        _
      $region20: #{brio_forward.2} parent=11 // pred_fallthru
        _
      // Predicated region
      $region21: #{brio_forward.2} parent=11 // pred_check
        %p503 = pneg %p141
      $region22: #{brio_forward.2} parent=11 // pred_check_branch
        %505 = sbr.rel (%p503) target = $region24
      $region23: #{brio_forward.2} parent=11 // pred_region
        _
      $region24: #{brio_forward.2} parent=11 // pred_fallthru
        _
      // Predicated region
      $region25: #{brio_forward.2} parent=11 // pred_check
        %p506 = pneg %p162
      $region26: #{brio_forward.2} parent=11 // pred_check_branch
        %508 = sbr.rel (%p506) target = $region28
      $region27: #{brio_forward.2} parent=11 // pred_region
        _
      $region28: #{brio_forward.2} parent=11 // pred_fallthru
        _
      // Predicated region
      $region29: #{brio_forward.2} parent=11 // pred_check
        %p509 = pneg %p183
      $region30: #{brio_forward.2} parent=11 // pred_check_branch
        %511 = sbr.rel (%p509) target = $region32
      $region31: #{brio_forward.2} parent=11 // pred_region
        _
      $region32: #{brio_forward.2} parent=11 // pred_fallthru
        _
      // Predicated region
      $region33: #{brio_forward.2} parent=11 // pred_check
        %p512 = pneg %p204
      $region34: #{brio_forward.2} parent=11 // pred_check_branch
        %514 = sbr.rel (%p512) target = $region36
      $region35: #{brio_forward.2} parent=11 // pred_region
        _
      $region36: #{brio_forward.2} parent=11 // pred_fallthru
        _
      // Predicated region
      $region37: #{brio_forward.2} parent=11 // pred_check
        %p515 = pneg %p225
      $region38: #{brio_forward.2} parent=11 // pred_check_branch
        %517 = sbr.rel (%p515) target = $region40
      $region39: #{brio_forward.2} parent=11 // pred_region
        _
      $region40: #{brio_forward.2} parent=11 // pred_fallthru
        _
      // Predicated region
      $region41: #{brio_forward.2} parent=11 // pred_check
        %p518 = pneg %p246
      $region42: #{brio_forward.2} parent=11 // pred_check_branch
        %520 = sbr.rel (%p518) target = $region44
      $region43: #{brio_forward.2} parent=11 // pred_region
        _
      $region44: #{brio_forward.2} parent=11 // pred_fallthru
        _
      // Predicated region
      $region45: #{brio_forward.2} parent=11 // pred_check
        %p521 = pneg %p267
      $region46: #{brio_forward.2} parent=11 // pred_check_branch
        %523 = sbr.rel (%p521) target = $region48
      $region47: #{brio_forward.2} parent=11 // pred_region
        _
      $region48: #{brio_forward.2} parent=11 // pred_fallthru
        _
      // Predicated region
      $region49: #{brio_forward.2} parent=11 // pred_check
        %p524 = pneg %p288
      $region50: #{brio_forward.2} parent=11 // pred_check_branch
        %526 = sbr.rel (%p524) target = $region52
      $region51: #{brio_forward.2} parent=11 // pred_region
        _
      $region52: #{brio_forward.2} parent=11 // pred_fallthru
        _
      // Predicated region
      $region53: #{brio_forward.2} parent=11 // pred_check
        %p527 = pneg %p309
      $region54: #{brio_forward.2} parent=11 // pred_check_branch
        %529 = sbr.rel (%p527) target = $region56
      $region55: #{brio_forward.2} parent=11 // pred_region
        _
      $region56: #{brio_forward.2} parent=11 // pred_fallthru
        _
      // Predicated region
      $region57: #{brio_forward.2} parent=11 // pred_check
        %p530 = pneg %p330
      $region58: #{brio_forward.2} parent=11 // pred_check_branch
        %532 = sbr.rel (%p530) target = $region60
      $region59: #{brio_forward.2} parent=11 // pred_region
        _
      $region60: #{brio_forward.2} parent=11 // pred_fallthru
        _
      // Predicated region
      $region61: #{brio_forward.2} parent=11 // pred_check
        %p533 = pneg %p351
      $region62: #{brio_forward.2} parent=11 // pred_check_branch
        %535 = sbr.rel (%p533) target = $region64
      $region63: #{brio_forward.2} parent=11 // pred_region
        _
      $region64: #{brio_forward.2} parent=11 // pred_fallthru
        _
      // Predicated region
      $region65: #{brio_forward.2} parent=11 // pred_check
        %p536 = pneg %p372
      $region66: #{brio_forward.2} parent=11 // pred_check_branch
        %538 = sbr.rel (%p536) target = $region68
      $region67: #{brio_forward.2} parent=11 // pred_region
        _
      $region68: #{brio_forward.2} parent=11 // pred_fallthru
        _
      // Predicated region
      $region69: #{brio_forward.2} parent=11 // pred_check
        %p539 = pneg %p393
      $region70: #{brio_forward.2} parent=11 // pred_check_branch
        %541 = sbr.rel (%p539) target = $region72
      $region71: #{brio_forward.2} parent=11 // pred_region
        _
      $region72: #{brio_forward.2} parent=11 // pred_fallthru
        _
      // Predicated region
      $region73: #{brio_forward.2} parent=11 // pred_check
        %p542 = pneg %p414
      $region74: #{brio_forward.2} parent=11 // pred_check_branch
        %544 = sbr.rel (%p542) target = $region76
      $region75: #{brio_forward.2} parent=11 // pred_region
        _
      $region76: #{brio_forward.2} parent=11 // pred_fallthru
        _
      // Predicated region
      $region77: #{brio_forward.2} parent=11 // pred_check
        %p545 = pneg %p435
      $region78: #{brio_forward.2} parent=11 // pred_check_branch
        %547 = sbr.rel (%p545) target = $region80
      $region79: #{brio_forward.2} parent=11 // pred_region
        _
      $region80: #{brio_forward.2} parent=11 // pred_fallthru
        _
      // Predicated region
      $region81: #{brio_forward.2} parent=11 // pred_check
        %p548 = pneg %p456
      $region82: #{brio_forward.2} parent=11 // pred_check_branch
        %550 = sbr.rel (%p548) target = $region84
      $region83: #{brio_forward.2} parent=11 // pred_region
        _
      $region84: #{brio_forward.2} parent=11 // pred_fallthru
        _
    $region12: #{brio_forward.2} parent=5 // pred_fallthru
      _
    %p551 = scmp.lt.s32.totalorder %s26, 2
    // Predicated region
    $region85: #{brio_forward.2} parent=5 // pred_check
      %p552 = pneg %p551
    $region86: #{brio_forward.2} parent=5 // pred_check_branch
      %554 = sbr.rel (%p552) target = $region88
    $region87: #{brio_forward.2} parent=5 // pred_region
      // Predicated region
      $region89: #{brio_forward.2} parent=87 // pred_check
        %p555 = pneg %p46
      $region90: #{brio_forward.2} parent=87 // pred_check_branch
        %557 = sbr.rel (%p555) target = $region92
      $region91: #{brio_forward.2} parent=87 // pred_region
        %p558 = scmp.lt.s32.totalorder %s26, 1
        %s559 = scalar_select %p558, %s26, 1
        %s560 = smul.addr %s559, 2
        %s561 = smul.addr %s560, 8
        %s562 = scalar_lea.vmem %s0, %s561
      $region92: #{brio_forward.2} parent=87 // pred_fallthru
        _
      // Predicated region
      $region93: #{brio_forward.2} parent=87 // pred_check
        %p563 = pneg %p72
      $region94: #{brio_forward.2} parent=87 // pred_check_branch
        %565 = sbr.rel (%p563) target = $region96
      $region95: #{brio_forward.2} parent=87 // pred_region
        %p566 = scmp.lt.s32.totalorder %s26, 1
        %s567 = scalar_select %p566, %s26, 1
        %s568 = scalar_lea.vmem %s1, %s567
      $region96: #{brio_forward.2} parent=87 // pred_fallthru
        _
    $region88: #{brio_forward.2} parent=5 // pred_fallthru
      _
    %p569 = scmp.le.s32.totalorder 1, %s26
    %p570 = scmp.lt.s32.totalorder %s26, 3
    %p571 = pnand %p569, %p570
    %p572 = pneg %p571
    // Predicated region
    $region97: #{brio_forward.2} parent=5 // pred_check
      _
    $region98: #{brio_forward.2} parent=5 // pred_check_branch
      %574 = sbr.rel (%p571) target = $region100
    $region99: #{brio_forward.2} parent=5 // pred_region
      %s575 = ssub.s32 %s26, 1
      %p576 = scmp.lt.s32.totalorder %s31, 1
      %s577 = scalar_select %p576, %s31, 1
      %s578 = smul.addr %s577, 2
      %s579 = smul.addr %s578, 8
      %s580 = scalar_lea.vmem %s0, %s579
      %p581 = pneg %p52
      %p582 = pneg %p49
      %p583 = scmp.lt.s32.totalorder %s31, 1
      %s584 = scalar_select %p583, %s31, 1
      %s585 = scalar_lea.vmem %s1, %s584
      %p586 = pneg %p78
      %p587 = pneg %p75
      %p588 = pneg %p99
      %p589 = pneg %p96
      %p590 = pneg %p120
      %p591 = pneg %p117
      %p592 = pneg %p141
      %p593 = pneg %p138
      %p594 = pneg %p162
      %p595 = pneg %p159
      %p596 = pneg %p183
      %p597 = pneg %p180
      %p598 = pneg %p204
      %p599 = pneg %p201
      %p600 = pneg %p225
      %p601 = pneg %p222
      %p602 = pneg %p246
      %p603 = pneg %p243
      %p604 = pneg %p267
      %p605 = pneg %p264
      %p606 = pneg %p288
      %p607 = pneg %p285
      %p608 = pneg %p309
      %p609 = pneg %p306
      %p610 = pneg %p330
      %p611 = pneg %p327
      %p612 = pneg %p351
      %p613 = pneg %p348
      %p614 = pneg %p372
      %p615 = pneg %p369
      %p616 = pneg %p393
      %p617 = pneg %p390
      %p618 = pneg %p414
      %p619 = pneg %p411
      %p620 = pneg %p435
      %p621 = pneg %p432
      %p622 = pneg %p456
      %p623 = pneg %p453
      %p624 = pneg %p482
      %p625 = pneg %p479
      %p626 = scmp.lt.s32.totalorder %s31, 1
      %s627 = scalar_select %p626, %s31, 1
      %s628 = smul.addr %s627, 2
      %s629 = smul.addr %s628, 8
      %s630 = scalar_lea.vmem %s20, %s629
      %p631 = scmp.lt.s32.totalorder %s31, 1
      %s632 = scalar_select %p631, %s31, 1
      %s633 = smul.addr %s632, 2
      %s634 = smul.addr %s633, 8
      %s635 = scalar_lea.vmem %s0, %s634
      %p636 = scmp.lt.s32.totalorder %s31, 1
      %s637 = scalar_select %p636, %s31, 1
      %s638 = scalar_lea.vmem %s1, %s637
      %p639 = scmp.lt.s32.totalorder %s31, 1
      %s640 = scalar_select %p639, %s31, 1
      %s641 = smul.addr %s640, 2
      %s642 = smul.addr %s641, 8
      %s643 = scalar_lea.vmem %s20, %s642
      %v645 = vld [vmem:[%s635] sm:$0xff]
      %v646 = vld [vmem:[%s635 + $0x8] sm:$0xff]
      %v647 = vld [vmem:[%s2] sm:$0x1]
      %v648 = vld [vmem:[%s3] sm:$0x1]
      %vm649 = vcmask 261120
      %v650 = vsel %vm649, %v645, 0.0
      %651 = vadd.xlane.f32.xlu0 %v650
      %v652 = vpop.xlane.xlu0 %651
      %v653 = vsel %vm649, %v646, 0.0
      %654 = vadd.xlane.f32.xlu0 %v653
      %v655 = vpop.xlane.xlu0 %654
      %v656 = vrcp.pop 32.0
      %v657 = vmul.f32 %v652, %v656
      %v658 = vmul.f32 %v655, %v656
      %v659 = vsub.f32 %v645, %v657
      %v660 = vsub.f32 %v646, %v658
      %v661 = vmul.f32 %v659, %v659
      %v662 = vmul.f32 %v660, %v660
      %v663 = vsel %vm649, %v661, 0.0
      %664 = vadd.xlane.f32.xlu0 %v663
      %v665 = vpop.xlane.xlu0 %664
      %v666 = vsel %vm649, %v662, 0.0
      %667 = vadd.xlane.f32.xlu0 %v666
      %v668 = vpop.xlane.xlu0 %667
      %v669 = vmul.f32 %v665, %v656
      %v670 = vmul.f32 %v668, %v656
      %v671 = vadd.f32 %v669, 1e-05
      %v672 = vadd.f32 %v670, 1e-05
      %v673 = vrsqrt.pop %v671
      %v674 = vrsqrt.pop %v672
      %v675 = vmul.f32 %v659, %v673
      %v676 = vmul.f32 %v660, %v674
      %v678 = vlaneseq
      %v679 = vshrl.u32 %v678, 7
      %v680 = vsub.s32 0, %v679
      %v681 = vrot.slane %v647, %v680
      %v683 = vmul.f32 %v675, %v681
      %v684 = vmul.f32 %v676, %v681
      %v686 = vlaneseq
      %v687 = vshrl.u32 %v686, 7
      %v688 = vsub.s32 0, %v687
      %v689 = vrot.slane %v648, %v688
      %v691 = vadd.f32 %v683, %v689
      %v692 = vadd.f32 %v684, %v689
      %v693 = vld [vmem:[%s638] sm:$0x1]
      %v694 = vld [vmem:[%s4] sm:$0xf]
      %v695 = vld [vmem:[%s4 + $0x4] sm:$0xf]
      %v696 = vld [vmem:[%s4 + $0x8] sm:$0xf]
      %v697 = vld [vmem:[%s4 + $0xc] sm:$0xf]
      %v698 = vpack.c.bf16 %v692, %v691
      %v699 = vld [vmem:[%s5] sm:$0x1]
      %v701 = vlaneseq
      %v702 = vshrl.u32 %v701, 7
      %v703 = vsub.s32 0, %v702
      %v704 = vrot.slane %v699, %v703
      %v710 = vunpack.c.l.b16 %v694
      %v711 = vunpack.c.l.b16 %v695
      %v712 = vunpack.c.l.b16 %v696
      %v713 = vunpack.c.l.b16 %v697
      %v714 = vpack.c.b16 %v711, %v710
      %v715 = vpack.c.b16 %v713, %v712
      %v719 = vsel %vm649, %v698, 0
      %721 = vmatprep.subr.bf16.mxu0 0
      %722 = vmatpush1.bf16.msra.mxu0 0
      %723 = vmatprep.subr.bf16.mxu0 0
      %724 = vmatpush1.bf16.msra.mxu0 0
      %725 = vmatprep.subr.bf16.mxu0 0
      %726 = vmatpush1.bf16.msra.mxu0 0
      %727 = vmatprep.subr.bf16.mxu0 0
      %728 = vmatpush1.bf16.msra.mxu0 0
      %729 = vmatprep.subr.bf16.mxu0 0
      %730 = vmatpush1.bf16.msra.mxu0 0
      %731 = vmatprep.subr.bf16.mxu0 0
      %732 = vmatpush1.bf16.msra.mxu0 0
      %733 = vmatprep.subr.bf16.mxu0 0
      %734 = vmatpush1.bf16.msra.mxu0 %v715
      %735 = vmatprep.subr.bf16.mxu0 0
      %736 = vmatpush1.bf16.msra.mxu0 %v714
      %737 = vmatprep.subr.bf16.mxu0 0
      %738 = vmatpush2.bf16.msra.mxu0 0
      %739 = vmatprep.subr.bf16.mxu0 0
      %740 = vmatpush2.bf16.msra.mxu0 0
      %741 = vmatprep.subr.bf16.mxu0 0
      %742 = vmatpush2.bf16.msra.mxu0 0
      %743 = vmatprep.subr.bf16.mxu0 0
      %744 = vmatpush2.bf16.msra.mxu0 0
      %745 = vmatprep.subr.bf16.mxu0 0
      %746 = vmatpush2.bf16.msra.mxu0 0
      %747 = vmatprep.subr.bf16.mxu0 0
      %748 = vmatpush2.bf16.msra.mxu0 0
      %749 = vmatprep.subr.bf16.mxu0 0
      %750 = vmatpush2.bf16.msra.mxu0 0
      %751 = vmatprep.subr.bf16.mxu0 0
      %752 = vmatpush2.bf16.msra.mxu0 0
      %753 = vmatprep.mubr.bf16.mxu0 0
      %754 = vmatmul.mubr.bf16.gmra.mxu0 %v719
      %v755 = vpop.f32.mrf.mxu0
      %v756 = vadd.f32 %v704, %v755
      %v757 = vpop.f32.mrf.mxu0
      %v758 = vpop.f32.mrf.mxu0
      %v759 = vadd.f32 %v704, %v758
      %v760 = vpop.f32.mrf.mxu0
      %761 = vdwg.mxu0
      %v762 = vld [vmem:[%s6] sm:$0xf]
      %v763 = vld [vmem:[%s6 + $0x4] sm:$0xf]
      %v764 = vld [vmem:[%s6 + $0x8] sm:$0xf]
      %v765 = vld [vmem:[%s6 + $0xc] sm:$0xf]
      %v766 = vld [vmem:[%s7] sm:$0x1]
      %v768 = vlaneseq
      %v769 = vshrl.u32 %v768, 7
      %v770 = vsub.s32 0, %v769
      %v771 = vrot.slane %v766, %v770
      %v777 = vunpack.c.l.b16 %v762
      %v778 = vunpack.c.l.b16 %v763
      %v779 = vunpack.c.l.b16 %v764
      %v780 = vunpack.c.l.b16 %v765
      %v781 = vpack.c.b16 %v778, %v777
      %v782 = vpack.c.b16 %v780, %v779
      %785 = vmatprep.subr.bf16.mxu0 0
      %786 = vmatpush1.bf16.msra.mxu0 0
      %787 = vmatprep.subr.bf16.mxu0 0
      %788 = vmatpush1.bf16.msra.mxu0 0
      %789 = vmatprep.subr.bf16.mxu0 0
      %790 = vmatpush1.bf16.msra.mxu0 0
      %791 = vmatprep.subr.bf16.mxu0 0
      %792 = vmatpush1.bf16.msra.mxu0 0
      %793 = vmatprep.subr.bf16.mxu0 0
      %794 = vmatpush1.bf16.msra.mxu0 0
      %795 = vmatprep.subr.bf16.mxu0 0
      %796 = vmatpush1.bf16.msra.mxu0 0
      %797 = vmatprep.subr.bf16.mxu0 0
      %798 = vmatpush1.bf16.msra.mxu0 %v782
      %799 = vmatprep.subr.bf16.mxu0 0
      %800 = vmatpush1.bf16.msra.mxu0 %v781
      %801 = vmatprep.subr.bf16.mxu0 0
      %802 = vmatpush2.bf16.msra.mxu0 0
      %803 = vmatprep.subr.bf16.mxu0 0
      %804 = vmatpush2.bf16.msra.mxu0 0
      %805 = vmatprep.subr.bf16.mxu0 0
      %806 = vmatpush2.bf16.msra.mxu0 0
      %807 = vmatprep.subr.bf16.mxu0 0
      %808 = vmatpush2.bf16.msra.mxu0 0
      %809 = vmatprep.subr.bf16.mxu0 0
      %810 = vmatpush2.bf16.msra.mxu0 0
      %811 = vmatprep.subr.bf16.mxu0 0
      %812 = vmatpush2.bf16.msra.mxu0 0
      %813 = vmatprep.subr.bf16.mxu0 0
      %814 = vmatpush2.bf16.msra.mxu0 0
      %815 = vmatprep.subr.bf16.mxu0 0
      %816 = vmatpush2.bf16.msra.mxu0 0
      %817 = vmatprep.mubr.bf16.mxu0 0
      %818 = vmatmul.mubr.bf16.gmra.mxu0 %v719
      %v819 = vpop.f32.mrf.mxu0
      %v820 = vadd.f32 %v771, %v819
      %v821 = vpop.f32.mrf.mxu0
      %v822 = vpop.f32.mrf.mxu0
      %v823 = vadd.f32 %v771, %v822
      %v824 = vpop.f32.mrf.mxu0
      %825 = vdwg.mxu0
      %v826 = vld [vmem:[%s8] sm:$0xf]
      %v827 = vld [vmem:[%s8 + $0x4] sm:$0xf]
      %v828 = vld [vmem:[%s8 + $0x8] sm:$0xf]
      %v829 = vld [vmem:[%s8 + $0xc] sm:$0xf]
      %v830 = vld [vmem:[%s9] sm:$0x1]
      %v832 = vlaneseq
      %v833 = vshrl.u32 %v832, 7
      %v834 = vsub.s32 0, %v833
      %v835 = vrot.slane %v830, %v834
      %v841 = vunpack.c.l.b16 %v826
      %v842 = vunpack.c.l.b16 %v827
      %v843 = vunpack.c.l.b16 %v828
      %v844 = vunpack.c.l.b16 %v829
      %v845 = vpack.c.b16 %v842, %v841
      %v846 = vpack.c.b16 %v844, %v843
      %849 = vmatprep.subr.bf16.mxu0 0
      %850 = vmatpush1.bf16.msra.mxu0 0
      %851 = vmatprep.subr.bf16.mxu0 0
      %852 = vmatpush1.bf16.msra.mxu0 0
      %853 = vmatprep.subr.bf16.mxu0 0
      %854 = vmatpush1.bf16.msra.mxu0 0
      %855 = vmatprep.subr.bf16.mxu0 0
      %856 = vmatpush1.bf16.msra.mxu0 0
      %857 = vmatprep.subr.bf16.mxu0 0
      %858 = vmatpush1.bf16.msra.mxu0 0
      %859 = vmatprep.subr.bf16.mxu0 0
      %860 = vmatpush1.bf16.msra.mxu0 0
      %861 = vmatprep.subr.bf16.mxu0 0
      %862 = vmatpush1.bf16.msra.mxu0 %v846
      %863 = vmatprep.subr.bf16.mxu0 0
      %864 = vmatpush1.bf16.msra.mxu0 %v845
      %865 = vmatprep.subr.bf16.mxu0 0
      %866 = vmatpush2.bf16.msra.mxu0 0
      %867 = vmatprep.subr.bf16.mxu0 0
      %868 = vmatpush2.bf16.msra.mxu0 0
      %869 = vmatprep.subr.bf16.mxu0 0
      %870 = vmatpush2.bf16.msra.mxu0 0
      %871 = vmatprep.subr.bf16.mxu0 0
      %872 = vmatpush2.bf16.msra.mxu0 0
      %873 = vmatprep.subr.bf16.mxu0 0
      %874 = vmatpush2.bf16.msra.mxu0 0
      %875 = vmatprep.subr.bf16.mxu0 0
      %876 = vmatpush2.bf16.msra.mxu0 0
      %877 = vmatprep.subr.bf16.mxu0 0
      %878 = vmatpush2.bf16.msra.mxu0 0
      %879 = vmatprep.subr.bf16.mxu0 0
      %880 = vmatpush2.bf16.msra.mxu0 0
      %881 = vmatprep.mubr.bf16.mxu0 0
      %882 = vmatmul.mubr.bf16.gmra.mxu0 %v719
      %v883 = vpop.f32.mrf.mxu0
      %v884 = vadd.f32 %v835, %v883
      %v885 = vpop.f32.mrf.mxu0
      %v886 = vpop.f32.mrf.mxu0
      %v887 = vadd.f32 %v835, %v886
      %v888 = vpop.f32.mrf.mxu0
      %889 = vdwg.mxu0
      %v890 = vpack.c.bf16 %v759, %v756
      %v891 = vpack.c.bf16 %v823, %v820
      %vm892 = vcmask 64512
      %v894 = vsel %vm892, %v890, 0
      %v897 = vsel %vm892, %v891, 0
      %899 = vmatprep.subr.bf16.mxu0 0
      %900 = vmatpush1.bf16.xpose.msra.mxu0 0
      %901 = vmatprep.subr.bf16.mxu0 0
      %902 = vmatpush1.bf16.xpose.msra.mxu0 0
      %903 = vmatprep.subr.bf16.mxu0 0
      %904 = vmatpush1.bf16.xpose.msra.mxu0 0
      %905 = vmatprep.subr.bf16.mxu0 0
      %906 = vmatpush1.bf16.xpose.msra.mxu0 0
      %907 = vmatprep.subr.bf16.mxu0 0
      %908 = vmatpush1.bf16.xpose.msra.mxu0 0
      %909 = vmatprep.subr.bf16.mxu0 0
      %910 = vmatpush1.bf16.xpose.msra.mxu0 0
      %911 = vmatprep.subr.bf16.mxu0 0
      %912 = vmatpush1.bf16.xpose.msra.mxu0 0
      %913 = vmatprep.subr.bf16.mxu0 0
      %914 = vmatpush1.bf16.xpose.msra.mxu0 %v897
      %915 = vmatprep.subr.bf16.mxu0 0
      %916 = vmatpush2.bf16.xpose.msra.mxu0 0
      %917 = vmatprep.subr.bf16.mxu0 0
      %918 = vmatpush2.bf16.xpose.msra.mxu0 0
      %919 = vmatprep.subr.bf16.mxu0 0
      %920 = vmatpush2.bf16.xpose.msra.mxu0 0
      %921 = vmatprep.subr.bf16.mxu0 0
      %922 = vmatpush2.bf16.xpose.msra.mxu0 0
      %923 = vmatprep.subr.bf16.mxu0 0
      %924 = vmatpush2.bf16.xpose.msra.mxu0 0
      %925 = vmatprep.subr.bf16.mxu0 0
      %926 = vmatpush2.bf16.xpose.msra.mxu0 0
      %927 = vmatprep.subr.bf16.mxu0 0
      %928 = vmatpush2.bf16.xpose.msra.mxu0 0
      %929 = vmatprep.subr.bf16.mxu0 0
      %930 = vmatpush2.bf16.xpose.msra.mxu0 0
      %931 = vmatprep.mubr.bf16.mxu0 0
      %932 = vmatmul.mubr.bf16.gmra.mxu0 %v894
      %v933 = vpop.f32.mrf.mxu0
      %v934 = vadd.f32 0.0, %v933
      %v935 = vpop.f32.mrf.mxu0
      %v936 = vpop.f32.mrf.mxu0
      %v937 = vadd.f32 0.0, %v936
      %v938 = vpop.f32.mrf.mxu0
      %939 = vdwg.mxu0
      %v940 = vmul.f32 %v934, 0.35355338
      %v941 = vmul.f32 %v937, 0.35355338
      %v943 = vlaneseq
      %v944 = vshrl.u32 %v943, 7
      %v945 = vsub.s32 0, %v944
      %v946 = vrot.slane %v693, %v945
      %v948 = vadd.f32 %v940, %v946
      %v949 = vadd.f32 %v941, %v946
      %v950 = vadd.f32 %v948, 0.0
      %v951 = vadd.f32 %v949, 0.0
      %vm952 = vcmask 130048
      %v953 = vsel %vm952, %v950, -inf
      %954 = vmax.xlane.f32.xlu0 %v953
      %v955 = vpop.xlane.xlu0 %954
      %v956 = vsel %vm952, %v951, -inf
      %957 = vmax.xlane.f32.xlu0 %v956
      %v958 = vpop.xlane.xlu0 %957
      %v959 = vsub.f32 %v950, %v955
      %v960 = vsub.f32 %v951, %v958
      %v961 = vmul.f32 %v959, 1.442695
      %v962 = vpow.pop %v961
      %v963 = vmul.f32 %v960, 1.442695
      %v964 = vpow.pop %v963
      %v965 = vsel %vm952, %v962, 0.0
      %966 = vadd.xlane.f32.xlu0 %v965
      %v967 = vpop.xlane.xlu0 %966
      %v968 = vsel %vm952, %v964, 0.0
      %969 = vadd.xlane.f32.xlu0 %v968
      %v970 = vpop.xlane.xlu0 %969
      %v971 = vrcp.pop %v967
      %v972 = vrcp.pop %v970
      %v973 = vmul.f32 %v962, %v971
      %v974 = vmul.f32 %v964, %v972
      %v975 = vpack.c.bf16 %v974, %v973
      %v976 = vpack.c.bf16 %v887, %v884
      %v978 = vsel %vm952, %v975, 0
      %980 = vmatprep.subr.bf16.mxu0 0
      %981 = vmatpush1.bf16.msra.mxu0 0
      %982 = vmatprep.subr.bf16.mxu0 0
      %983 = vmatpush1.bf16.msra.mxu0 0
      %984 = vmatprep.subr.bf16.mxu0 0
      %985 = vmatpush1.bf16.msra.mxu0 0
      %986 = vmatprep.subr.bf16.mxu0 0
      %987 = vmatpush1.bf16.msra.mxu0 0
      %988 = vmatprep.subr.bf16.mxu0 0
      %989 = vmatpush1.bf16.msra.mxu0 0
      %990 = vmatprep.subr.bf16.mxu0 0
      %991 = vmatpush1.bf16.msra.mxu0 0
      %992 = vmatprep.subr.bf16.mxu0 0
      %993 = vmatpush1.bf16.msra.mxu0 0
      %994 = vmatprep.subr.bf16.mxu0 0
      %995 = vmatpush1.bf16.msra.mxu0 %v976
      %996 = vmatprep.subr.bf16.mxu0 0
      %997 = vmatpush2.bf16.msra.mxu0 0
      %998 = vmatprep.subr.bf16.mxu0 0
      %999 = vmatpush2.bf16.msra.mxu0 0
      %1000 = vmatprep.subr.bf16.mxu0 0
      %1001 = vmatpush2.bf16.msra.mxu0 0
      %1002 = vmatprep.subr.bf16.mxu0 0
      %1003 = vmatpush2.bf16.msra.mxu0 0
      %1004 = vmatprep.subr.bf16.mxu0 0
      %1005 = vmatpush2.bf16.msra.mxu0 0
      %1006 = vmatprep.subr.bf16.mxu0 0
      %1007 = vmatpush2.bf16.msra.mxu0 0
      %1008 = vmatprep.subr.bf16.mxu0 0
      %1009 = vmatpush2.bf16.msra.mxu0 0
      %1010 = vmatprep.subr.bf16.mxu0 0
      %1011 = vmatpush2.bf16.msra.mxu0 0
      %1012 = vmatprep.mubr.bf16.mxu0 0
      %1013 = vmatmul.mubr.bf16.gmra.mxu0 %v978
      %v1014 = vpop.f32.mrf.mxu0
      %v1015 = vadd.f32 0.0, %v1014
      %v1016 = vpop.f32.mrf.mxu0
      %v1017 = vpop.f32.mrf.mxu0
      %v1018 = vadd.f32 0.0, %v1017
      %v1019 = vpop.f32.mrf.mxu0
      %1020 = vdwg.mxu0
      %v1021 = vld [vmem:[%s10] sm:$0xf]
      %v1022 = vpack.c.bf16 %v1018, %v1015
      %s1023 = scalar_lea.vmem %s4, 16
      %v1024 = vld [vmem:[%s1023] sm:$0xf]
      %v1025 = vld [vmem:[%s1023 + $0x4] sm:$0xf]
      %v1026 = vld [vmem:[%s1023 + $0x8] sm:$0xf]
      %v1027 = vld [vmem:[%s1023 + $0xc] sm:$0xf]
      %s1028 = scalar_lea.vmem %s5, 1
      %v1029 = vld [vmem:[%s1028] sm:$0x1]
      %v1031 = vlaneseq
      %v1032 = vshrl.u32 %v1031, 7
      %v1033 = vsub.s32 0, %v1032
      %v1034 = vrot.slane %v1029, %v1033
      %v1040 = vunpack.c.l.b16 %v1024
      %v1041 = vunpack.c.l.b16 %v1025
      %v1042 = vunpack.c.l.b16 %v1026
      %v1043 = vunpack.c.l.b16 %v1027
      %v1044 = vpack.c.b16 %v1041, %v1040
      %v1045 = vpack.c.b16 %v1043, %v1042
      %1048 = vmatprep.subr.bf16.mxu0 0
      %1049 = vmatpush1.bf16.msra.mxu0 0
      %1050 = vmatprep.subr.bf16.mxu0 0
      %1051 = vmatpush1.bf16.msra.mxu0 0
      %1052 = vmatprep.subr.bf16.mxu0 0
      %1053 = vmatpush1.bf16.msra.mxu0 0
      %1054 = vmatprep.subr.bf16.mxu0 0
      %1055 = vmatpush1.bf16.msra.mxu0 0
      %1056 = vmatprep.subr.bf16.mxu0 0
      %1057 = vmatpush1.bf16.msra.mxu0 0
      %1058 = vmatprep.subr.bf16.mxu0 0
      %1059 = vmatpush1.bf16.msra.mxu0 0
      %1060 = vmatprep.subr.bf16.mxu0 0
      %1061 = vmatpush1.bf16.msra.mxu0 %v1045
      %1062 = vmatprep.subr.bf16.mxu0 0
      %1063 = vmatpush1.bf16.msra.mxu0 %v1044
      %1064 = vmatprep.subr.bf16.mxu0 0
      %1065 = vmatpush2.bf16.msra.mxu0 0
      %1066 = vmatprep.subr.bf16.mxu0 0
      %1067 = vmatpush2.bf16.msra.mxu0 0
      %1068 = vmatprep.subr.bf16.mxu0 0
      %1069 = vmatpush2.bf16.msra.mxu0 0
      %1070 = vmatprep.subr.bf16.mxu0 0
      %1071 = vmatpush2.bf16.msra.mxu0 0
      %1072 = vmatprep.subr.bf16.mxu0 0
      %1073 = vmatpush2.bf16.msra.mxu0 0
      %1074 = vmatprep.subr.bf16.mxu0 0
      %1075 = vmatpush2.bf16.msra.mxu0 0
      %1076 = vmatprep.subr.bf16.mxu0 0
      %1077 = vmatpush2.bf16.msra.mxu0 0
      %1078 = vmatprep.subr.bf16.mxu0 0
      %1079 = vmatpush2.bf16.msra.mxu0 0
      %1080 = vmatprep.mubr.bf16.mxu0 0
      %1081 = vmatmul.mubr.bf16.gmra.mxu0 %v719
      %v1082 = vpop.f32.mrf.mxu0
      %v1083 = vadd.f32 %v1034, %v1082
      %v1084 = vpop.f32.mrf.mxu0
      %v1085 = vpop.f32.mrf.mxu0
      %v1086 = vadd.f32 %v1034, %v1085
      %v1087 = vpop.f32.mrf.mxu0
      %1088 = vdwg.mxu0
      %s1089 = scalar_lea.vmem %s6, 16
      %v1090 = vld [vmem:[%s1089] sm:$0xf]
      %v1091 = vld [vmem:[%s1089 + $0x4] sm:$0xf]
      %v1092 = vld [vmem:[%s1089 + $0x8] sm:$0xf]
      %v1093 = vld [vmem:[%s1089 + $0xc] sm:$0xf]
      %s1094 = scalar_lea.vmem %s7, 1
      %v1095 = vld [vmem:[%s1094] sm:$0x1]
      %v1097 = vlaneseq
      %v1098 = vshrl.u32 %v1097, 7
      %v1099 = vsub.s32 0, %v1098
      %v1100 = vrot.slane %v1095, %v1099
      %v1106 = vunpack.c.l.b16 %v1090
      %v1107 = vunpack.c.l.b16 %v1091
      %v1108 = vunpack.c.l.b16 %v1092
      %v1109 = vunpack.c.l.b16 %v1093
      %v1110 = vpack.c.b16 %v1107, %v1106
      %v1111 = vpack.c.b16 %v1109, %v1108
      %1114 = vmatprep.subr.bf16.mxu0 0
      %1115 = vmatpush1.bf16.msra.mxu0 0
      %1116 = vmatprep.subr.bf16.mxu0 0
      %1117 = vmatpush1.bf16.msra.mxu0 0
      %1118 = vmatprep.subr.bf16.mxu0 0
      %1119 = vmatpush1.bf16.msra.mxu0 0
      %1120 = vmatprep.subr.bf16.mxu0 0
      %1121 = vmatpush1.bf16.msra.mxu0 0
      %1122 = vmatprep.subr.bf16.mxu0 0
      %1123 = vmatpush1.bf16.msra.mxu0 0
      %1124 = vmatprep.subr.bf16.mxu0 0
      %1125 = vmatpush1.bf16.msra.mxu0 0
      %1126 = vmatprep.subr.bf16.mxu0 0
      %1127 = vmatpush1.bf16.msra.mxu0 %v1111
      %1128 = vmatprep.subr.bf16.mxu0 0
      %1129 = vmatpush1.bf16.msra.mxu0 %v1110
      %1130 = vmatprep.subr.bf16.mxu0 0
      %1131 = vmatpush2.bf16.msra.mxu0 0
      %1132 = vmatprep.subr.bf16.mxu0 0
      %1133 = vmatpush2.bf16.msra.mxu0 0
      %1134 = vmatprep.subr.bf16.mxu0 0
      %1135 = vmatpush2.bf16.msra.mxu0 0
      %1136 = vmatprep.subr.bf16.mxu0 0
      %1137 = vmatpush2.bf16.msra.mxu0 0
      %1138 = vmatprep.subr.bf16.mxu0 0
      %1139 = vmatpush2.bf16.msra.mxu0 0
      %1140 = vmatprep.subr.bf16.mxu0 0
      %1141 = vmatpush2.bf16.msra.mxu0 0
      %1142 = vmatprep.subr.bf16.mxu0 0
      %1143 = vmatpush2.bf16.msra.mxu0 0
      %1144 = vmatprep.subr.bf16.mxu0 0
      %1145 = vmatpush2.bf16.msra.mxu0 0
      %1146 = vmatprep.mubr.bf16.mxu0 0
      %1147 = vmatmul.mubr.bf16.gmra.mxu0 %v719
      %v1148 = vpop.f32.mrf.mxu0
      %v1149 = vadd.f32 %v1100, %v1148
      %v1150 = vpop.f32.mrf.mxu0
      %v1151 = vpop.f32.mrf.mxu0
      %v1152 = vadd.f32 %v1100, %v1151
      %v1153 = vpop.f32.mrf.mxu0
      %1154 = vdwg.mxu0
      %s1155 = scalar_lea.vmem %s8, 16
      %v1156 = vld [vmem:[%s1155] sm:$0xf]
      %v1157 = vld [vmem:[%s1155 + $0x4] sm:$0xf]
      %v1158 = vld [vmem:[%s1155 + $0x8] sm:$0xf]
      %v1159 = vld [vmem:[%s1155 + $0xc] sm:$0xf]
      %s1160 = scalar_lea.vmem %s9, 1
      %v1161 = vld [vmem:[%s1160] sm:$0x1]
      %v1163 = vlaneseq
      %v1164 = vshrl.u32 %v1163, 7
      %v1165 = vsub.s32 0, %v1164
      %v1166 = vrot.slane %v1161, %v1165
      %v1172 = vunpack.c.l.b16 %v1156
      %v1173 = vunpack.c.l.b16 %v1157
      %v1174 = vunpack.c.l.b16 %v1158
      %v1175 = vunpack.c.l.b16 %v1159
      %v1176 = vpack.c.b16 %v1173, %v1172
      %v1177 = vpack.c.b16 %v1175, %v1174
      %1180 = vmatprep.subr.bf16.mxu0 0
      %1181 = vmatpush1.bf16.msra.mxu0 0
      %1182 = vmatprep.subr.bf16.mxu0 0
      %1183 = vmatpush1.bf16.msra.mxu0 0
      %1184 = vmatprep.subr.bf16.mxu0 0
      %1185 = vmatpush1.bf16.msra.mxu0 0
      %1186 = vmatprep.subr.bf16.mxu0 0
      %1187 = vmatpush1.bf16.msra.mxu0 0
      %1188 = vmatprep.subr.bf16.mxu0 0
      %1189 = vmatpush1.bf16.msra.mxu0 0
      %1190 = vmatprep.subr.bf16.mxu0 0
      %1191 = vmatpush1.bf16.msra.mxu0 0
      %1192 = vmatprep.subr.bf16.mxu0 0
      %1193 = vmatpush1.bf16.msra.mxu0 %v1177
      %1194 = vmatprep.subr.bf16.mxu0 0
      %1195 = vmatpush1.bf16.msra.mxu0 %v1176
      %1196 = vmatprep.subr.bf16.mxu0 0
      %1197 = vmatpush2.bf16.msra.mxu0 0
      %1198 = vmatprep.subr.bf16.mxu0 0
      %1199 = vmatpush2.bf16.msra.mxu0 0
      %1200 = vmatprep.subr.bf16.mxu0 0
      %1201 = vmatpush2.bf16.msra.mxu0 0
      %1202 = vmatprep.subr.bf16.mxu0 0
      %1203 = vmatpush2.bf16.msra.mxu0 0
      %1204 = vmatprep.subr.bf16.mxu0 0
      %1205 = vmatpush2.bf16.msra.mxu0 0
      %1206 = vmatprep.subr.bf16.mxu0 0
      %1207 = vmatpush2.bf16.msra.mxu0 0
      %1208 = vmatprep.subr.bf16.mxu0 0
      %1209 = vmatpush2.bf16.msra.mxu0 0
      %1210 = vmatprep.subr.bf16.mxu0 0
      %1211 = vmatpush2.bf16.msra.mxu0 0
      %1212 = vmatprep.mubr.bf16.mxu0 0
      %1213 = vmatmul.mubr.bf16.gmra.mxu0 %v719
      %v1214 = vpop.f32.mrf.mxu0
      %v1215 = vadd.f32 %v1166, %v1214
      %v1216 = vpop.f32.mrf.mxu0
      %v1217 = vpop.f32.mrf.mxu0
      %v1218 = vadd.f32 %v1166, %v1217
      %v1219 = vpop.f32.mrf.mxu0
      %1220 = vdwg.mxu0
      %v1221 = vpack.c.bf16 %v1086, %v1083
      %v1222 = vpack.c.bf16 %v1152, %v1149
      %v1224 = vsel %vm892, %v1221, 0
      %v1227 = vsel %vm892, %v1222, 0
      %1229 = vmatprep.subr.bf16.mxu0 0
      %1230 = vmatpush1.bf16.xpose.msra.mxu0 0
      %1231 = vmatprep.subr.bf16.mxu0 0
      %1232 = vmatpush1.bf16.xpose.msra.mxu0 0
      %1233 = vmatprep.subr.bf16.mxu0 0
      %1234 = vmatpush1.bf16.xpose.msra.mxu0 0
      %1235 = vmatprep.subr.bf16.mxu0 0
      %1236 = vmatpush1.bf16.xpose.msra.mxu0 0
      %1237 = vmatprep.subr.bf16.mxu0 0
      %1238 = vmatpush1.bf16.xpose.msra.mxu0 0
      %1239 = vmatprep.subr.bf16.mxu0 0
      %1240 = vmatpush1.bf16.xpose.msra.mxu0 0
      %1241 = vmatprep.subr.bf16.mxu0 0
      %1242 = vmatpush1.bf16.xpose.msra.mxu0 0
      %1243 = vmatprep.subr.bf16.mxu0 0
      %1244 = vmatpush1.bf16.xpose.msra.mxu0 %v1227
      %1245 = vmatprep.subr.bf16.mxu0 0
      %1246 = vmatpush2.bf16.xpose.msra.mxu0 0
      %1247 = vmatprep.subr.bf16.mxu0 0
      %1248 = vmatpush2.bf16.xpose.msra.mxu0 0
      %1249 = vmatprep.subr.bf16.mxu0 0
      %1250 = vmatpush2.bf16.xpose.msra.mxu0 0
      %1251 = vmatprep.subr.bf16.mxu0 0
      %1252 = vmatpush2.bf16.xpose.msra.mxu0 0
      %1253 = vmatprep.subr.bf16.mxu0 0
      %1254 = vmatpush2.bf16.xpose.msra.mxu0 0
      %1255 = vmatprep.subr.bf16.mxu0 0
      %1256 = vmatpush2.bf16.xpose.msra.mxu0 0
      %1257 = vmatprep.subr.bf16.mxu0 0
      %1258 = vmatpush2.bf16.xpose.msra.mxu0 0
      %1259 = vmatprep.subr.bf16.mxu0 0
      %1260 = vmatpush2.bf16.xpose.msra.mxu0 0
      %1261 = vmatprep.mubr.bf16.mxu0 0
      %1262 = vmatmul.mubr.bf16.gmra.mxu0 %v1224
      %v1263 = vpop.f32.mrf.mxu0
      %v1264 = vadd.f32 0.0, %v1263
      %v1265 = vpop.f32.mrf.mxu0
      %v1266 = vpop.f32.mrf.mxu0
      %v1267 = vadd.f32 0.0, %v1266
      %v1268 = vpop.f32.mrf.mxu0
      %1269 = vdwg.mxu0
      %v1270 = vmul.f32 %v1264, 0.35355338
      %v1271 = vmul.f32 %v1267, 0.35355338
      %v1272 = vadd.f32 %v1270, %v946
      %v1273 = vadd.f32 %v1271, %v946
      %v1274 = vadd.f32 %v1272, 0.0
      %v1275 = vadd.f32 %v1273, 0.0
      %v1276 = vsel %vm952, %v1274, -inf
      %1277 = vmax.xlane.f32.xlu0 %v1276
      %v1278 = vpop.xlane.xlu0 %1277
      %v1279 = vsel %vm952, %v1275, -inf
      %1280 = vmax.xlane.f32.xlu0 %v1279
      %v1281 = vpop.xlane.xlu0 %1280
      %v1282 = vsub.f32 %v1274, %v1278
      %v1283 = vsub.f32 %v1275, %v1281
      %v1284 = vmul.f32 %v1282, 1.442695
      %v1285 = vpow.pop %v1284
      %v1286 = vmul.f32 %v1283, 1.442695
      %v1287 = vpow.pop %v1286
      %v1288 = vsel %vm952, %v1285, 0.0
      %1289 = vadd.xlane.f32.xlu0 %v1288
      %v1290 = vpop.xlane.xlu0 %1289
      %v1291 = vsel %vm952, %v1287, 0.0
      %1292 = vadd.xlane.f32.xlu0 %v1291
      %v1293 = vpop.xlane.xlu0 %1292
      %v1294 = vrcp.pop %v1290
      %v1295 = vrcp.pop %v1293
      %v1296 = vmul.f32 %v1285, %v1294
      %v1297 = vmul.f32 %v1287, %v1295
      %v1298 = vpack.c.bf16 %v1297, %v1296
      %v1299 = vpack.c.bf16 %v1218, %v1215
      %v1301 = vsel %vm952, %v1298, 0
      %1303 = vmatprep.subr.bf16.mxu0 0
      %1304 = vmatpush1.bf16.msra.mxu0 0
      %1305 = vmatprep.subr.bf16.mxu0 0
      %1306 = vmatpush1.bf16.msra.mxu0 0
      %1307 = vmatprep.subr.bf16.mxu0 0
      %1308 = vmatpush1.bf16.msra.mxu0 0
      %1309 = vmatprep.subr.bf16.mxu0 0
      %1310 = vmatpush1.bf16.msra.mxu0 0
      %1311 = vmatprep.subr.bf16.mxu0 0
      %1312 = vmatpush1.bf16.msra.mxu0 0
      %1313 = vmatprep.subr.bf16.mxu0 0
      %1314 = vmatpush1.bf16.msra.mxu0 0
      %1315 = vmatprep.subr.bf16.mxu0 0
      %1316 = vmatpush1.bf16.msra.mxu0 0
      %1317 = vmatprep.subr.bf16.mxu0 0
      %1318 = vmatpush1.bf16.msra.mxu0 %v1299
      %1319 = vmatprep.subr.bf16.mxu0 0
      %1320 = vmatpush2.bf16.msra.mxu0 0
      %1321 = vmatprep.subr.bf16.mxu0 0
      %1322 = vmatpush2.bf16.msra.mxu0 0
      %1323 = vmatprep.subr.bf16.mxu0 0
      %1324 = vmatpush2.bf16.msra.mxu0 0
      %1325 = vmatprep.subr.bf16.mxu0 0
      %1326 = vmatpush2.bf16.msra.mxu0 0
      %1327 = vmatprep.subr.bf16.mxu0 0
      %1328 = vmatpush2.bf16.msra.mxu0 0
      %1329 = vmatprep.subr.bf16.mxu0 0
      %1330 = vmatpush2.bf16.msra.mxu0 0
      %1331 = vmatprep.subr.bf16.mxu0 0
      %1332 = vmatpush2.bf16.msra.mxu0 0
      %1333 = vmatprep.subr.bf16.mxu0 0
      %1334 = vmatpush2.bf16.msra.mxu0 0
      %1335 = vmatprep.mubr.bf16.mxu0 0
      %1336 = vmatmul.mubr.bf16.gmra.mxu0 %v1301
      %v1337 = vpop.f32.mrf.mxu0
      %v1338 = vadd.f32 0.0, %v1337
      %v1339 = vpop.f32.mrf.mxu0
      %v1340 = vpop.f32.mrf.mxu0
      %v1341 = vadd.f32 0.0, %v1340
      %v1342 = vpop.f32.mrf.mxu0
      %1343 = vdwg.mxu0
      %s1344 = scalar_lea.vmem %s10, 4
      %v1345 = vld [vmem:[%s1344] sm:$0xf]
      %v1346 = vpack.c.bf16 %v1341, %v1338
      %v1348 = vsel %vm892, %v1346, 0
      %vm1350 = vcmask 1043456
      %v1352 = vsel %vm1350, %v1345, 0
      %1354 = vmatprep.subr.bf16.mxu0 0
      %1355 = vmatpush1.bf16.msra.mxu0 0
      %1356 = vmatprep.subr.bf16.mxu0 0
      %1357 = vmatpush1.bf16.msra.mxu0 0
      %1358 = vmatprep.subr.bf16.mxu0 0
      %1359 = vmatpush1.bf16.msra.mxu0 0
      %1360 = vmatprep.subr.bf16.mxu0 0
      %1361 = vmatpush1.bf16.msra.mxu0 0
      %1362 = vmatprep.subr.bf16.mxu0 0
      %1363 = vmatpush1.bf16.msra.mxu0 0
      %1364 = vmatprep.subr.bf16.mxu0 0
      %1365 = vmatpush1.bf16.msra.mxu0 0
      %1366 = vmatprep.subr.bf16.mxu0 0
      %1367 = vmatpush1.bf16.msra.mxu0 0
      %1368 = vmatprep.subr.bf16.mxu0 0
      %1369 = vmatpush1.bf16.msra.mxu0 %v1352
      %1370 = vmatprep.subr.bf16.mxu0 0
      %1371 = vmatpush2.bf16.msra.mxu0 0
      %1372 = vmatprep.subr.bf16.mxu0 0
      %1373 = vmatpush2.bf16.msra.mxu0 0
      %1374 = vmatprep.subr.bf16.mxu0 0
      %1375 = vmatpush2.bf16.msra.mxu0 0
      %1376 = vmatprep.subr.bf16.mxu0 0
      %1377 = vmatpush2.bf16.msra.mxu0 0
      %1378 = vmatprep.subr.bf16.mxu0 0
      %1379 = vmatpush2.bf16.msra.mxu0 0
      %1380 = vmatprep.subr.bf16.mxu0 0
      %1381 = vmatpush2.bf16.msra.mxu0 0
      %1382 = vmatprep.subr.bf16.mxu0 0
      %1383 = vmatpush2.bf16.msra.mxu0 0
      %1384 = vmatprep.subr.bf16.mxu0 0
      %1385 = vmatpush2.bf16.msra.mxu0 0
      %1386 = vmatprep.mubr.bf16.mxu0 0
      %1387 = vmatmul.mubr.bf16.gmra.mxu0 %v1348
      %v1388 = vpop.f32.mrf.mxu0
      %v1389 = vadd.f32 0.0, %v1388
      %v1390 = vpop.f32.mrf.mxu0
      %v1391 = vpop.f32.mrf.mxu0
      %v1392 = vadd.f32 0.0, %v1391
      %v1393 = vpop.f32.mrf.mxu0
      %1394 = vdwg.mxu0
      %v1396 = vsel %vm892, %v1022, 0
      %v1399 = vsel %vm1350, %v1021, 0
      %1401 = vmatprep.subr.bf16.mxu0 0
      %1402 = vmatpush1.bf16.msra.mxu0 0
      %1403 = vmatprep.subr.bf16.mxu0 0
      %1404 = vmatpush1.bf16.msra.mxu0 0
      %1405 = vmatprep.subr.bf16.mxu0 0
      %1406 = vmatpush1.bf16.msra.mxu0 0
      %1407 = vmatprep.subr.bf16.mxu0 0
      %1408 = vmatpush1.bf16.msra.mxu0 0
      %1409 = vmatprep.subr.bf16.mxu0 0
      %1410 = vmatpush1.bf16.msra.mxu0 0
      %1411 = vmatprep.subr.bf16.mxu0 0
      %1412 = vmatpush1.bf16.msra.mxu0 0
      %1413 = vmatprep.subr.bf16.mxu0 0
      %1414 = vmatpush1.bf16.msra.mxu0 0
      %1415 = vmatprep.subr.bf16.mxu0 0
      %1416 = vmatpush1.bf16.msra.mxu0 %v1399
      %1417 = vmatprep.subr.bf16.mxu0 0
      %1418 = vmatpush2.bf16.msra.mxu0 0
      %1419 = vmatprep.subr.bf16.mxu0 0
      %1420 = vmatpush2.bf16.msra.mxu0 0
      %1421 = vmatprep.subr.bf16.mxu0 0
      %1422 = vmatpush2.bf16.msra.mxu0 0
      %1423 = vmatprep.subr.bf16.mxu0 0
      %1424 = vmatpush2.bf16.msra.mxu0 0
      %1425 = vmatprep.subr.bf16.mxu0 0
      %1426 = vmatpush2.bf16.msra.mxu0 0
      %1427 = vmatprep.subr.bf16.mxu0 0
      %1428 = vmatpush2.bf16.msra.mxu0 0
      %1429 = vmatprep.subr.bf16.mxu0 0
      %1430 = vmatpush2.bf16.msra.mxu0 0
      %1431 = vmatprep.subr.bf16.mxu0 0
      %1432 = vmatpush2.bf16.msra.mxu0 0
      %1433 = vmatprep.mubr.bf16.mxu0 0
      %1434 = vmatmul.mubr.bf16.gmra.mxu0 %v1396
      %v1435 = vpop.f32.mrf.mxu0
      %v1436 = vadd.f32 %v1389, %v1435
      %v1437 = vpop.f32.mrf.mxu0
      %v1438 = vpop.f32.mrf.mxu0
      %v1439 = vadd.f32 %v1392, %v1438
      %v1440 = vpop.f32.mrf.mxu0
      %1441 = vdwg.mxu0
      %s1442 = scalar_lea.vmem %s4, 32
      %v1443 = vld [vmem:[%s1442] sm:$0xf]
      %v1444 = vld [vmem:[%s1442 + $0x4] sm:$0xf]
      %v1445 = vld [vmem:[%s1442 + $0x8] sm:$0xf]
      %v1446 = vld [vmem:[%s1442 + $0xc] sm:$0xf]
      %s1447 = scalar_lea.vmem %s5, 2
      %v1448 = vld [vmem:[%s1447] sm:$0x1]
      %v1450 = vlaneseq
      %v1451 = vshrl.u32 %v1450, 7
      %v1452 = vsub.s32 0, %v1451
      %v1453 = vrot.slane %v1448, %v1452
      %v1459 = vunpack.c.l.b16 %v1443
      %v1460 = vunpack.c.l.b16 %v1444
      %v1461 = vunpack.c.l.b16 %v1445
      %v1462 = vunpack.c.l.b16 %v1446
      %v1463 = vpack.c.b16 %v1460, %v1459
      %v1464 = vpack.c.b16 %v1462, %v1461
      %1467 = vmatprep.subr.bf16.mxu0 0
      %1468 = vmatpush1.bf16.msra.mxu0 0
      %1469 = vmatprep.subr.bf16.mxu0 0
      %1470 = vmatpush1.bf16.msra.mxu0 0
      %1471 = vmatprep.subr.bf16.mxu0 0
      %1472 = vmatpush1.bf16.msra.mxu0 0
      %1473 = vmatprep.subr.bf16.mxu0 0
      %1474 = vmatpush1.bf16.msra.mxu0 0
      %1475 = vmatprep.subr.bf16.mxu0 0
      %1476 = vmatpush1.bf16.msra.mxu0 0
      %1477 = vmatprep.subr.bf16.mxu0 0
      %1478 = vmatpush1.bf16.msra.mxu0 0
      %1479 = vmatprep.subr.bf16.mxu0 0
      %1480 = vmatpush1.bf16.msra.mxu0 %v1464
      %1481 = vmatprep.subr.bf16.mxu0 0
      %1482 = vmatpush1.bf16.msra.mxu0 %v1463
      %1483 = vmatprep.subr.bf16.mxu0 0
      %1484 = vmatpush2.bf16.msra.mxu0 0
      %1485 = vmatprep.subr.bf16.mxu0 0
      %1486 = vmatpush2.bf16.msra.mxu0 0
      %1487 = vmatprep.subr.bf16.mxu0 0
      %1488 = vmatpush2.bf16.msra.mxu0 0
      %1489 = vmatprep.subr.bf16.mxu0 0
      %1490 = vmatpush2.bf16.msra.mxu0 0
      %1491 = vmatprep.subr.bf16.mxu0 0
      %1492 = vmatpush2.bf16.msra.mxu0 0
      %1493 = vmatprep.subr.bf16.mxu0 0
      %1494 = vmatpush2.bf16.msra.mxu0 0
      %1495 = vmatprep.subr.bf16.mxu0 0
      %1496 = vmatpush2.bf16.msra.mxu0 0
      %1497 = vmatprep.subr.bf16.mxu0 0
      %1498 = vmatpush2.bf16.msra.mxu0 0
      %1499 = vmatprep.mubr.bf16.mxu0 0
      %1500 = vmatmul.mubr.bf16.gmra.mxu0 %v719
      %v1501 = vpop.f32.mrf.mxu0
      %v1502 = vadd.f32 %v1453, %v1501
      %v1503 = vpop.f32.mrf.mxu0
      %v1504 = vpop.f32.mrf.mxu0
      %v1505 = vadd.f32 %v1453, %v1504
      %v1506 = vpop.f32.mrf.mxu0
      %1507 = vdwg.mxu0
      %s1508 = scalar_lea.vmem %s6, 32
      %v1509 = vld [vmem:[%s1508] sm:$0xf]
      %v1510 = vld [vmem:[%s1508 + $0x4] sm:$0xf]
      %v1511 = vld [vmem:[%s1508 + $0x8] sm:$0xf]
      %v1512 = vld [vmem:[%s1508 + $0xc] sm:$0xf]
      %s1513 = scalar_lea.vmem %s7, 2
      %v1514 = vld [vmem:[%s1513] sm:$0x1]
      %v1516 = vlaneseq
      %v1517 = vshrl.u32 %v1516, 7
      %v1518 = vsub.s32 0, %v1517
      %v1519 = vrot.slane %v1514, %v1518
      %v1525 = vunpack.c.l.b16 %v1509
      %v1526 = vunpack.c.l.b16 %v1510
      %v1527 = vunpack.c.l.b16 %v1511
      %v1528 = vunpack.c.l.b16 %v1512
      %v1529 = vpack.c.b16 %v1526, %v1525
      %v1530 = vpack.c.b16 %v1528, %v1527
      %1533 = vmatprep.subr.bf16.mxu0 0
      %1534 = vmatpush1.bf16.msra.mxu0 0
      %1535 = vmatprep.subr.bf16.mxu0 0
      %1536 = vmatpush1.bf16.msra.mxu0 0
      %1537 = vmatprep.subr.bf16.mxu0 0
      %1538 = vmatpush1.bf16.msra.mxu0 0
      %1539 = vmatprep.subr.bf16.mxu0 0
      %1540 = vmatpush1.bf16.msra.mxu0 0
      %1541 = vmatprep.subr.bf16.mxu0 0
      %1542 = vmatpush1.bf16.msra.mxu0 0
      %1543 = vmatprep.subr.bf16.mxu0 0
      %1544 = vmatpush1.bf16.msra.mxu0 0
      %1545 = vmatprep.subr.bf16.mxu0 0
      %1546 = vmatpush1.bf16.msra.mxu0 %v1530
      %1547 = vmatprep.subr.bf16.mxu0 0
      %1548 = vmatpush1.bf16.msra.mxu0 %v1529
      %1549 = vmatprep.subr.bf16.mxu0 0
      %1550 = vmatpush2.bf16.msra.mxu0 0
      %1551 = vmatprep.subr.bf16.mxu0 0
      %1552 = vmatpush2.bf16.msra.mxu0 0
      %1553 = vmatprep.subr.bf16.mxu0 0
      %1554 = vmatpush2.bf16.msra.mxu0 0
      %1555 = vmatprep.subr.bf16.mxu0 0
      %1556 = vmatpush2.bf16.msra.mxu0 0
      %1557 = vmatprep.subr.bf16.mxu0 0
      %1558 = vmatpush2.bf16.msra.mxu0 0
      %1559 = vmatprep.subr.bf16.mxu0 0
      %1560 = vmatpush2.bf16.msra.mxu0 0
      %1561 = vmatprep.subr.bf16.mxu0 0
      %1562 = vmatpush2.bf16.msra.mxu0 0
      %1563 = vmatprep.subr.bf16.mxu0 0
      %1564 = vmatpush2.bf16.msra.mxu0 0
      %1565 = vmatprep.mubr.bf16.mxu0 0
      %1566 = vmatmul.mubr.bf16.gmra.mxu0 %v719
      %v1567 = vpop.f32.mrf.mxu0
      %v1568 = vadd.f32 %v1519, %v1567
      %v1569 = vpop.f32.mrf.mxu0
      %v1570 = vpop.f32.mrf.mxu0
      %v1571 = vadd.f32 %v1519, %v1570
      %v1572 = vpop.f32.mrf.mxu0
      %1573 = vdwg.mxu0
      %s1574 = scalar_lea.vmem %s8, 32
      %v1575 = vld [vmem:[%s1574] sm:$0xf]
      %v1576 = vld [vmem:[%s1574 + $0x4] sm:$0xf]
      %v1577 = vld [vmem:[%s1574 + $0x8] sm:$0xf]
      %v1578 = vld [vmem:[%s1574 + $0xc] sm:$0xf]
      %s1579 = scalar_lea.vmem %s9, 2
      %v1580 = vld [vmem:[%s1579] sm:$0x1]
      %v1582 = vlaneseq
      %v1583 = vshrl.u32 %v1582, 7
      %v1584 = vsub.s32 0, %v1583
      %v1585 = vrot.slane %v1580, %v1584
      %v1591 = vunpack.c.l.b16 %v1575
      %v1592 = vunpack.c.l.b16 %v1576
      %v1593 = vunpack.c.l.b16 %v1577
      %v1594 = vunpack.c.l.b16 %v1578
      %v1595 = vpack.c.b16 %v1592, %v1591
      %v1596 = vpack.c.b16 %v1594, %v1593
      %1599 = vmatprep.subr.bf16.mxu0 0
      %1600 = vmatpush1.bf16.msra.mxu0 0
      %1601 = vmatprep.subr.bf16.mxu0 0
      %1602 = vmatpush1.bf16.msra.mxu0 0
      %1603 = vmatprep.subr.bf16.mxu0 0
      %1604 = vmatpush1.bf16.msra.mxu0 0
      %1605 = vmatprep.subr.bf16.mxu0 0
      %1606 = vmatpush1.bf16.msra.mxu0 0
      %1607 = vmatprep.subr.bf16.mxu0 0
      %1608 = vmatpush1.bf16.msra.mxu0 0
      %1609 = vmatprep.subr.bf16.mxu0 0
      %1610 = vmatpush1.bf16.msra.mxu0 0
      %1611 = vmatprep.subr.bf16.mxu0 0
      %1612 = vmatpush1.bf16.msra.mxu0 %v1596
      %1613 = vmatprep.subr.bf16.mxu0 0
      %1614 = vmatpush1.bf16.msra.mxu0 %v1595
      %1615 = vmatprep.subr.bf16.mxu0 0
      %1616 = vmatpush2.bf16.msra.mxu0 0
      %1617 = vmatprep.subr.bf16.mxu0 0
      %1618 = vmatpush2.bf16.msra.mxu0 0
      %1619 = vmatprep.subr.bf16.mxu0 0
      %1620 = vmatpush2.bf16.msra.mxu0 0
      %1621 = vmatprep.subr.bf16.mxu0 0
      %1622 = vmatpush2.bf16.msra.mxu0 0
      %1623 = vmatprep.subr.bf16.mxu0 0
      %1624 = vmatpush2.bf16.msra.mxu0 0
      %1625 = vmatprep.subr.bf16.mxu0 0
      %1626 = vmatpush2.bf16.msra.mxu0 0
      %1627 = vmatprep.subr.bf16.mxu0 0
      %1628 = vmatpush2.bf16.msra.mxu0 0
      %1629 = vmatprep.subr.bf16.mxu0 0
      %1630 = vmatpush2.bf16.msra.mxu0 0
      %1631 = vmatprep.mubr.bf16.mxu0 0
      %1632 = vmatmul.mubr.bf16.gmra.mxu0 %v719
      %v1633 = vpop.f32.mrf.mxu0
      %v1634 = vadd.f32 %v1585, %v1633
      %v1635 = vpop.f32.mrf.mxu0
      %v1636 = vpop.f32.mrf.mxu0
      %v1637 = vadd.f32 %v1585, %v1636
      %v1638 = vpop.f32.mrf.mxu0
      %1639 = vdwg.mxu0
      %v1640 = vpack.c.bf16 %v1505, %v1502
      %v1641 = vpack.c.bf16 %v1571, %v1568
      %v1643 = vsel %vm892, %v1640, 0
      %v1646 = vsel %vm892, %v1641, 0
      %1648 = vmatprep.subr.bf16.mxu0 0
      %1649 = vmatpush1.bf16.xpose.msra.mxu0 0
      %1650 = vmatprep.subr.bf16.mxu0 0
      %1651 = vmatpush1.bf16.xpose.msra.mxu0 0
      %1652 = vmatprep.subr.bf16.mxu0 0
      %1653 = vmatpush1.bf16.xpose.msra.mxu0 0
      %1654 = vmatprep.subr.bf16.mxu0 0
      %1655 = vmatpush1.bf16.xpose.msra.mxu0 0
      %1656 = vmatprep.subr.bf16.mxu0 0
      %1657 = vmatpush1.bf16.xpose.msra.mxu0 0
      %1658 = vmatprep.subr.bf16.mxu0 0
      %1659 = vmatpush1.bf16.xpose.msra.mxu0 0
      %1660 = vmatprep.subr.bf16.mxu0 0
      %1661 = vmatpush1.bf16.xpose.msra.mxu0 0
      %1662 = vmatprep.subr.bf16.mxu0 0
      %1663 = vmatpush1.bf16.xpose.msra.mxu0 %v1646
      %1664 = vmatprep.subr.bf16.mxu0 0
      %1665 = vmatpush2.bf16.xpose.msra.mxu0 0
      %1666 = vmatprep.subr.bf16.mxu0 0
      %1667 = vmatpush2.bf16.xpose.msra.mxu0 0
      %1668 = vmatprep.subr.bf16.mxu0 0
      %1669 = vmatpush2.bf16.xpose.msra.mxu0 0
      %1670 = vmatprep.subr.bf16.mxu0 0
      %1671 = vmatpush2.bf16.xpose.msra.mxu0 0
      %1672 = vmatprep.subr.bf16.mxu0 0
      %1673 = vmatpush2.bf16.xpose.msra.mxu0 0
      %1674 = vmatprep.subr.bf16.mxu0 0
      %1675 = vmatpush2.bf16.xpose.msra.mxu0 0
      %1676 = vmatprep.subr.bf16.mxu0 0
      %1677 = vmatpush2.bf16.xpose.msra.mxu0 0
      %1678 = vmatprep.subr.bf16.mxu0 0
      %1679 = vmatpush2.bf16.xpose.msra.mxu0 0
      %1680 = vmatprep.mubr.bf16.mxu0 0
      %1681 = vmatmul.mubr.bf16.gmra.mxu0 %v1643
      %v1682 = vpop.f32.mrf.mxu0
      %v1683 = vadd.f32 0.0, %v1682
      %v1684 = vpop.f32.mrf.mxu0
      %v1685 = vpop.f32.mrf.mxu0
      %v1686 = vadd.f32 0.0, %v1685
      %v1687 = vpop.f32.mrf.mxu0
      %1688 = vdwg.mxu0
      %v1689 = vmul.f32 %v1683, 0.35355338
      %v1690 = vmul.f32 %v1686, 0.35355338
      %v1691 = vadd.f32 %v1689, %v946
      %v1692 = vadd.f32 %v1690, %v946
      %v1693 = vadd.f32 %v1691, 0.0
      %v1694 = vadd.f32 %v1692, 0.0
      %v1695 = vsel %vm952, %v1693, -inf
      %1696 = vmax.xlane.f32.xlu0 %v1695
      %v1697 = vpop.xlane.xlu0 %1696
      %v1698 = vsel %vm952, %v1694, -inf
      %1699 = vmax.xlane.f32.xlu0 %v1698
      %v1700 = vpop.xlane.xlu0 %1699
      %v1701 = vsub.f32 %v1693, %v1697
      %v1702 = vsub.f32 %v1694, %v1700
      %v1703 = vmul.f32 %v1701, 1.442695
      %v1704 = vpow.pop %v1703
      %v1705 = vmul.f32 %v1702, 1.442695
      %v1706 = vpow.pop %v1705
      %v1707 = vsel %vm952, %v1704, 0.0
      %1708 = vadd.xlane.f32.xlu0 %v1707
      %v1709 = vpop.xlane.xlu0 %1708
      %v1710 = vsel %vm952, %v1706, 0.0
      %1711 = vadd.xlane.f32.xlu0 %v1710
      %v1712 = vpop.xlane.xlu0 %1711
      %v1713 = vrcp.pop %v1709
      %v1714 = vrcp.pop %v1712
      %v1715 = vmul.f32 %v1704, %v1713
      %v1716 = vmul.f32 %v1706, %v1714
      %v1717 = vpack.c.bf16 %v1716, %v1715
      %v1718 = vpack.c.bf16 %v1637, %v1634
      %v1720 = vsel %vm952, %v1717, 0
      %1722 = vmatprep.subr.bf16.mxu0 0
      %1723 = vmatpush1.bf16.msra.mxu0 0
      %1724 = vmatprep.subr.bf16.mxu0 0
      %1725 = vmatpush1.bf16.msra.mxu0 0
      %1726 = vmatprep.subr.bf16.mxu0 0
      %1727 = vmatpush1.bf16.msra.mxu0 0
      %1728 = vmatprep.subr.bf16.mxu0 0
      %1729 = vmatpush1.bf16.msra.mxu0 0
      %1730 = vmatprep.subr.bf16.mxu0 0
      %1731 = vmatpush1.bf16.msra.mxu0 0
      %1732 = vmatprep.subr.bf16.mxu0 0
      %1733 = vmatpush1.bf16.msra.mxu0 0
      %1734 = vmatprep.subr.bf16.mxu0 0
      %1735 = vmatpush1.bf16.msra.mxu0 0
      %1736 = vmatprep.subr.bf16.mxu0 0
      %1737 = vmatpush1.bf16.msra.mxu0 %v1718
      %1738 = vmatprep.subr.bf16.mxu0 0
      %1739 = vmatpush2.bf16.msra.mxu0 0
      %1740 = vmatprep.subr.bf16.mxu0 0
      %1741 = vmatpush2.bf16.msra.mxu0 0
      %1742 = vmatprep.subr.bf16.mxu0 0
      %1743 = vmatpush2.bf16.msra.mxu0 0
      %1744 = vmatprep.subr.bf16.mxu0 0
      %1745 = vmatpush2.bf16.msra.mxu0 0
      %1746 = vmatprep.subr.bf16.mxu0 0
      %1747 = vmatpush2.bf16.msra.mxu0 0
      %1748 = vmatprep.subr.bf16.mxu0 0
      %1749 = vmatpush2.bf16.msra.mxu0 0
      %1750 = vmatprep.subr.bf16.mxu0 0
      %1751 = vmatpush2.bf16.msra.mxu0 0
      %1752 = vmatprep.subr.bf16.mxu0 0
      %1753 = vmatpush2.bf16.msra.mxu0 0
      %1754 = vmatprep.mubr.bf16.mxu0 0
      %1755 = vmatmul.mubr.bf16.gmra.mxu0 %v1720
      %v1756 = vpop.f32.mrf.mxu0
      %v1757 = vadd.f32 0.0, %v1756
      %v1758 = vpop.f32.mrf.mxu0
      %v1759 = vpop.f32.mrf.mxu0
      %v1760 = vadd.f32 0.0, %v1759
      %v1761 = vpop.f32.mrf.mxu0
      %1762 = vdwg.mxu0
      %s1763 = scalar_lea.vmem %s10, 8
      %v1764 = vld [vmem:[%s1763] sm:$0xf]
      %v1765 = vpack.c.bf16 %v1760, %v1757
      %v1767 = vsel %vm892, %v1765, 0
      %v1770 = vsel %vm1350, %v1764, 0
      %1772 = vmatprep.subr.bf16.mxu0 0
      %1773 = vmatpush1.bf16.msra.mxu0 0
      %1774 = vmatprep.subr.bf16.mxu0 0
      %1775 = vmatpush1.bf16.msra.mxu0 0
      %1776 = vmatprep.subr.bf16.mxu0 0
      %1777 = vmatpush1.bf16.msra.mxu0 0
      %1778 = vmatprep.subr.bf16.mxu0 0
      %1779 = vmatpush1.bf16.msra.mxu0 0
      %1780 = vmatprep.subr.bf16.mxu0 0
      %1781 = vmatpush1.bf16.msra.mxu0 0
      %1782 = vmatprep.subr.bf16.mxu0 0
      %1783 = vmatpush1.bf16.msra.mxu0 0
      %1784 = vmatprep.subr.bf16.mxu0 0
      %1785 = vmatpush1.bf16.msra.mxu0 0
      %1786 = vmatprep.subr.bf16.mxu0 0
      %1787 = vmatpush1.bf16.msra.mxu0 %v1770
      %1788 = vmatprep.subr.bf16.mxu0 0
      %1789 = vmatpush2.bf16.msra.mxu0 0
      %1790 = vmatprep.subr.bf16.mxu0 0
      %1791 = vmatpush2.bf16.msra.mxu0 0
      %1792 = vmatprep.subr.bf16.mxu0 0
      %1793 = vmatpush2.bf16.msra.mxu0 0
      %1794 = vmatprep.subr.bf16.mxu0 0
      %1795 = vmatpush2.bf16.msra.mxu0 0
      %1796 = vmatprep.subr.bf16.mxu0 0
      %1797 = vmatpush2.bf16.msra.mxu0 0
      %1798 = vmatprep.subr.bf16.mxu0 0
      %1799 = vmatpush2.bf16.msra.mxu0 0
      %1800 = vmatprep.subr.bf16.mxu0 0
      %1801 = vmatpush2.bf16.msra.mxu0 0
      %1802 = vmatprep.subr.bf16.mxu0 0
      %1803 = vmatpush2.bf16.msra.mxu0 0
      %1804 = vmatprep.mubr.bf16.mxu0 0
      %1805 = vmatmul.mubr.bf16.gmra.mxu0 %v1767
      %v1806 = vpop.f32.mrf.mxu0
      %v1807 = vadd.f32 0.0, %v1806
      %v1808 = vpop.f32.mrf.mxu0
      %v1809 = vpop.f32.mrf.mxu0
      %v1810 = vadd.f32 0.0, %v1809
      %v1811 = vpop.f32.mrf.mxu0
      %1812 = vdwg.mxu0
      %v1813 = vadd.f32 %v1436, %v1807
      %v1814 = vadd.f32 %v1439, %v1810
      %s1815 = scalar_lea.vmem %s4, 48
      %v1816 = vld [vmem:[%s1815] sm:$0xf]
      %v1817 = vld [vmem:[%s1815 + $0x4] sm:$0xf]
      %v1818 = vld [vmem:[%s1815 + $0x8] sm:$0xf]
      %v1819 = vld [vmem:[%s1815 + $0xc] sm:$0xf]
      %s1820 = scalar_lea.vmem %s5, 3
      %v1821 = vld [vmem:[%s1820] sm:$0x1]
      %v1823 = vlaneseq
      %v1824 = vshrl.u32 %v1823, 7
      %v1825 = vsub.s32 0, %v1824
      %v1826 = vrot.slane %v1821, %v1825
      %v1832 = vunpack.c.l.b16 %v1816
      %v1833 = vunpack.c.l.b16 %v1817
      %v1834 = vunpack.c.l.b16 %v1818
      %v1835 = vunpack.c.l.b16 %v1819
      %v1836 = vpack.c.b16 %v1833, %v1832
      %v1837 = vpack.c.b16 %v1835, %v1834
      %1840 = vmatprep.subr.bf16.mxu0 0
      %1841 = vmatpush1.bf16.msra.mxu0 0
      %1842 = vmatprep.subr.bf16.mxu0 0
      %1843 = vmatpush1.bf16.msra.mxu0 0
      %1844 = vmatprep.subr.bf16.mxu0 0
      %1845 = vmatpush1.bf16.msra.mxu0 0
      %1846 = vmatprep.subr.bf16.mxu0 0
      %1847 = vmatpush1.bf16.msra.mxu0 0
      %1848 = vmatprep.subr.bf16.mxu0 0
      %1849 = vmatpush1.bf16.msra.mxu0 0
      %1850 = vmatprep.subr.bf16.mxu0 0
      %1851 = vmatpush1.bf16.msra.mxu0 0
      %1852 = vmatprep.subr.bf16.mxu0 0
      %1853 = vmatpush1.bf16.msra.mxu0 %v1837
      %1854 = vmatprep.subr.bf16.mxu0 0
      %1855 = vmatpush1.bf16.msra.mxu0 %v1836
      %1856 = vmatprep.subr.bf16.mxu0 0
      %1857 = vmatpush2.bf16.msra.mxu0 0
      %1858 = vmatprep.subr.bf16.mxu0 0
      %1859 = vmatpush2.bf16.msra.mxu0 0
      %1860 = vmatprep.subr.bf16.mxu0 0
      %1861 = vmatpush2.bf16.msra.mxu0 0
      %1862 = vmatprep.subr.bf16.mxu0 0
      %1863 = vmatpush2.bf16.msra.mxu0 0
      %1864 = vmatprep.subr.bf16.mxu0 0
      %1865 = vmatpush2.bf16.msra.mxu0 0
      %1866 = vmatprep.subr.bf16.mxu0 0
      %1867 = vmatpush2.bf16.msra.mxu0 0
      %1868 = vmatprep.subr.bf16.mxu0 0
      %1869 = vmatpush2.bf16.msra.mxu0 0
      %1870 = vmatprep.subr.bf16.mxu0 0
      %1871 = vmatpush2.bf16.msra.mxu0 0
      %1872 = vmatprep.mubr.bf16.mxu0 0
      %1873 = vmatmul.mubr.bf16.gmra.mxu0 %v719
      %v1874 = vpop.f32.mrf.mxu0
      %v1875 = vadd.f32 %v1826, %v1874
      %v1876 = vpop.f32.mrf.mxu0
      %v1877 = vpop.f32.mrf.mxu0
      %v1878 = vadd.f32 %v1826, %v1877
      %v1879 = vpop.f32.mrf.mxu0
      %1880 = vdwg.mxu0
      %s1881 = scalar_lea.vmem %s6, 48
      %v1882 = vld [vmem:[%s1881] sm:$0xf]
      %v1883 = vld [vmem:[%s1881 + $0x4] sm:$0xf]
      %v1884 = vld [vmem:[%s1881 + $0x8] sm:$0xf]
      %v1885 = vld [vmem:[%s1881 + $0xc] sm:$0xf]
      %s1886 = scalar_lea.vmem %s7, 3
      %v1887 = vld [vmem:[%s1886] sm:$0x1]
      %v1889 = vlaneseq
      %v1890 = vshrl.u32 %v1889, 7
      %v1891 = vsub.s32 0, %v1890
      %v1892 = vrot.slane %v1887, %v1891
      %v1898 = vunpack.c.l.b16 %v1882
      %v1899 = vunpack.c.l.b16 %v1883
      %v1900 = vunpack.c.l.b16 %v1884
      %v1901 = vunpack.c.l.b16 %v1885
      %v1902 = vpack.c.b16 %v1899, %v1898
      %v1903 = vpack.c.b16 %v1901, %v1900
      %1906 = vmatprep.subr.bf16.mxu0 0
      %1907 = vmatpush1.bf16.msra.mxu0 0
      %1908 = vmatprep.subr.bf16.mxu0 0
      %1909 = vmatpush1.bf16.msra.mxu0 0
      %1910 = vmatprep.subr.bf16.mxu0 0
      %1911 = vmatpush1.bf16.msra.mxu0 0
      %1912 = vmatprep.subr.bf16.mxu0 0
      %1913 = vmatpush1.bf16.msra.mxu0 0
      %1914 = vmatprep.subr.bf16.mxu0 0
      %1915 = vmatpush1.bf16.msra.mxu0 0
      %1916 = vmatprep.subr.bf16.mxu0 0
      %1917 = vmatpush1.bf16.msra.mxu0 0
      %1918 = vmatprep.subr.bf16.mxu0 0
      %1919 = vmatpush1.bf16.msra.mxu0 %v1903
      %1920 = vmatprep.subr.bf16.mxu0 0
      %1921 = vmatpush1.bf16.msra.mxu0 %v1902
      %1922 = vmatprep.subr.bf16.mxu0 0
      %1923 = vmatpush2.bf16.msra.mxu0 0
      %1924 = vmatprep.subr.bf16.mxu0 0
      %1925 = vmatpush2.bf16.msra.mxu0 0
      %1926 = vmatprep.subr.bf16.mxu0 0
      %1927 = vmatpush2.bf16.msra.mxu0 0
      %1928 = vmatprep.subr.bf16.mxu0 0
      %1929 = vmatpush2.bf16.msra.mxu0 0
      %1930 = vmatprep.subr.bf16.mxu0 0
      %1931 = vmatpush2.bf16.msra.mxu0 0
      %1932 = vmatprep.subr.bf16.mxu0 0
      %1933 = vmatpush2.bf16.msra.mxu0 0
      %1934 = vmatprep.subr.bf16.mxu0 0
      %1935 = vmatpush2.bf16.msra.mxu0 0
      %1936 = vmatprep.subr.bf16.mxu0 0
      %1937 = vmatpush2.bf16.msra.mxu0 0
      %1938 = vmatprep.mubr.bf16.mxu0 0
      %1939 = vmatmul.mubr.bf16.gmra.mxu0 %v719
      %v1940 = vpop.f32.mrf.mxu0
      %v1941 = vadd.f32 %v1892, %v1940
      %v1942 = vpop.f32.mrf.mxu0
      %v1943 = vpop.f32.mrf.mxu0
      %v1944 = vadd.f32 %v1892, %v1943
      %v1945 = vpop.f32.mrf.mxu0
      %1946 = vdwg.mxu0
      %s1947 = scalar_lea.vmem %s8, 48
      %v1948 = vld [vmem:[%s1947] sm:$0xf]
      %v1949 = vld [vmem:[%s1947 + $0x4] sm:$0xf]
      %v1950 = vld [vmem:[%s1947 + $0x8] sm:$0xf]
      %v1951 = vld [vmem:[%s1947 + $0xc] sm:$0xf]
      %s1952 = scalar_lea.vmem %s9, 3
      %v1953 = vld [vmem:[%s1952] sm:$0x1]
      %v1955 = vlaneseq
      %v1956 = vshrl.u32 %v1955, 7
      %v1957 = vsub.s32 0, %v1956
      %v1958 = vrot.slane %v1953, %v1957
      %v1964 = vunpack.c.l.b16 %v1948
      %v1965 = vunpack.c.l.b16 %v1949
      %v1966 = vunpack.c.l.b16 %v1950
      %v1967 = vunpack.c.l.b16 %v1951
      %v1968 = vpack.c.b16 %v1965, %v1964
      %v1969 = vpack.c.b16 %v1967, %v1966
      %1972 = vmatprep.subr.bf16.mxu0 0
      %1973 = vmatpush1.bf16.msra.mxu0 0
      %1974 = vmatprep.subr.bf16.mxu0 0
      %1975 = vmatpush1.bf16.msra.mxu0 0
      %1976 = vmatprep.subr.bf16.mxu0 0
      %1977 = vmatpush1.bf16.msra.mxu0 0
      %1978 = vmatprep.subr.bf16.mxu0 0
      %1979 = vmatpush1.bf16.msra.mxu0 0
      %1980 = vmatprep.subr.bf16.mxu0 0
      %1981 = vmatpush1.bf16.msra.mxu0 0
      %1982 = vmatprep.subr.bf16.mxu0 0
      %1983 = vmatpush1.bf16.msra.mxu0 0
      %1984 = vmatprep.subr.bf16.mxu0 0
      %1985 = vmatpush1.bf16.msra.mxu0 %v1969
      %1986 = vmatprep.subr.bf16.mxu0 0
      %1987 = vmatpush1.bf16.msra.mxu0 %v1968
      %1988 = vmatprep.subr.bf16.mxu0 0
      %1989 = vmatpush2.bf16.msra.mxu0 0
      %1990 = vmatprep.subr.bf16.mxu0 0
      %1991 = vmatpush2.bf16.msra.mxu0 0
      %1992 = vmatprep.subr.bf16.mxu0 0
      %1993 = vmatpush2.bf16.msra.mxu0 0
      %1994 = vmatprep.subr.bf16.mxu0 0
      %1995 = vmatpush2.bf16.msra.mxu0 0
      %1996 = vmatprep.subr.bf16.mxu0 0
      %1997 = vmatpush2.bf16.msra.mxu0 0
      %1998 = vmatprep.subr.bf16.mxu0 0
      %1999 = vmatpush2.bf16.msra.mxu0 0
      %2000 = vmatprep.subr.bf16.mxu0 0
      %2001 = vmatpush2.bf16.msra.mxu0 0
      %2002 = vmatprep.subr.bf16.mxu0 0
      %2003 = vmatpush2.bf16.msra.mxu0 0
      %2004 = vmatprep.mubr.bf16.mxu0 0
      %2005 = vmatmul.mubr.bf16.gmra.mxu0 %v719
      %v2006 = vpop.f32.mrf.mxu0
      %v2007 = vadd.f32 %v1958, %v2006
      %v2008 = vpop.f32.mrf.mxu0
      %v2009 = vpop.f32.mrf.mxu0
      %v2010 = vadd.f32 %v1958, %v2009
      %v2011 = vpop.f32.mrf.mxu0
      %2012 = vdwg.mxu0
      %v2013 = vpack.c.bf16 %v1878, %v1875
      %v2014 = vpack.c.bf16 %v1944, %v1941
      %v2016 = vsel %vm892, %v2013, 0
      %v2019 = vsel %vm892, %v2014, 0
      %2021 = vmatprep.subr.bf16.mxu0 0
      %2022 = vmatpush1.bf16.xpose.msra.mxu0 0
      %2023 = vmatprep.subr.bf16.mxu0 0
      %2024 = vmatpush1.bf16.xpose.msra.mxu0 0
      %2025 = vmatprep.subr.bf16.mxu0 0
      %2026 = vmatpush1.bf16.xpose.msra.mxu0 0
      %2027 = vmatprep.subr.bf16.mxu0 0
      %2028 = vmatpush1.bf16.xpose.msra.mxu0 0
      %2029 = vmatprep.subr.bf16.mxu0 0
      %2030 = vmatpush1.bf16.xpose.msra.mxu0 0
      %2031 = vmatprep.subr.bf16.mxu0 0
      %2032 = vmatpush1.bf16.xpose.msra.mxu0 0
      %2033 = vmatprep.subr.bf16.mxu0 0
      %2034 = vmatpush1.bf16.xpose.msra.mxu0 0
      %2035 = vmatprep.subr.bf16.mxu0 0
      %2036 = vmatpush1.bf16.xpose.msra.mxu0 %v2019
      %2037 = vmatprep.subr.bf16.mxu0 0
      %2038 = vmatpush2.bf16.xpose.msra.mxu0 0
      %2039 = vmatprep.subr.bf16.mxu0 0
      %2040 = vmatpush2.bf16.xpose.msra.mxu0 0
      %2041 = vmatprep.subr.bf16.mxu0 0
      %2042 = vmatpush2.bf16.xpose.msra.mxu0 0
      %2043 = vmatprep.subr.bf16.mxu0 0
      %2044 = vmatpush2.bf16.xpose.msra.mxu0 0
      %2045 = vmatprep.subr.bf16.mxu0 0
      %2046 = vmatpush2.bf16.xpose.msra.mxu0 0
      %2047 = vmatprep.subr.bf16.mxu0 0
      %2048 = vmatpush2.bf16.xpose.msra.mxu0 0
      %2049 = vmatprep.subr.bf16.mxu0 0
      %2050 = vmatpush2.bf16.xpose.msra.mxu0 0
      %2051 = vmatprep.subr.bf16.mxu0 0
      %2052 = vmatpush2.bf16.xpose.msra.mxu0 0
      %2053 = vmatprep.mubr.bf16.mxu0 0
      %2054 = vmatmul.mubr.bf16.gmra.mxu0 %v2016
      %v2055 = vpop.f32.mrf.mxu0
      %v2056 = vadd.f32 0.0, %v2055
      %v2057 = vpop.f32.mrf.mxu0
      %v2058 = vpop.f32.mrf.mxu0
      %v2059 = vadd.f32 0.0, %v2058
      %v2060 = vpop.f32.mrf.mxu0
      %2061 = vdwg.mxu0
      %v2062 = vmul.f32 %v2056, 0.35355338
      %v2063 = vmul.f32 %v2059, 0.35355338
      %v2064 = vadd.f32 %v2062, %v946
      %v2065 = vadd.f32 %v2063, %v946
      %v2066 = vadd.f32 %v2064, 0.0
      %v2067 = vadd.f32 %v2065, 0.0
      %v2068 = vsel %vm952, %v2066, -inf
      %2069 = vmax.xlane.f32.xlu0 %v2068
      %v2070 = vpop.xlane.xlu0 %2069
      %v2071 = vsel %vm952, %v2067, -inf
      %2072 = vmax.xlane.f32.xlu0 %v2071
      %v2073 = vpop.xlane.xlu0 %2072
      %v2074 = vsub.f32 %v2066, %v2070
      %v2075 = vsub.f32 %v2067, %v2073
      %v2076 = vmul.f32 %v2074, 1.442695
      %v2077 = vpow.pop %v2076
      %v2078 = vmul.f32 %v2075, 1.442695
      %v2079 = vpow.pop %v2078
      %v2080 = vsel %vm952, %v2077, 0.0
      %2081 = vadd.xlane.f32.xlu0 %v2080
      %v2082 = vpop.xlane.xlu0 %2081
      %v2083 = vsel %vm952, %v2079, 0.0
      %2084 = vadd.xlane.f32.xlu0 %v2083
      %v2085 = vpop.xlane.xlu0 %2084
      %v2086 = vrcp.pop %v2082
      %v2087 = vrcp.pop %v2085
      %v2088 = vmul.f32 %v2077, %v2086
      %v2089 = vmul.f32 %v2079, %v2087
      %v2090 = vpack.c.bf16 %v2089, %v2088
      %v2091 = vpack.c.bf16 %v2010, %v2007
      %v2093 = vsel %vm952, %v2090, 0
      %2095 = vmatprep.subr.bf16.mxu0 0
      %2096 = vmatpush1.bf16.msra.mxu0 0
      %2097 = vmatprep.subr.bf16.mxu0 0
      %2098 = vmatpush1.bf16.msra.mxu0 0
      %2099 = vmatprep.subr.bf16.mxu0 0
      %2100 = vmatpush1.bf16.msra.mxu0 0
      %2101 = vmatprep.subr.bf16.mxu0 0
      %2102 = vmatpush1.bf16.msra.mxu0 0
      %2103 = vmatprep.subr.bf16.mxu0 0
      %2104 = vmatpush1.bf16.msra.mxu0 0
      %2105 = vmatprep.subr.bf16.mxu0 0
      %2106 = vmatpush1.bf16.msra.mxu0 0
      %2107 = vmatprep.subr.bf16.mxu0 0
      %2108 = vmatpush1.bf16.msra.mxu0 0
      %2109 = vmatprep.subr.bf16.mxu0 0
      %2110 = vmatpush1.bf16.msra.mxu0 %v2091
      %2111 = vmatprep.subr.bf16.mxu0 0
      %2112 = vmatpush2.bf16.msra.mxu0 0
      %2113 = vmatprep.subr.bf16.mxu0 0
      %2114 = vmatpush2.bf16.msra.mxu0 0
      %2115 = vmatprep.subr.bf16.mxu0 0
      %2116 = vmatpush2.bf16.msra.mxu0 0
      %2117 = vmatprep.subr.bf16.mxu0 0
      %2118 = vmatpush2.bf16.msra.mxu0 0
      %2119 = vmatprep.subr.bf16.mxu0 0
      %2120 = vmatpush2.bf16.msra.mxu0 0
      %2121 = vmatprep.subr.bf16.mxu0 0
      %2122 = vmatpush2.bf16.msra.mxu0 0
      %2123 = vmatprep.subr.bf16.mxu0 0
      %2124 = vmatpush2.bf16.msra.mxu0 0
      %2125 = vmatprep.subr.bf16.mxu0 0
      %2126 = vmatpush2.bf16.msra.mxu0 0
      %2127 = vmatprep.mubr.bf16.mxu0 0
      %2128 = vmatmul.mubr.bf16.gmra.mxu0 %v2093
      %v2129 = vpop.f32.mrf.mxu0
      %v2130 = vadd.f32 0.0, %v2129
      %v2131 = vpop.f32.mrf.mxu0
      %v2132 = vpop.f32.mrf.mxu0
      %v2133 = vadd.f32 0.0, %v2132
      %v2134 = vpop.f32.mrf.mxu0
      %2135 = vdwg.mxu0
      %s2136 = scalar_lea.vmem %s10, 12
      %v2137 = vld [vmem:[%s2136] sm:$0xf]
      %v2138 = vpack.c.bf16 %v2133, %v2130
      %v2140 = vsel %vm892, %v2138, 0
      %v2143 = vsel %vm1350, %v2137, 0
      %2145 = vmatprep.subr.bf16.mxu0 0
      %2146 = vmatpush1.bf16.msra.mxu0 0
      %2147 = vmatprep.subr.bf16.mxu0 0
      %2148 = vmatpush1.bf16.msra.mxu0 0
      %2149 = vmatprep.subr.bf16.mxu0 0
      %2150 = vmatpush1.bf16.msra.mxu0 0
      %2151 = vmatprep.subr.bf16.mxu0 0
      %2152 = vmatpush1.bf16.msra.mxu0 0
      %2153 = vmatprep.subr.bf16.mxu0 0
      %2154 = vmatpush1.bf16.msra.mxu0 0
      %2155 = vmatprep.subr.bf16.mxu0 0
      %2156 = vmatpush1.bf16.msra.mxu0 0
      %2157 = vmatprep.subr.bf16.mxu0 0
      %2158 = vmatpush1.bf16.msra.mxu0 0
      %2159 = vmatprep.subr.bf16.mxu0 0
      %2160 = vmatpush1.bf16.msra.mxu0 %v2143
      %2161 = vmatprep.subr.bf16.mxu0 0
      %2162 = vmatpush2.bf16.msra.mxu0 0
      %2163 = vmatprep.subr.bf16.mxu0 0
      %2164 = vmatpush2.bf16.msra.mxu0 0
      %2165 = vmatprep.subr.bf16.mxu0 0
      %2166 = vmatpush2.bf16.msra.mxu0 0
      %2167 = vmatprep.subr.bf16.mxu0 0
      %2168 = vmatpush2.bf16.msra.mxu0 0
      %2169 = vmatprep.subr.bf16.mxu0 0
      %2170 = vmatpush2.bf16.msra.mxu0 0
      %2171 = vmatprep.subr.bf16.mxu0 0
      %2172 = vmatpush2.bf16.msra.mxu0 0
      %2173 = vmatprep.subr.bf16.mxu0 0
      %2174 = vmatpush2.bf16.msra.mxu0 0
      %2175 = vmatprep.subr.bf16.mxu0 0
      %2176 = vmatpush2.bf16.msra.mxu0 0
      %2177 = vmatprep.mubr.bf16.mxu0 0
      %2178 = vmatmul.mubr.bf16.gmra.mxu0 %v2140
      %v2179 = vpop.f32.mrf.mxu0
      %v2180 = vadd.f32 0.0, %v2179
      %v2181 = vpop.f32.mrf.mxu0
      %v2182 = vpop.f32.mrf.mxu0
      %v2183 = vadd.f32 0.0, %v2182
      %v2184 = vpop.f32.mrf.mxu0
      %2185 = vdwg.mxu0
      %v2186 = vadd.f32 %v1813, %v2180
      %v2187 = vadd.f32 %v1814, %v2183
      %v2188 = vld [vmem:[%s11] sm:$0x1]
      %v2190 = vlaneseq
      %v2191 = vshrl.u32 %v2190, 7
      %v2192 = vsub.s32 0, %v2191
      %v2193 = vrot.slane %v2188, %v2192
      %v2195 = vadd.f32 %v2186, %v2193
      %v2196 = vadd.f32 %v2187, %v2193
      %v2197 = vadd.f32 %v691, %v2195
      %v2198 = vadd.f32 %v692, %v2196
      %v2199 = vld [vmem:[%s12] sm:$0x1]
      %v2200 = vld [vmem:[%s13] sm:$0x1]
      %v2201 = vsel %vm649, %v2197, 0.0
      %2202 = vadd.xlane.f32.xlu0 %v2201
      %v2203 = vpop.xlane.xlu0 %2202
      %v2204 = vsel %vm649, %v2198, 0.0
      %2205 = vadd.xlane.f32.xlu0 %v2204
      %v2206 = vpop.xlane.xlu0 %2205
      %v2207 = vmul.f32 %v2203, %v656
      %v2208 = vmul.f32 %v2206, %v656
      %v2209 = vsub.f32 %v2197, %v2207
      %v2210 = vsub.f32 %v2198, %v2208
      %v2211 = vmul.f32 %v2209, %v2209
      %v2212 = vmul.f32 %v2210, %v2210
      %v2213 = vsel %vm649, %v2211, 0.0
      %2214 = vadd.xlane.f32.xlu0 %v2213
      %v2215 = vpop.xlane.xlu0 %2214
      %v2216 = vsel %vm649, %v2212, 0.0
      %2217 = vadd.xlane.f32.xlu0 %v2216
      %v2218 = vpop.xlane.xlu0 %2217
      %v2219 = vmul.f32 %v2215, %v656
      %v2220 = vmul.f32 %v2218, %v656
      %v2221 = vadd.f32 %v2219, 1e-05
      %v2222 = vadd.f32 %v2220, 1e-05
      %v2223 = vrsqrt.pop %v2221
      %v2224 = vrsqrt.pop %v2222
      %v2225 = vmul.f32 %v2209, %v2223
      %v2226 = vmul.f32 %v2210, %v2224
      %v2228 = vlaneseq
      %v2229 = vshrl.u32 %v2228, 7
      %v2230 = vsub.s32 0, %v2229
      %v2231 = vrot.slane %v2199, %v2230
      %v2233 = vmul.f32 %v2225, %v2231
      %v2234 = vmul.f32 %v2226, %v2231
      %v2236 = vlaneseq
      %v2237 = vshrl.u32 %v2236, 7
      %v2238 = vsub.s32 0, %v2237
      %v2239 = vrot.slane %v2200, %v2238
      %v2241 = vadd.f32 %v2233, %v2239
      %v2242 = vadd.f32 %v2234, %v2239
      %v2243 = vld [vmem:[%s14] sm:$0xf]
      %v2244 = vld [vmem:[%s14 + $0x4] sm:$0xf]
      %v2245 = vld [vmem:[%s14 + $0x8] sm:$0xf]
      %v2246 = vld [vmem:[%s14 + $0xc] sm:$0xf]
      %v2247 = vpack.c.bf16 %v2242, %v2241
      %v2248 = vld [vmem:[%s15] sm:$0x1]
      %v2250 = vlaneseq
      %v2251 = vshrl.u32 %v2250, 7
      %v2252 = vsub.s32 0, %v2251
      %v2253 = vrot.slane %v2248, %v2252
      %v2259 = vunpack.c.l.b16 %v2243
      %v2260 = vunpack.c.l.b16 %v2244
      %v2261 = vunpack.c.l.b16 %v2245
      %v2262 = vunpack.c.l.b16 %v2246
      %v2263 = vpack.c.b16 %v2260, %v2259
      %v2264 = vpack.c.b16 %v2262, %v2261
      %v2268 = vsel %vm649, %v2247, 0
      %2270 = vmatprep.subr.bf16.mxu0 0
      %2271 = vmatpush1.bf16.msra.mxu0 0
      %2272 = vmatprep.subr.bf16.mxu0 0
      %2273 = vmatpush1.bf16.msra.mxu0 0
      %2274 = vmatprep.subr.bf16.mxu0 0
      %2275 = vmatpush1.bf16.msra.mxu0 0
      %2276 = vmatprep.subr.bf16.mxu0 0
      %2277 = vmatpush1.bf16.msra.mxu0 0
      %2278 = vmatprep.subr.bf16.mxu0 0
      %2279 = vmatpush1.bf16.msra.mxu0 0
      %2280 = vmatprep.subr.bf16.mxu0 0
      %2281 = vmatpush1.bf16.msra.mxu0 0
      %2282 = vmatprep.subr.bf16.mxu0 0
      %2283 = vmatpush1.bf16.msra.mxu0 %v2264
      %2284 = vmatprep.subr.bf16.mxu0 0
      %2285 = vmatpush1.bf16.msra.mxu0 %v2263
      %2286 = vmatprep.subr.bf16.mxu0 0
      %2287 = vmatpush2.bf16.msra.mxu0 0
      %2288 = vmatprep.subr.bf16.mxu0 0
      %2289 = vmatpush2.bf16.msra.mxu0 0
      %2290 = vmatprep.subr.bf16.mxu0 0
      %2291 = vmatpush2.bf16.msra.mxu0 0
      %2292 = vmatprep.subr.bf16.mxu0 0
      %2293 = vmatpush2.bf16.msra.mxu0 0
      %2294 = vmatprep.subr.bf16.mxu0 0
      %2295 = vmatpush2.bf16.msra.mxu0 0
      %2296 = vmatprep.subr.bf16.mxu0 0
      %2297 = vmatpush2.bf16.msra.mxu0 0
      %2298 = vmatprep.subr.bf16.mxu0 0
      %2299 = vmatpush2.bf16.msra.mxu0 0
      %2300 = vmatprep.subr.bf16.mxu0 0
      %2301 = vmatpush2.bf16.msra.mxu0 0
      %2302 = vmatprep.mubr.bf16.mxu0 0
      %2303 = vmatmul.mubr.bf16.gmra.mxu0 %v2268
      %v2304 = vpop.f32.mrf.mxu0
      %v2305 = vadd.f32 %v2253, %v2304
      %v2306 = vpop.f32.mrf.mxu0
      %v2307 = vpop.f32.mrf.mxu0
      %v2308 = vadd.f32 %v2253, %v2307
      %v2309 = vpop.f32.mrf.mxu0
      %2310 = vdwg.mxu0
      %v2311 = vmul.f32 %v2305, %v2305
      %v2312 = vmul.f32 %v2308, %v2308
      %v2313 = vmul.f32 %v2305, %v2311
      %v2314 = vmul.f32 %v2308, %v2312
      %v2315 = vmul.f32 %v2313, 0.044715
      %v2316 = vmul.f32 %v2314, 0.044715
      %v2317 = vadd.f32 %v2305, %v2315
      %v2318 = vadd.f32 %v2308, %v2316
      %v2319 = vmul.f32 %v2317, 0.7978846
      %v2320 = vmul.f32 %v2318, 0.7978846
      %v2321 = vtanh.pop %v2319
      %v2322 = vtanh.pop %v2320
      %v2323 = vadd.f32 %v2321, 1.0
      %v2324 = vadd.f32 %v2322, 1.0
      %v2325 = vmul.f32 %v2323, 0.5
      %v2326 = vmul.f32 %v2324, 0.5
      %v2327 = vmul.f32 %v2305, %v2325
      %v2328 = vmul.f32 %v2308, %v2326
      %v2329 = vld [vmem:[%s16] sm:$0xf]
      %v2330 = vld [vmem:[%s16 + $0x4] sm:$0xf]
      %v2331 = vld [vmem:[%s16 + $0x8] sm:$0xf]
      %v2332 = vld [vmem:[%s16 + $0xc] sm:$0xf]
      %v2333 = vld [vmem:[%s16 + $0x10] sm:$0xf]
      %v2334 = vld [vmem:[%s16 + $0x14] sm:$0xf]
      %v2335 = vld [vmem:[%s16 + $0x18] sm:$0xf]
      %v2336 = vld [vmem:[%s16 + $0x1c] sm:$0xf]
      %v2337 = vpack.c.bf16 %v2328, %v2327
      %v2338 = vld [vmem:[%s17] sm:$0x1]
      %v2340 = vlaneseq
      %v2341 = vshrl.u32 %v2340, 7
      %v2342 = vsub.s32 0, %v2341
      %v2343 = vrot.slane %v2338, %v2342
      %v2353 = vunpack.c.l.b16 %v2329
      %v2354 = vunpack.c.l.b16 %v2330
      %v2355 = vunpack.c.l.b16 %v2331
      %v2356 = vunpack.c.l.b16 %v2332
      %v2357 = vunpack.c.l.b16 %v2333
      %v2358 = vunpack.c.l.b16 %v2334
      %v2359 = vunpack.c.l.b16 %v2335
      %v2360 = vunpack.c.l.b16 %v2336
      %v2361 = vpack.c.b16 %v2354, %v2353
      %v2362 = vpack.c.b16 %v2356, %v2355
      %v2363 = vpack.c.b16 %v2358, %v2357
      %v2364 = vpack.c.b16 %v2360, %v2359
      %vm2369 = vcmask 523264
      %v2371 = vsel %vm2369, %v2337, 0
      %2373 = vmatprep.subr.bf16.mxu0 0
      %2374 = vmatpush1.bf16.msra.mxu0 0
      %2375 = vmatprep.subr.bf16.mxu0 0
      %2376 = vmatpush1.bf16.msra.mxu0 0
      %2377 = vmatprep.subr.bf16.mxu0 0
      %2378 = vmatpush1.bf16.msra.mxu0 0
      %2379 = vmatprep.subr.bf16.mxu0 0
      %2380 = vmatpush1.bf16.msra.mxu0 0
      %2381 = vmatprep.subr.bf16.mxu0 0
      %2382 = vmatpush1.bf16.msra.mxu0 %v2364
      %2383 = vmatprep.subr.bf16.mxu0 0
      %2384 = vmatpush1.bf16.msra.mxu0 %v2363
      %2385 = vmatprep.subr.bf16.mxu0 0
      %2386 = vmatpush1.bf16.msra.mxu0 %v2362
      %2387 = vmatprep.subr.bf16.mxu0 0
      %2388 = vmatpush1.bf16.msra.mxu0 %v2361
      %2389 = vmatprep.subr.bf16.mxu0 0
      %2390 = vmatpush2.bf16.msra.mxu0 0
      %2391 = vmatprep.subr.bf16.mxu0 0
      %2392 = vmatpush2.bf16.msra.mxu0 0
      %2393 = vmatprep.subr.bf16.mxu0 0
      %2394 = vmatpush2.bf16.msra.mxu0 0
      %2395 = vmatprep.subr.bf16.mxu0 0
      %2396 = vmatpush2.bf16.msra.mxu0 0
      %2397 = vmatprep.subr.bf16.mxu0 0
      %2398 = vmatpush2.bf16.msra.mxu0 0
      %2399 = vmatprep.subr.bf16.mxu0 0
      %2400 = vmatpush2.bf16.msra.mxu0 0
      %2401 = vmatprep.subr.bf16.mxu0 0
      %2402 = vmatpush2.bf16.msra.mxu0 0
      %2403 = vmatprep.subr.bf16.mxu0 0
      %2404 = vmatpush2.bf16.msra.mxu0 0
      %2405 = vmatprep.mubr.bf16.mxu0 0
      %2406 = vmatmul.mubr.bf16.gmra.mxu0 %v2371
      %v2407 = vpop.f32.mrf.mxu0
      %v2408 = vadd.f32 %v2343, %v2407
      %v2409 = vpop.f32.mrf.mxu0
      %v2410 = vpop.f32.mrf.mxu0
      %v2411 = vadd.f32 %v2343, %v2410
      %v2412 = vpop.f32.mrf.mxu0
      %2413 = vdwg.mxu0
      %v2414 = vadd.f32 %v2241, %v2408
      %v2415 = vadd.f32 %v2242, %v2411
      %v2416 = vld [vmem:[%s18] sm:$0x1]
      %v2417 = vld [vmem:[%s19] sm:$0x1]
      %v2418 = vsel %vm649, %v2414, 0.0
      %2419 = vadd.xlane.f32.xlu0 %v2418
      %v2420 = vpop.xlane.xlu0 %2419
      %v2421 = vsel %vm649, %v2415, 0.0
      %2422 = vadd.xlane.f32.xlu0 %v2421
      %v2423 = vpop.xlane.xlu0 %2422
      %v2424 = vmul.f32 %v2420, %v656
      %v2425 = vmul.f32 %v2423, %v656
      %v2426 = vsub.f32 %v2414, %v2424
      %v2427 = vsub.f32 %v2415, %v2425
      %v2428 = vmul.f32 %v2426, %v2426
      %v2429 = vmul.f32 %v2427, %v2427
      %v2430 = vsel %vm649, %v2428, 0.0
      %2431 = vadd.xlane.f32.xlu0 %v2430
      %v2432 = vpop.xlane.xlu0 %2431
      %v2433 = vsel %vm649, %v2429, 0.0
      %2434 = vadd.xlane.f32.xlu0 %v2433
      %v2435 = vpop.xlane.xlu0 %2434
      %v2436 = vmul.f32 %v2432, %v656
      %v2437 = vmul.f32 %v2435, %v656
      %v2438 = vadd.f32 %v2436, 1e-05
      %v2439 = vadd.f32 %v2437, 1e-05
      %v2440 = vrsqrt.pop %v2438
      %v2441 = vrsqrt.pop %v2439
      %v2442 = vmul.f32 %v2426, %v2440
      %v2443 = vmul.f32 %v2427, %v2441
      %v2445 = vlaneseq
      %v2446 = vshrl.u32 %v2445, 7
      %v2447 = vsub.s32 0, %v2446
      %v2448 = vrot.slane %v2416, %v2447
      %v2450 = vmul.f32 %v2442, %v2448
      %v2451 = vmul.f32 %v2443, %v2448
      %v2453 = vlaneseq
      %v2454 = vshrl.u32 %v2453, 7
      %v2455 = vsub.s32 0, %v2454
      %v2456 = vrot.slane %v2417, %v2455
      %v2458 = vadd.f32 %v2450, %v2456
      %v2459 = vadd.f32 %v2451, %v2456
      %2460 = vst.msk [vmem:[%s643] sm:$0xff] %vm649, %v2458
      %2461 = vst.msk [vmem:[%s643 + $0x8] sm:$0xff] %vm649, %v2459
      %p2462 = scmp.lt.s32.totalorder %s31, 1
      %s2463 = scalar_select %p2462, %s31, 1
      %s2464 = smul.addr %s2463, 2
      %s2465 = smul.addr %s2464, 8
      %s2466 = scalar_lea.vmem %s20, %s2465
      // Predicated region
      $region101: #{brio_forward.2} parent=99 // pred_check
        %p2467 = pneg %p479
      $region102: #{brio_forward.2} parent=99 // pred_check_branch
        %2469 = sbr.rel (%p2467) target = $region104
      $region103: #{brio_forward.2} parent=99 // pred_region
        _
      $region104: #{brio_forward.2} parent=99 // pred_fallthru
        _
    $region100: #{brio_forward.2} parent=5 // pred_fallthru
      _
    %p2470 = scmp.le.s32.totalorder 2, %s26
    // Predicated region
    $region105: #{brio_forward.2} parent=5 // pred_check
      %p2471 = pneg %p2470
    $region106: #{brio_forward.2} parent=5 // pred_check_branch
      %2473 = sbr.rel (%p2471) target = $region108
    $region107: #{brio_forward.2} parent=5 // pred_region
      %s2474 = ssub.s32 %s26, 2
      // Predicated region
      $region109: #{brio_forward.2} parent=107 // pred_check
        %p2475 = pneg %p485
      $region110: #{brio_forward.2} parent=107 // pred_check_branch
        %2477 = sbr.rel (%p2475) target = $region112
      $region111: #{brio_forward.2} parent=107 // pred_region
        %p2478 = scmp.lt.s32.totalorder %s32, 1
        %s2479 = scalar_select %p2478, %s32, 1
        %s2480 = smul.addr %s2479, 2
        %s2481 = smul.addr %s2480, 8
        %s2482 = scalar_lea.vmem %s20, %s2481
      $region112: #{brio_forward.2} parent=107 // pred_fallthru
        _
    $region108: #{brio_forward.2} parent=5 // pred_fallthru
      _
  $region6: #{brio_forward.2} parent=0 // loop_footer
    %s30 = sadd.s32 1, %s26
  $region7: #{brio_forward.2} parent=0 // loop_footer_branch
    %25 = sbr.rel target = $region3
  $region8: #{brio_forward.2} parent=0 // loop_exit
    _

// kernel: brio_forward.3
$region0: #{brio_forward.3}
  #allocation0 [shape = 'u32[]', space=smem, size = 0x4, offset = 0x4, fixed_abs, tag = 'smem constant byte address 0x4 - core index']
  #allocation1 [shape = 'u32[144,128]{1,0:T(1,128)}', space=vmem, size = 0x12000, scoped, tag = 'internal scratch']
  %s0 = inlined_call_operand.smem [shape: u32[37], index: -1, kind: input, shape index: {}]
  %s1 = sld [smem:[%s0]]
  %s2 = scalar_lea.smem %s0, 1
  %s3 = sld [smem:[%s2]]
  %s4 = scalar_lea.smem %s0, 2
  %s5 = sld [smem:[%s4]]
  %s6 = scalar_lea.smem %s0, 3
  %s7 = sld [smem:[%s6]]
  %s8 = scalar_lea.smem %s0, 4
  %s9 = sld [smem:[%s8]]
  %s10 = scalar_lea.smem %s0, 5
  %s11 = sld [smem:[%s10]]
  %s12 = scalar_lea.smem %s0, 6
  %s13 = sld [smem:[%s12]]
  %s14 = scalar_lea.smem %s0, 7
  %s15 = sld [smem:[%s14]]
  %s16 = scalar_lea.smem %s0, 8
  %s17 = sld [smem:[%s16]]
  %s18 = scalar_lea.smem %s0, 9
  %s19 = sld [smem:[%s18]]
  %s20 = scalar_lea.smem %s0, 10
  %s21 = sld [smem:[%s20]]
  %s22 = scalar_lea.smem %s0, 11
  %s23 = sld [smem:[%s22]]
  %s24 = scalar_lea.smem %s0, 12
  %s25 = sld [smem:[%s24]]
  %s26 = scalar_lea.smem %s0, 13
  %s27 = sld [smem:[%s26]]
  %s28 = scalar_lea.smem %s0, 14
  %s29 = sld [smem:[%s28]]
  %s30 = scalar_lea.smem %s0, 15
  %s31 = sld [smem:[%s30]]
  %s32 = scalar_lea.smem %s0, 16
  %s33 = sld [smem:[%s32]]
  %s34 = scalar_lea.smem %s0, 17
  %s35 = sld [smem:[%s34]]
  %s36 = scalar_lea.smem %s0, 18
  %s37 = sld [smem:[%s36]]
  %s38 = scalar_lea.smem %s0, 19
  %s39 = sld [smem:[%s38]]
  %s40 = scalar_lea.smem %s0, 20
  %s41 = sld [smem:[%s40]]
  %s42 = scalar_lea.smem %s0, 21
  %s43 = sld [smem:[%s42]]
  %s44 = scalar_lea.smem %s0, 22
  %s45 = sld [smem:[%s44]]
  %s46 = scalar_lea.smem %s0, 23
  %s47 = sld [smem:[%s46]]
  %s48 = scalar_lea.smem %s0, 24
  %s49 = sld [smem:[%s48]]
  %s50 = scalar_lea.smem %s0, 25
  %s51 = sld [smem:[%s50]]
  %s52 = scalar_lea.smem %s0, 26
  %s53 = sld [smem:[%s52]]
  %s54 = scalar_lea.smem %s0, 27
  %s55 = sld [smem:[%s54]]
  %s56 = scalar_lea.smem %s0, 28
  %s57 = sld [smem:[%s56]]
  %s58 = scalar_lea.smem %s0, 29
  %s59 = sld [smem:[%s58]]
  %s60 = scalar_lea.smem %s0, 30
  %s61 = sld [smem:[%s60]]
  %s62 = scalar_lea.smem %s0, 31
  %s63 = sld [smem:[%s62]]
  %s64 = scalar_lea.smem %s0, 32
  %s65 = sld [smem:[%s64]]
  %s66 = scalar_lea.smem %s0, 33
  %s67 = sld [smem:[%s66]]
  %s68 = scalar_lea.smem %s0, 34
  %s69 = sld [smem:[%s68]]
  %s70 = scalar_lea.smem %s0, 35
  %s71 = sld [smem:[%s70]]
  %s72 = scalar_lea.smem %s0, 36
  %s73 = sld [smem:[%s72]]
  %74 = xla_tuple %s71, %s73
  %s75 = sld [smem:[#allocation0]]
  $region185: #{brio_forward.3} parent=0
    _
  %s77 = ssub.s32 1, %s75
  %s78 = scalar_select 0, %s77, %s75
  $region1: #{brio_forward.3} parent=0
    #allocation2 [shape = 'u8[8192]{0}', space=vmem, size = 0x2000, scoped, tag = 'output window, operand 1']
    #allocation3 [shape = 's32[2]{0}', space=sflag, size = 0x8, scoped, tag = 'scoped memory for brio_forward.3']
    %79 = vsyncpa [#allocation3], 0
    %s80 = scalar_lea.sflag [#allocation3], 1
    %81 = vsyncpa %s80, 0
    loop: start=0, step=1, limit=8
    $region2: #{brio_forward.3} parent=1 // loop_pre_header
      _
    $region3: #{brio_forward.3} parent=1 // loop_header
      %s83 = sphi 0, %s87
      %p84 = scmp.ge.s32.totalorder %s83, 8
      %s90 = sphi 0, %s102
      %s91 = sphi 0, %s98
      %s92 = sphi 0, %s90
      %s93 = sphi 0, %s91
      %s94 = sphi 0, %s92
      %s95 = sphi 0, %s93
      %s109 = sphi 0, %s111
      %s112 = sphi 0, %s109
      %s113 = sphi 0, %s112
      %s129 = sphi 0, %s113
      %s139 = sphi 0, %s141
      %s142 = sphi 0, %s139
      %s143 = sphi 0, %s142
      %s159 = sphi 0, %s143
      %s165 = sphi 0, %s167
      %s168 = sphi 0, %s165
      %s169 = sphi 0, %s168
      %s185 = sphi 0, %s169
      %s191 = sphi 0, %s193
      %s194 = sphi 0, %s191
      %s195 = sphi 0, %s194
      %s211 = sphi 0, %s195
      %s221 = sphi 0, %s223
      %s224 = sphi 0, %s221
      %s225 = sphi 0, %s224
      %s241 = sphi 0, %s225
      %s245 = sphi 0, %s245
      %s247 = sphi 0, %s245
      %s248 = sphi 0, %s247
      %s262 = sphi 0, %s248
      %s266 = sphi 0, %s266
      %s268 = sphi 0, %s266
      %s269 = sphi 0, %s268
      %s283 = sphi 0, %s269
      %s287 = sphi 0, %s287
      %s289 = sphi 0, %s287
      %s290 = sphi 0, %s289
      %s304 = sphi 0, %s290
      %s308 = sphi 0, %s308
      %s310 = sphi 0, %s308
      %s311 = sphi 0, %s310
      %s325 = sphi 0, %s311
      %s329 = sphi 0, %s329
      %s331 = sphi 0, %s329
      %s332 = sphi 0, %s331
      %s346 = sphi 0, %s332
      %s350 = sphi 0, %s350
      %s352 = sphi 0, %s350
      %s353 = sphi 0, %s352
      %s367 = sphi 0, %s353
      %s371 = sphi 0, %s371
      %s373 = sphi 0, %s371
      %s374 = sphi 0, %s373
      %s388 = sphi 0, %s374
      %s392 = sphi 0, %s392
      %s394 = sphi 0, %s392
      %s395 = sphi 0, %s394
      %s409 = sphi 0, %s395
      %s413 = sphi 0, %s413
      %s415 = sphi 0, %s413
      %s416 = sphi 0, %s415
      %s430 = sphi 0, %s416
      %s434 = sphi 0, %s434
      %s436 = sphi 0, %s434
      %s437 = sphi 0, %s436
      %s451 = sphi 0, %s437
      %s455 = sphi 0, %s455
      %s457 = sphi 0, %s455
      %s458 = sphi 0, %s457
      %s472 = sphi 0, %s458
      %s476 = sphi 0, %s476
      %s478 = sphi 0, %s476
      %s479 = sphi 0, %s478
      %s493 = sphi 0, %s479
      %s497 = sphi 0, %s497
      %s499 = sphi 0, %s497
      %s500 = sphi 0, %s499
      %s514 = sphi 0, %s500
      %s518 = sphi 0, %s518
      %s520 = sphi 0, %s518
      %s521 = sphi 0, %s520
      %s535 = sphi 0, %s521
      %s539 = sphi 0, %s539
      %s541 = sphi 0, %s539
      %s542 = sphi 0, %s541
      %s556 = sphi 0, %s542
      %s560 = sphi 0, %s560
      %s562 = sphi 0, %s560
      %s563 = sphi 0, %s562
      %s577 = sphi 0, %s563
      %s581 = sphi 0, %s581
      %s583 = sphi 0, %s581
      %s584 = sphi 0, %s583
      %s598 = sphi 0, %s584
      %s602 = sphi 0, %s602
      %s604 = sphi 0, %s602
      %s605 = sphi 0, %s604
      %s619 = sphi 0, %s605
      %s623 = sphi 0, %s623
      %s625 = sphi 0, %s623
      %s626 = sphi 0, %s625
      %s640 = sphi 0, %s626
      %s644 = sphi 0, %s644
      %s646 = sphi 0, %s644
      %s647 = sphi 0, %s646
      %s661 = sphi 0, %s647
      %s665 = sphi 0, %s665
      %s667 = sphi 0, %s665
      %s668 = sphi 0, %s667
      %s682 = sphi 0, %s668
      %s686 = sphi 0, %s686
      %s688 = sphi 0, %s686
      %s689 = sphi 0, %s688
      %s703 = sphi 0, %s689
      %s707 = sphi 0, %s707
      %s709 = sphi 0, %s707
      %s710 = sphi 0, %s709
      %s724 = sphi 0, %s710
      %s728 = sphi 0, %s728
      %s730 = sphi 0, %s728
      %s731 = sphi 0, %s730
      %s745 = sphi 0, %s731
      %s749 = sphi 0, %s749
      %s751 = sphi 0, %s749
      %s752 = sphi 0, %s751
      %s766 = sphi 0, %s752
      %s770 = sphi 0, %s770
      %s772 = sphi 0, %s770
      %s773 = sphi 0, %s772
      %s787 = sphi 0, %s773
      %s791 = sphi 0, %s791
      %s793 = sphi 0, %s791
      %s794 = sphi 0, %s793
      %s808 = sphi 0, %s794
      %s812 = sphi 0, %s812
      %s814 = sphi 0, %s812
      %s815 = sphi 0, %s814
      %s829 = sphi 0, %s815
      %s833 = sphi 0, %s833
      %s835 = sphi 0, %s833
      %s836 = sphi 0, %s835
      %s850 = sphi 0, %s836
      %s854 = sphi 0, %s854
      %s856 = sphi 0, %s854
      %s857 = sphi 0, %s856
      %s871 = sphi 0, %s857
      %s881 = sphi 0, %s883
      %s884 = sphi 0, %s881
      %s885 = sphi 0, %s884
      %s901 = sphi 0, %s885
      %s907 = sphi 0, %s909
      %s910 = sphi 0, %s907
      %s911 = sphi 0, %s910
      %s927 = sphi 0, %s911
    $region4: #{brio_forward.3} parent=1 // loop_header_branch
      %86 = sbr.rel (%p84) target = $region8
    $region5: #{brio_forward.3} parent=1 // loop_body
      %s88 = ssub.s32 %s83, 1
      %s89 = ssub.s32 %s83, 2
      %s96 = sadd.s32 1, %s91
      %p97 = scmp.ge.s32.totalorder %s96, 3
      %s98 = scalar_select %p97, 0, %s96
      %s99 = sadd.s32 1, %s90
      %s100 = scalar_select %p97, %s99, %s90
      %p101 = scmp.ge.s32.totalorder %s100, 2
      %s102 = scalar_select %p101, 0, %s100
      %s103 = smul.u32 %s90, 3
      %s104 = sadd.s32 %s103, %s91
      %s105 = smul.u32 %s102, 3
      %s106 = sadd.s32 %s105, %s98
      %s107 = ssub.s32 %s104, %s106
      %p108 = scmp.eq.s32.totalorder %s107, 0
      %s110 = sadd.s32 %s109, 1
      %s111 = scalar_select %p108, %s109, %s110
      %p114 = pneg %p108
      %p115 = scmp.eq.s32.totalorder %s83, 5
      %p116 = por %p114, %p115
      %p117 = scmp.ne.s32.totalorder %s109, %s112
      %p118 = scmp.eq.s32.totalorder %s83, 0
      %p119 = por %p117, %p118
      %p120 = scmp.ne.s32.totalorder %s109, %s112
      %p121 = scmp.eq.s32.totalorder %s88, 5
      %p122 = por %p120, %p121
      %p123 = scmp.ne.s32.totalorder %s112, %s113
      %p124 = scmp.eq.s32.totalorder %s88, 0
      %p125 = por %p123, %p124
      %p126 = scmp.ne.s32.totalorder %s112, %s113
      %p127 = scmp.eq.s32.totalorder %s89, 5
      %p128 = por %p126, %p127
      %p130 = scmp.ne.s32.totalorder %s113, %s129
      %p131 = scmp.eq.s32.totalorder %s89, 0
      %p132 = por %p130, %p131
      %s133 = smul.u32 %s90, 3
      %s134 = sadd.s32 %s133, %s91
      %s135 = smul.u32 %s102, 3
      %s136 = sadd.s32 %s135, %s98
      %s137 = ssub.s32 %s134, %s136
      %p138 = scmp.eq.s32.totalorder %s137, 0
      %s140 = sadd.s32 %s139, 1
      %s141 = scalar_select %p138, %s139, %s140
      %p144 = pneg %p138
      %p145 = scmp.eq.s32.totalorder %s83, 5
      %p146 = por %p144, %p145
      %p147 = scmp.ne.s32.totalorder %s139, %s142
      %p148 = scmp.eq.s32.totalorder %s83, 0
      %p149 = por %p147, %p148
      %p150 = scmp.ne.s32.totalorder %s139, %s142
      %p151 = scmp.eq.s32.totalorder %s88, 5
      %p152 = por %p150, %p151
      %p153 = scmp.ne.s32.totalorder %s142, %s143
      %p154 = scmp.eq.s32.totalorder %s88, 0
      %p155 = por %p153, %p154
      %p156 = scmp.ne.s32.totalorder %s142, %s143
      %p157 = scmp.eq.s32.totalorder %s89, 5
      %p158 = por %p156, %p157
      %p160 = scmp.ne.s32.totalorder %s143, %s159
      %p161 = scmp.eq.s32.totalorder %s89, 0
      %p162 = por %p160, %p161
      %s163 = ssub.s32 %s90, %s102
      %p164 = scmp.eq.s32.totalorder %s163, 0
      %s166 = sadd.s32 %s165, 1
      %s167 = scalar_select %p164, %s165, %s166
      %p170 = pneg %p164
      %p171 = scmp.eq.s32.totalorder %s83, 5
      %p172 = por %p170, %p171
      %p173 = scmp.ne.s32.totalorder %s165, %s168
      %p174 = scmp.eq.s32.totalorder %s83, 0
      %p175 = por %p173, %p174
      %p176 = scmp.ne.s32.totalorder %s165, %s168
      %p177 = scmp.eq.s32.totalorder %s88, 5
      %p178 = por %p176, %p177
      %p179 = scmp.ne.s32.totalorder %s168, %s169
      %p180 = scmp.eq.s32.totalorder %s88, 0
      %p181 = por %p179, %p180
      %p182 = scmp.ne.s32.totalorder %s168, %s169
      %p183 = scmp.eq.s32.totalorder %s89, 5
      %p184 = por %p182, %p183
      %p186 = scmp.ne.s32.totalorder %s169, %s185
      %p187 = scmp.eq.s32.totalorder %s89, 0
      %p188 = por %p186, %p187
      %s189 = ssub.s32 %s90, %s102
      %p190 = scmp.eq.s32.totalorder %s189, 0
      %s192 = sadd.s32 %s191, 1
      %s193 = scalar_select %p190, %s191, %s192
      %p196 = pneg %p190
      %p197 = scmp.eq.s32.totalorder %s83, 5
      %p198 = por %p196, %p197
      %p199 = scmp.ne.s32.totalorder %s191, %s194
      %p200 = scmp.eq.s32.totalorder %s83, 0
      %p201 = por %p199, %p200
      %p202 = scmp.ne.s32.totalorder %s191, %s194
      %p203 = scmp.eq.s32.totalorder %s88, 5
      %p204 = por %p202, %p203
      %p205 = scmp.ne.s32.totalorder %s194, %s195
      %p206 = scmp.eq.s32.totalorder %s88, 0
      %p207 = por %p205, %p206
      %p208 = scmp.ne.s32.totalorder %s194, %s195
      %p209 = scmp.eq.s32.totalorder %s89, 5
      %p210 = por %p208, %p209
      %p212 = scmp.ne.s32.totalorder %s195, %s211
      %p213 = scmp.eq.s32.totalorder %s89, 0
      %p214 = por %p212, %p213
      %s215 = smul.u32 %s90, 3
      %s216 = sadd.s32 %s215, %s91
      %s217 = smul.u32 %s102, 3
      %s218 = sadd.s32 %s217, %s98
      %s219 = ssub.s32 %s216, %s218
      %p220 = scmp.eq.s32.totalorder %s219, 0
      %s222 = sadd.s32 %s221, 1
      %s223 = scalar_select %p220, %s221, %s222
      %p226 = pneg %p220
      %p227 = scmp.eq.s32.totalorder %s83, 5
      %p228 = por %p226, %p227
      %p229 = scmp.ne.s32.totalorder %s221, %s224
      %p230 = scmp.eq.s32.totalorder %s83, 0
      %p231 = por %p229, %p230
      %p232 = scmp.ne.s32.totalorder %s221, %s224
      %p233 = scmp.eq.s32.totalorder %s88, 5
      %p234 = por %p232, %p233
      %p235 = scmp.ne.s32.totalorder %s224, %s225
      %p236 = scmp.eq.s32.totalorder %s88, 0
      %p237 = por %p235, %p236
      %p238 = scmp.ne.s32.totalorder %s224, %s225
      %p239 = scmp.eq.s32.totalorder %s89, 5
      %p240 = por %p238, %p239
      %p242 = scmp.ne.s32.totalorder %s225, %s241
      %p243 = scmp.eq.s32.totalorder %s89, 0
      %p244 = por %p242, %p243
      %s246 = sadd.s32 %s245, 1
      %p249 = scmp.eq.s32.totalorder %s83, 5
      %p250 = scmp.ne.s32.totalorder %s245, %s247
      %p251 = scmp.eq.s32.totalorder %s83, 0
      %p252 = por %p250, %p251
      %p253 = scmp.ne.s32.totalorder %s245, %s247
      %p254 = scmp.eq.s32.totalorder %s88, 5
      %p255 = por %p253, %p254
      %p256 = scmp.ne.s32.totalorder %s247, %s248
      %p257 = scmp.eq.s32.totalorder %s88, 0
      %p258 = por %p256, %p257
      %p259 = scmp.ne.s32.totalorder %s247, %s248
      %p260 = scmp.eq.s32.totalorder %s89, 5
      %p261 = por %p259, %p260
      %p263 = scmp.ne.s32.totalorder %s248, %s262
      %p264 = scmp.eq.s32.totalorder %s89, 0
      %p265 = por %p263, %p264
      %s267 = sadd.s32 %s266, 1
      %p270 = scmp.eq.s32.totalorder %s83, 5
      %p271 = scmp.ne.s32.totalorder %s266, %s268
      %p272 = scmp.eq.s32.totalorder %s83, 0
      %p273 = por %p271, %p272
      %p274 = scmp.ne.s32.totalorder %s266, %s268
      %p275 = scmp.eq.s32.totalorder %s88, 5
      %p276 = por %p274, %p275
      %p277 = scmp.ne.s32.totalorder %s268, %s269
      %p278 = scmp.eq.s32.totalorder %s88, 0
      %p279 = por %p277, %p278
      %p280 = scmp.ne.s32.totalorder %s268, %s269
      %p281 = scmp.eq.s32.totalorder %s89, 5
      %p282 = por %p280, %p281
      %p284 = scmp.ne.s32.totalorder %s269, %s283
      %p285 = scmp.eq.s32.totalorder %s89, 0
      %p286 = por %p284, %p285
      %s288 = sadd.s32 %s287, 1
      %p291 = scmp.eq.s32.totalorder %s83, 5
      %p292 = scmp.ne.s32.totalorder %s287, %s289
      %p293 = scmp.eq.s32.totalorder %s83, 0
      %p294 = por %p292, %p293
      %p295 = scmp.ne.s32.totalorder %s287, %s289
      %p296 = scmp.eq.s32.totalorder %s88, 5
      %p297 = por %p295, %p296
      %p298 = scmp.ne.s32.totalorder %s289, %s290
      %p299 = scmp.eq.s32.totalorder %s88, 0
      %p300 = por %p298, %p299
      %p301 = scmp.ne.s32.totalorder %s289, %s290
      %p302 = scmp.eq.s32.totalorder %s89, 5
      %p303 = por %p301, %p302
      %p305 = scmp.ne.s32.totalorder %s290, %s304
      %p306 = scmp.eq.s32.totalorder %s89, 0
      %p307 = por %p305, %p306
      %s309 = sadd.s32 %s308, 1
      %p312 = scmp.eq.s32.totalorder %s83, 5
      %p313 = scmp.ne.s32.totalorder %s308, %s310
      %p314 = scmp.eq.s32.totalorder %s83, 0
      %p315 = por %p313, %p314
      %p316 = scmp.ne.s32.totalorder %s308, %s310
      %p317 = scmp.eq.s32.totalorder %s88, 5
      %p318 = por %p316, %p317
      %p319 = scmp.ne.s32.totalorder %s310, %s311
      %p320 = scmp.eq.s32.totalorder %s88, 0
      %p321 = por %p319, %p320
      %p322 = scmp.ne.s32.totalorder %s310, %s311
      %p323 = scmp.eq.s32.totalorder %s89, 5
      %p324 = por %p322, %p323
      %p326 = scmp.ne.s32.totalorder %s311, %s325
      %p327 = scmp.eq.s32.totalorder %s89, 0
      %p328 = por %p326, %p327
      %s330 = sadd.s32 %s329, 1
      %p333 = scmp.eq.s32.totalorder %s83, 5
      %p334 = scmp.ne.s32.totalorder %s329, %s331
      %p335 = scmp.eq.s32.totalorder %s83, 0
      %p336 = por %p334, %p335
      %p337 = scmp.ne.s32.totalorder %s329, %s331
      %p338 = scmp.eq.s32.totalorder %s88, 5
      %p339 = por %p337, %p338
      %p340 = scmp.ne.s32.totalorder %s331, %s332
      %p341 = scmp.eq.s32.totalorder %s88, 0
      %p342 = por %p340, %p341
      %p343 = scmp.ne.s32.totalorder %s331, %s332
      %p344 = scmp.eq.s32.totalorder %s89, 5
      %p345 = por %p343, %p344
      %p347 = scmp.ne.s32.totalorder %s332, %s346
      %p348 = scmp.eq.s32.totalorder %s89, 0
      %p349 = por %p347, %p348
      %s351 = sadd.s32 %s350, 1
      %p354 = scmp.eq.s32.totalorder %s83, 5
      %p355 = scmp.ne.s32.totalorder %s350, %s352
      %p356 = scmp.eq.s32.totalorder %s83, 0
      %p357 = por %p355, %p356
      %p358 = scmp.ne.s32.totalorder %s350, %s352
      %p359 = scmp.eq.s32.totalorder %s88, 5
      %p360 = por %p358, %p359
      %p361 = scmp.ne.s32.totalorder %s352, %s353
      %p362 = scmp.eq.s32.totalorder %s88, 0
      %p363 = por %p361, %p362
      %p364 = scmp.ne.s32.totalorder %s352, %s353
      %p365 = scmp.eq.s32.totalorder %s89, 5
      %p366 = por %p364, %p365
      %p368 = scmp.ne.s32.totalorder %s353, %s367
      %p369 = scmp.eq.s32.totalorder %s89, 0
      %p370 = por %p368, %p369
      %s372 = sadd.s32 %s371, 1
      %p375 = scmp.eq.s32.totalorder %s83, 5
      %p376 = scmp.ne.s32.totalorder %s371, %s373
      %p377 = scmp.eq.s32.totalorder %s83, 0
      %p378 = por %p376, %p377
      %p379 = scmp.ne.s32.totalorder %s371, %s373
      %p380 = scmp.eq.s32.totalorder %s88, 5
      %p381 = por %p379, %p380
      %p382 = scmp.ne.s32.totalorder %s373, %s374
      %p383 = scmp.eq.s32.totalorder %s88, 0
      %p384 = por %p382, %p383
      %p385 = scmp.ne.s32.totalorder %s373, %s374
      %p386 = scmp.eq.s32.totalorder %s89, 5
      %p387 = por %p385, %p386
      %p389 = scmp.ne.s32.totalorder %s374, %s388
      %p390 = scmp.eq.s32.totalorder %s89, 0
      %p391 = por %p389, %p390
      %s393 = sadd.s32 %s392, 1
      %p396 = scmp.eq.s32.totalorder %s83, 5
      %p397 = scmp.ne.s32.totalorder %s392, %s394
      %p398 = scmp.eq.s32.totalorder %s83, 0
      %p399 = por %p397, %p398
      %p400 = scmp.ne.s32.totalorder %s392, %s394
      %p401 = scmp.eq.s32.totalorder %s88, 5
      %p402 = por %p400, %p401
      %p403 = scmp.ne.s32.totalorder %s394, %s395
      %p404 = scmp.eq.s32.totalorder %s88, 0
      %p405 = por %p403, %p404
      %p406 = scmp.ne.s32.totalorder %s394, %s395
      %p407 = scmp.eq.s32.totalorder %s89, 5
      %p408 = por %p406, %p407
      %p410 = scmp.ne.s32.totalorder %s395, %s409
      %p411 = scmp.eq.s32.totalorder %s89, 0
      %p412 = por %p410, %p411
      %s414 = sadd.s32 %s413, 1
      %p417 = scmp.eq.s32.totalorder %s83, 5
      %p418 = scmp.ne.s32.totalorder %s413, %s415
      %p419 = scmp.eq.s32.totalorder %s83, 0
      %p420 = por %p418, %p419
      %p421 = scmp.ne.s32.totalorder %s413, %s415
      %p422 = scmp.eq.s32.totalorder %s88, 5
      %p423 = por %p421, %p422
      %p424 = scmp.ne.s32.totalorder %s415, %s416
      %p425 = scmp.eq.s32.totalorder %s88, 0
      %p426 = por %p424, %p425
      %p427 = scmp.ne.s32.totalorder %s415, %s416
      %p428 = scmp.eq.s32.totalorder %s89, 5
      %p429 = por %p427, %p428
      %p431 = scmp.ne.s32.totalorder %s416, %s430
      %p432 = scmp.eq.s32.totalorder %s89, 0
      %p433 = por %p431, %p432
      %s435 = sadd.s32 %s434, 1
      %p438 = scmp.eq.s32.totalorder %s83, 5
      %p439 = scmp.ne.s32.totalorder %s434, %s436
      %p440 = scmp.eq.s32.totalorder %s83, 0
      %p441 = por %p439, %p440
      %p442 = scmp.ne.s32.totalorder %s434, %s436
      %p443 = scmp.eq.s32.totalorder %s88, 5
      %p444 = por %p442, %p443
      %p445 = scmp.ne.s32.totalorder %s436, %s437
      %p446 = scmp.eq.s32.totalorder %s88, 0
      %p447 = por %p445, %p446
      %p448 = scmp.ne.s32.totalorder %s436, %s437
      %p449 = scmp.eq.s32.totalorder %s89, 5
      %p450 = por %p448, %p449
      %p452 = scmp.ne.s32.totalorder %s437, %s451
      %p453 = scmp.eq.s32.totalorder %s89, 0
      %p454 = por %p452, %p453
      %s456 = sadd.s32 %s455, 1
      %p459 = scmp.eq.s32.totalorder %s83, 5
      %p460 = scmp.ne.s32.totalorder %s455, %s457
      %p461 = scmp.eq.s32.totalorder %s83, 0
      %p462 = por %p460, %p461
      %p463 = scmp.ne.s32.totalorder %s455, %s457
      %p464 = scmp.eq.s32.totalorder %s88, 5
      %p465 = por %p463, %p464
      %p466 = scmp.ne.s32.totalorder %s457, %s458
      %p467 = scmp.eq.s32.totalorder %s88, 0
      %p468 = por %p466, %p467
      %p469 = scmp.ne.s32.totalorder %s457, %s458
      %p470 = scmp.eq.s32.totalorder %s89, 5
      %p471 = por %p469, %p470
      %p473 = scmp.ne.s32.totalorder %s458, %s472
      %p474 = scmp.eq.s32.totalorder %s89, 0
      %p475 = por %p473, %p474
      %s477 = sadd.s32 %s476, 1
      %p480 = scmp.eq.s32.totalorder %s83, 5
      %p481 = scmp.ne.s32.totalorder %s476, %s478
      %p482 = scmp.eq.s32.totalorder %s83, 0
      %p483 = por %p481, %p482
      %p484 = scmp.ne.s32.totalorder %s476, %s478
      %p485 = scmp.eq.s32.totalorder %s88, 5
      %p486 = por %p484, %p485
      %p487 = scmp.ne.s32.totalorder %s478, %s479
      %p488 = scmp.eq.s32.totalorder %s88, 0
      %p489 = por %p487, %p488
      %p490 = scmp.ne.s32.totalorder %s478, %s479
      %p491 = scmp.eq.s32.totalorder %s89, 5
      %p492 = por %p490, %p491
      %p494 = scmp.ne.s32.totalorder %s479, %s493
      %p495 = scmp.eq.s32.totalorder %s89, 0
      %p496 = por %p494, %p495
      %s498 = sadd.s32 %s497, 1
      %p501 = scmp.eq.s32.totalorder %s83, 5
      %p502 = scmp.ne.s32.totalorder %s497, %s499
      %p503 = scmp.eq.s32.totalorder %s83, 0
      %p504 = por %p502, %p503
      %p505 = scmp.ne.s32.totalorder %s497, %s499
      %p506 = scmp.eq.s32.totalorder %s88, 5
      %p507 = por %p505, %p506
      %p508 = scmp.ne.s32.totalorder %s499, %s500
      %p509 = scmp.eq.s32.totalorder %s88, 0
      %p510 = por %p508, %p509
      %p511 = scmp.ne.s32.totalorder %s499, %s500
      %p512 = scmp.eq.s32.totalorder %s89, 5
      %p513 = por %p511, %p512
      %p515 = scmp.ne.s32.totalorder %s500, %s514
      %p516 = scmp.eq.s32.totalorder %s89, 0
      %p517 = por %p515, %p516
      %s519 = sadd.s32 %s518, 1
      %p522 = scmp.eq.s32.totalorder %s83, 5
      %p523 = scmp.ne.s32.totalorder %s518, %s520
      %p524 = scmp.eq.s32.totalorder %s83, 0
      %p525 = por %p523, %p524
      %p526 = scmp.ne.s32.totalorder %s518, %s520
      %p527 = scmp.eq.s32.totalorder %s88, 5
      %p528 = por %p526, %p527
      %p529 = scmp.ne.s32.totalorder %s520, %s521
      %p530 = scmp.eq.s32.totalorder %s88, 0
      %p531 = por %p529, %p530
      %p532 = scmp.ne.s32.totalorder %s520, %s521
      %p533 = scmp.eq.s32.totalorder %s89, 5
      %p534 = por %p532, %p533
      %p536 = scmp.ne.s32.totalorder %s521, %s535
      %p537 = scmp.eq.s32.totalorder %s89, 0
      %p538 = por %p536, %p537
      %s540 = sadd.s32 %s539, 1
      %p543 = scmp.eq.s32.totalorder %s83, 5
      %p544 = scmp.ne.s32.totalorder %s539, %s541
      %p545 = scmp.eq.s32.totalorder %s83, 0
      %p546 = por %p544, %p545
      %p547 = scmp.ne.s32.totalorder %s539, %s541
      %p548 = scmp.eq.s32.totalorder %s88, 5
      %p549 = por %p547, %p548
      %p550 = scmp.ne.s32.totalorder %s541, %s542
      %p551 = scmp.eq.s32.totalorder %s88, 0
      %p552 = por %p550, %p551
      %p553 = scmp.ne.s32.totalorder %s541, %s542
      %p554 = scmp.eq.s32.totalorder %s89, 5
      %p555 = por %p553, %p554
      %p557 = scmp.ne.s32.totalorder %s542, %s556
      %p558 = scmp.eq.s32.totalorder %s89, 0
      %p559 = por %p557, %p558
      %s561 = sadd.s32 %s560, 1
      %p564 = scmp.eq.s32.totalorder %s83, 5
      %p565 = scmp.ne.s32.totalorder %s560, %s562
      %p566 = scmp.eq.s32.totalorder %s83, 0
      %p567 = por %p565, %p566
      %p568 = scmp.ne.s32.totalorder %s560, %s562
      %p569 = scmp.eq.s32.totalorder %s88, 5
      %p570 = por %p568, %p569
      %p571 = scmp.ne.s32.totalorder %s562, %s563
      %p572 = scmp.eq.s32.totalorder %s88, 0
      %p573 = por %p571, %p572
      %p574 = scmp.ne.s32.totalorder %s562, %s563
      %p575 = scmp.eq.s32.totalorder %s89, 5
      %p576 = por %p574, %p575
      %p578 = scmp.ne.s32.totalorder %s563, %s577
      %p579 = scmp.eq.s32.totalorder %s89, 0
      %p580 = por %p578, %p579
      %s582 = sadd.s32 %s581, 1
      %p585 = scmp.eq.s32.totalorder %s83, 5
      %p586 = scmp.ne.s32.totalorder %s581, %s583
      %p587 = scmp.eq.s32.totalorder %s83, 0
      %p588 = por %p586, %p587
      %p589 = scmp.ne.s32.totalorder %s581, %s583
      %p590 = scmp.eq.s32.totalorder %s88, 5
      %p591 = por %p589, %p590
      %p592 = scmp.ne.s32.totalorder %s583, %s584
      %p593 = scmp.eq.s32.totalorder %s88, 0
      %p594 = por %p592, %p593
      %p595 = scmp.ne.s32.totalorder %s583, %s584
      %p596 = scmp.eq.s32.totalorder %s89, 5
      %p597 = por %p595, %p596
      %p599 = scmp.ne.s32.totalorder %s584, %s598
      %p600 = scmp.eq.s32.totalorder %s89, 0
      %p601 = por %p599, %p600
      %s603 = sadd.s32 %s602, 1
      %p606 = scmp.eq.s32.totalorder %s83, 5
      %p607 = scmp.ne.s32.totalorder %s602, %s604
      %p608 = scmp.eq.s32.totalorder %s83, 0
      %p609 = por %p607, %p608
      %p610 = scmp.ne.s32.totalorder %s602, %s604
      %p611 = scmp.eq.s32.totalorder %s88, 5
      %p612 = por %p610, %p611
      %p613 = scmp.ne.s32.totalorder %s604, %s605
      %p614 = scmp.eq.s32.totalorder %s88, 0
      %p615 = por %p613, %p614
      %p616 = scmp.ne.s32.totalorder %s604, %s605
      %p617 = scmp.eq.s32.totalorder %s89, 5
      %p618 = por %p616, %p617
      %p620 = scmp.ne.s32.totalorder %s605, %s619
      %p621 = scmp.eq.s32.totalorder %s89, 0
      %p622 = por %p620, %p621
      %s624 = sadd.s32 %s623, 1
      %p627 = scmp.eq.s32.totalorder %s83, 5
      %p628 = scmp.ne.s32.totalorder %s623, %s625
      %p629 = scmp.eq.s32.totalorder %s83, 0
      %p630 = por %p628, %p629
      %p631 = scmp.ne.s32.totalorder %s623, %s625
      %p632 = scmp.eq.s32.totalorder %s88, 5
      %p633 = por %p631, %p632
      %p634 = scmp.ne.s32.totalorder %s625, %s626
      %p635 = scmp.eq.s32.totalorder %s88, 0
      %p636 = por %p634, %p635
      %p637 = scmp.ne.s32.totalorder %s625, %s626
      %p638 = scmp.eq.s32.totalorder %s89, 5
      %p639 = por %p637, %p638
      %p641 = scmp.ne.s32.totalorder %s626, %s640
      %p642 = scmp.eq.s32.totalorder %s89, 0
      %p643 = por %p641, %p642
      %s645 = sadd.s32 %s644, 1
      %p648 = scmp.eq.s32.totalorder %s83, 5
      %p649 = scmp.ne.s32.totalorder %s644, %s646
      %p650 = scmp.eq.s32.totalorder %s83, 0
      %p651 = por %p649, %p650
      %p652 = scmp.ne.s32.totalorder %s644, %s646
      %p653 = scmp.eq.s32.totalorder %s88, 5
      %p654 = por %p652, %p653
      %p655 = scmp.ne.s32.totalorder %s646, %s647
      %p656 = scmp.eq.s32.totalorder %s88, 0
      %p657 = por %p655, %p656
      %p658 = scmp.ne.s32.totalorder %s646, %s647
      %p659 = scmp.eq.s32.totalorder %s89, 5
      %p660 = por %p658, %p659
      %p662 = scmp.ne.s32.totalorder %s647, %s661
      %p663 = scmp.eq.s32.totalorder %s89, 0
      %p664 = por %p662, %p663
      %s666 = sadd.s32 %s665, 1
      %p669 = scmp.eq.s32.totalorder %s83, 5
      %p670 = scmp.ne.s32.totalorder %s665, %s667
      %p671 = scmp.eq.s32.totalorder %s83, 0
      %p672 = por %p670, %p671
      %p673 = scmp.ne.s32.totalorder %s665, %s667
      %p674 = scmp.eq.s32.totalorder %s88, 5
      %p675 = por %p673, %p674
      %p676 = scmp.ne.s32.totalorder %s667, %s668
      %p677 = scmp.eq.s32.totalorder %s88, 0
      %p678 = por %p676, %p677
      %p679 = scmp.ne.s32.totalorder %s667, %s668
      %p680 = scmp.eq.s32.totalorder %s89, 5
      %p681 = por %p679, %p680
      %p683 = scmp.ne.s32.totalorder %s668, %s682
      %p684 = scmp.eq.s32.totalorder %s89, 0
      %p685 = por %p683, %p684
      %s687 = sadd.s32 %s686, 1
      %p690 = scmp.eq.s32.totalorder %s83, 5
      %p691 = scmp.ne.s32.totalorder %s686, %s688
      %p692 = scmp.eq.s32.totalorder %s83, 0
      %p693 = por %p691, %p692
      %p694 = scmp.ne.s32.totalorder %s686, %s688
      %p695 = scmp.eq.s32.totalorder %s88, 5
      %p696 = por %p694, %p695
      %p697 = scmp.ne.s32.totalorder %s688, %s689
      %p698 = scmp.eq.s32.totalorder %s88, 0
      %p699 = por %p697, %p698
      %p700 = scmp.ne.s32.totalorder %s688, %s689
      %p701 = scmp.eq.s32.totalorder %s89, 5
      %p702 = por %p700, %p701
      %p704 = scmp.ne.s32.totalorder %s689, %s703
      %p705 = scmp.eq.s32.totalorder %s89, 0
      %p706 = por %p704, %p705
      %s708 = sadd.s32 %s707, 1
      %p711 = scmp.eq.s32.totalorder %s83, 5
      %p712 = scmp.ne.s32.totalorder %s707, %s709
      %p713 = scmp.eq.s32.totalorder %s83, 0
      %p714 = por %p712, %p713
      %p715 = scmp.ne.s32.totalorder %s707, %s709
      %p716 = scmp.eq.s32.totalorder %s88, 5
      %p717 = por %p715, %p716
      %p718 = scmp.ne.s32.totalorder %s709, %s710
      %p719 = scmp.eq.s32.totalorder %s88, 0
      %p720 = por %p718, %p719
      %p721 = scmp.ne.s32.totalorder %s709, %s710
      %p722 = scmp.eq.s32.totalorder %s89, 5
      %p723 = por %p721, %p722
      %p725 = scmp.ne.s32.totalorder %s710, %s724
      %p726 = scmp.eq.s32.totalorder %s89, 0
      %p727 = por %p725, %p726
      %s729 = sadd.s32 %s728, 1
      %p732 = scmp.eq.s32.totalorder %s83, 5
      %p733 = scmp.ne.s32.totalorder %s728, %s730
      %p734 = scmp.eq.s32.totalorder %s83, 0
      %p735 = por %p733, %p734
      %p736 = scmp.ne.s32.totalorder %s728, %s730
      %p737 = scmp.eq.s32.totalorder %s88, 5
      %p738 = por %p736, %p737
      %p739 = scmp.ne.s32.totalorder %s730, %s731
      %p740 = scmp.eq.s32.totalorder %s88, 0
      %p741 = por %p739, %p740
      %p742 = scmp.ne.s32.totalorder %s730, %s731
      %p743 = scmp.eq.s32.totalorder %s89, 5
      %p744 = por %p742, %p743
      %p746 = scmp.ne.s32.totalorder %s731, %s745
      %p747 = scmp.eq.s32.totalorder %s89, 0
      %p748 = por %p746, %p747
      %s750 = sadd.s32 %s749, 1
      %p753 = scmp.eq.s32.totalorder %s83, 5
      %p754 = scmp.ne.s32.totalorder %s749, %s751
      %p755 = scmp.eq.s32.totalorder %s83, 0
      %p756 = por %p754, %p755
      %p757 = scmp.ne.s32.totalorder %s749, %s751
      %p758 = scmp.eq.s32.totalorder %s88, 5
      %p759 = por %p757, %p758
      %p760 = scmp.ne.s32.totalorder %s751, %s752
      %p761 = scmp.eq.s32.totalorder %s88, 0
      %p762 = por %p760, %p761
      %p763 = scmp.ne.s32.totalorder %s751, %s752
      %p764 = scmp.eq.s32.totalorder %s89, 5
      %p765 = por %p763, %p764
      %p767 = scmp.ne.s32.totalorder %s752, %s766
      %p768 = scmp.eq.s32.totalorder %s89, 0
      %p769 = por %p767, %p768
      %s771 = sadd.s32 %s770, 1
      %p774 = scmp.eq.s32.totalorder %s83, 5
      %p775 = scmp.ne.s32.totalorder %s770, %s772
      %p776 = scmp.eq.s32.totalorder %s83, 0
      %p777 = por %p775, %p776
      %p778 = scmp.ne.s32.totalorder %s770, %s772
      %p779 = scmp.eq.s32.totalorder %s88, 5
      %p780 = por %p778, %p779
      %p781 = scmp.ne.s32.totalorder %s772, %s773
      %p782 = scmp.eq.s32.totalorder %s88, 0
      %p783 = por %p781, %p782
      %p784 = scmp.ne.s32.totalorder %s772, %s773
      %p785 = scmp.eq.s32.totalorder %s89, 5
      %p786 = por %p784, %p785
      %p788 = scmp.ne.s32.totalorder %s773, %s787
      %p789 = scmp.eq.s32.totalorder %s89, 0
      %p790 = por %p788, %p789
      %s792 = sadd.s32 %s791, 1
      %p795 = scmp.eq.s32.totalorder %s83, 5
      %p796 = scmp.ne.s32.totalorder %s791, %s793
      %p797 = scmp.eq.s32.totalorder %s83, 0
      %p798 = por %p796, %p797
      %p799 = scmp.ne.s32.totalorder %s791, %s793
      %p800 = scmp.eq.s32.totalorder %s88, 5
      %p801 = por %p799, %p800
      %p802 = scmp.ne.s32.totalorder %s793, %s794
      %p803 = scmp.eq.s32.totalorder %s88, 0
      %p804 = por %p802, %p803
      %p805 = scmp.ne.s32.totalorder %s793, %s794
      %p806 = scmp.eq.s32.totalorder %s89, 5
      %p807 = por %p805, %p806
      %p809 = scmp.ne.s32.totalorder %s794, %s808
      %p810 = scmp.eq.s32.totalorder %s89, 0
      %p811 = por %p809, %p810
      %s813 = sadd.s32 %s812, 1
      %p816 = scmp.eq.s32.totalorder %s83, 5
      %p817 = scmp.ne.s32.totalorder %s812, %s814
      %p818 = scmp.eq.s32.totalorder %s83, 0
      %p819 = por %p817, %p818
      %p820 = scmp.ne.s32.totalorder %s812, %s814
      %p821 = scmp.eq.s32.totalorder %s88, 5
      %p822 = por %p820, %p821
      %p823 = scmp.ne.s32.totalorder %s814, %s815
      %p824 = scmp.eq.s32.totalorder %s88, 0
      %p825 = por %p823, %p824
      %p826 = scmp.ne.s32.totalorder %s814, %s815
      %p827 = scmp.eq.s32.totalorder %s89, 5
      %p828 = por %p826, %p827
      %p830 = scmp.ne.s32.totalorder %s815, %s829
      %p831 = scmp.eq.s32.totalorder %s89, 0
      %p832 = por %p830, %p831
      %s834 = sadd.s32 %s833, 1
      %p837 = scmp.eq.s32.totalorder %s83, 5
      %p838 = scmp.ne.s32.totalorder %s833, %s835
      %p839 = scmp.eq.s32.totalorder %s83, 0
      %p840 = por %p838, %p839
      %p841 = scmp.ne.s32.totalorder %s833, %s835
      %p842 = scmp.eq.s32.totalorder %s88, 5
      %p843 = por %p841, %p842
      %p844 = scmp.ne.s32.totalorder %s835, %s836
      %p845 = scmp.eq.s32.totalorder %s88, 0
      %p846 = por %p844, %p845
      %p847 = scmp.ne.s32.totalorder %s835, %s836
      %p848 = scmp.eq.s32.totalorder %s89, 5
      %p849 = por %p847, %p848
      %p851 = scmp.ne.s32.totalorder %s836, %s850
      %p852 = scmp.eq.s32.totalorder %s89, 0
      %p853 = por %p851, %p852
      %s855 = sadd.s32 %s854, 1
      %p858 = scmp.eq.s32.totalorder %s83, 5
      %p859 = scmp.ne.s32.totalorder %s854, %s856
      %p860 = scmp.eq.s32.totalorder %s83, 0
      %p861 = por %p859, %p860
      %p862 = scmp.ne.s32.totalorder %s854, %s856
      %p863 = scmp.eq.s32.totalorder %s88, 5
      %p864 = por %p862, %p863
      %p865 = scmp.ne.s32.totalorder %s856, %s857
      %p866 = scmp.eq.s32.totalorder %s88, 0
      %p867 = por %p865, %p866
      %p868 = scmp.ne.s32.totalorder %s856, %s857
      %p869 = scmp.eq.s32.totalorder %s89, 5
      %p870 = por %p868, %p869
      %p872 = scmp.ne.s32.totalorder %s857, %s871
      %p873 = scmp.eq.s32.totalorder %s89, 0
      %p874 = por %p872, %p873
      %s875 = smul.u32 %s90, 3
      %s876 = sadd.s32 %s875, %s91
      %s877 = smul.u32 %s102, 3
      %s878 = sadd.s32 %s877, %s98
      %s879 = ssub.s32 %s876, %s878
      %p880 = scmp.eq.s32.totalorder %s879, 0
      %s882 = sadd.s32 %s881, 1
      %s883 = scalar_select %p880, %s881, %s882
      %p886 = pneg %p880
      %p887 = scmp.eq.s32.totalorder %s83, 5
      %p888 = por %p886, %p887
      %p889 = scmp.ne.s32.totalorder %s881, %s884
      %p890 = scmp.eq.s32.totalorder %s83, 0
      %p891 = por %p889, %p890
      %p892 = scmp.ne.s32.totalorder %s881, %s884
      %p893 = scmp.eq.s32.totalorder %s88, 5
      %p894 = por %p892, %p893
      %p895 = scmp.ne.s32.totalorder %s884, %s885
      %p896 = scmp.eq.s32.totalorder %s88, 0
      %p897 = por %p895, %p896
      %p898 = scmp.ne.s32.totalorder %s884, %s885
      %p899 = scmp.eq.s32.totalorder %s89, 5
      %p900 = por %p898, %p899
      %p902 = scmp.ne.s32.totalorder %s885, %s901
      %p903 = scmp.eq.s32.totalorder %s89, 0
      %p904 = por %p902, %p903
      %s905 = ssub.s32 %s90, %s102
      %p906 = scmp.eq.s32.totalorder %s905, 0
      %s908 = sadd.s32 %s907, 1
      %s909 = scalar_select %p906, %s907, %s908
      %p912 = pneg %p906
      %p913 = scmp.eq.s32.totalorder %s83, 5
      %p914 = por %p912, %p913
      %p915 = scmp.ne.s32.totalorder %s907, %s910
      %p916 = scmp.eq.s32.totalorder %s83, 0
      %p917 = por %p915, %p916
      %p918 = scmp.ne.s32.totalorder %s907, %s910
      %p919 = scmp.eq.s32.totalorder %s88, 5
      %p920 = por %p918, %p919
      %p921 = scmp.ne.s32.totalorder %s910, %s911
      %p922 = scmp.eq.s32.totalorder %s88, 0
      %p923 = por %p921, %p922
      %p924 = scmp.ne.s32.totalorder %s910, %s911
      %p925 = scmp.eq.s32.totalorder %s89, 5
      %p926 = por %p924, %p925
      %p928 = scmp.ne.s32.totalorder %s911, %s927
      %p929 = scmp.eq.s32.totalorder %s89, 0
      %p930 = por %p928, %p929
      %p931 = scmp.le.s32.totalorder 1, %s83
      %p932 = scmp.lt.s32.totalorder %s83, 7
      %p933 = pnand %p931, %p932
      %p934 = pneg %p933
      // Predicated region
      $region9: #{brio_forward.3} parent=5 // pred_check
        _
      $region10: #{brio_forward.3} parent=5 // pred_check_branch
        %936 = sbr.rel (%p933) target = $region12
      $region11: #{brio_forward.3} parent=5 // pred_region
        %s937 = ssub.s32 %s83, 1
        // Predicated region
        $region13: #{brio_forward.3} parent=11 // pred_check
          %p938 = pneg %p258
        $region14: #{brio_forward.3} parent=11 // pred_check_branch
          %940 = sbr.rel (%p938) target = $region16
        $region15: #{brio_forward.3} parent=11 // pred_region
          _
        $region16: #{brio_forward.3} parent=11 // pred_fallthru
          _
        // Predicated region
        $region17: #{brio_forward.3} parent=11 // pred_check
          %p941 = pneg %p279
        $region18: #{brio_forward.3} parent=11 // pred_check_branch
          %943 = sbr.rel (%p941) target = $region20
        $region19: #{brio_forward.3} parent=11 // pred_region
          _
        $region20: #{brio_forward.3} parent=11 // pred_fallthru
          _
        // Predicated region
        $region21: #{brio_forward.3} parent=11 // pred_check
          %p944 = pneg %p300
        $region22: #{brio_forward.3} parent=11 // pred_check_branch
          %946 = sbr.rel (%p944) target = $region24
        $region23: #{brio_forward.3} parent=11 // pred_region
          _
        $region24: #{brio_forward.3} parent=11 // pred_fallthru
          _
        // Predicated region
        $region25: #{brio_forward.3} parent=11 // pred_check
          %p947 = pneg %p321
        $region26: #{brio_forward.3} parent=11 // pred_check_branch
          %949 = sbr.rel (%p947) target = $region28
        $region27: #{brio_forward.3} parent=11 // pred_region
          _
        $region28: #{brio_forward.3} parent=11 // pred_fallthru
          _
        // Predicated region
        $region29: #{brio_forward.3} parent=11 // pred_check
          %p950 = pneg %p342
        $region30: #{brio_forward.3} parent=11 // pred_check_branch
          %952 = sbr.rel (%p950) target = $region32
        $region31: #{brio_forward.3} parent=11 // pred_region
          _
        $region32: #{brio_forward.3} parent=11 // pred_fallthru
          _
        // Predicated region
        $region33: #{brio_forward.3} parent=11 // pred_check
          %p953 = pneg %p363
        $region34: #{brio_forward.3} parent=11 // pred_check_branch
          %955 = sbr.rel (%p953) target = $region36
        $region35: #{brio_forward.3} parent=11 // pred_region
          _
        $region36: #{brio_forward.3} parent=11 // pred_fallthru
          _
        // Predicated region
        $region37: #{brio_forward.3} parent=11 // pred_check
          %p956 = pneg %p384
        $region38: #{brio_forward.3} parent=11 // pred_check_branch
          %958 = sbr.rel (%p956) target = $region40
        $region39: #{brio_forward.3} parent=11 // pred_region
          _
        $region40: #{brio_forward.3} parent=11 // pred_fallthru
          _
        // Predicated region
        $region41: #{brio_forward.3} parent=11 // pred_check
          %p959 = pneg %p405
        $region42: #{brio_forward.3} parent=11 // pred_check_branch
          %961 = sbr.rel (%p959) target = $region44
        $region43: #{brio_forward.3} parent=11 // pred_region
          _
        $region44: #{brio_forward.3} parent=11 // pred_fallthru
          _
        // Predicated region
        $region45: #{brio_forward.3} parent=11 // pred_check
          %p962 = pneg %p426
        $region46: #{brio_forward.3} parent=11 // pred_check_branch
          %964 = sbr.rel (%p962) target = $region48
        $region47: #{brio_forward.3} parent=11 // pred_region
          _
        $region48: #{brio_forward.3} parent=11 // pred_fallthru
          _
        // Predicated region
        $region49: #{brio_forward.3} parent=11 // pred_check
          %p965 = pneg %p447
        $region50: #{brio_forward.3} parent=11 // pred_check_branch
          %967 = sbr.rel (%p965) target = $region52
        $region51: #{brio_forward.3} parent=11 // pred_region
          _
        $region52: #{brio_forward.3} parent=11 // pred_fallthru
          _
        // Predicated region
        $region53: #{brio_forward.3} parent=11 // pred_check
          %p968 = pneg %p468
        $region54: #{brio_forward.3} parent=11 // pred_check_branch
          %970 = sbr.rel (%p968) target = $region56
        $region55: #{brio_forward.3} parent=11 // pred_region
          _
        $region56: #{brio_forward.3} parent=11 // pred_fallthru
          _
        // Predicated region
        $region57: #{brio_forward.3} parent=11 // pred_check
          %p971 = pneg %p489
        $region58: #{brio_forward.3} parent=11 // pred_check_branch
          %973 = sbr.rel (%p971) target = $region60
        $region59: #{brio_forward.3} parent=11 // pred_region
          _
        $region60: #{brio_forward.3} parent=11 // pred_fallthru
          _
        // Predicated region
        $region61: #{brio_forward.3} parent=11 // pred_check
          %p974 = pneg %p510
        $region62: #{brio_forward.3} parent=11 // pred_check_branch
          %976 = sbr.rel (%p974) target = $region64
        $region63: #{brio_forward.3} parent=11 // pred_region
          _
        $region64: #{brio_forward.3} parent=11 // pred_fallthru
          _
        // Predicated region
        $region65: #{brio_forward.3} parent=11 // pred_check
          %p977 = pneg %p531
        $region66: #{brio_forward.3} parent=11 // pred_check_branch
          %979 = sbr.rel (%p977) target = $region68
        $region67: #{brio_forward.3} parent=11 // pred_region
          _
        $region68: #{brio_forward.3} parent=11 // pred_fallthru
          _
        // Predicated region
        $region69: #{brio_forward.3} parent=11 // pred_check
          %p980 = pneg %p552
        $region70: #{brio_forward.3} parent=11 // pred_check_branch
          %982 = sbr.rel (%p980) target = $region72
        $region71: #{brio_forward.3} parent=11 // pred_region
          _
        $region72: #{brio_forward.3} parent=11 // pred_fallthru
          _
        // Predicated region
        $region73: #{brio_forward.3} parent=11 // pred_check
          %p983 = pneg %p573
        $region74: #{brio_forward.3} parent=11 // pred_check_branch
          %985 = sbr.rel (%p983) target = $region76
        $region75: #{brio_forward.3} parent=11 // pred_region
          _
        $region76: #{brio_forward.3} parent=11 // pred_fallthru
          _
        // Predicated region
        $region77: #{brio_forward.3} parent=11 // pred_check
          %p986 = pneg %p594
        $region78: #{brio_forward.3} parent=11 // pred_check_branch
          %988 = sbr.rel (%p986) target = $region80
        $region79: #{brio_forward.3} parent=11 // pred_region
          _
        $region80: #{brio_forward.3} parent=11 // pred_fallthru
          _
        // Predicated region
        $region81: #{brio_forward.3} parent=11 // pred_check
          %p989 = pneg %p615
        $region82: #{brio_forward.3} parent=11 // pred_check_branch
          %991 = sbr.rel (%p989) target = $region84
        $region83: #{brio_forward.3} parent=11 // pred_region
          _
        $region84: #{brio_forward.3} parent=11 // pred_fallthru
          _
        // Predicated region
        $region85: #{brio_forward.3} parent=11 // pred_check
          %p992 = pneg %p636
        $region86: #{brio_forward.3} parent=11 // pred_check_branch
          %994 = sbr.rel (%p992) target = $region88
        $region87: #{brio_forward.3} parent=11 // pred_region
          _
        $region88: #{brio_forward.3} parent=11 // pred_fallthru
          _
        // Predicated region
        $region89: #{brio_forward.3} parent=11 // pred_check
          %p995 = pneg %p657
        $region90: #{brio_forward.3} parent=11 // pred_check_branch
          %997 = sbr.rel (%p995) target = $region92
        $region91: #{brio_forward.3} parent=11 // pred_region
          _
        $region92: #{brio_forward.3} parent=11 // pred_fallthru
          _
        // Predicated region
        $region93: #{brio_forward.3} parent=11 // pred_check
          %p998 = pneg %p678
        $region94: #{brio_forward.3} parent=11 // pred_check_branch
          %1000 = sbr.rel (%p998) target = $region96
        $region95: #{brio_forward.3} parent=11 // pred_region
          _
        $region96: #{brio_forward.3} parent=11 // pred_fallthru
          _
        // Predicated region
        $region97: #{brio_forward.3} parent=11 // pred_check
          %p1001 = pneg %p699
        $region98: #{brio_forward.3} parent=11 // pred_check_branch
          %1003 = sbr.rel (%p1001) target = $region100
        $region99: #{brio_forward.3} parent=11 // pred_region
          _
        $region100: #{brio_forward.3} parent=11 // pred_fallthru
          _
        // Predicated region
        $region101: #{brio_forward.3} parent=11 // pred_check
          %p1004 = pneg %p720
        $region102: #{brio_forward.3} parent=11 // pred_check_branch
          %1006 = sbr.rel (%p1004) target = $region104
        $region103: #{brio_forward.3} parent=11 // pred_region
          _
        $region104: #{brio_forward.3} parent=11 // pred_fallthru
          _
        // Predicated region
        $region105: #{brio_forward.3} parent=11 // pred_check
          %p1007 = pneg %p741
        $region106: #{brio_forward.3} parent=11 // pred_check_branch
          %1009 = sbr.rel (%p1007) target = $region108
        $region107: #{brio_forward.3} parent=11 // pred_region
          _
        $region108: #{brio_forward.3} parent=11 // pred_fallthru
          _
        // Predicated region
        $region109: #{brio_forward.3} parent=11 // pred_check
          %p1010 = pneg %p762
        $region110: #{brio_forward.3} parent=11 // pred_check_branch
          %1012 = sbr.rel (%p1010) target = $region112
        $region111: #{brio_forward.3} parent=11 // pred_region
          _
        $region112: #{brio_forward.3} parent=11 // pred_fallthru
          _
        // Predicated region
        $region113: #{brio_forward.3} parent=11 // pred_check
          %p1013 = pneg %p783
        $region114: #{brio_forward.3} parent=11 // pred_check_branch
          %1015 = sbr.rel (%p1013) target = $region116
        $region115: #{brio_forward.3} parent=11 // pred_region
          _
        $region116: #{brio_forward.3} parent=11 // pred_fallthru
          _
        // Predicated region
        $region117: #{brio_forward.3} parent=11 // pred_check
          %p1016 = pneg %p804
        $region118: #{brio_forward.3} parent=11 // pred_check_branch
          %1018 = sbr.rel (%p1016) target = $region120
        $region119: #{brio_forward.3} parent=11 // pred_region
          _
        $region120: #{brio_forward.3} parent=11 // pred_fallthru
          _
        // Predicated region
        $region121: #{brio_forward.3} parent=11 // pred_check
          %p1019 = pneg %p825
        $region122: #{brio_forward.3} parent=11 // pred_check_branch
          %1021 = sbr.rel (%p1019) target = $region124
        $region123: #{brio_forward.3} parent=11 // pred_region
          _
        $region124: #{brio_forward.3} parent=11 // pred_fallthru
          _
        // Predicated region
        $region125: #{brio_forward.3} parent=11 // pred_check
          %p1022 = pneg %p846
        $region126: #{brio_forward.3} parent=11 // pred_check_branch
          %1024 = sbr.rel (%p1022) target = $region128
        $region127: #{brio_forward.3} parent=11 // pred_region
          _
        $region128: #{brio_forward.3} parent=11 // pred_fallthru
          _
        // Predicated region
        $region129: #{brio_forward.3} parent=11 // pred_check
          %p1025 = pneg %p867
        $region130: #{brio_forward.3} parent=11 // pred_check_branch
          %1027 = sbr.rel (%p1025) target = $region132
        $region131: #{brio_forward.3} parent=11 // pred_region
          _
        $region132: #{brio_forward.3} parent=11 // pred_fallthru
          _
      $region12: #{brio_forward.3} parent=5 // pred_fallthru
        _
      %p1028 = scmp.lt.s32.totalorder %s83, 6
      // Predicated region
      $region133: #{brio_forward.3} parent=5 // pred_check
        %p1029 = pneg %p1028
      $region134: #{brio_forward.3} parent=5 // pred_check_branch
        %1031 = sbr.rel (%p1029) target = $region136
      $region135: #{brio_forward.3} parent=5 // pred_region
        // Predicated region
        $region137: #{brio_forward.3} parent=135 // pred_check
          %p1032 = pneg %p119
        $region138: #{brio_forward.3} parent=135 // pred_check_branch
          %1034 = sbr.rel (%p1032) target = $region140
        $region139: #{brio_forward.3} parent=135 // pred_region
          %s1035 = smul.u32 %s90, 3
          %s1036 = sadd.s32 %s1035, %s91
          %p1037 = scmp.lt.s32.totalorder %s1036, 5
          %s1038 = scalar_select %p1037, %s1036, 5
          %s1039 = smul.addr %s1038, 8
          %s1040 = scalar_lea.vmem %s1, %s1039
          %s1041 = smul.u32 %s90, 3
          %s1042 = sadd.s32 %s1041, %s91
        $region140: #{brio_forward.3} parent=135 // pred_fallthru
          _
        // Predicated region
        $region141: #{brio_forward.3} parent=135 // pred_check
          %p1043 = pneg %p149
        $region142: #{brio_forward.3} parent=135 // pred_check_branch
          %1045 = sbr.rel (%p1043) target = $region144
        $region143: #{brio_forward.3} parent=135 // pred_region
          %s1046 = smul.u32 %s90, 3
          %s1047 = sadd.s32 %s1046, %s91
          %p1048 = scmp.lt.s32.totalorder %s1047, 5
          %s1049 = scalar_select %p1048, %s1047, 5
          %s1050 = scalar_lea.vmem %s3, %s1049
          %s1051 = smul.u32 %s90, 3
          %s1052 = sadd.s32 %s1051, %s91
        $region144: #{brio_forward.3} parent=135 // pred_fallthru
          _
        // Predicated region
        $region145: #{brio_forward.3} parent=135 // pred_check
          %p1053 = pneg %p175
        $region146: #{brio_forward.3} parent=135 // pred_check_branch
          %1055 = sbr.rel (%p1053) target = $region148
        $region147: #{brio_forward.3} parent=135 // pred_region
          %p1056 = scmp.lt.s32.totalorder %s90, 1
          %s1057 = scalar_select %p1056, %s90, 1
          %s1058 = smul.addr %s1057, 2
          %s1059 = smul.addr %s1058, 8
          %s1060 = scalar_lea.vmem %s5, %s1059
        $region148: #{brio_forward.3} parent=135 // pred_fallthru
          _
        // Predicated region
        $region149: #{brio_forward.3} parent=135 // pred_check
          %p1061 = pneg %p201
        $region150: #{brio_forward.3} parent=135 // pred_check_branch
          %1063 = sbr.rel (%p1061) target = $region152
        $region151: #{brio_forward.3} parent=135 // pred_region
          %p1064 = scmp.lt.s32.totalorder %s90, 1
          %s1065 = scalar_select %p1064, %s90, 1
          %s1066 = scalar_lea.vmem %s7, %s1065
        $region152: #{brio_forward.3} parent=135 // pred_fallthru
          _
        // Predicated region
        $region153: #{brio_forward.3} parent=135 // pred_check
          %p1067 = pneg %p231
        $region154: #{brio_forward.3} parent=135 // pred_check_branch
          %1069 = sbr.rel (%p1067) target = $region156
        $region155: #{brio_forward.3} parent=135 // pred_region
          %s1070 = smul.u32 %s90, 3
          %s1071 = sadd.s32 %s1070, %s91
          %p1072 = scmp.lt.s32.totalorder %s1071, 5
          %s1073 = scalar_select %p1072, %s1071, 5
          %s1074 = smul.addr %s1073, 8
          %s1075 = scalar_lea.vmem %s9, %s1074
          %s1076 = smul.u32 %s90, 3
          %s1077 = sadd.s32 %s1076, %s91
        $region156: #{brio_forward.3} parent=135 // pred_fallthru
          _
      $region136: #{brio_forward.3} parent=5 // pred_fallthru
        _
      %p1078 = scmp.le.s32.totalorder 1, %s83
      %p1079 = scmp.lt.s32.totalorder %s83, 7
      %p1080 = pnand %p1078, %p1079
      %p1081 = pneg %p1080
      // Predicated region
      $region157: #{brio_forward.3} parent=5 // pred_check
        _
      $region158: #{brio_forward.3} parent=5 // pred_check_branch
        %1083 = sbr.rel (%p1080) target = $region160
      $region159: #{brio_forward.3} parent=5 // pred_region
        %s1084 = ssub.s32 %s83, 1
        %s1085 = smul.u32 %s92, 3
        %s1086 = sadd.s32 %s1085, %s93
        %p1087 = scmp.lt.s32.totalorder %s1086, 5
        %s1088 = scalar_select %p1087, %s1086, 5
        %s1089 = smul.addr %s1088, 8
        %s1090 = scalar_lea.vmem %s1, %s1089
        %p1091 = pneg %p125
        %p1092 = pneg %p122
        %s1093 = smul.u32 %s92, 3
        %s1094 = sadd.s32 %s1093, %s93
        %p1095 = scmp.lt.s32.totalorder %s1094, 5
        %s1096 = scalar_select %p1095, %s1094, 5
        %s1097 = scalar_lea.vmem %s3, %s1096
        %p1098 = pneg %p155
        %p1099 = pneg %p152
        %p1100 = scmp.lt.s32.totalorder %s92, 1
        %s1101 = scalar_select %p1100, %s92, 1
        %s1102 = smul.addr %s1101, 2
        %s1103 = smul.addr %s1102, 8
        %s1104 = scalar_lea.vmem %s5, %s1103
        %p1105 = pneg %p181
        %p1106 = pneg %p178
        %p1107 = scmp.lt.s32.totalorder %s92, 1
        %s1108 = scalar_select %p1107, %s92, 1
        %s1109 = scalar_lea.vmem %s7, %s1108
        %p1110 = pneg %p207
        %p1111 = pneg %p204
        %s1112 = smul.u32 %s92, 3
        %s1113 = sadd.s32 %s1112, %s93
        %p1114 = scmp.lt.s32.totalorder %s1113, 5
        %s1115 = scalar_select %p1114, %s1113, 5
        %s1116 = smul.addr %s1115, 8
        %s1117 = scalar_lea.vmem %s9, %s1116
        %p1118 = pneg %p237
        %p1119 = pneg %p234
        %p1120 = pneg %p258
        %p1121 = pneg %p255
        %p1122 = pneg %p279
        %p1123 = pneg %p276
        %p1124 = pneg %p300
        %p1125 = pneg %p297
        %p1126 = pneg %p321
        %p1127 = pneg %p318
        %p1128 = pneg %p342
        %p1129 = pneg %p339
        %p1130 = pneg %p363
        %p1131 = pneg %p360
        %p1132 = pneg %p384
        %p1133 = pneg %p381
        %p1134 = pneg %p405
        %p1135 = pneg %p402
        %p1136 = pneg %p426
        %p1137 = pneg %p423
        %p1138 = pneg %p447
        %p1139 = pneg %p444
        %p1140 = pneg %p468
        %p1141 = pneg %p465
        %p1142 = pneg %p489
        %p1143 = pneg %p486
        %p1144 = pneg %p510
        %p1145 = pneg %p507
        %p1146 = pneg %p531
        %p1147 = pneg %p528
        %p1148 = pneg %p552
        %p1149 = pneg %p549
        %p1150 = pneg %p573
        %p1151 = pneg %p570
        %p1152 = pneg %p594
        %p1153 = pneg %p591
        %p1154 = pneg %p615
        %p1155 = pneg %p612
        %p1156 = pneg %p636
        %p1157 = pneg %p633
        %p1158 = pneg %p657
        %p1159 = pneg %p654
        %p1160 = pneg %p678
        %p1161 = pneg %p675
        %p1162 = pneg %p699
        %p1163 = pneg %p696
        %p1164 = pneg %p720
        %p1165 = pneg %p717
        %p1166 = pneg %p741
        %p1167 = pneg %p738
        %p1168 = pneg %p762
        %p1169 = pneg %p759
        %p1170 = pneg %p783
        %p1171 = pneg %p780
        %p1172 = pneg %p804
        %p1173 = pneg %p801
        %p1174 = pneg %p825
        %p1175 = pneg %p822
        %p1176 = pneg %p846
        %p1177 = pneg %p843
        %p1178 = pneg %p867
        %p1179 = pneg %p864
        %p1180 = pneg %p897
        %p1181 = pneg %p894
        %s1182 = smul.u32 %s92, 3
        %s1183 = sadd.s32 %s1182, %s93
        %p1184 = scmp.lt.s32.totalorder %s1183, 5
        %s1185 = scalar_select %p1184, %s1183, 5
        %s1186 = scalar_lea.vmem %s71, %s1185
        %p1187 = pneg %p923
        %p1188 = pneg %p920
        %s1189 = sand.u32 %s910, 1
        %s1190 = scalar_lea.sflag [#allocation3], %s1189
        %s1191 = sand.u32 %s910, 1
        %s1192 = smul.addr %s1191, 8
        %s1193 = scalar_lea.vmem [#allocation2], %s1192
        %s1194 = smul.u32 %s92, 3
        %s1195 = sadd.s32 %s1194, %s93
        %p1196 = scmp.lt.s32.totalorder %s1195, 5
        %s1197 = scalar_select %p1196, %s1195, 5
        %s1198 = smul.addr %s1197, 8
        %s1199 = scalar_lea.vmem %s1, %s1198
        %s1200 = smul.u32 %s92, 3
        %s1201 = sadd.s32 %s1200, %s93
        %s1202 = smul.u32 %s92, 3
        %s1203 = sadd.s32 %s1202, %s93
        %p1204 = scmp.lt.s32.totalorder %s1203, 5
        %s1205 = scalar_select %p1204, %s1203, 5
        %s1206 = scalar_lea.vmem %s3, %s1205
        %s1207 = smul.u32 %s92, 3
        %s1208 = sadd.s32 %s1207, %s93
        %p1209 = scmp.lt.s32.totalorder %s92, 1
        %s1210 = scalar_select %p1209, %s92, 1
        %s1211 = smul.addr %s1210, 2
        %s1212 = smul.addr %s1211, 8
        %s1213 = scalar_lea.vmem %s5, %s1212
        %p1214 = scmp.lt.s32.totalorder %s92, 1
        %s1215 = scalar_select %p1214, %s92, 1
        %s1216 = scalar_lea.vmem %s7, %s1215
        %s1217 = smul.u32 %s92, 3
        %s1218 = sadd.s32 %s1217, %s93
        %p1219 = scmp.lt.s32.totalorder %s1218, 5
        %s1220 = scalar_select %p1219, %s1218, 5
        %s1221 = smul.addr %s1220, 8
        %s1222 = scalar_lea.vmem %s9, %s1221
        %s1223 = smul.u32 %s92, 3
        %s1224 = sadd.s32 %s1223, %s93
        %s1225 = smul.u32 %s92, 3
        %s1226 = sadd.s32 %s1225, %s93
        %p1227 = scmp.lt.s32.totalorder %s1226, 5
        %s1228 = scalar_select %p1227, %s1226, 5
        %s1229 = scalar_lea.vmem %s71, %s1228
        %s1230 = smul.u32 %s92, 3
        %s1231 = sadd.s32 %s1230, %s93
        %v1233 = vld [vmem:[%s1199] sm:$0xff]
        %v1234 = vld [vmem:[%s11] sm:$0x1]
        %v1235 = vld [vmem:[%s13] sm:$0x1]
        %vm1236 = vcmask 261120
        %v1237 = vsel %vm1236, %v1233, 0.0
        %1238 = vadd.xlane.f32.xlu0 %v1237
        %v1239 = vpop.xlane.xlu0 %1238
        %v1240 = vrcp.pop 32.0
        %v1241 = vmul.f32 %v1239, %v1240
        %v1242 = vsub.f32 %v1233, %v1241
        %v1243 = vmul.f32 %v1242, %v1242
        %v1244 = vsel %vm1236, %v1243, 0.0
        %1245 = vadd.xlane.f32.xlu0 %v1244
        %v1246 = vpop.xlane.xlu0 %1245
        %v1247 = vmul.f32 %v1246, %v1240
        %v1248 = vadd.f32 %v1247, 1e-05
        %v1249 = vrsqrt.pop %v1248
        %v1250 = vmul.f32 %v1242, %v1249
        %v1252 = vlaneseq
        %v1253 = vshrl.u32 %v1252, 7
        %v1254 = vsub.s32 0, %v1253
        %v1255 = vrot.slane %v1234, %v1254
        %v1257 = vmul.f32 %v1250, %v1255
        %v1259 = vlaneseq
        %v1260 = vshrl.u32 %v1259, 7
        %v1261 = vsub.s32 0, %v1260
        %v1262 = vrot.slane %v1235, %v1261
        %v1264 = vadd.f32 %v1257, %v1262
        %v1265 = vld [vmem:[%s1206] sm:$0x1]
        %v1266 = vlaneseq
        %v1267 = vshrl.u32 %v1266, 7
        %v1268 = vlaneseq
        %v1269 = vand.u32 %v1268, 127
        %vm1270 = vcmp.ge.s32.totalorder %v1267, %v1269
        %v1271 = vsel %vm1270, 0.0, -1e+09
        %v1272 = vld [vmem:[%s15] sm:$0xf]
        %v1273 = vld [vmem:[%s15 + $0x4] sm:$0xf]
        %v1274 = vld [vmem:[%s15 + $0x8] sm:$0xf]
        %v1275 = vld [vmem:[%s15 + $0xc] sm:$0xf]
        %v1276 = vpack.c.bf16 %v1264, %v1264
        %v1277 = vld [vmem:[%s17] sm:$0x1]
        %v1279 = vlaneseq
        %v1280 = vshrl.u32 %v1279, 7
        %v1281 = vsub.s32 0, %v1280
        %v1282 = vrot.slane %v1277, %v1281
        %v1288 = vunpack.c.l.b16 %v1272
        %v1289 = vunpack.c.l.b16 %v1273
        %v1290 = vunpack.c.l.b16 %v1274
        %v1291 = vunpack.c.l.b16 %v1275
        %v1292 = vpack.c.b16 %v1289, %v1288
        %v1293 = vpack.c.b16 %v1291, %v1290
        %v1297 = vsel %vm1236, %v1276, 0
        %1299 = vmatprep.subr.bf16.mxu0 0
        %1300 = vmatpush1.bf16.msra.mxu0 0
        %1301 = vmatprep.subr.bf16.mxu0 0
        %1302 = vmatpush1.bf16.msra.mxu0 0
        %1303 = vmatprep.subr.bf16.mxu0 0
        %1304 = vmatpush1.bf16.msra.mxu0 0
        %1305 = vmatprep.subr.bf16.mxu0 0
        %1306 = vmatpush1.bf16.msra.mxu0 0
        %1307 = vmatprep.subr.bf16.mxu0 0
        %1308 = vmatpush1.bf16.msra.mxu0 0
        %1309 = vmatprep.subr.bf16.mxu0 0
        %1310 = vmatpush1.bf16.msra.mxu0 0
        %1311 = vmatprep.subr.bf16.mxu0 0
        %1312 = vmatpush1.bf16.msra.mxu0 %v1293
        %1313 = vmatprep.subr.bf16.mxu0 0
        %1314 = vmatpush1.bf16.msra.mxu0 %v1292
        %1315 = vmatprep.subr.bf16.mxu0 0
        %1316 = vmatpush2.bf16.msra.mxu0 0
        %1317 = vmatprep.subr.bf16.mxu0 0
        %1318 = vmatpush2.bf16.msra.mxu0 0
        %1319 = vmatprep.subr.bf16.mxu0 0
        %1320 = vmatpush2.bf16.msra.mxu0 0
        %1321 = vmatprep.subr.bf16.mxu0 0
        %1322 = vmatpush2.bf16.msra.mxu0 0
        %1323 = vmatprep.subr.bf16.mxu0 0
        %1324 = vmatpush2.bf16.msra.mxu0 0
        %1325 = vmatprep.subr.bf16.mxu0 0
        %1326 = vmatpush2.bf16.msra.mxu0 0
        %1327 = vmatprep.subr.bf16.mxu0 0
        %1328 = vmatpush2.bf16.msra.mxu0 0
        %1329 = vmatprep.subr.bf16.mxu0 0
        %1330 = vmatpush2.bf16.msra.mxu0 0
        %1331 = vmatprep.mubr.bf16.mxu0 0
        %1332 = vmatmul.mubr.bf16.gmra.mxu0 %v1297
        %v1333 = vpop.f32.mrf.mxu0
        %v1334 = vadd.f32 %v1282, %v1333
        %v1335 = vpop.f32.mrf.mxu0
        %v1336 = vpop.f32.mrf.mxu0
        %v1337 = vpop.f32.mrf.mxu0
        %1338 = vdwg.mxu0
        %v1339 = vld [vmem:[%s19] sm:$0xf]
        %v1340 = vld [vmem:[%s19 + $0x4] sm:$0xf]
        %v1341 = vld [vmem:[%s19 + $0x8] sm:$0xf]
        %v1342 = vld [vmem:[%s19 + $0xc] sm:$0xf]
        %v1343 = vld [vmem:[%s21] sm:$0x1]
        %v1345 = vlaneseq
        %v1346 = vshrl.u32 %v1345, 7
        %v1347 = vsub.s32 0, %v1346
        %v1348 = vrot.slane %v1343, %v1347
        %v1354 = vunpack.c.l.b16 %v1339
        %v1355 = vunpack.c.l.b16 %v1340
        %v1356 = vunpack.c.l.b16 %v1341
        %v1357 = vunpack.c.l.b16 %v1342
        %v1358 = vpack.c.b16 %v1355, %v1354
        %v1359 = vpack.c.b16 %v1357, %v1356
        %1362 = vmatprep.subr.bf16.mxu0 0
        %1363 = vmatpush1.bf16.msra.mxu0 0
        %1364 = vmatprep.subr.bf16.mxu0 0
        %1365 = vmatpush1.bf16.msra.mxu0 0
        %1366 = vmatprep.subr.bf16.mxu0 0
        %1367 = vmatpush1.bf16.msra.mxu0 0
        %1368 = vmatprep.subr.bf16.mxu0 0
        %1369 = vmatpush1.bf16.msra.mxu0 0
        %1370 = vmatprep.subr.bf16.mxu0 0
        %1371 = vmatpush1.bf16.msra.mxu0 0
        %1372 = vmatprep.subr.bf16.mxu0 0
        %1373 = vmatpush1.bf16.msra.mxu0 0
        %1374 = vmatprep.subr.bf16.mxu0 0
        %1375 = vmatpush1.bf16.msra.mxu0 %v1359
        %1376 = vmatprep.subr.bf16.mxu0 0
        %1377 = vmatpush1.bf16.msra.mxu0 %v1358
        %1378 = vmatprep.subr.bf16.mxu0 0
        %1379 = vmatpush2.bf16.msra.mxu0 0
        %1380 = vmatprep.subr.bf16.mxu0 0
        %1381 = vmatpush2.bf16.msra.mxu0 0
        %1382 = vmatprep.subr.bf16.mxu0 0
        %1383 = vmatpush2.bf16.msra.mxu0 0
        %1384 = vmatprep.subr.bf16.mxu0 0
        %1385 = vmatpush2.bf16.msra.mxu0 0
        %1386 = vmatprep.subr.bf16.mxu0 0
        %1387 = vmatpush2.bf16.msra.mxu0 0
        %1388 = vmatprep.subr.bf16.mxu0 0
        %1389 = vmatpush2.bf16.msra.mxu0 0
        %1390 = vmatprep.subr.bf16.mxu0 0
        %1391 = vmatpush2.bf16.msra.mxu0 0
        %1392 = vmatprep.subr.bf16.mxu0 0
        %1393 = vmatpush2.bf16.msra.mxu0 0
        %1394 = vmatprep.mubr.bf16.mxu0 0
        %1395 = vmatmul.mubr.bf16.gmra.mxu0 %v1297
        %v1396 = vpop.f32.mrf.mxu0
        %v1397 = vadd.f32 %v1348, %v1396
        %v1398 = vpop.f32.mrf.mxu0
        %v1399 = vpop.f32.mrf.mxu0
        %v1400 = vpop.f32.mrf.mxu0
        %1401 = vdwg.mxu0
        %v1402 = vld [vmem:[%s23] sm:$0xf]
        %v1403 = vld [vmem:[%s23 + $0x4] sm:$0xf]
        %v1404 = vld [vmem:[%s23 + $0x8] sm:$0xf]
        %v1405 = vld [vmem:[%s23 + $0xc] sm:$0xf]
        %v1406 = vld [vmem:[%s25] sm:$0x1]
        %v1408 = vlaneseq
        %v1409 = vshrl.u32 %v1408, 7
        %v1410 = vsub.s32 0, %v1409
        %v1411 = vrot.slane %v1406, %v1410
        %v1417 = vunpack.c.l.b16 %v1402
        %v1418 = vunpack.c.l.b16 %v1403
        %v1419 = vunpack.c.l.b16 %v1404
        %v1420 = vunpack.c.l.b16 %v1405
        %v1421 = vpack.c.b16 %v1418, %v1417
        %v1422 = vpack.c.b16 %v1420, %v1419
        %1425 = vmatprep.subr.bf16.mxu0 0
        %1426 = vmatpush1.bf16.msra.mxu0 0
        %1427 = vmatprep.subr.bf16.mxu0 0
        %1428 = vmatpush1.bf16.msra.mxu0 0
        %1429 = vmatprep.subr.bf16.mxu0 0
        %1430 = vmatpush1.bf16.msra.mxu0 0
        %1431 = vmatprep.subr.bf16.mxu0 0
        %1432 = vmatpush1.bf16.msra.mxu0 0
        %1433 = vmatprep.subr.bf16.mxu0 0
        %1434 = vmatpush1.bf16.msra.mxu0 0
        %1435 = vmatprep.subr.bf16.mxu0 0
        %1436 = vmatpush1.bf16.msra.mxu0 0
        %1437 = vmatprep.subr.bf16.mxu0 0
        %1438 = vmatpush1.bf16.msra.mxu0 %v1422
        %1439 = vmatprep.subr.bf16.mxu0 0
        %1440 = vmatpush1.bf16.msra.mxu0 %v1421
        %1441 = vmatprep.subr.bf16.mxu0 0
        %1442 = vmatpush2.bf16.msra.mxu0 0
        %1443 = vmatprep.subr.bf16.mxu0 0
        %1444 = vmatpush2.bf16.msra.mxu0 0
        %1445 = vmatprep.subr.bf16.mxu0 0
        %1446 = vmatpush2.bf16.msra.mxu0 0
        %1447 = vmatprep.subr.bf16.mxu0 0
        %1448 = vmatpush2.bf16.msra.mxu0 0
        %1449 = vmatprep.subr.bf16.mxu0 0
        %1450 = vmatpush2.bf16.msra.mxu0 0
        %1451 = vmatprep.subr.bf16.mxu0 0
        %1452 = vmatpush2.bf16.msra.mxu0 0
        %1453 = vmatprep.subr.bf16.mxu0 0
        %1454 = vmatpush2.bf16.msra.mxu0 0
        %1455 = vmatprep.subr.bf16.mxu0 0
        %1456 = vmatpush2.bf16.msra.mxu0 0
        %1457 = vmatprep.mubr.bf16.mxu0 0
        %1458 = vmatmul.mubr.bf16.gmra.mxu0 %v1297
        %v1459 = vpop.f32.mrf.mxu0
        %v1460 = vadd.f32 %v1411, %v1459
        %v1461 = vpop.f32.mrf.mxu0
        %v1462 = vpop.f32.mrf.mxu0
        %v1463 = vpop.f32.mrf.mxu0
        %1464 = vdwg.mxu0
        %v1465 = vpack.c.bf16 %v1334, %v1334
        %v1466 = vpack.c.bf16 %v1397, %v1397
        %vm1467 = vcmask 64512
        %v1469 = vsel %vm1467, %v1465, 0
        %v1472 = vsel %vm1467, %v1466, 0
        %1474 = vmatprep.subr.bf16.mxu0 0
        %1475 = vmatpush1.bf16.xpose.msra.mxu0 0
        %1476 = vmatprep.subr.bf16.mxu0 0
        %1477 = vmatpush1.bf16.xpose.msra.mxu0 0
        %1478 = vmatprep.subr.bf16.mxu0 0
        %1479 = vmatpush1.bf16.xpose.msra.mxu0 0
        %1480 = vmatprep.subr.bf16.mxu0 0
        %1481 = vmatpush1.bf16.xpose.msra.mxu0 0
        %1482 = vmatprep.subr.bf16.mxu0 0
        %1483 = vmatpush1.bf16.xpose.msra.mxu0 0
        %1484 = vmatprep.subr.bf16.mxu0 0
        %1485 = vmatpush1.bf16.xpose.msra.mxu0 0
        %1486 = vmatprep.subr.bf16.mxu0 0
        %1487 = vmatpush1.bf16.xpose.msra.mxu0 0
        %1488 = vmatprep.subr.bf16.mxu0 0
        %1489 = vmatpush1.bf16.xpose.msra.mxu0 %v1472
        %1490 = vmatprep.subr.bf16.mxu0 0
        %1491 = vmatpush2.bf16.xpose.msra.mxu0 0
        %1492 = vmatprep.subr.bf16.mxu0 0
        %1493 = vmatpush2.bf16.xpose.msra.mxu0 0
        %1494 = vmatprep.subr.bf16.mxu0 0
        %1495 = vmatpush2.bf16.xpose.msra.mxu0 0
        %1496 = vmatprep.subr.bf16.mxu0 0
        %1497 = vmatpush2.bf16.xpose.msra.mxu0 0
        %1498 = vmatprep.subr.bf16.mxu0 0
        %1499 = vmatpush2.bf16.xpose.msra.mxu0 0
        %1500 = vmatprep.subr.bf16.mxu0 0
        %1501 = vmatpush2.bf16.xpose.msra.mxu0 0
        %1502 = vmatprep.subr.bf16.mxu0 0
        %1503 = vmatpush2.bf16.xpose.msra.mxu0 0
        %1504 = vmatprep.subr.bf16.mxu0 0
        %1505 = vmatpush2.bf16.xpose.msra.mxu0 0
        %1506 = vmatprep.mubr.bf16.mxu0 0
        %1507 = vmatmul.mubr.bf16.gmra.mxu0 %v1469
        %v1508 = vpop.f32.mrf.mxu0
        %v1509 = vadd.f32 0.0, %v1508
        %v1510 = vpop.f32.mrf.mxu0
        %v1511 = vpop.f32.mrf.mxu0
        %v1512 = vpop.f32.mrf.mxu0
        %1513 = vdwg.mxu0
        %v1514 = vmul.f32 %v1509, 0.35355338
        %v1516 = vlaneseq
        %v1517 = vshrl.u32 %v1516, 7
        %v1518 = vsub.s32 0, %v1517
        %v1519 = vrot.slane %v1265, %v1518
        %v1521 = vadd.f32 %v1514, %v1519
        %v1522 = vadd.f32 %v1521, %v1271
        %v1523 = vsel %vm1467, %v1522, -inf
        %1524 = vmax.xlane.f32.xlu0 %v1523
        %v1525 = vpop.xlane.xlu0 %1524
        %v1526 = vsub.f32 %v1522, %v1525
        %v1527 = vmul.f32 %v1526, 1.442695
        %v1528 = vpow.pop %v1527
        %v1529 = vsel %vm1467, %v1528, 0.0
        %1530 = vadd.xlane.f32.xlu0 %v1529
        %v1531 = vpop.xlane.xlu0 %1530
        %v1532 = vrcp.pop %v1531
        %v1533 = vmul.f32 %v1528, %v1532
        %v1534 = vpack.c.bf16 %v1533, %v1533
        %v1535 = vpack.c.bf16 %v1460, %v1460
        %v1537 = vsel %vm1467, %v1534, 0
        %vm1539 = vcmask 1043456
        %v1541 = vsel %vm1539, %v1535, 0
        %1543 = vmatprep.subr.bf16.mxu0 0
        %1544 = vmatpush1.bf16.msra.mxu0 0
        %1545 = vmatprep.subr.bf16.mxu0 0
        %1546 = vmatpush1.bf16.msra.mxu0 0
        %1547 = vmatprep.subr.bf16.mxu0 0
        %1548 = vmatpush1.bf16.msra.mxu0 0
        %1549 = vmatprep.subr.bf16.mxu0 0
        %1550 = vmatpush1.bf16.msra.mxu0 0
        %1551 = vmatprep.subr.bf16.mxu0 0
        %1552 = vmatpush1.bf16.msra.mxu0 0
        %1553 = vmatprep.subr.bf16.mxu0 0
        %1554 = vmatpush1.bf16.msra.mxu0 0
        %1555 = vmatprep.subr.bf16.mxu0 0
        %1556 = vmatpush1.bf16.msra.mxu0 0
        %1557 = vmatprep.subr.bf16.mxu0 0
        %1558 = vmatpush1.bf16.msra.mxu0 %v1541
        %1559 = vmatprep.subr.bf16.mxu0 0
        %1560 = vmatpush2.bf16.msra.mxu0 0
        %1561 = vmatprep.subr.bf16.mxu0 0
        %1562 = vmatpush2.bf16.msra.mxu0 0
        %1563 = vmatprep.subr.bf16.mxu0 0
        %1564 = vmatpush2.bf16.msra.mxu0 0
        %1565 = vmatprep.subr.bf16.mxu0 0
        %1566 = vmatpush2.bf16.msra.mxu0 0
        %1567 = vmatprep.subr.bf16.mxu0 0
        %1568 = vmatpush2.bf16.msra.mxu0 0
        %1569 = vmatprep.subr.bf16.mxu0 0
        %1570 = vmatpush2.bf16.msra.mxu0 0
        %1571 = vmatprep.subr.bf16.mxu0 0
        %1572 = vmatpush2.bf16.msra.mxu0 0
        %1573 = vmatprep.subr.bf16.mxu0 0
        %1574 = vmatpush2.bf16.msra.mxu0 0
        %1575 = vmatprep.mubr.bf16.mxu0 0
        %1576 = vmatmul.mubr.bf16.gmra.mxu0 %v1537
        %v1577 = vpop.f32.mrf.mxu0
        %v1578 = vadd.f32 0.0, %v1577
        %v1579 = vpop.f32.mrf.mxu0
        %v1580 = vpop.f32.mrf.mxu0
        %v1581 = vpop.f32.mrf.mxu0
        %1582 = vdwg.mxu0
        %v1583 = vld [vmem:[%s27] sm:$0xf]
        %v1584 = vpack.c.bf16 %v1578, %v1578
        %s1585 = scalar_lea.vmem %s15, 16
        %v1586 = vld [vmem:[%s1585] sm:$0xf]
        %v1587 = vld [vmem:[%s1585 + $0x4] sm:$0xf]
        %v1588 = vld [vmem:[%s1585 + $0x8] sm:$0xf]
        %v1589 = vld [vmem:[%s1585 + $0xc] sm:$0xf]
        %s1590 = scalar_lea.vmem %s17, 1
        %v1591 = vld [vmem:[%s1590] sm:$0x1]
        %v1593 = vlaneseq
        %v1594 = vshrl.u32 %v1593, 7
        %v1595 = vsub.s32 0, %v1594
        %v1596 = vrot.slane %v1591, %v1595
        %v1602 = vunpack.c.l.b16 %v1586
        %v1603 = vunpack.c.l.b16 %v1587
        %v1604 = vunpack.c.l.b16 %v1588
        %v1605 = vunpack.c.l.b16 %v1589
        %v1606 = vpack.c.b16 %v1603, %v1602
        %v1607 = vpack.c.b16 %v1605, %v1604
        %1610 = vmatprep.subr.bf16.mxu0 0
        %1611 = vmatpush1.bf16.msra.mxu0 0
        %1612 = vmatprep.subr.bf16.mxu0 0
        %1613 = vmatpush1.bf16.msra.mxu0 0
        %1614 = vmatprep.subr.bf16.mxu0 0
        %1615 = vmatpush1.bf16.msra.mxu0 0
        %1616 = vmatprep.subr.bf16.mxu0 0
        %1617 = vmatpush1.bf16.msra.mxu0 0
        %1618 = vmatprep.subr.bf16.mxu0 0
        %1619 = vmatpush1.bf16.msra.mxu0 0
        %1620 = vmatprep.subr.bf16.mxu0 0
        %1621 = vmatpush1.bf16.msra.mxu0 0
        %1622 = vmatprep.subr.bf16.mxu0 0
        %1623 = vmatpush1.bf16.msra.mxu0 %v1607
        %1624 = vmatprep.subr.bf16.mxu0 0
        %1625 = vmatpush1.bf16.msra.mxu0 %v1606
        %1626 = vmatprep.subr.bf16.mxu0 0
        %1627 = vmatpush2.bf16.msra.mxu0 0
        %1628 = vmatprep.subr.bf16.mxu0 0
        %1629 = vmatpush2.bf16.msra.mxu0 0
        %1630 = vmatprep.subr.bf16.mxu0 0
        %1631 = vmatpush2.bf16.msra.mxu0 0
        %1632 = vmatprep.subr.bf16.mxu0 0
        %1633 = vmatpush2.bf16.msra.mxu0 0
        %1634 = vmatprep.subr.bf16.mxu0 0
        %1635 = vmatpush2.bf16.msra.mxu0 0
        %1636 = vmatprep.subr.bf16.mxu0 0
        %1637 = vmatpush2.bf16.msra.mxu0 0
        %1638 = vmatprep.subr.bf16.mxu0 0
        %1639 = vmatpush2.bf16.msra.mxu0 0
        %1640 = vmatprep.subr.bf16.mxu0 0
        %1641 = vmatpush2.bf16.msra.mxu0 0
        %1642 = vmatprep.mubr.bf16.mxu0 0
        %1643 = vmatmul.mubr.bf16.gmra.mxu0 %v1297
        %v1644 = vpop.f32.mrf.mxu0
        %v1645 = vadd.f32 %v1596, %v1644
        %v1646 = vpop.f32.mrf.mxu0
        %v1647 = vpop.f32.mrf.mxu0
        %v1648 = vpop.f32.mrf.mxu0
        %1649 = vdwg.mxu0
        %s1650 = scalar_lea.vmem %s19, 16
        %v1651 = vld [vmem:[%s1650] sm:$0xf]
        %v1652 = vld [vmem:[%s1650 + $0x4] sm:$0xf]
        %v1653 = vld [vmem:[%s1650 + $0x8] sm:$0xf]
        %v1654 = vld [vmem:[%s1650 + $0xc] sm:$0xf]
        %s1655 = scalar_lea.vmem %s21, 1
        %v1656 = vld [vmem:[%s1655] sm:$0x1]
        %v1658 = vlaneseq
        %v1659 = vshrl.u32 %v1658, 7
        %v1660 = vsub.s32 0, %v1659
        %v1661 = vrot.slane %v1656, %v1660
        %v1667 = vunpack.c.l.b16 %v1651
        %v1668 = vunpack.c.l.b16 %v1652
        %v1669 = vunpack.c.l.b16 %v1653
        %v1670 = vunpack.c.l.b16 %v1654
        %v1671 = vpack.c.b16 %v1668, %v1667
        %v1672 = vpack.c.b16 %v1670, %v1669
        %1675 = vmatprep.subr.bf16.mxu0 0
        %1676 = vmatpush1.bf16.msra.mxu0 0
        %1677 = vmatprep.subr.bf16.mxu0 0
        %1678 = vmatpush1.bf16.msra.mxu0 0
        %1679 = vmatprep.subr.bf16.mxu0 0
        %1680 = vmatpush1.bf16.msra.mxu0 0
        %1681 = vmatprep.subr.bf16.mxu0 0
        %1682 = vmatpush1.bf16.msra.mxu0 0
        %1683 = vmatprep.subr.bf16.mxu0 0
        %1684 = vmatpush1.bf16.msra.mxu0 0
        %1685 = vmatprep.subr.bf16.mxu0 0
        %1686 = vmatpush1.bf16.msra.mxu0 0
        %1687 = vmatprep.subr.bf16.mxu0 0
        %1688 = vmatpush1.bf16.msra.mxu0 %v1672
        %1689 = vmatprep.subr.bf16.mxu0 0
        %1690 = vmatpush1.bf16.msra.mxu0 %v1671
        %1691 = vmatprep.subr.bf16.mxu0 0
        %1692 = vmatpush2.bf16.msra.mxu0 0
        %1693 = vmatprep.subr.bf16.mxu0 0
        %1694 = vmatpush2.bf16.msra.mxu0 0
        %1695 = vmatprep.subr.bf16.mxu0 0
        %1696 = vmatpush2.bf16.msra.mxu0 0
        %1697 = vmatprep.subr.bf16.mxu0 0
        %1698 = vmatpush2.bf16.msra.mxu0 0
        %1699 = vmatprep.subr.bf16.mxu0 0
        %1700 = vmatpush2.bf16.msra.mxu0 0
        %1701 = vmatprep.subr.bf16.mxu0 0
        %1702 = vmatpush2.bf16.msra.mxu0 0
        %1703 = vmatprep.subr.bf16.mxu0 0
        %1704 = vmatpush2.bf16.msra.mxu0 0
        %1705 = vmatprep.subr.bf16.mxu0 0
        %1706 = vmatpush2.bf16.msra.mxu0 0
        %1707 = vmatprep.mubr.bf16.mxu0 0
        %1708 = vmatmul.mubr.bf16.gmra.mxu0 %v1297
        %v1709 = vpop.f32.mrf.mxu0
        %v1710 = vadd.f32 %v1661, %v1709
        %v1711 = vpop.f32.mrf.mxu0
        %v1712 = vpop.f32.mrf.mxu0
        %v1713 = vpop.f32.mrf.mxu0
        %1714 = vdwg.mxu0
        %s1715 = scalar_lea.vmem %s23, 16
        %v1716 = vld [vmem:[%s1715] sm:$0xf]
        %v1717 = vld [vmem:[%s1715 + $0x4] sm:$0xf]
        %v1718 = vld [vmem:[%s1715 + $0x8] sm:$0xf]
        %v1719 = vld [vmem:[%s1715 + $0xc] sm:$0xf]
        %s1720 = scalar_lea.vmem %s25, 1
        %v1721 = vld [vmem:[%s1720] sm:$0x1]
        %v1723 = vlaneseq
        %v1724 = vshrl.u32 %v1723, 7
        %v1725 = vsub.s32 0, %v1724
        %v1726 = vrot.slane %v1721, %v1725
        %v1732 = vunpack.c.l.b16 %v1716
        %v1733 = vunpack.c.l.b16 %v1717
        %v1734 = vunpack.c.l.b16 %v1718
        %v1735 = vunpack.c.l.b16 %v1719
        %v1736 = vpack.c.b16 %v1733, %v1732
        %v1737 = vpack.c.b16 %v1735, %v1734
        %1740 = vmatprep.subr.bf16.mxu0 0
        %1741 = vmatpush1.bf16.msra.mxu0 0
        %1742 = vmatprep.subr.bf16.mxu0 0
        %1743 = vmatpush1.bf16.msra.mxu0 0
        %1744 = vmatprep.subr.bf16.mxu0 0
        %1745 = vmatpush1.bf16.msra.mxu0 0
        %1746 = vmatprep.subr.bf16.mxu0 0
        %1747 = vmatpush1.bf16.msra.mxu0 0
        %1748 = vmatprep.subr.bf16.mxu0 0
        %1749 = vmatpush1.bf16.msra.mxu0 0
        %1750 = vmatprep.subr.bf16.mxu0 0
        %1751 = vmatpush1.bf16.msra.mxu0 0
        %1752 = vmatprep.subr.bf16.mxu0 0
        %1753 = vmatpush1.bf16.msra.mxu0 %v1737
        %1754 = vmatprep.subr.bf16.mxu0 0
        %1755 = vmatpush1.bf16.msra.mxu0 %v1736
        %1756 = vmatprep.subr.bf16.mxu0 0
        %1757 = vmatpush2.bf16.msra.mxu0 0
        %1758 = vmatprep.subr.bf16.mxu0 0
        %1759 = vmatpush2.bf16.msra.mxu0 0
        %1760 = vmatprep.subr.bf16.mxu0 0
        %1761 = vmatpush2.bf16.msra.mxu0 0
        %1762 = vmatprep.subr.bf16.mxu0 0
        %1763 = vmatpush2.bf16.msra.mxu0 0
        %1764 = vmatprep.subr.bf16.mxu0 0
        %1765 = vmatpush2.bf16.msra.mxu0 0
        %1766 = vmatprep.subr.bf16.mxu0 0
        %1767 = vmatpush2.bf16.msra.mxu0 0
        %1768 = vmatprep.subr.bf16.mxu0 0
        %1769 = vmatpush2.bf16.msra.mxu0 0
        %1770 = vmatprep.subr.bf16.mxu0 0
        %1771 = vmatpush2.bf16.msra.mxu0 0
        %1772 = vmatprep.mubr.bf16.mxu0 0
        %1773 = vmatmul.mubr.bf16.gmra.mxu0 %v1297
        %v1774 = vpop.f32.mrf.mxu0
        %v1775 = vadd.f32 %v1726, %v1774
        %v1776 = vpop.f32.mrf.mxu0
        %v1777 = vpop.f32.mrf.mxu0
        %v1778 = vpop.f32.mrf.mxu0
        %1779 = vdwg.mxu0
        %v1780 = vpack.c.bf16 %v1645, %v1645
        %v1781 = vpack.c.bf16 %v1710, %v1710
        %v1783 = vsel %vm1467, %v1780, 0
        %v1786 = vsel %vm1467, %v1781, 0
        %1788 = vmatprep.subr.bf16.mxu0 0
        %1789 = vmatpush1.bf16.xpose.msra.mxu0 0
        %1790 = vmatprep.subr.bf16.mxu0 0
        %1791 = vmatpush1.bf16.xpose.msra.mxu0 0
        %1792 = vmatprep.subr.bf16.mxu0 0
        %1793 = vmatpush1.bf16.xpose.msra.mxu0 0
        %1794 = vmatprep.subr.bf16.mxu0 0
        %1795 = vmatpush1.bf16.xpose.msra.mxu0 0
        %1796 = vmatprep.subr.bf16.mxu0 0
        %1797 = vmatpush1.bf16.xpose.msra.mxu0 0
        %1798 = vmatprep.subr.bf16.mxu0 0
        %1799 = vmatpush1.bf16.xpose.msra.mxu0 0
        %1800 = vmatprep.subr.bf16.mxu0 0
        %1801 = vmatpush1.bf16.xpose.msra.mxu0 0
        %1802 = vmatprep.subr.bf16.mxu0 0
        %1803 = vmatpush1.bf16.xpose.msra.mxu0 %v1786
        %1804 = vmatprep.subr.bf16.mxu0 0
        %1805 = vmatpush2.bf16.xpose.msra.mxu0 0
        %1806 = vmatprep.subr.bf16.mxu0 0
        %1807 = vmatpush2.bf16.xpose.msra.mxu0 0
        %1808 = vmatprep.subr.bf16.mxu0 0
        %1809 = vmatpush2.bf16.xpose.msra.mxu0 0
        %1810 = vmatprep.subr.bf16.mxu0 0
        %1811 = vmatpush2.bf16.xpose.msra.mxu0 0
        %1812 = vmatprep.subr.bf16.mxu0 0
        %1813 = vmatpush2.bf16.xpose.msra.mxu0 0
        %1814 = vmatprep.subr.bf16.mxu0 0
        %1815 = vmatpush2.bf16.xpose.msra.mxu0 0
        %1816 = vmatprep.subr.bf16.mxu0 0
        %1817 = vmatpush2.bf16.xpose.msra.mxu0 0
        %1818 = vmatprep.subr.bf16.mxu0 0
        %1819 = vmatpush2.bf16.xpose.msra.mxu0 0
        %1820 = vmatprep.mubr.bf16.mxu0 0
        %1821 = vmatmul.mubr.bf16.gmra.mxu0 %v1783
        %v1822 = vpop.f32.mrf.mxu0
        %v1823 = vadd.f32 0.0, %v1822
        %v1824 = vpop.f32.mrf.mxu0
        %v1825 = vpop.f32.mrf.mxu0
        %v1826 = vpop.f32.mrf.mxu0
        %1827 = vdwg.mxu0
        %v1828 = vmul.f32 %v1823, 0.35355338
        %v1829 = vadd.f32 %v1828, %v1519
        %v1830 = vadd.f32 %v1829, %v1271
        %v1831 = vsel %vm1467, %v1830, -inf
        %1832 = vmax.xlane.f32.xlu0 %v1831
        %v1833 = vpop.xlane.xlu0 %1832
        %v1834 = vsub.f32 %v1830, %v1833
        %v1835 = vmul.f32 %v1834, 1.442695
        %v1836 = vpow.pop %v1835
        %v1837 = vsel %vm1467, %v1836, 0.0
        %1838 = vadd.xlane.f32.xlu0 %v1837
        %v1839 = vpop.xlane.xlu0 %1838
        %v1840 = vrcp.pop %v1839
        %v1841 = vmul.f32 %v1836, %v1840
        %v1842 = vpack.c.bf16 %v1841, %v1841
        %v1843 = vpack.c.bf16 %v1775, %v1775
        %v1845 = vsel %vm1467, %v1842, 0
        %v1848 = vsel %vm1539, %v1843, 0
        %1850 = vmatprep.subr.bf16.mxu0 0
        %1851 = vmatpush1.bf16.msra.mxu0 0
        %1852 = vmatprep.subr.bf16.mxu0 0
        %1853 = vmatpush1.bf16.msra.mxu0 0
        %1854 = vmatprep.subr.bf16.mxu0 0
        %1855 = vmatpush1.bf16.msra.mxu0 0
        %1856 = vmatprep.subr.bf16.mxu0 0
        %1857 = vmatpush1.bf16.msra.mxu0 0
        %1858 = vmatprep.subr.bf16.mxu0 0
        %1859 = vmatpush1.bf16.msra.mxu0 0
        %1860 = vmatprep.subr.bf16.mxu0 0
        %1861 = vmatpush1.bf16.msra.mxu0 0
        %1862 = vmatprep.subr.bf16.mxu0 0
        %1863 = vmatpush1.bf16.msra.mxu0 0
        %1864 = vmatprep.subr.bf16.mxu0 0
        %1865 = vmatpush1.bf16.msra.mxu0 %v1848
        %1866 = vmatprep.subr.bf16.mxu0 0
        %1867 = vmatpush2.bf16.msra.mxu0 0
        %1868 = vmatprep.subr.bf16.mxu0 0
        %1869 = vmatpush2.bf16.msra.mxu0 0
        %1870 = vmatprep.subr.bf16.mxu0 0
        %1871 = vmatpush2.bf16.msra.mxu0 0
        %1872 = vmatprep.subr.bf16.mxu0 0
        %1873 = vmatpush2.bf16.msra.mxu0 0
        %1874 = vmatprep.subr.bf16.mxu0 0
        %1875 = vmatpush2.bf16.msra.mxu0 0
        %1876 = vmatprep.subr.bf16.mxu0 0
        %1877 = vmatpush2.bf16.msra.mxu0 0
        %1878 = vmatprep.subr.bf16.mxu0 0
        %1879 = vmatpush2.bf16.msra.mxu0 0
        %1880 = vmatprep.subr.bf16.mxu0 0
        %1881 = vmatpush2.bf16.msra.mxu0 0
        %1882 = vmatprep.mubr.bf16.mxu0 0
        %1883 = vmatmul.mubr.bf16.gmra.mxu0 %v1845
        %v1884 = vpop.f32.mrf.mxu0
        %v1885 = vadd.f32 0.0, %v1884
        %v1886 = vpop.f32.mrf.mxu0
        %v1887 = vpop.f32.mrf.mxu0
        %v1888 = vpop.f32.mrf.mxu0
        %1889 = vdwg.mxu0
        %s1890 = scalar_lea.vmem %s27, 4
        %v1891 = vld [vmem:[%s1890] sm:$0xf]
        %v1892 = vpack.c.bf16 %v1885, %v1885
        %v1894 = vsel %vm1467, %v1892, 0
        %v1897 = vsel %vm1539, %v1891, 0
        %1899 = vmatprep.subr.bf16.mxu0 0
        %1900 = vmatpush1.bf16.msra.mxu0 0
        %1901 = vmatprep.subr.bf16.mxu0 0
        %1902 = vmatpush1.bf16.msra.mxu0 0
        %1903 = vmatprep.subr.bf16.mxu0 0
        %1904 = vmatpush1.bf16.msra.mxu0 0
        %1905 = vmatprep.subr.bf16.mxu0 0
        %1906 = vmatpush1.bf16.msra.mxu0 0
        %1907 = vmatprep.subr.bf16.mxu0 0
        %1908 = vmatpush1.bf16.msra.mxu0 0
        %1909 = vmatprep.subr.bf16.mxu0 0
        %1910 = vmatpush1.bf16.msra.mxu0 0
        %1911 = vmatprep.subr.bf16.mxu0 0
        %1912 = vmatpush1.bf16.msra.mxu0 0
        %1913 = vmatprep.subr.bf16.mxu0 0
        %1914 = vmatpush1.bf16.msra.mxu0 %v1897
        %1915 = vmatprep.subr.bf16.mxu0 0
        %1916 = vmatpush2.bf16.msra.mxu0 0
        %1917 = vmatprep.subr.bf16.mxu0 0
        %1918 = vmatpush2.bf16.msra.mxu0 0
        %1919 = vmatprep.subr.bf16.mxu0 0
        %1920 = vmatpush2.bf16.msra.mxu0 0
        %1921 = vmatprep.subr.bf16.mxu0 0
        %1922 = vmatpush2.bf16.msra.mxu0 0
        %1923 = vmatprep.subr.bf16.mxu0 0
        %1924 = vmatpush2.bf16.msra.mxu0 0
        %1925 = vmatprep.subr.bf16.mxu0 0
        %1926 = vmatpush2.bf16.msra.mxu0 0
        %1927 = vmatprep.subr.bf16.mxu0 0
        %1928 = vmatpush2.bf16.msra.mxu0 0
        %1929 = vmatprep.subr.bf16.mxu0 0
        %1930 = vmatpush2.bf16.msra.mxu0 0
        %1931 = vmatprep.mubr.bf16.mxu0 0
        %1932 = vmatmul.mubr.bf16.gmra.mxu0 %v1894
        %v1933 = vpop.f32.mrf.mxu0
        %v1934 = vadd.f32 0.0, %v1933
        %v1935 = vpop.f32.mrf.mxu0
        %v1936 = vpop.f32.mrf.mxu0
        %v1937 = vpop.f32.mrf.mxu0
        %1938 = vdwg.mxu0
        %v1940 = vsel %vm1467, %v1584, 0
        %v1943 = vsel %vm1539, %v1583, 0
        %1945 = vmatprep.subr.bf16.mxu0 0
        %1946 = vmatpush1.bf16.msra.mxu0 0
        %1947 = vmatprep.subr.bf16.mxu0 0
        %1948 = vmatpush1.bf16.msra.mxu0 0
        %1949 = vmatprep.subr.bf16.mxu0 0
        %1950 = vmatpush1.bf16.msra.mxu0 0
        %1951 = vmatprep.subr.bf16.mxu0 0
        %1952 = vmatpush1.bf16.msra.mxu0 0
        %1953 = vmatprep.subr.bf16.mxu0 0
        %1954 = vmatpush1.bf16.msra.mxu0 0
        %1955 = vmatprep.subr.bf16.mxu0 0
        %1956 = vmatpush1.bf16.msra.mxu0 0
        %1957 = vmatprep.subr.bf16.mxu0 0
        %1958 = vmatpush1.bf16.msra.mxu0 0
        %1959 = vmatprep.subr.bf16.mxu0 0
        %1960 = vmatpush1.bf16.msra.mxu0 %v1943
        %1961 = vmatprep.subr.bf16.mxu0 0
        %1962 = vmatpush2.bf16.msra.mxu0 0
        %1963 = vmatprep.subr.bf16.mxu0 0
        %1964 = vmatpush2.bf16.msra.mxu0 0
        %1965 = vmatprep.subr.bf16.mxu0 0
        %1966 = vmatpush2.bf16.msra.mxu0 0
        %1967 = vmatprep.subr.bf16.mxu0 0
        %1968 = vmatpush2.bf16.msra.mxu0 0
        %1969 = vmatprep.subr.bf16.mxu0 0
        %1970 = vmatpush2.bf16.msra.mxu0 0
        %1971 = vmatprep.subr.bf16.mxu0 0
        %1972 = vmatpush2.bf16.msra.mxu0 0
        %1973 = vmatprep.subr.bf16.mxu0 0
        %1974 = vmatpush2.bf16.msra.mxu0 0
        %1975 = vmatprep.subr.bf16.mxu0 0
        %1976 = vmatpush2.bf16.msra.mxu0 0
        %1977 = vmatprep.mubr.bf16.mxu0 0
        %1978 = vmatmul.mubr.bf16.gmra.mxu0 %v1940
        %v1979 = vpop.f32.mrf.mxu0
        %v1980 = vadd.f32 %v1934, %v1979
        %v1981 = vpop.f32.mrf.mxu0
        %v1982 = vpop.f32.mrf.mxu0
        %v1983 = vpop.f32.mrf.mxu0
        %1984 = vdwg.mxu0
        %s1985 = scalar_lea.vmem %s15, 32
        %v1986 = vld [vmem:[%s1985] sm:$0xf]
        %v1987 = vld [vmem:[%s1985 + $0x4] sm:$0xf]
        %v1988 = vld [vmem:[%s1985 + $0x8] sm:$0xf]
        %v1989 = vld [vmem:[%s1985 + $0xc] sm:$0xf]
        %s1990 = scalar_lea.vmem %s17, 2
        %v1991 = vld [vmem:[%s1990] sm:$0x1]
        %v1993 = vlaneseq
        %v1994 = vshrl.u32 %v1993, 7
        %v1995 = vsub.s32 0, %v1994
        %v1996 = vrot.slane %v1991, %v1995
        %v2002 = vunpack.c.l.b16 %v1986
        %v2003 = vunpack.c.l.b16 %v1987
        %v2004 = vunpack.c.l.b16 %v1988
        %v2005 = vunpack.c.l.b16 %v1989
        %v2006 = vpack.c.b16 %v2003, %v2002
        %v2007 = vpack.c.b16 %v2005, %v2004
        %2010 = vmatprep.subr.bf16.mxu0 0
        %2011 = vmatpush1.bf16.msra.mxu0 0
        %2012 = vmatprep.subr.bf16.mxu0 0
        %2013 = vmatpush1.bf16.msra.mxu0 0
        %2014 = vmatprep.subr.bf16.mxu0 0
        %2015 = vmatpush1.bf16.msra.mxu0 0
        %2016 = vmatprep.subr.bf16.mxu0 0
        %2017 = vmatpush1.bf16.msra.mxu0 0
        %2018 = vmatprep.subr.bf16.mxu0 0
        %2019 = vmatpush1.bf16.msra.mxu0 0
        %2020 = vmatprep.subr.bf16.mxu0 0
        %2021 = vmatpush1.bf16.msra.mxu0 0
        %2022 = vmatprep.subr.bf16.mxu0 0
        %2023 = vmatpush1.bf16.msra.mxu0 %v2007
        %2024 = vmatprep.subr.bf16.mxu0 0
        %2025 = vmatpush1.bf16.msra.mxu0 %v2006
        %2026 = vmatprep.subr.bf16.mxu0 0
        %2027 = vmatpush2.bf16.msra.mxu0 0
        %2028 = vmatprep.subr.bf16.mxu0 0
        %2029 = vmatpush2.bf16.msra.mxu0 0
        %2030 = vmatprep.subr.bf16.mxu0 0
        %2031 = vmatpush2.bf16.msra.mxu0 0
        %2032 = vmatprep.subr.bf16.mxu0 0
        %2033 = vmatpush2.bf16.msra.mxu0 0
        %2034 = vmatprep.subr.bf16.mxu0 0
        %2035 = vmatpush2.bf16.msra.mxu0 0
        %2036 = vmatprep.subr.bf16.mxu0 0
        %2037 = vmatpush2.bf16.msra.mxu0 0
        %2038 = vmatprep.subr.bf16.mxu0 0
        %2039 = vmatpush2.bf16.msra.mxu0 0
        %2040 = vmatprep.subr.bf16.mxu0 0
        %2041 = vmatpush2.bf16.msra.mxu0 0
        %2042 = vmatprep.mubr.bf16.mxu0 0
        %2043 = vmatmul.mubr.bf16.gmra.mxu0 %v1297
        %v2044 = vpop.f32.mrf.mxu0
        %v2045 = vadd.f32 %v1996, %v2044
        %v2046 = vpop.f32.mrf.mxu0
        %v2047 = vpop.f32.mrf.mxu0
        %v2048 = vpop.f32.mrf.mxu0
        %2049 = vdwg.mxu0
        %s2050 = scalar_lea.vmem %s19, 32
        %v2051 = vld [vmem:[%s2050] sm:$0xf]
        %v2052 = vld [vmem:[%s2050 + $0x4] sm:$0xf]
        %v2053 = vld [vmem:[%s2050 + $0x8] sm:$0xf]
        %v2054 = vld [vmem:[%s2050 + $0xc] sm:$0xf]
        %s2055 = scalar_lea.vmem %s21, 2
        %v2056 = vld [vmem:[%s2055] sm:$0x1]
        %v2058 = vlaneseq
        %v2059 = vshrl.u32 %v2058, 7
        %v2060 = vsub.s32 0, %v2059
        %v2061 = vrot.slane %v2056, %v2060
        %v2067 = vunpack.c.l.b16 %v2051
        %v2068 = vunpack.c.l.b16 %v2052
        %v2069 = vunpack.c.l.b16 %v2053
        %v2070 = vunpack.c.l.b16 %v2054
        %v2071 = vpack.c.b16 %v2068, %v2067
        %v2072 = vpack.c.b16 %v2070, %v2069
        %2075 = vmatprep.subr.bf16.mxu0 0
        %2076 = vmatpush1.bf16.msra.mxu0 0
        %2077 = vmatprep.subr.bf16.mxu0 0
        %2078 = vmatpush1.bf16.msra.mxu0 0
        %2079 = vmatprep.subr.bf16.mxu0 0
        %2080 = vmatpush1.bf16.msra.mxu0 0
        %2081 = vmatprep.subr.bf16.mxu0 0
        %2082 = vmatpush1.bf16.msra.mxu0 0
        %2083 = vmatprep.subr.bf16.mxu0 0
        %2084 = vmatpush1.bf16.msra.mxu0 0
        %2085 = vmatprep.subr.bf16.mxu0 0
        %2086 = vmatpush1.bf16.msra.mxu0 0
        %2087 = vmatprep.subr.bf16.mxu0 0
        %2088 = vmatpush1.bf16.msra.mxu0 %v2072
        %2089 = vmatprep.subr.bf16.mxu0 0
        %2090 = vmatpush1.bf16.msra.mxu0 %v2071
        %2091 = vmatprep.subr.bf16.mxu0 0
        %2092 = vmatpush2.bf16.msra.mxu0 0
        %2093 = vmatprep.subr.bf16.mxu0 0
        %2094 = vmatpush2.bf16.msra.mxu0 0
        %2095 = vmatprep.subr.bf16.mxu0 0
        %2096 = vmatpush2.bf16.msra.mxu0 0
        %2097 = vmatprep.subr.bf16.mxu0 0
        %2098 = vmatpush2.bf16.msra.mxu0 0
        %2099 = vmatprep.subr.bf16.mxu0 0
        %2100 = vmatpush2.bf16.msra.mxu0 0
        %2101 = vmatprep.subr.bf16.mxu0 0
        %2102 = vmatpush2.bf16.msra.mxu0 0
        %2103 = vmatprep.subr.bf16.mxu0 0
        %2104 = vmatpush2.bf16.msra.mxu0 0
        %2105 = vmatprep.subr.bf16.mxu0 0
        %2106 = vmatpush2.bf16.msra.mxu0 0
        %2107 = vmatprep.mubr.bf16.mxu0 0
        %2108 = vmatmul.mubr.bf16.gmra.mxu0 %v1297
        %v2109 = vpop.f32.mrf.mxu0
        %v2110 = vadd.f32 %v2061, %v2109
        %v2111 = vpop.f32.mrf.mxu0
        %v2112 = vpop.f32.mrf.mxu0
        %v2113 = vpop.f32.mrf.mxu0
        %2114 = vdwg.mxu0
        %s2115 = scalar_lea.vmem %s23, 32
        %v2116 = vld [vmem:[%s2115] sm:$0xf]
        %v2117 = vld [vmem:[%s2115 + $0x4] sm:$0xf]
        %v2118 = vld [vmem:[%s2115 + $0x8] sm:$0xf]
        %v2119 = vld [vmem:[%s2115 + $0xc] sm:$0xf]
        %s2120 = scalar_lea.vmem %s25, 2
        %v2121 = vld [vmem:[%s2120] sm:$0x1]
        %v2123 = vlaneseq
        %v2124 = vshrl.u32 %v2123, 7
        %v2125 = vsub.s32 0, %v2124
        %v2126 = vrot.slane %v2121, %v2125
        %v2132 = vunpack.c.l.b16 %v2116
        %v2133 = vunpack.c.l.b16 %v2117
        %v2134 = vunpack.c.l.b16 %v2118
        %v2135 = vunpack.c.l.b16 %v2119
        %v2136 = vpack.c.b16 %v2133, %v2132
        %v2137 = vpack.c.b16 %v2135, %v2134
        %2140 = vmatprep.subr.bf16.mxu0 0
        %2141 = vmatpush1.bf16.msra.mxu0 0
        %2142 = vmatprep.subr.bf16.mxu0 0
        %2143 = vmatpush1.bf16.msra.mxu0 0
        %2144 = vmatprep.subr.bf16.mxu0 0
        %2145 = vmatpush1.bf16.msra.mxu0 0
        %2146 = vmatprep.subr.bf16.mxu0 0
        %2147 = vmatpush1.bf16.msra.mxu0 0
        %2148 = vmatprep.subr.bf16.mxu0 0
        %2149 = vmatpush1.bf16.msra.mxu0 0
        %2150 = vmatprep.subr.bf16.mxu0 0
        %2151 = vmatpush1.bf16.msra.mxu0 0
        %2152 = vmatprep.subr.bf16.mxu0 0
        %2153 = vmatpush1.bf16.msra.mxu0 %v2137
        %2154 = vmatprep.subr.bf16.mxu0 0
        %2155 = vmatpush1.bf16.msra.mxu0 %v2136
        %2156 = vmatprep.subr.bf16.mxu0 0
        %2157 = vmatpush2.bf16.msra.mxu0 0
        %2158 = vmatprep.subr.bf16.mxu0 0
        %2159 = vmatpush2.bf16.msra.mxu0 0
        %2160 = vmatprep.subr.bf16.mxu0 0
        %2161 = vmatpush2.bf16.msra.mxu0 0
        %2162 = vmatprep.subr.bf16.mxu0 0
        %2163 = vmatpush2.bf16.msra.mxu0 0
        %2164 = vmatprep.subr.bf16.mxu0 0
        %2165 = vmatpush2.bf16.msra.mxu0 0
        %2166 = vmatprep.subr.bf16.mxu0 0
        %2167 = vmatpush2.bf16.msra.mxu0 0
        %2168 = vmatprep.subr.bf16.mxu0 0
        %2169 = vmatpush2.bf16.msra.mxu0 0
        %2170 = vmatprep.subr.bf16.mxu0 0
        %2171 = vmatpush2.bf16.msra.mxu0 0
        %2172 = vmatprep.mubr.bf16.mxu0 0
        %2173 = vmatmul.mubr.bf16.gmra.mxu0 %v1297
        %v2174 = vpop.f32.mrf.mxu0
        %v2175 = vadd.f32 %v2126, %v2174
        %v2176 = vpop.f32.mrf.mxu0
        %v2177 = vpop.f32.mrf.mxu0
        %v2178 = vpop.f32.mrf.mxu0
        %2179 = vdwg.mxu0
        %v2180 = vpack.c.bf16 %v2045, %v2045
        %v2181 = vpack.c.bf16 %v2110, %v2110
        %v2183 = vsel %vm1467, %v2180, 0
        %v2186 = vsel %vm1467, %v2181, 0
        %2188 = vmatprep.subr.bf16.mxu0 0
        %2189 = vmatpush1.bf16.xpose.msra.mxu0 0
        %2190 = vmatprep.subr.bf16.mxu0 0
        %2191 = vmatpush1.bf16.xpose.msra.mxu0 0
        %2192 = vmatprep.subr.bf16.mxu0 0
        %2193 = vmatpush1.bf16.xpose.msra.mxu0 0
        %2194 = vmatprep.subr.bf16.mxu0 0
        %2195 = vmatpush1.bf16.xpose.msra.mxu0 0
        %2196 = vmatprep.subr.bf16.mxu0 0
        %2197 = vmatpush1.bf16.xpose.msra.mxu0 0
        %2198 = vmatprep.subr.bf16.mxu0 0
        %2199 = vmatpush1.bf16.xpose.msra.mxu0 0
        %2200 = vmatprep.subr.bf16.mxu0 0
        %2201 = vmatpush1.bf16.xpose.msra.mxu0 0
        %2202 = vmatprep.subr.bf16.mxu0 0
        %2203 = vmatpush1.bf16.xpose.msra.mxu0 %v2186
        %2204 = vmatprep.subr.bf16.mxu0 0
        %2205 = vmatpush2.bf16.xpose.msra.mxu0 0
        %2206 = vmatprep.subr.bf16.mxu0 0
        %2207 = vmatpush2.bf16.xpose.msra.mxu0 0
        %2208 = vmatprep.subr.bf16.mxu0 0
        %2209 = vmatpush2.bf16.xpose.msra.mxu0 0
        %2210 = vmatprep.subr.bf16.mxu0 0
        %2211 = vmatpush2.bf16.xpose.msra.mxu0 0
        %2212 = vmatprep.subr.bf16.mxu0 0
        %2213 = vmatpush2.bf16.xpose.msra.mxu0 0
        %2214 = vmatprep.subr.bf16.mxu0 0
        %2215 = vmatpush2.bf16.xpose.msra.mxu0 0
        %2216 = vmatprep.subr.bf16.mxu0 0
        %2217 = vmatpush2.bf16.xpose.msra.mxu0 0
        %2218 = vmatprep.subr.bf16.mxu0 0
        %2219 = vmatpush2.bf16.xpose.msra.mxu0 0
        %2220 = vmatprep.mubr.bf16.mxu0 0
        %2221 = vmatmul.mubr.bf16.gmra.mxu0 %v2183
        %v2222 = vpop.f32.mrf.mxu0
        %v2223 = vadd.f32 0.0, %v2222
        %v2224 = vpop.f32.mrf.mxu0
        %v2225 = vpop.f32.mrf.mxu0
        %v2226 = vpop.f32.mrf.mxu0
        %2227 = vdwg.mxu0
        %v2228 = vmul.f32 %v2223, 0.35355338
        %v2229 = vadd.f32 %v2228, %v1519
        %v2230 = vadd.f32 %v2229, %v1271
        %v2231 = vsel %vm1467, %v2230, -inf
        %2232 = vmax.xlane.f32.xlu0 %v2231
        %v2233 = vpop.xlane.xlu0 %2232
        %v2234 = vsub.f32 %v2230, %v2233
        %v2235 = vmul.f32 %v2234, 1.442695
        %v2236 = vpow.pop %v2235
        %v2237 = vsel %vm1467, %v2236, 0.0
        %2238 = vadd.xlane.f32.xlu0 %v2237
        %v2239 = vpop.xlane.xlu0 %2238
        %v2240 = vrcp.pop %v2239
        %v2241 = vmul.f32 %v2236, %v2240
        %v2242 = vpack.c.bf16 %v2241, %v2241
        %v2243 = vpack.c.bf16 %v2175, %v2175
        %v2245 = vsel %vm1467, %v2242, 0
        %v2248 = vsel %vm1539, %v2243, 0
        %2250 = vmatprep.subr.bf16.mxu0 0
        %2251 = vmatpush1.bf16.msra.mxu0 0
        %2252 = vmatprep.subr.bf16.mxu0 0
        %2253 = vmatpush1.bf16.msra.mxu0 0
        %2254 = vmatprep.subr.bf16.mxu0 0
        %2255 = vmatpush1.bf16.msra.mxu0 0
        %2256 = vmatprep.subr.bf16.mxu0 0
        %2257 = vmatpush1.bf16.msra.mxu0 0
        %2258 = vmatprep.subr.bf16.mxu0 0
        %2259 = vmatpush1.bf16.msra.mxu0 0
        %2260 = vmatprep.subr.bf16.mxu0 0
        %2261 = vmatpush1.bf16.msra.mxu0 0
        %2262 = vmatprep.subr.bf16.mxu0 0
        %2263 = vmatpush1.bf16.msra.mxu0 0
        %2264 = vmatprep.subr.bf16.mxu0 0
        %2265 = vmatpush1.bf16.msra.mxu0 %v2248
        %2266 = vmatprep.subr.bf16.mxu0 0
        %2267 = vmatpush2.bf16.msra.mxu0 0
        %2268 = vmatprep.subr.bf16.mxu0 0
        %2269 = vmatpush2.bf16.msra.mxu0 0
        %2270 = vmatprep.subr.bf16.mxu0 0
        %2271 = vmatpush2.bf16.msra.mxu0 0
        %2272 = vmatprep.subr.bf16.mxu0 0
        %2273 = vmatpush2.bf16.msra.mxu0 0
        %2274 = vmatprep.subr.bf16.mxu0 0
        %2275 = vmatpush2.bf16.msra.mxu0 0
        %2276 = vmatprep.subr.bf16.mxu0 0
        %2277 = vmatpush2.bf16.msra.mxu0 0
        %2278 = vmatprep.subr.bf16.mxu0 0
        %2279 = vmatpush2.bf16.msra.mxu0 0
        %2280 = vmatprep.subr.bf16.mxu0 0
        %2281 = vmatpush2.bf16.msra.mxu0 0
        %2282 = vmatprep.mubr.bf16.mxu0 0
        %2283 = vmatmul.mubr.bf16.gmra.mxu0 %v2245
        %v2284 = vpop.f32.mrf.mxu0
        %v2285 = vadd.f32 0.0, %v2284
        %v2286 = vpop.f32.mrf.mxu0
        %v2287 = vpop.f32.mrf.mxu0
        %v2288 = vpop.f32.mrf.mxu0
        %2289 = vdwg.mxu0
        %s2290 = scalar_lea.vmem %s27, 8
        %v2291 = vld [vmem:[%s2290] sm:$0xf]
        %v2292 = vpack.c.bf16 %v2285, %v2285
        %v2294 = vsel %vm1467, %v2292, 0
        %v2297 = vsel %vm1539, %v2291, 0
        %2299 = vmatprep.subr.bf16.mxu0 0
        %2300 = vmatpush1.bf16.msra.mxu0 0
        %2301 = vmatprep.subr.bf16.mxu0 0
        %2302 = vmatpush1.bf16.msra.mxu0 0
        %2303 = vmatprep.subr.bf16.mxu0 0
        %2304 = vmatpush1.bf16.msra.mxu0 0
        %2305 = vmatprep.subr.bf16.mxu0 0
        %2306 = vmatpush1.bf16.msra.mxu0 0
        %2307 = vmatprep.subr.bf16.mxu0 0
        %2308 = vmatpush1.bf16.msra.mxu0 0
        %2309 = vmatprep.subr.bf16.mxu0 0
        %2310 = vmatpush1.bf16.msra.mxu0 0
        %2311 = vmatprep.subr.bf16.mxu0 0
        %2312 = vmatpush1.bf16.msra.mxu0 0
        %2313 = vmatprep.subr.bf16.mxu0 0
        %2314 = vmatpush1.bf16.msra.mxu0 %v2297
        %2315 = vmatprep.subr.bf16.mxu0 0
        %2316 = vmatpush2.bf16.msra.mxu0 0
        %2317 = vmatprep.subr.bf16.mxu0 0
        %2318 = vmatpush2.bf16.msra.mxu0 0
        %2319 = vmatprep.subr.bf16.mxu0 0
        %2320 = vmatpush2.bf16.msra.mxu0 0
        %2321 = vmatprep.subr.bf16.mxu0 0
        %2322 = vmatpush2.bf16.msra.mxu0 0
        %2323 = vmatprep.subr.bf16.mxu0 0
        %2324 = vmatpush2.bf16.msra.mxu0 0
        %2325 = vmatprep.subr.bf16.mxu0 0
        %2326 = vmatpush2.bf16.msra.mxu0 0
        %2327 = vmatprep.subr.bf16.mxu0 0
        %2328 = vmatpush2.bf16.msra.mxu0 0
        %2329 = vmatprep.subr.bf16.mxu0 0
        %2330 = vmatpush2.bf16.msra.mxu0 0
        %2331 = vmatprep.mubr.bf16.mxu0 0
        %2332 = vmatmul.mubr.bf16.gmra.mxu0 %v2294
        %v2333 = vpop.f32.mrf.mxu0
        %v2334 = vadd.f32 0.0, %v2333
        %v2335 = vpop.f32.mrf.mxu0
        %v2336 = vpop.f32.mrf.mxu0
        %v2337 = vpop.f32.mrf.mxu0
        %2338 = vdwg.mxu0
        %v2339 = vadd.f32 %v1980, %v2334
        %s2340 = scalar_lea.vmem %s15, 48
        %v2341 = vld [vmem:[%s2340] sm:$0xf]
        %v2342 = vld [vmem:[%s2340 + $0x4] sm:$0xf]
        %v2343 = vld [vmem:[%s2340 + $0x8] sm:$0xf]
        %v2344 = vld [vmem:[%s2340 + $0xc] sm:$0xf]
        %s2345 = scalar_lea.vmem %s17, 3
        %v2346 = vld [vmem:[%s2345] sm:$0x1]
        %v2348 = vlaneseq
        %v2349 = vshrl.u32 %v2348, 7
        %v2350 = vsub.s32 0, %v2349
        %v2351 = vrot.slane %v2346, %v2350
        %v2357 = vunpack.c.l.b16 %v2341
        %v2358 = vunpack.c.l.b16 %v2342
        %v2359 = vunpack.c.l.b16 %v2343
        %v2360 = vunpack.c.l.b16 %v2344
        %v2361 = vpack.c.b16 %v2358, %v2357
        %v2362 = vpack.c.b16 %v2360, %v2359
        %2365 = vmatprep.subr.bf16.mxu0 0
        %2366 = vmatpush1.bf16.msra.mxu0 0
        %2367 = vmatprep.subr.bf16.mxu0 0
        %2368 = vmatpush1.bf16.msra.mxu0 0
        %2369 = vmatprep.subr.bf16.mxu0 0
        %2370 = vmatpush1.bf16.msra.mxu0 0
        %2371 = vmatprep.subr.bf16.mxu0 0
        %2372 = vmatpush1.bf16.msra.mxu0 0
        %2373 = vmatprep.subr.bf16.mxu0 0
        %2374 = vmatpush1.bf16.msra.mxu0 0
        %2375 = vmatprep.subr.bf16.mxu0 0
        %2376 = vmatpush1.bf16.msra.mxu0 0
        %2377 = vmatprep.subr.bf16.mxu0 0
        %2378 = vmatpush1.bf16.msra.mxu0 %v2362
        %2379 = vmatprep.subr.bf16.mxu0 0
        %2380 = vmatpush1.bf16.msra.mxu0 %v2361
        %2381 = vmatprep.subr.bf16.mxu0 0
        %2382 = vmatpush2.bf16.msra.mxu0 0
        %2383 = vmatprep.subr.bf16.mxu0 0
        %2384 = vmatpush2.bf16.msra.mxu0 0
        %2385 = vmatprep.subr.bf16.mxu0 0
        %2386 = vmatpush2.bf16.msra.mxu0 0
        %2387 = vmatprep.subr.bf16.mxu0 0
        %2388 = vmatpush2.bf16.msra.mxu0 0
        %2389 = vmatprep.subr.bf16.mxu0 0
        %2390 = vmatpush2.bf16.msra.mxu0 0
        %2391 = vmatprep.subr.bf16.mxu0 0
        %2392 = vmatpush2.bf16.msra.mxu0 0
        %2393 = vmatprep.subr.bf16.mxu0 0
        %2394 = vmatpush2.bf16.msra.mxu0 0
        %2395 = vmatprep.subr.bf16.mxu0 0
        %2396 = vmatpush2.bf16.msra.mxu0 0
        %2397 = vmatprep.mubr.bf16.mxu0 0
        %2398 = vmatmul.mubr.bf16.gmra.mxu0 %v1297
        %v2399 = vpop.f32.mrf.mxu0
        %v2400 = vadd.f32 %v2351, %v2399
        %v2401 = vpop.f32.mrf.mxu0
        %v2402 = vpop.f32.mrf.mxu0
        %v2403 = vpop.f32.mrf.mxu0
        %2404 = vdwg.mxu0
        %s2405 = scalar_lea.vmem %s19, 48
        %v2406 = vld [vmem:[%s2405] sm:$0xf]
        %v2407 = vld [vmem:[%s2405 + $0x4] sm:$0xf]
        %v2408 = vld [vmem:[%s2405 + $0x8] sm:$0xf]
        %v2409 = vld [vmem:[%s2405 + $0xc] sm:$0xf]
        %s2410 = scalar_lea.vmem %s21, 3
        %v2411 = vld [vmem:[%s2410] sm:$0x1]
        %v2413 = vlaneseq
        %v2414 = vshrl.u32 %v2413, 7
        %v2415 = vsub.s32 0, %v2414
        %v2416 = vrot.slane %v2411, %v2415
        %v2422 = vunpack.c.l.b16 %v2406
        %v2423 = vunpack.c.l.b16 %v2407
        %v2424 = vunpack.c.l.b16 %v2408
        %v2425 = vunpack.c.l.b16 %v2409
        %v2426 = vpack.c.b16 %v2423, %v2422
        %v2427 = vpack.c.b16 %v2425, %v2424
        %2430 = vmatprep.subr.bf16.mxu0 0
        %2431 = vmatpush1.bf16.msra.mxu0 0
        %2432 = vmatprep.subr.bf16.mxu0 0
        %2433 = vmatpush1.bf16.msra.mxu0 0
        %2434 = vmatprep.subr.bf16.mxu0 0
        %2435 = vmatpush1.bf16.msra.mxu0 0
        %2436 = vmatprep.subr.bf16.mxu0 0
        %2437 = vmatpush1.bf16.msra.mxu0 0
        %2438 = vmatprep.subr.bf16.mxu0 0
        %2439 = vmatpush1.bf16.msra.mxu0 0
        %2440 = vmatprep.subr.bf16.mxu0 0
        %2441 = vmatpush1.bf16.msra.mxu0 0
        %2442 = vmatprep.subr.bf16.mxu0 0
        %2443 = vmatpush1.bf16.msra.mxu0 %v2427
        %2444 = vmatprep.subr.bf16.mxu0 0
        %2445 = vmatpush1.bf16.msra.mxu0 %v2426
        %2446 = vmatprep.subr.bf16.mxu0 0
        %2447 = vmatpush2.bf16.msra.mxu0 0
        %2448 = vmatprep.subr.bf16.mxu0 0
        %2449 = vmatpush2.bf16.msra.mxu0 0
        %2450 = vmatprep.subr.bf16.mxu0 0
        %2451 = vmatpush2.bf16.msra.mxu0 0
        %2452 = vmatprep.subr.bf16.mxu0 0
        %2453 = vmatpush2.bf16.msra.mxu0 0
        %2454 = vmatprep.subr.bf16.mxu0 0
        %2455 = vmatpush2.bf16.msra.mxu0 0
        %2456 = vmatprep.subr.bf16.mxu0 0
        %2457 = vmatpush2.bf16.msra.mxu0 0
        %2458 = vmatprep.subr.bf16.mxu0 0
        %2459 = vmatpush2.bf16.msra.mxu0 0
        %2460 = vmatprep.subr.bf16.mxu0 0
        %2461 = vmatpush2.bf16.msra.mxu0 0
        %2462 = vmatprep.mubr.bf16.mxu0 0
        %2463 = vmatmul.mubr.bf16.gmra.mxu0 %v1297
        %v2464 = vpop.f32.mrf.mxu0
        %v2465 = vadd.f32 %v2416, %v2464
        %v2466 = vpop.f32.mrf.mxu0
        %v2467 = vpop.f32.mrf.mxu0
        %v2468 = vpop.f32.mrf.mxu0
        %2469 = vdwg.mxu0
        %s2470 = scalar_lea.vmem %s23, 48
        %v2471 = vld [vmem:[%s2470] sm:$0xf]
        %v2472 = vld [vmem:[%s2470 + $0x4] sm:$0xf]
        %v2473 = vld [vmem:[%s2470 + $0x8] sm:$0xf]
        %v2474 = vld [vmem:[%s2470 + $0xc] sm:$0xf]
        %s2475 = scalar_lea.vmem %s25, 3
        %v2476 = vld [vmem:[%s2475] sm:$0x1]
        %v2478 = vlaneseq
        %v2479 = vshrl.u32 %v2478, 7
        %v2480 = vsub.s32 0, %v2479
        %v2481 = vrot.slane %v2476, %v2480
        %v2487 = vunpack.c.l.b16 %v2471
        %v2488 = vunpack.c.l.b16 %v2472
        %v2489 = vunpack.c.l.b16 %v2473
        %v2490 = vunpack.c.l.b16 %v2474
        %v2491 = vpack.c.b16 %v2488, %v2487
        %v2492 = vpack.c.b16 %v2490, %v2489
        %2495 = vmatprep.subr.bf16.mxu0 0
        %2496 = vmatpush1.bf16.msra.mxu0 0
        %2497 = vmatprep.subr.bf16.mxu0 0
        %2498 = vmatpush1.bf16.msra.mxu0 0
        %2499 = vmatprep.subr.bf16.mxu0 0
        %2500 = vmatpush1.bf16.msra.mxu0 0
        %2501 = vmatprep.subr.bf16.mxu0 0
        %2502 = vmatpush1.bf16.msra.mxu0 0
        %2503 = vmatprep.subr.bf16.mxu0 0
        %2504 = vmatpush1.bf16.msra.mxu0 0
        %2505 = vmatprep.subr.bf16.mxu0 0
        %2506 = vmatpush1.bf16.msra.mxu0 0
        %2507 = vmatprep.subr.bf16.mxu0 0
        %2508 = vmatpush1.bf16.msra.mxu0 %v2492
        %2509 = vmatprep.subr.bf16.mxu0 0
        %2510 = vmatpush1.bf16.msra.mxu0 %v2491
        %2511 = vmatprep.subr.bf16.mxu0 0
        %2512 = vmatpush2.bf16.msra.mxu0 0
        %2513 = vmatprep.subr.bf16.mxu0 0
        %2514 = vmatpush2.bf16.msra.mxu0 0
        %2515 = vmatprep.subr.bf16.mxu0 0
        %2516 = vmatpush2.bf16.msra.mxu0 0
        %2517 = vmatprep.subr.bf16.mxu0 0
        %2518 = vmatpush2.bf16.msra.mxu0 0
        %2519 = vmatprep.subr.bf16.mxu0 0
        %2520 = vmatpush2.bf16.msra.mxu0 0
        %2521 = vmatprep.subr.bf16.mxu0 0
        %2522 = vmatpush2.bf16.msra.mxu0 0
        %2523 = vmatprep.subr.bf16.mxu0 0
        %2524 = vmatpush2.bf16.msra.mxu0 0
        %2525 = vmatprep.subr.bf16.mxu0 0
        %2526 = vmatpush2.bf16.msra.mxu0 0
        %2527 = vmatprep.mubr.bf16.mxu0 0
        %2528 = vmatmul.mubr.bf16.gmra.mxu0 %v1297
        %v2529 = vpop.f32.mrf.mxu0
        %v2530 = vadd.f32 %v2481, %v2529
        %v2531 = vpop.f32.mrf.mxu0
        %v2532 = vpop.f32.mrf.mxu0
        %v2533 = vpop.f32.mrf.mxu0
        %2534 = vdwg.mxu0
        %v2535 = vpack.c.bf16 %v2400, %v2400
        %v2536 = vpack.c.bf16 %v2465, %v2465
        %v2538 = vsel %vm1467, %v2535, 0
        %v2541 = vsel %vm1467, %v2536, 0
        %2543 = vmatprep.subr.bf16.mxu0 0
        %2544 = vmatpush1.bf16.xpose.msra.mxu0 0
        %2545 = vmatprep.subr.bf16.mxu0 0
        %2546 = vmatpush1.bf16.xpose.msra.mxu0 0
        %2547 = vmatprep.subr.bf16.mxu0 0
        %2548 = vmatpush1.bf16.xpose.msra.mxu0 0
        %2549 = vmatprep.subr.bf16.mxu0 0
        %2550 = vmatpush1.bf16.xpose.msra.mxu0 0
        %2551 = vmatprep.subr.bf16.mxu0 0
        %2552 = vmatpush1.bf16.xpose.msra.mxu0 0
        %2553 = vmatprep.subr.bf16.mxu0 0
        %2554 = vmatpush1.bf16.xpose.msra.mxu0 0
        %2555 = vmatprep.subr.bf16.mxu0 0
        %2556 = vmatpush1.bf16.xpose.msra.mxu0 0
        %2557 = vmatprep.subr.bf16.mxu0 0
        %2558 = vmatpush1.bf16.xpose.msra.mxu0 %v2541
        %2559 = vmatprep.subr.bf16.mxu0 0
        %2560 = vmatpush2.bf16.xpose.msra.mxu0 0
        %2561 = vmatprep.subr.bf16.mxu0 0
        %2562 = vmatpush2.bf16.xpose.msra.mxu0 0
        %2563 = vmatprep.subr.bf16.mxu0 0
        %2564 = vmatpush2.bf16.xpose.msra.mxu0 0
        %2565 = vmatprep.subr.bf16.mxu0 0
        %2566 = vmatpush2.bf16.xpose.msra.mxu0 0
        %2567 = vmatprep.subr.bf16.mxu0 0
        %2568 = vmatpush2.bf16.xpose.msra.mxu0 0
        %2569 = vmatprep.subr.bf16.mxu0 0
        %2570 = vmatpush2.bf16.xpose.msra.mxu0 0
        %2571 = vmatprep.subr.bf16.mxu0 0
        %2572 = vmatpush2.bf16.xpose.msra.mxu0 0
        %2573 = vmatprep.subr.bf16.mxu0 0
        %2574 = vmatpush2.bf16.xpose.msra.mxu0 0
        %2575 = vmatprep.mubr.bf16.mxu0 0
        %2576 = vmatmul.mubr.bf16.gmra.mxu0 %v2538
        %v2577 = vpop.f32.mrf.mxu0
        %v2578 = vadd.f32 0.0, %v2577
        %v2579 = vpop.f32.mrf.mxu0
        %v2580 = vpop.f32.mrf.mxu0
        %v2581 = vpop.f32.mrf.mxu0
        %2582 = vdwg.mxu0
        %v2583 = vmul.f32 %v2578, 0.35355338
        %v2584 = vadd.f32 %v2583, %v1519
        %v2585 = vadd.f32 %v2584, %v1271
        %v2586 = vsel %vm1467, %v2585, -inf
        %2587 = vmax.xlane.f32.xlu0 %v2586
        %v2588 = vpop.xlane.xlu0 %2587
        %v2589 = vsub.f32 %v2585, %v2588
        %v2590 = vmul.f32 %v2589, 1.442695
        %v2591 = vpow.pop %v2590
        %v2592 = vsel %vm1467, %v2591, 0.0
        %2593 = vadd.xlane.f32.xlu0 %v2592
        %v2594 = vpop.xlane.xlu0 %2593
        %v2595 = vrcp.pop %v2594
        %v2596 = vmul.f32 %v2591, %v2595
        %v2597 = vpack.c.bf16 %v2596, %v2596
        %v2598 = vpack.c.bf16 %v2530, %v2530
        %v2600 = vsel %vm1467, %v2597, 0
        %v2603 = vsel %vm1539, %v2598, 0
        %2605 = vmatprep.subr.bf16.mxu0 0
        %2606 = vmatpush1.bf16.msra.mxu0 0
        %2607 = vmatprep.subr.bf16.mxu0 0
        %2608 = vmatpush1.bf16.msra.mxu0 0
        %2609 = vmatprep.subr.bf16.mxu0 0
        %2610 = vmatpush1.bf16.msra.mxu0 0
        %2611 = vmatprep.subr.bf16.mxu0 0
        %2612 = vmatpush1.bf16.msra.mxu0 0
        %2613 = vmatprep.subr.bf16.mxu0 0
        %2614 = vmatpush1.bf16.msra.mxu0 0
        %2615 = vmatprep.subr.bf16.mxu0 0
        %2616 = vmatpush1.bf16.msra.mxu0 0
        %2617 = vmatprep.subr.bf16.mxu0 0
        %2618 = vmatpush1.bf16.msra.mxu0 0
        %2619 = vmatprep.subr.bf16.mxu0 0
        %2620 = vmatpush1.bf16.msra.mxu0 %v2603
        %2621 = vmatprep.subr.bf16.mxu0 0
        %2622 = vmatpush2.bf16.msra.mxu0 0
        %2623 = vmatprep.subr.bf16.mxu0 0
        %2624 = vmatpush2.bf16.msra.mxu0 0
        %2625 = vmatprep.subr.bf16.mxu0 0
        %2626 = vmatpush2.bf16.msra.mxu0 0
        %2627 = vmatprep.subr.bf16.mxu0 0
        %2628 = vmatpush2.bf16.msra.mxu0 0
        %2629 = vmatprep.subr.bf16.mxu0 0
        %2630 = vmatpush2.bf16.msra.mxu0 0
        %2631 = vmatprep.subr.bf16.mxu0 0
        %2632 = vmatpush2.bf16.msra.mxu0 0
        %2633 = vmatprep.subr.bf16.mxu0 0
        %2634 = vmatpush2.bf16.msra.mxu0 0
        %2635 = vmatprep.subr.bf16.mxu0 0
        %2636 = vmatpush2.bf16.msra.mxu0 0
        %2637 = vmatprep.mubr.bf16.mxu0 0
        %2638 = vmatmul.mubr.bf16.gmra.mxu0 %v2600
        %v2639 = vpop.f32.mrf.mxu0
        %v2640 = vadd.f32 0.0, %v2639
        %v2641 = vpop.f32.mrf.mxu0
        %v2642 = vpop.f32.mrf.mxu0
        %v2643 = vpop.f32.mrf.mxu0
        %2644 = vdwg.mxu0
        %s2645 = scalar_lea.vmem %s27, 12
        %v2646 = vld [vmem:[%s2645] sm:$0xf]
        %v2647 = vpack.c.bf16 %v2640, %v2640
        %v2649 = vsel %vm1467, %v2647, 0
        %v2652 = vsel %vm1539, %v2646, 0
        %2654 = vmatprep.subr.bf16.mxu0 0
        %2655 = vmatpush1.bf16.msra.mxu0 0
        %2656 = vmatprep.subr.bf16.mxu0 0
        %2657 = vmatpush1.bf16.msra.mxu0 0
        %2658 = vmatprep.subr.bf16.mxu0 0
        %2659 = vmatpush1.bf16.msra.mxu0 0
        %2660 = vmatprep.subr.bf16.mxu0 0
        %2661 = vmatpush1.bf16.msra.mxu0 0
        %2662 = vmatprep.subr.bf16.mxu0 0
        %2663 = vmatpush1.bf16.msra.mxu0 0
        %2664 = vmatprep.subr.bf16.mxu0 0
        %2665 = vmatpush1.bf16.msra.mxu0 0
        %2666 = vmatprep.subr.bf16.mxu0 0
        %2667 = vmatpush1.bf16.msra.mxu0 0
        %2668 = vmatprep.subr.bf16.mxu0 0
        %2669 = vmatpush1.bf16.msra.mxu0 %v2652
        %2670 = vmatprep.subr.bf16.mxu0 0
        %2671 = vmatpush2.bf16.msra.mxu0 0
        %2672 = vmatprep.subr.bf16.mxu0 0
        %2673 = vmatpush2.bf16.msra.mxu0 0
        %2674 = vmatprep.subr.bf16.mxu0 0
        %2675 = vmatpush2.bf16.msra.mxu0 0
        %2676 = vmatprep.subr.bf16.mxu0 0
        %2677 = vmatpush2.bf16.msra.mxu0 0
        %2678 = vmatprep.subr.bf16.mxu0 0
        %2679 = vmatpush2.bf16.msra.mxu0 0
        %2680 = vmatprep.subr.bf16.mxu0 0
        %2681 = vmatpush2.bf16.msra.mxu0 0
        %2682 = vmatprep.subr.bf16.mxu0 0
        %2683 = vmatpush2.bf16.msra.mxu0 0
        %2684 = vmatprep.subr.bf16.mxu0 0
        %2685 = vmatpush2.bf16.msra.mxu0 0
        %2686 = vmatprep.mubr.bf16.mxu0 0
        %2687 = vmatmul.mubr.bf16.gmra.mxu0 %v2649
        %v2688 = vpop.f32.mrf.mxu0
        %v2689 = vadd.f32 0.0, %v2688
        %v2690 = vpop.f32.mrf.mxu0
        %v2691 = vpop.f32.mrf.mxu0
        %v2692 = vpop.f32.mrf.mxu0
        %2693 = vdwg.mxu0
        %v2694 = vadd.f32 %v2339, %v2689
        %v2695 = vld [vmem:[%s29] sm:$0x1]
        %v2697 = vlaneseq
        %v2698 = vshrl.u32 %v2697, 7
        %v2699 = vsub.s32 0, %v2698
        %v2700 = vrot.slane %v2695, %v2699
        %v2702 = vadd.f32 %v2694, %v2700
        %v2703 = vadd.f32 %v1264, %v2702
        %v2704 = vld [vmem:[%s31] sm:$0x1]
        %v2705 = vld [vmem:[%s33] sm:$0x1]
        %v2706 = vsel %vm1236, %v2703, 0.0
        %2707 = vadd.xlane.f32.xlu0 %v2706
        %v2708 = vpop.xlane.xlu0 %2707
        %v2709 = vmul.f32 %v2708, %v1240
        %v2710 = vsub.f32 %v2703, %v2709
        %v2711 = vmul.f32 %v2710, %v2710
        %v2712 = vsel %vm1236, %v2711, 0.0
        %2713 = vadd.xlane.f32.xlu0 %v2712
        %v2714 = vpop.xlane.xlu0 %2713
        %v2715 = vmul.f32 %v2714, %v1240
        %v2716 = vadd.f32 %v2715, 1e-05
        %v2717 = vrsqrt.pop %v2716
        %v2718 = vmul.f32 %v2710, %v2717
        %v2720 = vlaneseq
        %v2721 = vshrl.u32 %v2720, 7
        %v2722 = vsub.s32 0, %v2721
        %v2723 = vrot.slane %v2704, %v2722
        %v2725 = vmul.f32 %v2718, %v2723
        %v2727 = vlaneseq
        %v2728 = vshrl.u32 %v2727, 7
        %v2729 = vsub.s32 0, %v2728
        %v2730 = vrot.slane %v2705, %v2729
        %v2732 = vadd.f32 %v2725, %v2730
        %v2733 = vld [vmem:[%s1213] sm:$0xff]
        %v2734 = vld [vmem:[%s1213 + $0x8] sm:$0xff]
        %v2735 = vld [vmem:[%s1216] sm:$0x1]
        %v2736 = vld [vmem:[%s35] sm:$0xf]
        %v2737 = vld [vmem:[%s35 + $0x4] sm:$0xf]
        %v2738 = vld [vmem:[%s35 + $0x8] sm:$0xf]
        %v2739 = vld [vmem:[%s35 + $0xc] sm:$0xf]
        %v2740 = vpack.c.bf16 %v2732, %v2732
        %v2741 = vld [vmem:[%s37] sm:$0x1]
        %v2743 = vlaneseq
        %v2744 = vshrl.u32 %v2743, 7
        %v2745 = vsub.s32 0, %v2744
        %v2746 = vrot.slane %v2741, %v2745
        %v2752 = vunpack.c.l.b16 %v2736
        %v2753 = vunpack.c.l.b16 %v2737
        %v2754 = vunpack.c.l.b16 %v2738
        %v2755 = vunpack.c.l.b16 %v2739
        %v2756 = vpack.c.b16 %v2753, %v2752
        %v2757 = vpack.c.b16 %v2755, %v2754
        %v2761 = vsel %vm1236, %v2740, 0
        %2763 = vmatprep.subr.bf16.mxu0 0
        %2764 = vmatpush1.bf16.msra.mxu0 0
        %2765 = vmatprep.subr.bf16.mxu0 0
        %2766 = vmatpush1.bf16.msra.mxu0 0
        %2767 = vmatprep.subr.bf16.mxu0 0
        %2768 = vmatpush1.bf16.msra.mxu0 0
        %2769 = vmatprep.subr.bf16.mxu0 0
        %2770 = vmatpush1.bf16.msra.mxu0 0
        %2771 = vmatprep.subr.bf16.mxu0 0
        %2772 = vmatpush1.bf16.msra.mxu0 0
        %2773 = vmatprep.subr.bf16.mxu0 0
        %2774 = vmatpush1.bf16.msra.mxu0 0
        %2775 = vmatprep.subr.bf16.mxu0 0
        %2776 = vmatpush1.bf16.msra.mxu0 %v2757
        %2777 = vmatprep.subr.bf16.mxu0 0
        %2778 = vmatpush1.bf16.msra.mxu0 %v2756
        %2779 = vmatprep.subr.bf16.mxu0 0
        %2780 = vmatpush2.bf16.msra.mxu0 0
        %2781 = vmatprep.subr.bf16.mxu0 0
        %2782 = vmatpush2.bf16.msra.mxu0 0
        %2783 = vmatprep.subr.bf16.mxu0 0
        %2784 = vmatpush2.bf16.msra.mxu0 0
        %2785 = vmatprep.subr.bf16.mxu0 0
        %2786 = vmatpush2.bf16.msra.mxu0 0
        %2787 = vmatprep.subr.bf16.mxu0 0
        %2788 = vmatpush2.bf16.msra.mxu0 0
        %2789 = vmatprep.subr.bf16.mxu0 0
        %2790 = vmatpush2.bf16.msra.mxu0 0
        %2791 = vmatprep.subr.bf16.mxu0 0
        %2792 = vmatpush2.bf16.msra.mxu0 0
        %2793 = vmatprep.subr.bf16.mxu0 0
        %2794 = vmatpush2.bf16.msra.mxu0 0
        %2795 = vmatprep.mubr.bf16.mxu0 0
        %2796 = vmatmul.mubr.bf16.gmra.mxu0 %v2761
        %v2797 = vpop.f32.mrf.mxu0
        %v2798 = vadd.f32 %v2746, %v2797
        %v2799 = vpop.f32.mrf.mxu0
        %v2800 = vpop.f32.mrf.mxu0
        %v2801 = vpop.f32.mrf.mxu0
        %2802 = vdwg.mxu0
        %v2803 = vld [vmem:[%s39] sm:$0xf]
        %v2804 = vld [vmem:[%s39 + $0x4] sm:$0xf]
        %v2805 = vld [vmem:[%s39 + $0x8] sm:$0xf]
        %v2806 = vld [vmem:[%s39 + $0xc] sm:$0xf]
        %v2807 = vpack.c.bf16 %v2734, %v2733
        %v2808 = vld [vmem:[%s41] sm:$0x1]
        %v2810 = vlaneseq
        %v2811 = vshrl.u32 %v2810, 7
        %v2812 = vsub.s32 0, %v2811
        %v2813 = vrot.slane %v2808, %v2812
        %v2819 = vunpack.c.l.b16 %v2803
        %v2820 = vunpack.c.l.b16 %v2804
        %v2821 = vunpack.c.l.b16 %v2805
        %v2822 = vunpack.c.l.b16 %v2806
        %v2823 = vpack.c.b16 %v2820, %v2819
        %v2824 = vpack.c.b16 %v2822, %v2821
        %v2828 = vsel %vm1236, %v2807, 0
        %2830 = vmatprep.subr.bf16.mxu0 0
        %2831 = vmatpush1.bf16.msra.mxu0 0
        %2832 = vmatprep.subr.bf16.mxu0 0
        %2833 = vmatpush1.bf16.msra.mxu0 0
        %2834 = vmatprep.subr.bf16.mxu0 0
        %2835 = vmatpush1.bf16.msra.mxu0 0
        %2836 = vmatprep.subr.bf16.mxu0 0
        %2837 = vmatpush1.bf16.msra.mxu0 0
        %2838 = vmatprep.subr.bf16.mxu0 0
        %2839 = vmatpush1.bf16.msra.mxu0 0
        %2840 = vmatprep.subr.bf16.mxu0 0
        %2841 = vmatpush1.bf16.msra.mxu0 0
        %2842 = vmatprep.subr.bf16.mxu0 0
        %2843 = vmatpush1.bf16.msra.mxu0 %v2824
        %2844 = vmatprep.subr.bf16.mxu0 0
        %2845 = vmatpush1.bf16.msra.mxu0 %v2823
        %2846 = vmatprep.subr.bf16.mxu0 0
        %2847 = vmatpush2.bf16.msra.mxu0 0
        %2848 = vmatprep.subr.bf16.mxu0 0
        %2849 = vmatpush2.bf16.msra.mxu0 0
        %2850 = vmatprep.subr.bf16.mxu0 0
        %2851 = vmatpush2.bf16.msra.mxu0 0
        %2852 = vmatprep.subr.bf16.mxu0 0
        %2853 = vmatpush2.bf16.msra.mxu0 0
        %2854 = vmatprep.subr.bf16.mxu0 0
        %2855 = vmatpush2.bf16.msra.mxu0 0
        %2856 = vmatprep.subr.bf16.mxu0 0
        %2857 = vmatpush2.bf16.msra.mxu0 0
        %2858 = vmatprep.subr.bf16.mxu0 0
        %2859 = vmatpush2.bf16.msra.mxu0 0
        %2860 = vmatprep.subr.bf16.mxu0 0
        %2861 = vmatpush2.bf16.msra.mxu0 0
        %2862 = vmatprep.mubr.bf16.mxu0 0
        %2863 = vmatmul.mubr.bf16.gmra.mxu0 %v2828
        %v2864 = vpop.f32.mrf.mxu0
        %v2865 = vadd.f32 %v2813, %v2864
        %v2866 = vpop.f32.mrf.mxu0
        %v2867 = vpop.f32.mrf.mxu0
        %v2868 = vadd.f32 %v2813, %v2867
        %v2869 = vpop.f32.mrf.mxu0
        %2870 = vdwg.mxu0
        %v2871 = vld [vmem:[%s43] sm:$0xf]
        %v2872 = vld [vmem:[%s43 + $0x4] sm:$0xf]
        %v2873 = vld [vmem:[%s43 + $0x8] sm:$0xf]
        %v2874 = vld [vmem:[%s43 + $0xc] sm:$0xf]
        %v2875 = vld [vmem:[%s45] sm:$0x1]
        %v2877 = vlaneseq
        %v2878 = vshrl.u32 %v2877, 7
        %v2879 = vsub.s32 0, %v2878
        %v2880 = vrot.slane %v2875, %v2879
        %v2886 = vunpack.c.l.b16 %v2871
        %v2887 = vunpack.c.l.b16 %v2872
        %v2888 = vunpack.c.l.b16 %v2873
        %v2889 = vunpack.c.l.b16 %v2874
        %v2890 = vpack.c.b16 %v2887, %v2886
        %v2891 = vpack.c.b16 %v2889, %v2888
        %2894 = vmatprep.subr.bf16.mxu0 0
        %2895 = vmatpush1.bf16.msra.mxu0 0
        %2896 = vmatprep.subr.bf16.mxu0 0
        %2897 = vmatpush1.bf16.msra.mxu0 0
        %2898 = vmatprep.subr.bf16.mxu0 0
        %2899 = vmatpush1.bf16.msra.mxu0 0
        %2900 = vmatprep.subr.bf16.mxu0 0
        %2901 = vmatpush1.bf16.msra.mxu0 0
        %2902 = vmatprep.subr.bf16.mxu0 0
        %2903 = vmatpush1.bf16.msra.mxu0 0
        %2904 = vmatprep.subr.bf16.mxu0 0
        %2905 = vmatpush1.bf16.msra.mxu0 0
        %2906 = vmatprep.subr.bf16.mxu0 0
        %2907 = vmatpush1.bf16.msra.mxu0 %v2891
        %2908 = vmatprep.subr.bf16.mxu0 0
        %2909 = vmatpush1.bf16.msra.mxu0 %v2890
        %2910 = vmatprep.subr.bf16.mxu0 0
        %2911 = vmatpush2.bf16.msra.mxu0 0
        %2912 = vmatprep.subr.bf16.mxu0 0
        %2913 = vmatpush2.bf16.msra.mxu0 0
        %2914 = vmatprep.subr.bf16.mxu0 0
        %2915 = vmatpush2.bf16.msra.mxu0 0
        %2916 = vmatprep.subr.bf16.mxu0 0
        %2917 = vmatpush2.bf16.msra.mxu0 0
        %2918 = vmatprep.subr.bf16.mxu0 0
        %2919 = vmatpush2.bf16.msra.mxu0 0
        %2920 = vmatprep.subr.bf16.mxu0 0
        %2921 = vmatpush2.bf16.msra.mxu0 0
        %2922 = vmatprep.subr.bf16.mxu0 0
        %2923 = vmatpush2.bf16.msra.mxu0 0
        %2924 = vmatprep.subr.bf16.mxu0 0
        %2925 = vmatpush2.bf16.msra.mxu0 0
        %2926 = vmatprep.mubr.bf16.mxu0 0
        %2927 = vmatmul.mubr.bf16.gmra.mxu0 %v2828
        %v2928 = vpop.f32.mrf.mxu0
        %v2929 = vadd.f32 %v2880, %v2928
        %v2930 = vpop.f32.mrf.mxu0
        %v2931 = vpop.f32.mrf.mxu0
        %v2932 = vadd.f32 %v2880, %v2931
        %v2933 = vpop.f32.mrf.mxu0
        %2934 = vdwg.mxu0
        %v2935 = vpack.c.bf16 %v2798, %v2798
        %v2936 = vpack.c.bf16 %v2868, %v2865
        %v2938 = vsel %vm1467, %v2935, 0
        %v2941 = vsel %vm1467, %v2936, 0
        %2943 = vmatprep.subr.bf16.mxu0 0
        %2944 = vmatpush1.bf16.xpose.msra.mxu0 0
        %2945 = vmatprep.subr.bf16.mxu0 0
        %2946 = vmatpush1.bf16.xpose.msra.mxu0 0
        %2947 = vmatprep.subr.bf16.mxu0 0
        %2948 = vmatpush1.bf16.xpose.msra.mxu0 0
        %2949 = vmatprep.subr.bf16.mxu0 0
        %2950 = vmatpush1.bf16.xpose.msra.mxu0 0
        %2951 = vmatprep.subr.bf16.mxu0 0
        %2952 = vmatpush1.bf16.xpose.msra.mxu0 0
        %2953 = vmatprep.subr.bf16.mxu0 0
        %2954 = vmatpush1.bf16.xpose.msra.mxu0 0
        %2955 = vmatprep.subr.bf16.mxu0 0
        %2956 = vmatpush1.bf16.xpose.msra.mxu0 0
        %2957 = vmatprep.subr.bf16.mxu0 0
        %2958 = vmatpush1.bf16.xpose.msra.mxu0 %v2941
        %2959 = vmatprep.subr.bf16.mxu0 0
        %2960 = vmatpush2.bf16.xpose.msra.mxu0 0
        %2961 = vmatprep.subr.bf16.mxu0 0
        %2962 = vmatpush2.bf16.xpose.msra.mxu0 0
        %2963 = vmatprep.subr.bf16.mxu0 0
        %2964 = vmatpush2.bf16.xpose.msra.mxu0 0
        %2965 = vmatprep.subr.bf16.mxu0 0
        %2966 = vmatpush2.bf16.xpose.msra.mxu0 0
        %2967 = vmatprep.subr.bf16.mxu0 0
        %2968 = vmatpush2.bf16.xpose.msra.mxu0 0
        %2969 = vmatprep.subr.bf16.mxu0 0
        %2970 = vmatpush2.bf16.xpose.msra.mxu0 0
        %2971 = vmatprep.subr.bf16.mxu0 0
        %2972 = vmatpush2.bf16.xpose.msra.mxu0 0
        %2973 = vmatprep.subr.bf16.mxu0 0
        %2974 = vmatpush2.bf16.xpose.msra.mxu0 0
        %2975 = vmatprep.mubr.bf16.mxu0 0
        %2976 = vmatmul.mubr.bf16.gmra.mxu0 %v2938
        %v2977 = vpop.f32.mrf.mxu0
        %v2978 = vadd.f32 0.0, %v2977
        %v2979 = vpop.f32.mrf.mxu0
        %v2980 = vpop.f32.mrf.mxu0
        %v2981 = vpop.f32.mrf.mxu0
        %2982 = vdwg.mxu0
        %v2983 = vmul.f32 %v2978, 0.35355338
        %v2985 = vlaneseq
        %v2986 = vshrl.u32 %v2985, 7
        %v2987 = vsub.s32 0, %v2986
        %v2988 = vrot.slane %v2735, %v2987
        %v2990 = vadd.f32 %v2983, %v2988
        %v2991 = vadd.f32 %v2990, 0.0
        %vm2992 = vcmask 130048
        %v2993 = vsel %vm2992, %v2991, -inf
        %2994 = vmax.xlane.f32.xlu0 %v2993
        %v2995 = vpop.xlane.xlu0 %2994
        %v2996 = vsub.f32 %v2991, %v2995
        %v2997 = vmul.f32 %v2996, 1.442695
        %v2998 = vpow.pop %v2997
        %v2999 = vsel %vm2992, %v2998, 0.0
        %3000 = vadd.xlane.f32.xlu0 %v2999
        %v3001 = vpop.xlane.xlu0 %3000
        %v3002 = vrcp.pop %v3001
        %v3003 = vmul.f32 %v2998, %v3002
        %v3004 = vpack.c.bf16 %v3003, %v3003
        %v3005 = vpack.c.bf16 %v2932, %v2929
        %v3007 = vsel %vm2992, %v3004, 0
        %3009 = vmatprep.subr.bf16.mxu0 0
        %3010 = vmatpush1.bf16.msra.mxu0 0
        %3011 = vmatprep.subr.bf16.mxu0 0
        %3012 = vmatpush1.bf16.msra.mxu0 0
        %3013 = vmatprep.subr.bf16.mxu0 0
        %3014 = vmatpush1.bf16.msra.mxu0 0
        %3015 = vmatprep.subr.bf16.mxu0 0
        %3016 = vmatpush1.bf16.msra.mxu0 0
        %3017 = vmatprep.subr.bf16.mxu0 0
        %3018 = vmatpush1.bf16.msra.mxu0 0
        %3019 = vmatprep.subr.bf16.mxu0 0
        %3020 = vmatpush1.bf16.msra.mxu0 0
        %3021 = vmatprep.subr.bf16.mxu0 0
        %3022 = vmatpush1.bf16.msra.mxu0 0
        %3023 = vmatprep.subr.bf16.mxu0 0
        %3024 = vmatpush1.bf16.msra.mxu0 %v3005
        %3025 = vmatprep.subr.bf16.mxu0 0
        %3026 = vmatpush2.bf16.msra.mxu0 0
        %3027 = vmatprep.subr.bf16.mxu0 0
        %3028 = vmatpush2.bf16.msra.mxu0 0
        %3029 = vmatprep.subr.bf16.mxu0 0
        %3030 = vmatpush2.bf16.msra.mxu0 0
        %3031 = vmatprep.subr.bf16.mxu0 0
        %3032 = vmatpush2.bf16.msra.mxu0 0
        %3033 = vmatprep.subr.bf16.mxu0 0
        %3034 = vmatpush2.bf16.msra.mxu0 0
        %3035 = vmatprep.subr.bf16.mxu0 0
        %3036 = vmatpush2.bf16.msra.mxu0 0
        %3037 = vmatprep.subr.bf16.mxu0 0
        %3038 = vmatpush2.bf16.msra.mxu0 0
        %3039 = vmatprep.subr.bf16.mxu0 0
        %3040 = vmatpush2.bf16.msra.mxu0 0
        %3041 = vmatprep.mubr.bf16.mxu0 0
        %3042 = vmatmul.mubr.bf16.gmra.mxu0 %v3007
        %v3043 = vpop.f32.mrf.mxu0
        %v3044 = vadd.f32 0.0, %v3043
        %v3045 = vpop.f32.mrf.mxu0
        %v3046 = vpop.f32.mrf.mxu0
        %v3047 = vpop.f32.mrf.mxu0
        %3048 = vdwg.mxu0
        %v3049 = vld [vmem:[%s47] sm:$0xf]
        %v3050 = vpack.c.bf16 %v3044, %v3044
        %s3051 = scalar_lea.vmem %s35, 16
        %v3052 = vld [vmem:[%s3051] sm:$0xf]
        %v3053 = vld [vmem:[%s3051 + $0x4] sm:$0xf]
        %v3054 = vld [vmem:[%s3051 + $0x8] sm:$0xf]
        %v3055 = vld [vmem:[%s3051 + $0xc] sm:$0xf]
        %s3056 = scalar_lea.vmem %s37, 1
        %v3057 = vld [vmem:[%s3056] sm:$0x1]
        %v3059 = vlaneseq
        %v3060 = vshrl.u32 %v3059, 7
        %v3061 = vsub.s32 0, %v3060
        %v3062 = vrot.slane %v3057, %v3061
        %v3068 = vunpack.c.l.b16 %v3052
        %v3069 = vunpack.c.l.b16 %v3053
        %v3070 = vunpack.c.l.b16 %v3054
        %v3071 = vunpack.c.l.b16 %v3055
        %v3072 = vpack.c.b16 %v3069, %v3068
        %v3073 = vpack.c.b16 %v3071, %v3070
        %3076 = vmatprep.subr.bf16.mxu0 0
        %3077 = vmatpush1.bf16.msra.mxu0 0
        %3078 = vmatprep.subr.bf16.mxu0 0
        %3079 = vmatpush1.bf16.msra.mxu0 0
        %3080 = vmatprep.subr.bf16.mxu0 0
        %3081 = vmatpush1.bf16.msra.mxu0 0
        %3082 = vmatprep.subr.bf16.mxu0 0
        %3083 = vmatpush1.bf16.msra.mxu0 0
        %3084 = vmatprep.subr.bf16.mxu0 0
        %3085 = vmatpush1.bf16.msra.mxu0 0
        %3086 = vmatprep.subr.bf16.mxu0 0
        %3087 = vmatpush1.bf16.msra.mxu0 0
        %3088 = vmatprep.subr.bf16.mxu0 0
        %3089 = vmatpush1.bf16.msra.mxu0 %v3073
        %3090 = vmatprep.subr.bf16.mxu0 0
        %3091 = vmatpush1.bf16.msra.mxu0 %v3072
        %3092 = vmatprep.subr.bf16.mxu0 0
        %3093 = vmatpush2.bf16.msra.mxu0 0
        %3094 = vmatprep.subr.bf16.mxu0 0
        %3095 = vmatpush2.bf16.msra.mxu0 0
        %3096 = vmatprep.subr.bf16.mxu0 0
        %3097 = vmatpush2.bf16.msra.mxu0 0
        %3098 = vmatprep.subr.bf16.mxu0 0
        %3099 = vmatpush2.bf16.msra.mxu0 0
        %3100 = vmatprep.subr.bf16.mxu0 0
        %3101 = vmatpush2.bf16.msra.mxu0 0
        %3102 = vmatprep.subr.bf16.mxu0 0
        %3103 = vmatpush2.bf16.msra.mxu0 0
        %3104 = vmatprep.subr.bf16.mxu0 0
        %3105 = vmatpush2.bf16.msra.mxu0 0
        %3106 = vmatprep.subr.bf16.mxu0 0
        %3107 = vmatpush2.bf16.msra.mxu0 0
        %3108 = vmatprep.mubr.bf16.mxu0 0
        %3109 = vmatmul.mubr.bf16.gmra.mxu0 %v2761
        %v3110 = vpop.f32.mrf.mxu0
        %v3111 = vadd.f32 %v3062, %v3110
        %v3112 = vpop.f32.mrf.mxu0
        %v3113 = vpop.f32.mrf.mxu0
        %v3114 = vpop.f32.mrf.mxu0
        %3115 = vdwg.mxu0
        %s3116 = scalar_lea.vmem %s39, 16
        %v3117 = vld [vmem:[%s3116] sm:$0xf]
        %v3118 = vld [vmem:[%s3116 + $0x4] sm:$0xf]
        %v3119 = vld [vmem:[%s3116 + $0x8] sm:$0xf]
        %v3120 = vld [vmem:[%s3116 + $0xc] sm:$0xf]
        %s3121 = scalar_lea.vmem %s41, 1
        %v3122 = vld [vmem:[%s3121] sm:$0x1]
        %v3124 = vlaneseq
        %v3125 = vshrl.u32 %v3124, 7
        %v3126 = vsub.s32 0, %v3125
        %v3127 = vrot.slane %v3122, %v3126
        %v3133 = vunpack.c.l.b16 %v3117
        %v3134 = vunpack.c.l.b16 %v3118
        %v3135 = vunpack.c.l.b16 %v3119
        %v3136 = vunpack.c.l.b16 %v3120
        %v3137 = vpack.c.b16 %v3134, %v3133
        %v3138 = vpack.c.b16 %v3136, %v3135
        %3141 = vmatprep.subr.bf16.mxu0 0
        %3142 = vmatpush1.bf16.msra.mxu0 0
        %3143 = vmatprep.subr.bf16.mxu0 0
        %3144 = vmatpush1.bf16.msra.mxu0 0
        %3145 = vmatprep.subr.bf16.mxu0 0
        %3146 = vmatpush1.bf16.msra.mxu0 0
        %3147 = vmatprep.subr.bf16.mxu0 0
        %3148 = vmatpush1.bf16.msra.mxu0 0
        %3149 = vmatprep.subr.bf16.mxu0 0
        %3150 = vmatpush1.bf16.msra.mxu0 0
        %3151 = vmatprep.subr.bf16.mxu0 0
        %3152 = vmatpush1.bf16.msra.mxu0 0
        %3153 = vmatprep.subr.bf16.mxu0 0
        %3154 = vmatpush1.bf16.msra.mxu0 %v3138
        %3155 = vmatprep.subr.bf16.mxu0 0
        %3156 = vmatpush1.bf16.msra.mxu0 %v3137
        %3157 = vmatprep.subr.bf16.mxu0 0
        %3158 = vmatpush2.bf16.msra.mxu0 0
        %3159 = vmatprep.subr.bf16.mxu0 0
        %3160 = vmatpush2.bf16.msra.mxu0 0
        %3161 = vmatprep.subr.bf16.mxu0 0
        %3162 = vmatpush2.bf16.msra.mxu0 0
        %3163 = vmatprep.subr.bf16.mxu0 0
        %3164 = vmatpush2.bf16.msra.mxu0 0
        %3165 = vmatprep.subr.bf16.mxu0 0
        %3166 = vmatpush2.bf16.msra.mxu0 0
        %3167 = vmatprep.subr.bf16.mxu0 0
        %3168 = vmatpush2.bf16.msra.mxu0 0
        %3169 = vmatprep.subr.bf16.mxu0 0
        %3170 = vmatpush2.bf16.msra.mxu0 0
        %3171 = vmatprep.subr.bf16.mxu0 0
        %3172 = vmatpush2.bf16.msra.mxu0 0
        %3173 = vmatprep.mubr.bf16.mxu0 0
        %3174 = vmatmul.mubr.bf16.gmra.mxu0 %v2828
        %v3175 = vpop.f32.mrf.mxu0
        %v3176 = vadd.f32 %v3127, %v3175
        %v3177 = vpop.f32.mrf.mxu0
        %v3178 = vpop.f32.mrf.mxu0
        %v3179 = vadd.f32 %v3127, %v3178
        %v3180 = vpop.f32.mrf.mxu0
        %3181 = vdwg.mxu0
        %s3182 = scalar_lea.vmem %s43, 16
        %v3183 = vld [vmem:[%s3182] sm:$0xf]
        %v3184 = vld [vmem:[%s3182 + $0x4] sm:$0xf]
        %v3185 = vld [vmem:[%s3182 + $0x8] sm:$0xf]
        %v3186 = vld [vmem:[%s3182 + $0xc] sm:$0xf]
        %s3187 = scalar_lea.vmem %s45, 1
        %v3188 = vld [vmem:[%s3187] sm:$0x1]
        %v3190 = vlaneseq
        %v3191 = vshrl.u32 %v3190, 7
        %v3192 = vsub.s32 0, %v3191
        %v3193 = vrot.slane %v3188, %v3192
        %v3199 = vunpack.c.l.b16 %v3183
        %v3200 = vunpack.c.l.b16 %v3184
        %v3201 = vunpack.c.l.b16 %v3185
        %v3202 = vunpack.c.l.b16 %v3186
        %v3203 = vpack.c.b16 %v3200, %v3199
        %v3204 = vpack.c.b16 %v3202, %v3201
        %3207 = vmatprep.subr.bf16.mxu0 0
        %3208 = vmatpush1.bf16.msra.mxu0 0
        %3209 = vmatprep.subr.bf16.mxu0 0
        %3210 = vmatpush1.bf16.msra.mxu0 0
        %3211 = vmatprep.subr.bf16.mxu0 0
        %3212 = vmatpush1.bf16.msra.mxu0 0
        %3213 = vmatprep.subr.bf16.mxu0 0
        %3214 = vmatpush1.bf16.msra.mxu0 0
        %3215 = vmatprep.subr.bf16.mxu0 0
        %3216 = vmatpush1.bf16.msra.mxu0 0
        %3217 = vmatprep.subr.bf16.mxu0 0
        %3218 = vmatpush1.bf16.msra.mxu0 0
        %3219 = vmatprep.subr.bf16.mxu0 0
        %3220 = vmatpush1.bf16.msra.mxu0 %v3204
        %3221 = vmatprep.subr.bf16.mxu0 0
        %3222 = vmatpush1.bf16.msra.mxu0 %v3203
        %3223 = vmatprep.subr.bf16.mxu0 0
        %3224 = vmatpush2.bf16.msra.mxu0 0
        %3225 = vmatprep.subr.bf16.mxu0 0
        %3226 = vmatpush2.bf16.msra.mxu0 0
        %3227 = vmatprep.subr.bf16.mxu0 0
        %3228 = vmatpush2.bf16.msra.mxu0 0
        %3229 = vmatprep.subr.bf16.mxu0 0
        %3230 = vmatpush2.bf16.msra.mxu0 0
        %3231 = vmatprep.subr.bf16.mxu0 0
        %3232 = vmatpush2.bf16.msra.mxu0 0
        %3233 = vmatprep.subr.bf16.mxu0 0
        %3234 = vmatpush2.bf16.msra.mxu0 0
        %3235 = vmatprep.subr.bf16.mxu0 0
        %3236 = vmatpush2.bf16.msra.mxu0 0
        %3237 = vmatprep.subr.bf16.mxu0 0
        %3238 = vmatpush2.bf16.msra.mxu0 0
        %3239 = vmatprep.mubr.bf16.mxu0 0
        %3240 = vmatmul.mubr.bf16.gmra.mxu0 %v2828
        %v3241 = vpop.f32.mrf.mxu0
        %v3242 = vadd.f32 %v3193, %v3241
        %v3243 = vpop.f32.mrf.mxu0
        %v3244 = vpop.f32.mrf.mxu0
        %v3245 = vadd.f32 %v3193, %v3244
        %v3246 = vpop.f32.mrf.mxu0
        %3247 = vdwg.mxu0
        %v3248 = vpack.c.bf16 %v3111, %v3111
        %v3249 = vpack.c.bf16 %v3179, %v3176
        %v3251 = vsel %vm1467, %v3248, 0
        %v3254 = vsel %vm1467, %v3249, 0
        %3256 = vmatprep.subr.bf16.mxu0 0
        %3257 = vmatpush1.bf16.xpose.msra.mxu0 0
        %3258 = vmatprep.subr.bf16.mxu0 0
        %3259 = vmatpush1.bf16.xpose.msra.mxu0 0
        %3260 = vmatprep.subr.bf16.mxu0 0
        %3261 = vmatpush1.bf16.xpose.msra.mxu0 0
        %3262 = vmatprep.subr.bf16.mxu0 0
        %3263 = vmatpush1.bf16.xpose.msra.mxu0 0
        %3264 = vmatprep.subr.bf16.mxu0 0
        %3265 = vmatpush1.bf16.xpose.msra.mxu0 0
        %3266 = vmatprep.subr.bf16.mxu0 0
        %3267 = vmatpush1.bf16.xpose.msra.mxu0 0
        %3268 = vmatprep.subr.bf16.mxu0 0
        %3269 = vmatpush1.bf16.xpose.msra.mxu0 0
        %3270 = vmatprep.subr.bf16.mxu0 0
        %3271 = vmatpush1.bf16.xpose.msra.mxu0 %v3254
        %3272 = vmatprep.subr.bf16.mxu0 0
        %3273 = vmatpush2.bf16.xpose.msra.mxu0 0
        %3274 = vmatprep.subr.bf16.mxu0 0
        %3275 = vmatpush2.bf16.xpose.msra.mxu0 0
        %3276 = vmatprep.subr.bf16.mxu0 0
        %3277 = vmatpush2.bf16.xpose.msra.mxu0 0
        %3278 = vmatprep.subr.bf16.mxu0 0
        %3279 = vmatpush2.bf16.xpose.msra.mxu0 0
        %3280 = vmatprep.subr.bf16.mxu0 0
        %3281 = vmatpush2.bf16.xpose.msra.mxu0 0
        %3282 = vmatprep.subr.bf16.mxu0 0
        %3283 = vmatpush2.bf16.xpose.msra.mxu0 0
        %3284 = vmatprep.subr.bf16.mxu0 0
        %3285 = vmatpush2.bf16.xpose.msra.mxu0 0
        %3286 = vmatprep.subr.bf16.mxu0 0
        %3287 = vmatpush2.bf16.xpose.msra.mxu0 0
        %3288 = vmatprep.mubr.bf16.mxu0 0
        %3289 = vmatmul.mubr.bf16.gmra.mxu0 %v3251
        %v3290 = vpop.f32.mrf.mxu0
        %v3291 = vadd.f32 0.0, %v3290
        %v3292 = vpop.f32.mrf.mxu0
        %v3293 = vpop.f32.mrf.mxu0
        %v3294 = vpop.f32.mrf.mxu0
        %3295 = vdwg.mxu0
        %v3296 = vmul.f32 %v3291, 0.35355338
        %v3297 = vadd.f32 %v3296, %v2988
        %v3298 = vadd.f32 %v3297, 0.0
        %v3299 = vsel %vm2992, %v3298, -inf
        %3300 = vmax.xlane.f32.xlu0 %v3299
        %v3301 = vpop.xlane.xlu0 %3300
        %v3302 = vsub.f32 %v3298, %v3301
        %v3303 = vmul.f32 %v3302, 1.442695
        %v3304 = vpow.pop %v3303
        %v3305 = vsel %vm2992, %v3304, 0.0
        %3306 = vadd.xlane.f32.xlu0 %v3305
        %v3307 = vpop.xlane.xlu0 %3306
        %v3308 = vrcp.pop %v3307
        %v3309 = vmul.f32 %v3304, %v3308
        %v3310 = vpack.c.bf16 %v3309, %v3309
        %v3311 = vpack.c.bf16 %v3245, %v3242
        %v3313 = vsel %vm2992, %v3310, 0
        %3315 = vmatprep.subr.bf16.mxu0 0
        %3316 = vmatpush1.bf16.msra.mxu0 0
        %3317 = vmatprep.subr.bf16.mxu0 0
        %3318 = vmatpush1.bf16.msra.mxu0 0
        %3319 = vmatprep.subr.bf16.mxu0 0
        %3320 = vmatpush1.bf16.msra.mxu0 0
        %3321 = vmatprep.subr.bf16.mxu0 0
        %3322 = vmatpush1.bf16.msra.mxu0 0
        %3323 = vmatprep.subr.bf16.mxu0 0
        %3324 = vmatpush1.bf16.msra.mxu0 0
        %3325 = vmatprep.subr.bf16.mxu0 0
        %3326 = vmatpush1.bf16.msra.mxu0 0
        %3327 = vmatprep.subr.bf16.mxu0 0
        %3328 = vmatpush1.bf16.msra.mxu0 0
        %3329 = vmatprep.subr.bf16.mxu0 0
        %3330 = vmatpush1.bf16.msra.mxu0 %v3311
        %3331 = vmatprep.subr.bf16.mxu0 0
        %3332 = vmatpush2.bf16.msra.mxu0 0
        %3333 = vmatprep.subr.bf16.mxu0 0
        %3334 = vmatpush2.bf16.msra.mxu0 0
        %3335 = vmatprep.subr.bf16.mxu0 0
        %3336 = vmatpush2.bf16.msra.mxu0 0
        %3337 = vmatprep.subr.bf16.mxu0 0
        %3338 = vmatpush2.bf16.msra.mxu0 0
        %3339 = vmatprep.subr.bf16.mxu0 0
        %3340 = vmatpush2.bf16.msra.mxu0 0
        %3341 = vmatprep.subr.bf16.mxu0 0
        %3342 = vmatpush2.bf16.msra.mxu0 0
        %3343 = vmatprep.subr.bf16.mxu0 0
        %3344 = vmatpush2.bf16.msra.mxu0 0
        %3345 = vmatprep.subr.bf16.mxu0 0
        %3346 = vmatpush2.bf16.msra.mxu0 0
        %3347 = vmatprep.mubr.bf16.mxu0 0
        %3348 = vmatmul.mubr.bf16.gmra.mxu0 %v3313
        %v3349 = vpop.f32.mrf.mxu0
        %v3350 = vadd.f32 0.0, %v3349
        %v3351 = vpop.f32.mrf.mxu0
        %v3352 = vpop.f32.mrf.mxu0
        %v3353 = vpop.f32.mrf.mxu0
        %3354 = vdwg.mxu0
        %s3355 = scalar_lea.vmem %s47, 4
        %v3356 = vld [vmem:[%s3355] sm:$0xf]
        %v3357 = vpack.c.bf16 %v3350, %v3350
        %v3359 = vsel %vm1467, %v3357, 0
        %v3362 = vsel %vm1539, %v3356, 0
        %3364 = vmatprep.subr.bf16.mxu0 0
        %3365 = vmatpush1.bf16.msra.mxu0 0
        %3366 = vmatprep.subr.bf16.mxu0 0
        %3367 = vmatpush1.bf16.msra.mxu0 0
        %3368 = vmatprep.subr.bf16.mxu0 0
        %3369 = vmatpush1.bf16.msra.mxu0 0
        %3370 = vmatprep.subr.bf16.mxu0 0
        %3371 = vmatpush1.bf16.msra.mxu0 0
        %3372 = vmatprep.subr.bf16.mxu0 0
        %3373 = vmatpush1.bf16.msra.mxu0 0
        %3374 = vmatprep.subr.bf16.mxu0 0
        %3375 = vmatpush1.bf16.msra.mxu0 0
        %3376 = vmatprep.subr.bf16.mxu0 0
        %3377 = vmatpush1.bf16.msra.mxu0 0
        %3378 = vmatprep.subr.bf16.mxu0 0
        %3379 = vmatpush1.bf16.msra.mxu0 %v3362
        %3380 = vmatprep.subr.bf16.mxu0 0
        %3381 = vmatpush2.bf16.msra.mxu0 0
        %3382 = vmatprep.subr.bf16.mxu0 0
        %3383 = vmatpush2.bf16.msra.mxu0 0
        %3384 = vmatprep.subr.bf16.mxu0 0
        %3385 = vmatpush2.bf16.msra.mxu0 0
        %3386 = vmatprep.subr.bf16.mxu0 0
        %3387 = vmatpush2.bf16.msra.mxu0 0
        %3388 = vmatprep.subr.bf16.mxu0 0
        %3389 = vmatpush2.bf16.msra.mxu0 0
        %3390 = vmatprep.subr.bf16.mxu0 0
        %3391 = vmatpush2.bf16.msra.mxu0 0
        %3392 = vmatprep.subr.bf16.mxu0 0
        %3393 = vmatpush2.bf16.msra.mxu0 0
        %3394 = vmatprep.subr.bf16.mxu0 0
        %3395 = vmatpush2.bf16.msra.mxu0 0
        %3396 = vmatprep.mubr.bf16.mxu0 0
        %3397 = vmatmul.mubr.bf16.gmra.mxu0 %v3359
        %v3398 = vpop.f32.mrf.mxu0
        %v3399 = vadd.f32 0.0, %v3398
        %v3400 = vpop.f32.mrf.mxu0
        %v3401 = vpop.f32.mrf.mxu0
        %v3402 = vpop.f32.mrf.mxu0
        %3403 = vdwg.mxu0
        %v3405 = vsel %vm1467, %v3050, 0
        %v3408 = vsel %vm1539, %v3049, 0
        %3410 = vmatprep.subr.bf16.mxu0 0
        %3411 = vmatpush1.bf16.msra.mxu0 0
        %3412 = vmatprep.subr.bf16.mxu0 0
        %3413 = vmatpush1.bf16.msra.mxu0 0
        %3414 = vmatprep.subr.bf16.mxu0 0
        %3415 = vmatpush1.bf16.msra.mxu0 0
        %3416 = vmatprep.subr.bf16.mxu0 0
        %3417 = vmatpush1.bf16.msra.mxu0 0
        %3418 = vmatprep.subr.bf16.mxu0 0
        %3419 = vmatpush1.bf16.msra.mxu0 0
        %3420 = vmatprep.subr.bf16.mxu0 0
        %3421 = vmatpush1.bf16.msra.mxu0 0
        %3422 = vmatprep.subr.bf16.mxu0 0
        %3423 = vmatpush1.bf16.msra.mxu0 0
        %3424 = vmatprep.subr.bf16.mxu0 0
        %3425 = vmatpush1.bf16.msra.mxu0 %v3408
        %3426 = vmatprep.subr.bf16.mxu0 0
        %3427 = vmatpush2.bf16.msra.mxu0 0
        %3428 = vmatprep.subr.bf16.mxu0 0
        %3429 = vmatpush2.bf16.msra.mxu0 0
        %3430 = vmatprep.subr.bf16.mxu0 0
        %3431 = vmatpush2.bf16.msra.mxu0 0
        %3432 = vmatprep.subr.bf16.mxu0 0
        %3433 = vmatpush2.bf16.msra.mxu0 0
        %3434 = vmatprep.subr.bf16.mxu0 0
        %3435 = vmatpush2.bf16.msra.mxu0 0
        %3436 = vmatprep.subr.bf16.mxu0 0
        %3437 = vmatpush2.bf16.msra.mxu0 0
        %3438 = vmatprep.subr.bf16.mxu0 0
        %3439 = vmatpush2.bf16.msra.mxu0 0
        %3440 = vmatprep.subr.bf16.mxu0 0
        %3441 = vmatpush2.bf16.msra.mxu0 0
        %3442 = vmatprep.mubr.bf16.mxu0 0
        %3443 = vmatmul.mubr.bf16.gmra.mxu0 %v3405
        %v3444 = vpop.f32.mrf.mxu0
        %v3445 = vadd.f32 %v3399, %v3444
        %v3446 = vpop.f32.mrf.mxu0
        %v3447 = vpop.f32.mrf.mxu0
        %v3448 = vpop.f32.mrf.mxu0
        %3449 = vdwg.mxu0
        %s3450 = scalar_lea.vmem %s35, 32
        %v3451 = vld [vmem:[%s3450] sm:$0xf]
        %v3452 = vld [vmem:[%s3450 + $0x4] sm:$0xf]
        %v3453 = vld [vmem:[%s3450 + $0x8] sm:$0xf]
        %v3454 = vld [vmem:[%s3450 + $0xc] sm:$0xf]
        %s3455 = scalar_lea.vmem %s37, 2
        %v3456 = vld [vmem:[%s3455] sm:$0x1]
        %v3458 = vlaneseq
        %v3459 = vshrl.u32 %v3458, 7
        %v3460 = vsub.s32 0, %v3459
        %v3461 = vrot.slane %v3456, %v3460
        %v3467 = vunpack.c.l.b16 %v3451
        %v3468 = vunpack.c.l.b16 %v3452
        %v3469 = vunpack.c.l.b16 %v3453
        %v3470 = vunpack.c.l.b16 %v3454
        %v3471 = vpack.c.b16 %v3468, %v3467
        %v3472 = vpack.c.b16 %v3470, %v3469
        %3475 = vmatprep.subr.bf16.mxu0 0
        %3476 = vmatpush1.bf16.msra.mxu0 0
        %3477 = vmatprep.subr.bf16.mxu0 0
        %3478 = vmatpush1.bf16.msra.mxu0 0
        %3479 = vmatprep.subr.bf16.mxu0 0
        %3480 = vmatpush1.bf16.msra.mxu0 0
        %3481 = vmatprep.subr.bf16.mxu0 0
        %3482 = vmatpush1.bf16.msra.mxu0 0
        %3483 = vmatprep.subr.bf16.mxu0 0
        %3484 = vmatpush1.bf16.msra.mxu0 0
        %3485 = vmatprep.subr.bf16.mxu0 0
        %3486 = vmatpush1.bf16.msra.mxu0 0
        %3487 = vmatprep.subr.bf16.mxu0 0
        %3488 = vmatpush1.bf16.msra.mxu0 %v3472
        %3489 = vmatprep.subr.bf16.mxu0 0
        %3490 = vmatpush1.bf16.msra.mxu0 %v3471
        %3491 = vmatprep.subr.bf16.mxu0 0
        %3492 = vmatpush2.bf16.msra.mxu0 0
        %3493 = vmatprep.subr.bf16.mxu0 0
        %3494 = vmatpush2.bf16.msra.mxu0 0
        %3495 = vmatprep.subr.bf16.mxu0 0
        %3496 = vmatpush2.bf16.msra.mxu0 0
        %3497 = vmatprep.subr.bf16.mxu0 0
        %3498 = vmatpush2.bf16.msra.mxu0 0
        %3499 = vmatprep.subr.bf16.mxu0 0
        %3500 = vmatpush2.bf16.msra.mxu0 0
        %3501 = vmatprep.subr.bf16.mxu0 0
        %3502 = vmatpush2.bf16.msra.mxu0 0
        %3503 = vmatprep.subr.bf16.mxu0 0
        %3504 = vmatpush2.bf16.msra.mxu0 0
        %3505 = vmatprep.subr.bf16.mxu0 0
        %3506 = vmatpush2.bf16.msra.mxu0 0
        %3507 = vmatprep.mubr.bf16.mxu0 0
        %3508 = vmatmul.mubr.bf16.gmra.mxu0 %v2761
        %v3509 = vpop.f32.mrf.mxu0
        %v3510 = vadd.f32 %v3461, %v3509
        %v3511 = vpop.f32.mrf.mxu0
        %v3512 = vpop.f32.mrf.mxu0
        %v3513 = vpop.f32.mrf.mxu0
        %3514 = vdwg.mxu0
        %s3515 = scalar_lea.vmem %s39, 32
        %v3516 = vld [vmem:[%s3515] sm:$0xf]
        %v3517 = vld [vmem:[%s3515 + $0x4] sm:$0xf]
        %v3518 = vld [vmem:[%s3515 + $0x8] sm:$0xf]
        %v3519 = vld [vmem:[%s3515 + $0xc] sm:$0xf]
        %s3520 = scalar_lea.vmem %s41, 2
        %v3521 = vld [vmem:[%s3520] sm:$0x1]
        %v3523 = vlaneseq
        %v3524 = vshrl.u32 %v3523, 7
        %v3525 = vsub.s32 0, %v3524
        %v3526 = vrot.slane %v3521, %v3525
        %v3532 = vunpack.c.l.b16 %v3516
        %v3533 = vunpack.c.l.b16 %v3517
        %v3534 = vunpack.c.l.b16 %v3518
        %v3535 = vunpack.c.l.b16 %v3519
        %v3536 = vpack.c.b16 %v3533, %v3532
        %v3537 = vpack.c.b16 %v3535, %v3534
        %3540 = vmatprep.subr.bf16.mxu0 0
        %3541 = vmatpush1.bf16.msra.mxu0 0
        %3542 = vmatprep.subr.bf16.mxu0 0
        %3543 = vmatpush1.bf16.msra.mxu0 0
        %3544 = vmatprep.subr.bf16.mxu0 0
        %3545 = vmatpush1.bf16.msra.mxu0 0
        %3546 = vmatprep.subr.bf16.mxu0 0
        %3547 = vmatpush1.bf16.msra.mxu0 0
        %3548 = vmatprep.subr.bf16.mxu0 0
        %3549 = vmatpush1.bf16.msra.mxu0 0
        %3550 = vmatprep.subr.bf16.mxu0 0
        %3551 = vmatpush1.bf16.msra.mxu0 0
        %3552 = vmatprep.subr.bf16.mxu0 0
        %3553 = vmatpush1.bf16.msra.mxu0 %v3537
        %3554 = vmatprep.subr.bf16.mxu0 0
        %3555 = vmatpush1.bf16.msra.mxu0 %v3536
        %3556 = vmatprep.subr.bf16.mxu0 0
        %3557 = vmatpush2.bf16.msra.mxu0 0
        %3558 = vmatprep.subr.bf16.mxu0 0
        %3559 = vmatpush2.bf16.msra.mxu0 0
        %3560 = vmatprep.subr.bf16.mxu0 0
        %3561 = vmatpush2.bf16.msra.mxu0 0
        %3562 = vmatprep.subr.bf16.mxu0 0
        %3563 = vmatpush2.bf16.msra.mxu0 0
        %3564 = vmatprep.subr.bf16.mxu0 0
        %3565 = vmatpush2.bf16.msra.mxu0 0
        %3566 = vmatprep.subr.bf16.mxu0 0
        %3567 = vmatpush2.bf16.msra.mxu0 0
        %3568 = vmatprep.subr.bf16.mxu0 0
        %3569 = vmatpush2.bf16.msra.mxu0 0
        %3570 = vmatprep.subr.bf16.mxu0 0
        %3571 = vmatpush2.bf16.msra.mxu0 0
        %3572 = vmatprep.mubr.bf16.mxu0 0
        %3573 = vmatmul.mubr.bf16.gmra.mxu0 %v2828
        %v3574 = vpop.f32.mrf.mxu0
        %v3575 = vadd.f32 %v3526, %v3574
        %v3576 = vpop.f32.mrf.mxu0
        %v3577 = vpop.f32.mrf.mxu0
        %v3578 = vadd.f32 %v3526, %v3577
        %v3579 = vpop.f32.mrf.mxu0
        %3580 = vdwg.mxu0
        %s3581 = scalar_lea.vmem %s43, 32
        %v3582 = vld [vmem:[%s3581] sm:$0xf]
        %v3583 = vld [vmem:[%s3581 + $0x4] sm:$0xf]
        %v3584 = vld [vmem:[%s3581 + $0x8] sm:$0xf]
        %v3585 = vld [vmem:[%s3581 + $0xc] sm:$0xf]
        %s3586 = scalar_lea.vmem %s45, 2
        %v3587 = vld [vmem:[%s3586] sm:$0x1]
        %v3589 = vlaneseq
        %v3590 = vshrl.u32 %v3589, 7
        %v3591 = vsub.s32 0, %v3590
        %v3592 = vrot.slane %v3587, %v3591
        %v3598 = vunpack.c.l.b16 %v3582
        %v3599 = vunpack.c.l.b16 %v3583
        %v3600 = vunpack.c.l.b16 %v3584
        %v3601 = vunpack.c.l.b16 %v3585
        %v3602 = vpack.c.b16 %v3599, %v3598
        %v3603 = vpack.c.b16 %v3601, %v3600
        %3606 = vmatprep.subr.bf16.mxu0 0
        %3607 = vmatpush1.bf16.msra.mxu0 0
        %3608 = vmatprep.subr.bf16.mxu0 0
        %3609 = vmatpush1.bf16.msra.mxu0 0
        %3610 = vmatprep.subr.bf16.mxu0 0
        %3611 = vmatpush1.bf16.msra.mxu0 0
        %3612 = vmatprep.subr.bf16.mxu0 0
        %3613 = vmatpush1.bf16.msra.mxu0 0
        %3614 = vmatprep.subr.bf16.mxu0 0
        %3615 = vmatpush1.bf16.msra.mxu0 0
        %3616 = vmatprep.subr.bf16.mxu0 0
        %3617 = vmatpush1.bf16.msra.mxu0 0
        %3618 = vmatprep.subr.bf16.mxu0 0
        %3619 = vmatpush1.bf16.msra.mxu0 %v3603
        %3620 = vmatprep.subr.bf16.mxu0 0
        %3621 = vmatpush1.bf16.msra.mxu0 %v3602
        %3622 = vmatprep.subr.bf16.mxu0 0
        %3623 = vmatpush2.bf16.msra.mxu0 0
        %3624 = vmatprep.subr.bf16.mxu0 0
        %3625 = vmatpush2.bf16.msra.mxu0 0
        %3626 = vmatprep.subr.bf16.mxu0 0
        %3627 = vmatpush2.bf16.msra.mxu0 0
        %3628 = vmatprep.subr.bf16.mxu0 0
        %3629 = vmatpush2.bf16.msra.mxu0 0
        %3630 = vmatprep.subr.bf16.mxu0 0
        %3631 = vmatpush2.bf16.msra.mxu0 0
        %3632 = vmatprep.subr.bf16.mxu0 0
        %3633 = vmatpush2.bf16.msra.mxu0 0
        %3634 = vmatprep.subr.bf16.mxu0 0
        %3635 = vmatpush2.bf16.msra.mxu0 0
        %3636 = vmatprep.subr.bf16.mxu0 0
        %3637 = vmatpush2.bf16.msra.mxu0 0
        %3638 = vmatprep.mubr.bf16.mxu0 0
        %3639 = vmatmul.mubr.bf16.gmra.mxu0 %v2828
        %v3640 = vpop.f32.mrf.mxu0
        %v3641 = vadd.f32 %v3592, %v3640
        %v3642 = vpop.f32.mrf.mxu0
        %v3643 = vpop.f32.mrf.mxu0
        %v3644 = vadd.f32 %v3592, %v3643
        %v3645 = vpop.f32.mrf.mxu0
        %3646 = vdwg.mxu0
        %v3647 = vpack.c.bf16 %v3510, %v3510
        %v3648 = vpack.c.bf16 %v3578, %v3575
        %v3650 = vsel %vm1467, %v3647, 0
        %v3653 = vsel %vm1467, %v3648, 0
        %3655 = vmatprep.subr.bf16.mxu0 0
        %3656 = vmatpush1.bf16.xpose.msra.mxu0 0
        %3657 = vmatprep.subr.bf16.mxu0 0
        %3658 = vmatpush1.bf16.xpose.msra.mxu0 0
        %3659 = vmatprep.subr.bf16.mxu0 0
        %3660 = vmatpush1.bf16.xpose.msra.mxu0 0
        %3661 = vmatprep.subr.bf16.mxu0 0
        %3662 = vmatpush1.bf16.xpose.msra.mxu0 0
        %3663 = vmatprep.subr.bf16.mxu0 0
        %3664 = vmatpush1.bf16.xpose.msra.mxu0 0
        %3665 = vmatprep.subr.bf16.mxu0 0
        %3666 = vmatpush1.bf16.xpose.msra.mxu0 0
        %3667 = vmatprep.subr.bf16.mxu0 0
        %3668 = vmatpush1.bf16.xpose.msra.mxu0 0
        %3669 = vmatprep.subr.bf16.mxu0 0
        %3670 = vmatpush1.bf16.xpose.msra.mxu0 %v3653
        %3671 = vmatprep.subr.bf16.mxu0 0
        %3672 = vmatpush2.bf16.xpose.msra.mxu0 0
        %3673 = vmatprep.subr.bf16.mxu0 0
        %3674 = vmatpush2.bf16.xpose.msra.mxu0 0
        %3675 = vmatprep.subr.bf16.mxu0 0
        %3676 = vmatpush2.bf16.xpose.msra.mxu0 0
        %3677 = vmatprep.subr.bf16.mxu0 0
        %3678 = vmatpush2.bf16.xpose.msra.mxu0 0
        %3679 = vmatprep.subr.bf16.mxu0 0
        %3680 = vmatpush2.bf16.xpose.msra.mxu0 0
        %3681 = vmatprep.subr.bf16.mxu0 0
        %3682 = vmatpush2.bf16.xpose.msra.mxu0 0
        %3683 = vmatprep.subr.bf16.mxu0 0
        %3684 = vmatpush2.bf16.xpose.msra.mxu0 0
        %3685 = vmatprep.subr.bf16.mxu0 0
        %3686 = vmatpush2.bf16.xpose.msra.mxu0 0
        %3687 = vmatprep.mubr.bf16.mxu0 0
        %3688 = vmatmul.mubr.bf16.gmra.mxu0 %v3650
        %v3689 = vpop.f32.mrf.mxu0
        %v3690 = vadd.f32 0.0, %v3689
        %v3691 = vpop.f32.mrf.mxu0
        %v3692 = vpop.f32.mrf.mxu0
        %v3693 = vpop.f32.mrf.mxu0
        %3694 = vdwg.mxu0
        %v3695 = vmul.f32 %v3690, 0.35355338
        %v3696 = vadd.f32 %v3695, %v2988
        %v3697 = vadd.f32 %v3696, 0.0
        %v3698 = vsel %vm2992, %v3697, -inf
        %3699 = vmax.xlane.f32.xlu0 %v3698
        %v3700 = vpop.xlane.xlu0 %3699
        %v3701 = vsub.f32 %v3697, %v3700
        %v3702 = vmul.f32 %v3701, 1.442695
        %v3703 = vpow.pop %v3702
        %v3704 = vsel %vm2992, %v3703, 0.0
        %3705 = vadd.xlane.f32.xlu0 %v3704
        %v3706 = vpop.xlane.xlu0 %3705
        %v3707 = vrcp.pop %v3706
        %v3708 = vmul.f32 %v3703, %v3707
        %v3709 = vpack.c.bf16 %v3708, %v3708
        %v3710 = vpack.c.bf16 %v3644, %v3641
        %v3712 = vsel %vm2992, %v3709, 0
        %3714 = vmatprep.subr.bf16.mxu0 0
        %3715 = vmatpush1.bf16.msra.mxu0 0
        %3716 = vmatprep.subr.bf16.mxu0 0
        %3717 = vmatpush1.bf16.msra.mxu0 0
        %3718 = vmatprep.subr.bf16.mxu0 0
        %3719 = vmatpush1.bf16.msra.mxu0 0
        %3720 = vmatprep.subr.bf16.mxu0 0
        %3721 = vmatpush1.bf16.msra.mxu0 0
        %3722 = vmatprep.subr.bf16.mxu0 0
        %3723 = vmatpush1.bf16.msra.mxu0 0
        %3724 = vmatprep.subr.bf16.mxu0 0
        %3725 = vmatpush1.bf16.msra.mxu0 0
        %3726 = vmatprep.subr.bf16.mxu0 0
        %3727 = vmatpush1.bf16.msra.mxu0 0
        %3728 = vmatprep.subr.bf16.mxu0 0
        %3729 = vmatpush1.bf16.msra.mxu0 %v3710
        %3730 = vmatprep.subr.bf16.mxu0 0
        %3731 = vmatpush2.bf16.msra.mxu0 0
        %3732 = vmatprep.subr.bf16.mxu0 0
        %3733 = vmatpush2.bf16.msra.mxu0 0
        %3734 = vmatprep.subr.bf16.mxu0 0
        %3735 = vmatpush2.bf16.msra.mxu0 0
        %3736 = vmatprep.subr.bf16.mxu0 0
        %3737 = vmatpush2.bf16.msra.mxu0 0
        %3738 = vmatprep.subr.bf16.mxu0 0
        %3739 = vmatpush2.bf16.msra.mxu0 0
        %3740 = vmatprep.subr.bf16.mxu0 0
        %3741 = vmatpush2.bf16.msra.mxu0 0
        %3742 = vmatprep.subr.bf16.mxu0 0
        %3743 = vmatpush2.bf16.msra.mxu0 0
        %3744 = vmatprep.subr.bf16.mxu0 0
        %3745 = vmatpush2.bf16.msra.mxu0 0
        %3746 = vmatprep.mubr.bf16.mxu0 0
        %3747 = vmatmul.mubr.bf16.gmra.mxu0 %v3712
        %v3748 = vpop.f32.mrf.mxu0
        %v3749 = vadd.f32 0.0, %v3748
        %v3750 = vpop.f32.mrf.mxu0
        %v3751 = vpop.f32.mrf.mxu0
        %v3752 = vpop.f32.mrf.mxu0
        %3753 = vdwg.mxu0
        %s3754 = scalar_lea.vmem %s47, 8
        %v3755 = vld [vmem:[%s3754] sm:$0xf]
        %v3756 = vpack.c.bf16 %v3749, %v3749
        %v3758 = vsel %vm1467, %v3756, 0
        %v3761 = vsel %vm1539, %v3755, 0
        %3763 = vmatprep.subr.bf16.mxu0 0
        %3764 = vmatpush1.bf16.msra.mxu0 0
        %3765 = vmatprep.subr.bf16.mxu0 0
        %3766 = vmatpush1.bf16.msra.mxu0 0
        %3767 = vmatprep.subr.bf16.mxu0 0
        %3768 = vmatpush1.bf16.msra.mxu0 0
        %3769 = vmatprep.subr.bf16.mxu0 0
        %3770 = vmatpush1.bf16.msra.mxu0 0
        %3771 = vmatprep.subr.bf16.mxu0 0
        %3772 = vmatpush1.bf16.msra.mxu0 0
        %3773 = vmatprep.subr.bf16.mxu0 0
        %3774 = vmatpush1.bf16.msra.mxu0 0
        %3775 = vmatprep.subr.bf16.mxu0 0
        %3776 = vmatpush1.bf16.msra.mxu0 0
        %3777 = vmatprep.subr.bf16.mxu0 0
        %3778 = vmatpush1.bf16.msra.mxu0 %v3761
        %3779 = vmatprep.subr.bf16.mxu0 0
        %3780 = vmatpush2.bf16.msra.mxu0 0
        %3781 = vmatprep.subr.bf16.mxu0 0
        %3782 = vmatpush2.bf16.msra.mxu0 0
        %3783 = vmatprep.subr.bf16.mxu0 0
        %3784 = vmatpush2.bf16.msra.mxu0 0
        %3785 = vmatprep.subr.bf16.mxu0 0
        %3786 = vmatpush2.bf16.msra.mxu0 0
        %3787 = vmatprep.subr.bf16.mxu0 0
        %3788 = vmatpush2.bf16.msra.mxu0 0
        %3789 = vmatprep.subr.bf16.mxu0 0
        %3790 = vmatpush2.bf16.msra.mxu0 0
        %3791 = vmatprep.subr.bf16.mxu0 0
        %3792 = vmatpush2.bf16.msra.mxu0 0
        %3793 = vmatprep.subr.bf16.mxu0 0
        %3794 = vmatpush2.bf16.msra.mxu0 0
        %3795 = vmatprep.mubr.bf16.mxu0 0
        %3796 = vmatmul.mubr.bf16.gmra.mxu0 %v3758
        %v3797 = vpop.f32.mrf.mxu0
        %v3798 = vadd.f32 0.0, %v3797
        %v3799 = vpop.f32.mrf.mxu0
        %v3800 = vpop.f32.mrf.mxu0
        %v3801 = vpop.f32.mrf.mxu0
        %3802 = vdwg.mxu0
        %v3803 = vadd.f32 %v3445, %v3798
        %s3804 = scalar_lea.vmem %s35, 48
        %v3805 = vld [vmem:[%s3804] sm:$0xf]
        %v3806 = vld [vmem:[%s3804 + $0x4] sm:$0xf]
        %v3807 = vld [vmem:[%s3804 + $0x8] sm:$0xf]
        %v3808 = vld [vmem:[%s3804 + $0xc] sm:$0xf]
        %s3809 = scalar_lea.vmem %s37, 3
        %v3810 = vld [vmem:[%s3809] sm:$0x1]
        %v3812 = vlaneseq
        %v3813 = vshrl.u32 %v3812, 7
        %v3814 = vsub.s32 0, %v3813
        %v3815 = vrot.slane %v3810, %v3814
        %v3821 = vunpack.c.l.b16 %v3805
        %v3822 = vunpack.c.l.b16 %v3806
        %v3823 = vunpack.c.l.b16 %v3807
        %v3824 = vunpack.c.l.b16 %v3808
        %v3825 = vpack.c.b16 %v3822, %v3821
        %v3826 = vpack.c.b16 %v3824, %v3823
        %3829 = vmatprep.subr.bf16.mxu0 0
        %3830 = vmatpush1.bf16.msra.mxu0 0
        %3831 = vmatprep.subr.bf16.mxu0 0
        %3832 = vmatpush1.bf16.msra.mxu0 0
        %3833 = vmatprep.subr.bf16.mxu0 0
        %3834 = vmatpush1.bf16.msra.mxu0 0
        %3835 = vmatprep.subr.bf16.mxu0 0
        %3836 = vmatpush1.bf16.msra.mxu0 0
        %3837 = vmatprep.subr.bf16.mxu0 0
        %3838 = vmatpush1.bf16.msra.mxu0 0
        %3839 = vmatprep.subr.bf16.mxu0 0
        %3840 = vmatpush1.bf16.msra.mxu0 0
        %3841 = vmatprep.subr.bf16.mxu0 0
        %3842 = vmatpush1.bf16.msra.mxu0 %v3826
        %3843 = vmatprep.subr.bf16.mxu0 0
        %3844 = vmatpush1.bf16.msra.mxu0 %v3825
        %3845 = vmatprep.subr.bf16.mxu0 0
        %3846 = vmatpush2.bf16.msra.mxu0 0
        %3847 = vmatprep.subr.bf16.mxu0 0
        %3848 = vmatpush2.bf16.msra.mxu0 0
        %3849 = vmatprep.subr.bf16.mxu0 0
        %3850 = vmatpush2.bf16.msra.mxu0 0
        %3851 = vmatprep.subr.bf16.mxu0 0
        %3852 = vmatpush2.bf16.msra.mxu0 0
        %3853 = vmatprep.subr.bf16.mxu0 0
        %3854 = vmatpush2.bf16.msra.mxu0 0
        %3855 = vmatprep.subr.bf16.mxu0 0
        %3856 = vmatpush2.bf16.msra.mxu0 0
        %3857 = vmatprep.subr.bf16.mxu0 0
        %3858 = vmatpush2.bf16.msra.mxu0 0
        %3859 = vmatprep.subr.bf16.mxu0 0
        %3860 = vmatpush2.bf16.msra.mxu0 0
        %3861 = vmatprep.mubr.bf16.mxu0 0
        %3862 = vmatmul.mubr.bf16.gmra.mxu0 %v2761
        %v3863 = vpop.f32.mrf.mxu0
        %v3864 = vadd.f32 %v3815, %v3863
        %v3865 = vpop.f32.mrf.mxu0
        %v3866 = vpop.f32.mrf.mxu0
        %v3867 = vpop.f32.mrf.mxu0
        %3868 = vdwg.mxu0
        %s3869 = scalar_lea.vmem %s39, 48
        %v3870 = vld [vmem:[%s3869] sm:$0xf]
        %v3871 = vld [vmem:[%s3869 + $0x4] sm:$0xf]
        %v3872 = vld [vmem:[%s3869 + $0x8] sm:$0xf]
        %v3873 = vld [vmem:[%s3869 + $0xc] sm:$0xf]
        %s3874 = scalar_lea.vmem %s41, 3
        %v3875 = vld [vmem:[%s3874] sm:$0x1]
        %v3877 = vlaneseq
        %v3878 = vshrl.u32 %v3877, 7
        %v3879 = vsub.s32 0, %v3878
        %v3880 = vrot.slane %v3875, %v3879
        %v3886 = vunpack.c.l.b16 %v3870
        %v3887 = vunpack.c.l.b16 %v3871
        %v3888 = vunpack.c.l.b16 %v3872
        %v3889 = vunpack.c.l.b16 %v3873
        %v3890 = vpack.c.b16 %v3887, %v3886
        %v3891 = vpack.c.b16 %v3889, %v3888
        %3894 = vmatprep.subr.bf16.mxu0 0
        %3895 = vmatpush1.bf16.msra.mxu0 0
        %3896 = vmatprep.subr.bf16.mxu0 0
        %3897 = vmatpush1.bf16.msra.mxu0 0
        %3898 = vmatprep.subr.bf16.mxu0 0
        %3899 = vmatpush1.bf16.msra.mxu0 0
        %3900 = vmatprep.subr.bf16.mxu0 0
        %3901 = vmatpush1.bf16.msra.mxu0 0
        %3902 = vmatprep.subr.bf16.mxu0 0
        %3903 = vmatpush1.bf16.msra.mxu0 0
        %3904 = vmatprep.subr.bf16.mxu0 0
        %3905 = vmatpush1.bf16.msra.mxu0 0
        %3906 = vmatprep.subr.bf16.mxu0 0
        %3907 = vmatpush1.bf16.msra.mxu0 %v3891
        %3908 = vmatprep.subr.bf16.mxu0 0
        %3909 = vmatpush1.bf16.msra.mxu0 %v3890
        %3910 = vmatprep.subr.bf16.mxu0 0
        %3911 = vmatpush2.bf16.msra.mxu0 0
        %3912 = vmatprep.subr.bf16.mxu0 0
        %3913 = vmatpush2.bf16.msra.mxu0 0
        %3914 = vmatprep.subr.bf16.mxu0 0
        %3915 = vmatpush2.bf16.msra.mxu0 0
        %3916 = vmatprep.subr.bf16.mxu0 0
        %3917 = vmatpush2.bf16.msra.mxu0 0
        %3918 = vmatprep.subr.bf16.mxu0 0
        %3919 = vmatpush2.bf16.msra.mxu0 0
        %3920 = vmatprep.subr.bf16.mxu0 0
        %3921 = vmatpush2.bf16.msra.mxu0 0
        %3922 = vmatprep.subr.bf16.mxu0 0
        %3923 = vmatpush2.bf16.msra.mxu0 0
        %3924 = vmatprep.subr.bf16.mxu0 0
        %3925 = vmatpush2.bf16.msra.mxu0 0
        %3926 = vmatprep.mubr.bf16.mxu0 0
        %3927 = vmatmul.mubr.bf16.gmra.mxu0 %v2828
        %v3928 = vpop.f32.mrf.mxu0
        %v3929 = vadd.f32 %v3880, %v3928
        %v3930 = vpop.f32.mrf.mxu0
        %v3931 = vpop.f32.mrf.mxu0
        %v3932 = vadd.f32 %v3880, %v3931
        %v3933 = vpop.f32.mrf.mxu0
        %3934 = vdwg.mxu0
        %s3935 = scalar_lea.vmem %s43, 48
        %v3936 = vld [vmem:[%s3935] sm:$0xf]
        %v3937 = vld [vmem:[%s3935 + $0x4] sm:$0xf]
        %v3938 = vld [vmem:[%s3935 + $0x8] sm:$0xf]
        %v3939 = vld [vmem:[%s3935 + $0xc] sm:$0xf]
        %s3940 = scalar_lea.vmem %s45, 3
        %v3941 = vld [vmem:[%s3940] sm:$0x1]
        %v3943 = vlaneseq
        %v3944 = vshrl.u32 %v3943, 7
        %v3945 = vsub.s32 0, %v3944
        %v3946 = vrot.slane %v3941, %v3945
        %v3952 = vunpack.c.l.b16 %v3936
        %v3953 = vunpack.c.l.b16 %v3937
        %v3954 = vunpack.c.l.b16 %v3938
        %v3955 = vunpack.c.l.b16 %v3939
        %v3956 = vpack.c.b16 %v3953, %v3952
        %v3957 = vpack.c.b16 %v3955, %v3954
        %3960 = vmatprep.subr.bf16.mxu0 0
        %3961 = vmatpush1.bf16.msra.mxu0 0
        %3962 = vmatprep.subr.bf16.mxu0 0
        %3963 = vmatpush1.bf16.msra.mxu0 0
        %3964 = vmatprep.subr.bf16.mxu0 0
        %3965 = vmatpush1.bf16.msra.mxu0 0
        %3966 = vmatprep.subr.bf16.mxu0 0
        %3967 = vmatpush1.bf16.msra.mxu0 0
        %3968 = vmatprep.subr.bf16.mxu0 0
        %3969 = vmatpush1.bf16.msra.mxu0 0
        %3970 = vmatprep.subr.bf16.mxu0 0
        %3971 = vmatpush1.bf16.msra.mxu0 0
        %3972 = vmatprep.subr.bf16.mxu0 0
        %3973 = vmatpush1.bf16.msra.mxu0 %v3957
        %3974 = vmatprep.subr.bf16.mxu0 0
        %3975 = vmatpush1.bf16.msra.mxu0 %v3956
        %3976 = vmatprep.subr.bf16.mxu0 0
        %3977 = vmatpush2.bf16.msra.mxu0 0
        %3978 = vmatprep.subr.bf16.mxu0 0
        %3979 = vmatpush2.bf16.msra.mxu0 0
        %3980 = vmatprep.subr.bf16.mxu0 0
        %3981 = vmatpush2.bf16.msra.mxu0 0
        %3982 = vmatprep.subr.bf16.mxu0 0
        %3983 = vmatpush2.bf16.msra.mxu0 0
        %3984 = vmatprep.subr.bf16.mxu0 0
        %3985 = vmatpush2.bf16.msra.mxu0 0
        %3986 = vmatprep.subr.bf16.mxu0 0
        %3987 = vmatpush2.bf16.msra.mxu0 0
        %3988 = vmatprep.subr.bf16.mxu0 0
        %3989 = vmatpush2.bf16.msra.mxu0 0
        %3990 = vmatprep.subr.bf16.mxu0 0
        %3991 = vmatpush2.bf16.msra.mxu0 0
        %3992 = vmatprep.mubr.bf16.mxu0 0
        %3993 = vmatmul.mubr.bf16.gmra.mxu0 %v2828
        %v3994 = vpop.f32.mrf.mxu0
        %v3995 = vadd.f32 %v3946, %v3994
        %v3996 = vpop.f32.mrf.mxu0
        %v3997 = vpop.f32.mrf.mxu0
        %v3998 = vadd.f32 %v3946, %v3997
        %v3999 = vpop.f32.mrf.mxu0
        %4000 = vdwg.mxu0
        %v4001 = vpack.c.bf16 %v3864, %v3864
        %v4002 = vpack.c.bf16 %v3932, %v3929
        %v4004 = vsel %vm1467, %v4001, 0
        %v4007 = vsel %vm1467, %v4002, 0
        %4009 = vmatprep.subr.bf16.mxu0 0
        %4010 = vmatpush1.bf16.xpose.msra.mxu0 0
        %4011 = vmatprep.subr.bf16.mxu0 0
        %4012 = vmatpush1.bf16.xpose.msra.mxu0 0
        %4013 = vmatprep.subr.bf16.mxu0 0
        %4014 = vmatpush1.bf16.xpose.msra.mxu0 0
        %4015 = vmatprep.subr.bf16.mxu0 0
        %4016 = vmatpush1.bf16.xpose.msra.mxu0 0
        %4017 = vmatprep.subr.bf16.mxu0 0
        %4018 = vmatpush1.bf16.xpose.msra.mxu0 0
        %4019 = vmatprep.subr.bf16.mxu0 0
        %4020 = vmatpush1.bf16.xpose.msra.mxu0 0
        %4021 = vmatprep.subr.bf16.mxu0 0
        %4022 = vmatpush1.bf16.xpose.msra.mxu0 0
        %4023 = vmatprep.subr.bf16.mxu0 0
        %4024 = vmatpush1.bf16.xpose.msra.mxu0 %v4007
        %4025 = vmatprep.subr.bf16.mxu0 0
        %4026 = vmatpush2.bf16.xpose.msra.mxu0 0
        %4027 = vmatprep.subr.bf16.mxu0 0
        %4028 = vmatpush2.bf16.xpose.msra.mxu0 0
        %4029 = vmatprep.subr.bf16.mxu0 0
        %4030 = vmatpush2.bf16.xpose.msra.mxu0 0
        %4031 = vmatprep.subr.bf16.mxu0 0
        %4032 = vmatpush2.bf16.xpose.msra.mxu0 0
        %4033 = vmatprep.subr.bf16.mxu0 0
        %4034 = vmatpush2.bf16.xpose.msra.mxu0 0
        %4035 = vmatprep.subr.bf16.mxu0 0
        %4036 = vmatpush2.bf16.xpose.msra.mxu0 0
        %4037 = vmatprep.subr.bf16.mxu0 0
        %4038 = vmatpush2.bf16.xpose.msra.mxu0 0
        %4039 = vmatprep.subr.bf16.mxu0 0
        %4040 = vmatpush2.bf16.xpose.msra.mxu0 0
        %4041 = vmatprep.mubr.bf16.mxu0 0
        %4042 = vmatmul.mubr.bf16.gmra.mxu0 %v4004
        %v4043 = vpop.f32.mrf.mxu0
        %v4044 = vadd.f32 0.0, %v4043
        %v4045 = vpop.f32.mrf.mxu0
        %v4046 = vpop.f32.mrf.mxu0
        %v4047 = vpop.f32.mrf.mxu0
        %4048 = vdwg.mxu0
        %v4049 = vmul.f32 %v4044, 0.35355338
        %v4050 = vadd.f32 %v4049, %v2988
        %v4051 = vadd.f32 %v4050, 0.0
        %v4052 = vsel %vm2992, %v4051, -inf
        %4053 = vmax.xlane.f32.xlu0 %v4052
        %v4054 = vpop.xlane.xlu0 %4053
        %v4055 = vsub.f32 %v4051, %v4054
        %v4056 = vmul.f32 %v4055, 1.442695
        %v4057 = vpow.pop %v4056
        %v4058 = vsel %vm2992, %v4057, 0.0
        %4059 = vadd.xlane.f32.xlu0 %v4058
        %v4060 = vpop.xlane.xlu0 %4059
        %v4061 = vrcp.pop %v4060
        %v4062 = vmul.f32 %v4057, %v4061
        %v4063 = vpack.c.bf16 %v4062, %v4062
        %v4064 = vpack.c.bf16 %v3998, %v3995
        %v4066 = vsel %vm2992, %v4063, 0
        %4068 = vmatprep.subr.bf16.mxu0 0
        %4069 = vmatpush1.bf16.msra.mxu0 0
        %4070 = vmatprep.subr.bf16.mxu0 0
        %4071 = vmatpush1.bf16.msra.mxu0 0
        %4072 = vmatprep.subr.bf16.mxu0 0
        %4073 = vmatpush1.bf16.msra.mxu0 0
        %4074 = vmatprep.subr.bf16.mxu0 0
        %4075 = vmatpush1.bf16.msra.mxu0 0
        %4076 = vmatprep.subr.bf16.mxu0 0
        %4077 = vmatpush1.bf16.msra.mxu0 0
        %4078 = vmatprep.subr.bf16.mxu0 0
        %4079 = vmatpush1.bf16.msra.mxu0 0
        %4080 = vmatprep.subr.bf16.mxu0 0
        %4081 = vmatpush1.bf16.msra.mxu0 0
        %4082 = vmatprep.subr.bf16.mxu0 0
        %4083 = vmatpush1.bf16.msra.mxu0 %v4064
        %4084 = vmatprep.subr.bf16.mxu0 0
        %4085 = vmatpush2.bf16.msra.mxu0 0
        %4086 = vmatprep.subr.bf16.mxu0 0
        %4087 = vmatpush2.bf16.msra.mxu0 0
        %4088 = vmatprep.subr.bf16.mxu0 0
        %4089 = vmatpush2.bf16.msra.mxu0 0
        %4090 = vmatprep.subr.bf16.mxu0 0
        %4091 = vmatpush2.bf16.msra.mxu0 0
        %4092 = vmatprep.subr.bf16.mxu0 0
        %4093 = vmatpush2.bf16.msra.mxu0 0
        %4094 = vmatprep.subr.bf16.mxu0 0
        %4095 = vmatpush2.bf16.msra.mxu0 0
        %4096 = vmatprep.subr.bf16.mxu0 0
        %4097 = vmatpush2.bf16.msra.mxu0 0
        %4098 = vmatprep.subr.bf16.mxu0 0
        %4099 = vmatpush2.bf16.msra.mxu0 0
        %4100 = vmatprep.mubr.bf16.mxu0 0
        %4101 = vmatmul.mubr.bf16.gmra.mxu0 %v4066
        %v4102 = vpop.f32.mrf.mxu0
        %v4103 = vadd.f32 0.0, %v4102
        %v4104 = vpop.f32.mrf.mxu0
        %v4105 = vpop.f32.mrf.mxu0
        %v4106 = vpop.f32.mrf.mxu0
        %4107 = vdwg.mxu0
        %s4108 = scalar_lea.vmem %s47, 12
        %v4109 = vld [vmem:[%s4108] sm:$0xf]
        %v4110 = vpack.c.bf16 %v4103, %v4103
        %v4112 = vsel %vm1467, %v4110, 0
        %v4115 = vsel %vm1539, %v4109, 0
        %4117 = vmatprep.subr.bf16.mxu0 0
        %4118 = vmatpush1.bf16.msra.mxu0 0
        %4119 = vmatprep.subr.bf16.mxu0 0
        %4120 = vmatpush1.bf16.msra.mxu0 0
        %4121 = vmatprep.subr.bf16.mxu0 0
        %4122 = vmatpush1.bf16.msra.mxu0 0
        %4123 = vmatprep.subr.bf16.mxu0 0
        %4124 = vmatpush1.bf16.msra.mxu0 0
        %4125 = vmatprep.subr.bf16.mxu0 0
        %4126 = vmatpush1.bf16.msra.mxu0 0
        %4127 = vmatprep.subr.bf16.mxu0 0
        %4128 = vmatpush1.bf16.msra.mxu0 0
        %4129 = vmatprep.subr.bf16.mxu0 0
        %4130 = vmatpush1.bf16.msra.mxu0 0
        %4131 = vmatprep.subr.bf16.mxu0 0
        %4132 = vmatpush1.bf16.msra.mxu0 %v4115
        %4133 = vmatprep.subr.bf16.mxu0 0
        %4134 = vmatpush2.bf16.msra.mxu0 0
        %4135 = vmatprep.subr.bf16.mxu0 0
        %4136 = vmatpush2.bf16.msra.mxu0 0
        %4137 = vmatprep.subr.bf16.mxu0 0
        %4138 = vmatpush2.bf16.msra.mxu0 0
        %4139 = vmatprep.subr.bf16.mxu0 0
        %4140 = vmatpush2.bf16.msra.mxu0 0
        %4141 = vmatprep.subr.bf16.mxu0 0
        %4142 = vmatpush2.bf16.msra.mxu0 0
        %4143 = vmatprep.subr.bf16.mxu0 0
        %4144 = vmatpush2.bf16.msra.mxu0 0
        %4145 = vmatprep.subr.bf16.mxu0 0
        %4146 = vmatpush2.bf16.msra.mxu0 0
        %4147 = vmatprep.subr.bf16.mxu0 0
        %4148 = vmatpush2.bf16.msra.mxu0 0
        %4149 = vmatprep.mubr.bf16.mxu0 0
        %4150 = vmatmul.mubr.bf16.gmra.mxu0 %v4112
        %v4151 = vpop.f32.mrf.mxu0
        %v4152 = vadd.f32 0.0, %v4151
        %v4153 = vpop.f32.mrf.mxu0
        %v4154 = vpop.f32.mrf.mxu0
        %v4155 = vpop.f32.mrf.mxu0
        %4156 = vdwg.mxu0
        %v4157 = vadd.f32 %v3803, %v4152
        %v4158 = vld [vmem:[%s49] sm:$0x1]
        %v4160 = vlaneseq
        %v4161 = vshrl.u32 %v4160, 7
        %v4162 = vsub.s32 0, %v4161
        %v4163 = vrot.slane %v4158, %v4162
        %v4165 = vadd.f32 %v4157, %v4163
        %v4166 = vadd.f32 %v2732, %v4165
        %v4167 = vld [vmem:[%s51] sm:$0x1]
        %v4168 = vld [vmem:[%s53] sm:$0x1]
        %v4169 = vsel %vm1236, %v4166, 0.0
        %4170 = vadd.xlane.f32.xlu0 %v4169
        %v4171 = vpop.xlane.xlu0 %4170
        %v4172 = vmul.f32 %v4171, %v1240
        %v4173 = vsub.f32 %v4166, %v4172
        %v4174 = vmul.f32 %v4173, %v4173
        %v4175 = vsel %vm1236, %v4174, 0.0
        %4176 = vadd.xlane.f32.xlu0 %v4175
        %v4177 = vpop.xlane.xlu0 %4176
        %v4178 = vmul.f32 %v4177, %v1240
        %v4179 = vadd.f32 %v4178, 1e-05
        %v4180 = vrsqrt.pop %v4179
        %v4181 = vmul.f32 %v4173, %v4180
        %v4183 = vlaneseq
        %v4184 = vshrl.u32 %v4183, 7
        %v4185 = vsub.s32 0, %v4184
        %v4186 = vrot.slane %v4167, %v4185
        %v4188 = vmul.f32 %v4181, %v4186
        %v4190 = vlaneseq
        %v4191 = vshrl.u32 %v4190, 7
        %v4192 = vsub.s32 0, %v4191
        %v4193 = vrot.slane %v4168, %v4192
        %v4195 = vadd.f32 %v4188, %v4193
        %v4196 = vld [vmem:[%s55] sm:$0xf]
        %v4197 = vld [vmem:[%s55 + $0x4] sm:$0xf]
        %v4198 = vld [vmem:[%s55 + $0x8] sm:$0xf]
        %v4199 = vld [vmem:[%s55 + $0xc] sm:$0xf]
        %v4200 = vpack.c.bf16 %v4195, %v4195
        %v4201 = vld [vmem:[%s57] sm:$0x1]
        %v4203 = vlaneseq
        %v4204 = vshrl.u32 %v4203, 7
        %v4205 = vsub.s32 0, %v4204
        %v4206 = vrot.slane %v4201, %v4205
        %v4212 = vunpack.c.l.b16 %v4196
        %v4213 = vunpack.c.l.b16 %v4197
        %v4214 = vunpack.c.l.b16 %v4198
        %v4215 = vunpack.c.l.b16 %v4199
        %v4216 = vpack.c.b16 %v4213, %v4212
        %v4217 = vpack.c.b16 %v4215, %v4214
        %v4221 = vsel %vm1236, %v4200, 0
        %4223 = vmatprep.subr.bf16.mxu0 0
        %4224 = vmatpush1.bf16.msra.mxu0 0
        %4225 = vmatprep.subr.bf16.mxu0 0
        %4226 = vmatpush1.bf16.msra.mxu0 0
        %4227 = vmatprep.subr.bf16.mxu0 0
        %4228 = vmatpush1.bf16.msra.mxu0 0
        %4229 = vmatprep.subr.bf16.mxu0 0
        %4230 = vmatpush1.bf16.msra.mxu0 0
        %4231 = vmatprep.subr.bf16.mxu0 0
        %4232 = vmatpush1.bf16.msra.mxu0 0
        %4233 = vmatprep.subr.bf16.mxu0 0
        %4234 = vmatpush1.bf16.msra.mxu0 0
        %4235 = vmatprep.subr.bf16.mxu0 0
        %4236 = vmatpush1.bf16.msra.mxu0 %v4217
        %4237 = vmatprep.subr.bf16.mxu0 0
        %4238 = vmatpush1.bf16.msra.mxu0 %v4216
        %4239 = vmatprep.subr.bf16.mxu0 0
        %4240 = vmatpush2.bf16.msra.mxu0 0
        %4241 = vmatprep.subr.bf16.mxu0 0
        %4242 = vmatpush2.bf16.msra.mxu0 0
        %4243 = vmatprep.subr.bf16.mxu0 0
        %4244 = vmatpush2.bf16.msra.mxu0 0
        %4245 = vmatprep.subr.bf16.mxu0 0
        %4246 = vmatpush2.bf16.msra.mxu0 0
        %4247 = vmatprep.subr.bf16.mxu0 0
        %4248 = vmatpush2.bf16.msra.mxu0 0
        %4249 = vmatprep.subr.bf16.mxu0 0
        %4250 = vmatpush2.bf16.msra.mxu0 0
        %4251 = vmatprep.subr.bf16.mxu0 0
        %4252 = vmatpush2.bf16.msra.mxu0 0
        %4253 = vmatprep.subr.bf16.mxu0 0
        %4254 = vmatpush2.bf16.msra.mxu0 0
        %4255 = vmatprep.mubr.bf16.mxu0 0
        %4256 = vmatmul.mubr.bf16.gmra.mxu0 %v4221
        %v4257 = vpop.f32.mrf.mxu0
        %v4258 = vadd.f32 %v4206, %v4257
        %v4259 = vpop.f32.mrf.mxu0
        %v4260 = vpop.f32.mrf.mxu0
        %v4261 = vpop.f32.mrf.mxu0
        %4262 = vdwg.mxu0
        %v4263 = vmul.f32 %v4258, %v4258
        %v4264 = vmul.f32 %v4258, %v4263
        %v4265 = vmul.f32 %v4264, 0.044715
        %v4266 = vadd.f32 %v4258, %v4265
        %v4267 = vmul.f32 %v4266, 0.7978846
        %v4268 = vtanh.pop %v4267
        %v4269 = vadd.f32 %v4268, 1.0
        %v4270 = vmul.f32 %v4269, 0.5
        %v4271 = vmul.f32 %v4258, %v4270
        %v4272 = vld [vmem:[%s59] sm:$0xf]
        %v4273 = vld [vmem:[%s59 + $0x4] sm:$0xf]
        %v4274 = vld [vmem:[%s59 + $0x8] sm:$0xf]
        %v4275 = vld [vmem:[%s59 + $0xc] sm:$0xf]
        %v4276 = vld [vmem:[%s59 + $0x10] sm:$0xf]
        %v4277 = vld [vmem:[%s59 + $0x14] sm:$0xf]
        %v4278 = vld [vmem:[%s59 + $0x18] sm:$0xf]
        %v4279 = vld [vmem:[%s59 + $0x1c] sm:$0xf]
        %v4280 = vpack.c.bf16 %v4271, %v4271
        %v4281 = vld [vmem:[%s61] sm:$0x1]
        %v4283 = vlaneseq
        %v4284 = vshrl.u32 %v4283, 7
        %v4285 = vsub.s32 0, %v4284
        %v4286 = vrot.slane %v4281, %v4285
        %v4296 = vunpack.c.l.b16 %v4272
        %v4297 = vunpack.c.l.b16 %v4273
        %v4298 = vunpack.c.l.b16 %v4274
        %v4299 = vunpack.c.l.b16 %v4275
        %v4300 = vunpack.c.l.b16 %v4276
        %v4301 = vunpack.c.l.b16 %v4277
        %v4302 = vunpack.c.l.b16 %v4278
        %v4303 = vunpack.c.l.b16 %v4279
        %v4304 = vpack.c.b16 %v4297, %v4296
        %v4305 = vpack.c.b16 %v4299, %v4298
        %v4306 = vpack.c.b16 %v4301, %v4300
        %v4307 = vpack.c.b16 %v4303, %v4302
        %vm4312 = vcmask 523264
        %v4314 = vsel %vm4312, %v4280, 0
        %4316 = vmatprep.subr.bf16.mxu0 0
        %4317 = vmatpush1.bf16.msra.mxu0 0
        %4318 = vmatprep.subr.bf16.mxu0 0
        %4319 = vmatpush1.bf16.msra.mxu0 0
        %4320 = vmatprep.subr.bf16.mxu0 0
        %4321 = vmatpush1.bf16.msra.mxu0 0
        %4322 = vmatprep.subr.bf16.mxu0 0
        %4323 = vmatpush1.bf16.msra.mxu0 0
        %4324 = vmatprep.subr.bf16.mxu0 0
        %4325 = vmatpush1.bf16.msra.mxu0 %v4307
        %4326 = vmatprep.subr.bf16.mxu0 0
        %4327 = vmatpush1.bf16.msra.mxu0 %v4306
        %4328 = vmatprep.subr.bf16.mxu0 0
        %4329 = vmatpush1.bf16.msra.mxu0 %v4305
        %4330 = vmatprep.subr.bf16.mxu0 0
        %4331 = vmatpush1.bf16.msra.mxu0 %v4304
        %4332 = vmatprep.subr.bf16.mxu0 0
        %4333 = vmatpush2.bf16.msra.mxu0 0
        %4334 = vmatprep.subr.bf16.mxu0 0
        %4335 = vmatpush2.bf16.msra.mxu0 0
        %4336 = vmatprep.subr.bf16.mxu0 0
        %4337 = vmatpush2.bf16.msra.mxu0 0
        %4338 = vmatprep.subr.bf16.mxu0 0
        %4339 = vmatpush2.bf16.msra.mxu0 0
        %4340 = vmatprep.subr.bf16.mxu0 0
        %4341 = vmatpush2.bf16.msra.mxu0 0
        %4342 = vmatprep.subr.bf16.mxu0 0
        %4343 = vmatpush2.bf16.msra.mxu0 0
        %4344 = vmatprep.subr.bf16.mxu0 0
        %4345 = vmatpush2.bf16.msra.mxu0 0
        %4346 = vmatprep.subr.bf16.mxu0 0
        %4347 = vmatpush2.bf16.msra.mxu0 0
        %4348 = vmatprep.mubr.bf16.mxu0 0
        %4349 = vmatmul.mubr.bf16.gmra.mxu0 %v4314
        %v4350 = vpop.f32.mrf.mxu0
        %v4351 = vadd.f32 %v4286, %v4350
        %v4352 = vpop.f32.mrf.mxu0
        %v4353 = vpop.f32.mrf.mxu0
        %v4354 = vpop.f32.mrf.mxu0
        %4355 = vdwg.mxu0
        %v4356 = vadd.f32 %v4195, %v4351
        %v4357 = vld [vmem:[%s63] sm:$0x1]
        %v4358 = vld [vmem:[%s65] sm:$0x1]
        %v4359 = vsel %vm1236, %v4356, 0.0
        %4360 = vadd.xlane.f32.xlu0 %v4359
        %v4361 = vpop.xlane.xlu0 %4360
        %v4362 = vmul.f32 %v4361, %v1240
        %v4363 = vsub.f32 %v4356, %v4362
        %v4364 = vmul.f32 %v4363, %v4363
        %v4365 = vsel %vm1236, %v4364, 0.0
        %4366 = vadd.xlane.f32.xlu0 %v4365
        %v4367 = vpop.xlane.xlu0 %4366
        %v4368 = vmul.f32 %v4367, %v1240
        %v4369 = vadd.f32 %v4368, 1e-05
        %v4370 = vrsqrt.pop %v4369
        %v4371 = vmul.f32 %v4363, %v4370
        %v4373 = vlaneseq
        %v4374 = vshrl.u32 %v4373, 7
        %v4375 = vsub.s32 0, %v4374
        %v4376 = vrot.slane %v4357, %v4375
        %v4378 = vmul.f32 %v4371, %v4376
        %v4380 = vlaneseq
        %v4381 = vshrl.u32 %v4380, 7
        %v4382 = vsub.s32 0, %v4381
        %v4383 = vrot.slane %v4358, %v4382
        %v4385 = vadd.f32 %v4378, %v4383
        %v4386 = vld [vmem:[%s67] sm:$0xf]
        %v4387 = vld [vmem:[%s67 + $0x4] sm:$0xf]
        %v4388 = vld [vmem:[%s67 + $0x8] sm:$0xf]
        %v4389 = vld [vmem:[%s67 + $0xc] sm:$0xf]
        %v4390 = vpack.c.bf16 %v4385, %v4385
        %v4391 = vld [vmem:[%s69] sm:$0x1]
        %v4393 = vlaneseq
        %v4394 = vshrl.u32 %v4393, 7
        %v4395 = vsub.s32 0, %v4394
        %v4396 = vrot.slane %v4391, %v4395
        %v4402 = vunpack.c.l.b16 %v4386
        %v4403 = vunpack.c.l.b16 %v4387
        %v4404 = vunpack.c.l.b16 %v4388
        %v4405 = vunpack.c.l.b16 %v4389
        %v4406 = vpack.c.b16 %v4403, %v4402
        %v4407 = vpack.c.b16 %v4405, %v4404
        %v4411 = vsel %vm1236, %v4390, 0
        %4413 = vmatprep.subr.bf16.mxu0 0
        %4414 = vmatpush1.bf16.msra.mxu0 0
        %4415 = vmatprep.subr.bf16.mxu0 0
        %4416 = vmatpush1.bf16.msra.mxu0 0
        %4417 = vmatprep.subr.bf16.mxu0 0
        %4418 = vmatpush1.bf16.msra.mxu0 0
        %4419 = vmatprep.subr.bf16.mxu0 0
        %4420 = vmatpush1.bf16.msra.mxu0 0
        %4421 = vmatprep.subr.bf16.mxu0 0
        %4422 = vmatpush1.bf16.msra.mxu0 0
        %4423 = vmatprep.subr.bf16.mxu0 0
        %4424 = vmatpush1.bf16.msra.mxu0 0
        %4425 = vmatprep.subr.bf16.mxu0 0
        %4426 = vmatpush1.bf16.msra.mxu0 %v4407
        %4427 = vmatprep.subr.bf16.mxu0 0
        %4428 = vmatpush1.bf16.msra.mxu0 %v4406
        %4429 = vmatprep.subr.bf16.mxu0 0
        %4430 = vmatpush2.bf16.msra.mxu0 0
        %4431 = vmatprep.subr.bf16.mxu0 0
        %4432 = vmatpush2.bf16.msra.mxu0 0
        %4433 = vmatprep.subr.bf16.mxu0 0
        %4434 = vmatpush2.bf16.msra.mxu0 0
        %4435 = vmatprep.subr.bf16.mxu0 0
        %4436 = vmatpush2.bf16.msra.mxu0 0
        %4437 = vmatprep.subr.bf16.mxu0 0
        %4438 = vmatpush2.bf16.msra.mxu0 0
        %4439 = vmatprep.subr.bf16.mxu0 0
        %4440 = vmatpush2.bf16.msra.mxu0 0
        %4441 = vmatprep.subr.bf16.mxu0 0
        %4442 = vmatpush2.bf16.msra.mxu0 0
        %4443 = vmatprep.subr.bf16.mxu0 0
        %4444 = vmatpush2.bf16.msra.mxu0 0
        %4445 = vmatprep.mubr.bf16.mxu0 0
        %4446 = vmatmul.mubr.bf16.gmra.mxu0 %v4411
        %v4447 = vpop.f32.mrf.mxu0
        %v4448 = vadd.f32 %v4396, %v4447
        %v4449 = vpop.f32.mrf.mxu0
        %v4450 = vpop.f32.mrf.mxu0
        %v4451 = vpop.f32.mrf.mxu0
        %4452 = vdwg.mxu0
        %p4453 = scmp.eq.s32.totalorder %s93, 0
        // Predicated region
        $region161: #{brio_forward.3} parent=159 // pred_check
          %p4454 = pneg %p4453
        $region162: #{brio_forward.3} parent=159 // pred_check_branch
          %4456 = sbr.rel (%p4454) target = $region164
        $region163: #{brio_forward.3} parent=159 // pred_region
          %4457 = vst [vmem:[%s1193] sm:$0xff] %v4448
        $region164: #{brio_forward.3} parent=159 // pred_fallthru
          _
        %vm4458 = vcmask 1046528
        %v4459 = vsel %vm4458, %v4448, -inf
        %4460 = vmax.xlane.f32.xlu0 %v4459
        %v4461 = vpop.xlane.xlu0 %4460
        %v4462 = vsub.f32 %v4448, %v4461
        %v4463 = vmul.f32 %v4462, 1.442695
        %v4464 = vpow.pop %v4463
        %v4465 = vsel %vm4458, %v4464, 0.0
        %4466 = vadd.xlane.f32.xlu0 %v4465
        %v4467 = vpop.xlane.xlu0 %4466
        %v4468 = vlog2.pop %v4467
        %v4469 = vmul.f32 %v4468, 0.6931472
        %v4470 = vadd.f32 %v4461, %v4469
        %v4471 = vld [vmem:[%s1222] sm:$0x7f]
        %4472 = vset.pattern.permute.xlu0 0
        %4473 = vperm.xlu0 %4472, %v4471
        %v4474 = vpop.permute.xlu0 %4473
        %vm4475 = vcmp.eq.s32.totalorder %v1269, %v4474
        %v4476 = vsel %vm4475, %v4448, 0.0
        %v4477 = vsel %vm4458, %v4476, 0.0
        %4478 = vadd.xlane.f32.xlu0 %v4477
        %v4479 = vpop.xlane.xlu0 %4478
        %v4480 = vsub.f32 %v4479, %v4470
        %vm4481 = vcmp.ne.s32.totalorder %v4471, 0
        %v4482 = vsel %vm4481, 1, 0
        %v4483 = vcvt.s32.f32 %v4482
        %v4484 = vmul.f32 %v4480, %v4483
        %vm4485 = vcmask 6144
        %v4486 = vsel %vm4485, %v4484, 0.0
        %v4487 = vrot.slane %v4486, 4
        %v4488 = vadd.f32 %v4486, %v4487
        %v4489 = vrot.slane %v4488, 2
        %v4490 = vadd.f32 %v4488, %v4489
        %v4491 = vrot.slane %v4490, 1
        %v4492 = vadd.f32 %v4490, %v4491
        %v4493 = vsel %vm4485, %v4483, 0.0
        %v4494 = vrot.slane %v4493, 4
        %v4495 = vadd.f32 %v4493, %v4494
        %v4496 = vrot.slane %v4495, 2
        %v4497 = vadd.f32 %v4495, %v4496
        %v4498 = vrot.slane %v4497, 1
        %v4499 = vadd.f32 %v4497, %v4498
        %v4500 = vmax.f32 %v4499, 1.0
        %v4501 = vlog2.pop %v4500
        %v4502 = vmul.f32 %v4501, 0.6931472
        %v4503 = vmul.f32 %v4502, 2.0
        %v4504 = vmul.f32 %v4503, 1.442695
        %v4505 = vpow.pop %v4504
        %v4506 = vrcp.pop %v4505
        %v4507 = vmul.f32 %v4492, %v4506
        %vm4508 = vcmask 0
        %4509 = vst.msk [vmem:[%s1229] sm:$0x1] %vm4508, %v4507
        %s4510 = smul.u32 %s92, 3
        %s4511 = sadd.s32 %s4510, %s93
        %p4512 = scmp.lt.s32.totalorder %s4511, 5
        %s4513 = scalar_select %p4512, %s4511, 5
        %s4514 = scalar_lea.vmem %s71, %s4513
        %s4515 = sand.u32 %s910, 1
        %s4516 = scalar_lea.sflag [#allocation3], %s4515
        %s4517 = sand.u32 %s910, 1
        %s4518 = smul.addr %s4517, 8
        %s4519 = scalar_lea.vmem [#allocation2], %s4518
        // Predicated region
        $region165: #{brio_forward.3} parent=159 // pred_check
          %p4520 = pneg %p894
        $region166: #{brio_forward.3} parent=159 // pred_check_branch
          %4522 = sbr.rel (%p4520) target = $region168
        $region167: #{brio_forward.3} parent=159 // pred_region
          %s4523 = smul.u32 %s92, 3
          %s4524 = sadd.s32 %s4523, %s93
        $region168: #{brio_forward.3} parent=159 // pred_fallthru
          _
        // Predicated region
        $region169: #{brio_forward.3} parent=159 // pred_check
          %p4525 = pneg %p920
        $region170: #{brio_forward.3} parent=159 // pred_check_branch
          %4527 = sbr.rel (%p4525) target = $region172
        $region171: #{brio_forward.3} parent=159 // pred_region
          %s4529 = ssub.s32 128, 128
          %4530 = vsyncadd %s4516, %s4529
          %s4531 = smul.addr %s92, 128
          %s4532 = scalar_lea.hbm %s73, %s4531
          %s4534 = sshll.u32 %s4519, 4
          %s4535 = int_to_ptr.vmem [resolvable:$true] %s4534
          %4537 = dma.vmem_to_hbm [thread:$0]  %s4535, 128, %s4532, %s4516
        $region172: #{brio_forward.3} parent=159 // pred_fallthru
          _
      $region160: #{brio_forward.3} parent=5 // pred_fallthru
        _
      %p4538 = scmp.le.s32.totalorder 2, %s83
      // Predicated region
      $region173: #{brio_forward.3} parent=5 // pred_check
        %p4539 = pneg %p4538
      $region174: #{brio_forward.3} parent=5 // pred_check_branch
        %4541 = sbr.rel (%p4539) target = $region176
      $region175: #{brio_forward.3} parent=5 // pred_region
        %s4542 = ssub.s32 %s83, 2
        // Predicated region
        $region177: #{brio_forward.3} parent=175 // pred_check
          %p4543 = pneg %p900
        $region178: #{brio_forward.3} parent=175 // pred_check_branch
          %4545 = sbr.rel (%p4543) target = $region180
        $region179: #{brio_forward.3} parent=175 // pred_region
          %s4546 = smul.u32 %s94, 3
          %s4547 = sadd.s32 %s4546, %s95
          %p4548 = scmp.lt.s32.totalorder %s4547, 5
          %s4549 = scalar_select %p4548, %s4547, 5
          %s4550 = scalar_lea.vmem %s71, %s4549
        $region180: #{brio_forward.3} parent=175 // pred_fallthru
          _
        // Predicated region
        $region181: #{brio_forward.3} parent=175 // pred_check
          %p4551 = pneg %p926
        $region182: #{brio_forward.3} parent=175 // pred_check_branch
          %4553 = sbr.rel (%p4551) target = $region184
        $region183: #{brio_forward.3} parent=175 // pred_region
          %s4554 = sand.u32 %s911, 1
          %s4555 = scalar_lea.sflag [#allocation3], %s4554
          %s4556 = sand.u32 %s911, 1
          %s4557 = smul.addr %s4556, 8
          %s4558 = scalar_lea.vmem [#allocation2], %s4557
          %4559 = dma.done %s4555, 128
        $region184: #{brio_forward.3} parent=175 // pred_fallthru
          _
      $region176: #{brio_forward.3} parent=5 // pred_fallthru
        _
    $region6: #{brio_forward.3} parent=1 // loop_footer
      %s87 = sadd.s32 1, %s83
    $region7: #{brio_forward.3} parent=1 // loop_footer_branch
      %82 = sbr.rel target = $region3
    $region8: #{brio_forward.3} parent=1 // loop_exit
      _
    %4560 = vsyncpa [#allocation3], 1
    %s4561 = scalar_lea.sflag [#allocation3], 1
    %4562 = vsyncpa %s4561, 1

</llo_original>
